<compile_context>
chip_gen: v6e
topology: v6e:2x2x1
jax: 0.10.0
libtpu: 0.0.40
codegen_flags: <defaults>
</compile_context>

<pallas_src>
import functools

import numpy as np
import jax
import jax.numpy as jnp
from jax import lax
from jax.experimental import pallas as pl
from jax.experimental.pallas import tpu as pltpu

_SQRT_HALF = 0.7071067811865476
_LN_EPS = 1e-6
_NEG_INF = -1e30

_COMPILER_PARAMS = pltpu.CompilerParams(vmem_limit_bytes=32 * 1024 * 1024)


# ----------------------------------------------------------------------------
# In-kernel math helpers
# ----------------------------------------------------------------------------
def _erf_poly(x):
    # Abramowitz & Stegun 7.1.26 (|err| ~1e-7); divide moved to the EUP slot.
    ax = jnp.abs(x)
    t = pl.reciprocal(1.0 + 0.3275911 * ax, approx=True)
    poly = ((((1.061405429 * t - 1.453152027) * t + 1.421413741) * t
             - 0.284496736) * t + 0.254829592) * t
    e = 1.0 - poly * jnp.exp(-ax * ax)
    return jnp.where(x >= 0, e, -e)


def _gelu(x):
    return 0.5 * x * (1.0 + _erf_poly(x * _SQRT_HALF))


def _layer_norm(x, g, b, eps=_LN_EPS):
    mu = jnp.mean(x, axis=-1, keepdims=True)
    var = jnp.mean((x - mu) ** 2, axis=-1, keepdims=True)
    return (x - mu) * lax.rsqrt(var + eps) * g + b


def _conv3x3_bn_relu(y1, w2_ref, t2_ref, mask9, *, width):
    """3x3 conv (pad=1) + folded-BN shift + ReLU.

    One packed MXU matmul  taps = y1 @ W2_all  ([M, 9*med]), then per tap a
    pltpu.roll along the row axis + O(M) boundary-mask multiply (no O(M^2)
    shift-operator matmuls)."""
    m_rows = y1.shape[0]
    med = y1.shape[1]
    taps = jnp.dot(y1.astype(jnp.bfloat16), w2_ref[...],
                   preferred_element_type=jnp.float32)          # [M, 9*med]
    acc = taps[:, 4 * med:5 * med]                              # centre tap
    for k in range(9):
        if k == 4:
            continue
        dy, dx = k // 3 - 1, k % 3 - 1
        off = dy * width + dx                                   # source row offset
        rolled = pltpu.roll(taps[:, k * med:(k + 1) * med],
                            (-off) % m_rows, axis=0)
        acc = acc + rolled * mask9[:, k:k + 1]
    return jnp.maximum(acc + t2_ref[...], 0.0)


def _conv_block(x, w1_ref, t1_ref, w2_ref, t2_ref, w3_ref, t3_ref, mask9,
                *, width, extra=None):
    """ConvBlock: conv1+bn1+relu -> (+extra) -> conv2(3x3)+bn2+relu
    -> conv3+bn3+residual(x)+relu.  BN scales pre-folded into the weights."""
    y1 = jnp.maximum(
        jnp.dot(x.astype(jnp.bfloat16), w1_ref[...],
                preferred_element_type=jnp.float32) + t1_ref[...], 0.0)
    if extra is not None:
        y1 = y1 + extra
    x2 = _conv3x3_bn_relu(y1, w2_ref, t2_ref, mask9, width=width)
    out = jnp.maximum(
        jnp.dot(x2.astype(jnp.bfloat16), w3_ref[...],
                preferred_element_type=jnp.float32) + t3_ref[...] + x, 0.0)
    return out, x2


# ----------------------------------------------------------------------------
# The single fused kernel
# ----------------------------------------------------------------------------
def _conv_trans_kernel(
        # inputs
        x_ref, xt_ref, mask9_ref,
        cw1_ref, ct1_ref, cw2_ref, ct2_ref, cw3_ref, ct3_ref,
        wd_ref, bd_ref, lng_ref, lnb_ref,
        l1g_ref, l1b_ref, wq_ref, wk_ref, wv_ref, wp_ref, bp_ref,
        l2g_ref, l2b_ref, wf1_ref, bf1_ref, wf2_ref, bf2_ref,
        wu_ref, tu_ref,
        fw1_ref, ft1_ref, fw2_ref, ft2_ref, fw3_ref, ft3_ref,
        # outputs
        xout_ref, xtout_ref,
        # scratch
        pool_scr, z_scr, attn_scr, up_scr,
        *, batch, height, width, stride, heads, n_tok, npad):
    f32 = jnp.float32
    bf16 = jnp.bfloat16
    hw = height * width
    hs, ws = height // stride, width // stride
    n_patch = hs * ws
    mask9 = mask9_ref[...]
    x = x_ref[...]                                               # [B*H*W, Cin]

    # ---------------- cnn_block (returns x_mid and x2) ----------------
    x_mid, x2 = _conv_block(x, cw1_ref, ct1_ref, cw2_ref, ct2_ref,
                            cw3_ref, ct3_ref, mask9, width=width)

    # ---------------- FCUDown: avg-pool (rolls + row select) + project + LN + GELU
    t = x2
    for dy in range(stride):
        for dx in range(stride):
            if dy == 0 and dx == 0:
                continue
            t = t + pltpu.roll(x2, (-(dy * width + dx)) % x2.shape[0], axis=0)
    t = t * (1.0 / float(stride * stride))
    for b in range(batch):
        for yp in range(hs):
            for xp in range(ws):
                src = b * hw + (yp * stride) * width + xp * stride
                dst = b * n_patch + yp * ws + xp
                pool_scr[pl.ds(dst, 1), :] = t[src:src + 1, :]
    pooled = pool_scr[...]                                       # [B*Np, med]
    tok = jnp.dot(pooled.astype(bf16), wd_ref[...],
                  preferred_element_type=f32) + bd_ref[...]
    tok = _gelu(_layer_norm(tok, lng_ref[...], lnb_ref[...]))    # [B*Np, E]

    # ---------------- assemble z = cat([cls, tokens]) + x_t  (padded to npad)
    xt = xt_ref[...]                                             # [B*npad, E], pad rows 0
    z_scr[...] = xt
    for b in range(batch):
        r = b * npad
        z_scr[pl.ds(r, 1), :] = xt[r:r + 1, :] * 2.0             # cls: x_t[:,0]+x_t[:,0]
        z_scr[pl.ds(r + 1, n_patch), :] = (
            tok[b * n_patch:(b + 1) * n_patch, :]
            + xt[r + 1:r + 1 + n_patch, :])
    z = z_scr[...]

    # ---------------- transformer Block ----------------
    e_dim = z.shape[-1]
    hd = e_dim // heads
    scale = float(hd) ** -0.5
    n1 = _layer_norm(z, l1g_ref[...], l1b_ref[...])
    n1b = n1.astype(bf16)
    q = jnp.dot(n1b, wq_ref[...], preferred_element_type=f32) * scale
    k = jnp.dot(n1b, wk_ref[...], preferred_element_type=f32)
    v = jnp.dot(n1b, wv_ref[...], preferred_element_type=f32)
    qb, kb, vb = q.astype(bf16), k.astype(bf16), v.astype(bf16)
    col = lax.broadcasted_iota(jnp.int32, (npad, npad), 1)
    kmask = jnp.where(col < n_tok, 0.0, _NEG_INF).astype(f32)    # hoisted broadcast
    for b in range(batch):
        r0 = b * npad
        for h in range(heads):
            c0 = h * hd
            qh = qb[r0:r0 + npad, c0:c0 + hd]
            kh = kb[r0:r0 + npad, c0:c0 + hd]
            vh = vb[r0:r0 + npad, c0:c0 + hd]
            s = lax.dot_general(qh, kh, (((1,), (1,)), ((), ())),
                                preferred_element_type=f32)
            s = s + kmask
            s = s - jnp.max(s, axis=-1, keepdims=True)
            p = jnp.exp(s)
            p = p * pl.reciprocal(jnp.sum(p, axis=-1, keepdims=True), approx=True)
            attn_scr[pl.ds(r0, npad), pl.ds(c0, hd)] = jnp.dot(
                p.astype(bf16), vh, preferred_element_type=f32)
    attn = attn_scr[...]
    x1 = z + jnp.dot(attn.astype(bf16), wp_ref[...],
                     preferred_element_type=f32) + bp_ref[...]
    n2 = _layer_norm(x1, l2g_ref[...], l2b_ref[...])
    hmid = _gelu(jnp.dot(n2.astype(bf16), wf1_ref[...],
                         preferred_element_type=f32) + bf1_ref[...])
    zout = x1 + jnp.dot(hmid.astype(bf16), wf2_ref[...],
                        preferred_element_type=f32) + bf2_ref[...]
    for b in range(batch):
        xtout_ref[b] = zout[b * npad:b * npad + n_tok, :]

    # ---------------- FCUUp: project(+folded BN)+ReLU, nearest upsample ----
    proj = jnp.maximum(
        jnp.dot(zout.astype(bf16), wu_ref[...],
                preferred_element_type=f32) + tu_ref[...], 0.0)  # [B*npad, med]
    med = proj.shape[1]
    for b in range(batch):
        for yp in range(hs):
            for xp in range(ws):
                srow = b * npad + 1 + yp * ws + xp
                val = jnp.broadcast_to(proj[srow:srow + 1, :], (stride, med))
                for dy in range(stride):
                    dst = b * hw + (yp * stride + dy) * width + xp * stride
                    up_scr[pl.ds(dst, stride), :] = val
    x_t_r = up_scr[...]                                          # [B*H*W, med]

    # ---------------- fusion_block (return_x_2=False) ----------------------
    x_fin, _ = _conv_block(x_mid, fw1_ref, ft1_ref, fw2_ref, ft2_ref,
                           fw3_ref, ft3_ref, mask9, width=width, extra=x_t_r)
    xout_ref[...] = x_fin


# ----------------------------------------------------------------------------
# Host-side precompute: 3x3-conv boundary masks (O(M), not O(M^2))
# ----------------------------------------------------------------------------
def _build_tap_masks(b, h, w):
    m = np.zeros((b * h * w, 9), np.float32)
    for k in range(9):
        dy, dx = k // 3 - 1, k % 3 - 1
        for bi in range(b):
            for y in range(h):
                for x in range(w):
                    if 0 <= y + dy < h and 0 <= x + dx < w:
                        m[bi * h * w + y * w + x, k] = 1.0
    return jnp.asarray(m)


# ----------------------------------------------------------------------------
# Parameter construction (deterministic synthetic; BN folded at build time)
# ----------------------------------------------------------------------------
def _bn_affine(key, c, eps=1e-6):
    k1, k2, k3, k4 = jax.random.split(key, 4)
    gamma = 1.0 + 0.1 * jax.random.normal(k1, (c,), jnp.float32)
    beta = 0.1 * jax.random.normal(k2, (c,), jnp.float32)
    mean = 0.1 * jax.random.normal(k3, (c,), jnp.float32)
    var = 1.0 + 0.1 * jnp.abs(jax.random.normal(k4, (c,), jnp.float32))
    scale = gamma * lax.rsqrt(var + eps)
    shift = beta - mean * scale
    return scale, shift


def _conv_block_params(key, cin, cout):
    med = cout // 4
    ks = jax.random.split(key, 6)
    w1 = 0.2 * jax.random.normal(ks[0], (cin, med), jnp.float32)          # conv1 1x1
    s1, t1 = _bn_affine(ks[1], med)
    w2_t = 0.2 * jax.random.normal(ks[2], (med, med, 3, 3), jnp.float32)  # [out,in,kh,kw]
    s2, t2 = _bn_affine(ks[3], med)
    w3 = 0.2 * jax.random.normal(ks[4], (med, cout), jnp.float32)         # conv3 1x1
    s3, t3 = _bn_affine(ks[5], cout)
    # Fold BN scales; pack conv2 taps as [in, 9*out], tap-major (ky, kx).
    w2_scaled = w2_t * s2[:, None, None, None]                 # [out,in,3,3]
    w2_packed = jnp.transpose(w2_scaled, (1, 2, 3, 0)).reshape(med, 9 * med)
    return dict(w1=(w1 * s1[None, :]).astype(jnp.bfloat16),
                t1=t1.reshape(1, med),
                w2=w2_packed.astype(jnp.bfloat16),
                t2=t2.reshape(1, med),
                w3=(w3 * s3[None, :]).astype(jnp.bfloat16),
                t3=t3.reshape(1, cout))


def init_params(key, inplanes, outplanes, embed_dim, num_heads, mlp_ratio,
                batch, height, width, dw_stride):
    med = outplanes // 4
    hidden = int(embed_dim * mlp_ratio)
    keys = jax.random.split(key, 10)
    p = {}
    p["cnn"] = _conv_block_params(keys[0], inplanes, outplanes)
    p["fusion"] = _conv_block_params(keys[1], outplanes, outplanes)
    p["mask9"] = _build_tap_masks(batch, height, width)
    # FCUDown (conv_project has bias; LayerNorm affine, eps=1e-6).
    p["down_wd"] = (0.2 * jax.random.normal(keys[2], (med, embed_dim),
                                            jnp.float32)).astype(jnp.bfloat16)
    p["down_bd"] = 0.1 * jax.random.normal(keys[3], (1, embed_dim), jnp.float32)
    p["down_lng"] = (1.0 + 0.1 * jax.random.normal(keys[4], (embed_dim,),
                                                   jnp.float32)).reshape(1, embed_dim)
    p["down_lnb"] = 0.1 * jax.random.normal(keys[5], (1, embed_dim), jnp.float32)
    # FCUUp (conv bias and BN folded into shift; BN scale folded into weight).
    w_up = 0.2 * jax.random.normal(keys[6], (embed_dim, med), jnp.float32)
    b_up = 0.1 * jax.random.normal(keys[7], (med,), jnp.float32)
    s_up, t_up = _bn_affine(keys[8], med)
    p["up_w"] = (w_up * s_up[None, :]).astype(jnp.bfloat16)
    p["up_t"] = (b_up * s_up + t_up).reshape(1, med)
    # Transformer Block (qkv_bias=False; LN eps=1e-6).
    tk = jax.random.split(keys[9], 12)
    p["ln1_g"] = (1.0 + 0.1 * jax.random.normal(tk[0], (embed_dim,), jnp.float32)
                  ).reshape(1, embed_dim)
    p["ln1_b"] = 0.1 * jax.random.normal(tk[1], (1, embed_dim), jnp.float32)
    p["w_q"] = (0.2 * jax.random.normal(tk[2], (embed_dim, embed_dim),
                                        jnp.float32)).astype(jnp.bfloat16)
    p["w_k"] = (0.2 * jax.random.normal(tk[3], (embed_dim, embed_dim),
                                        jnp.float32)).astype(jnp.bfloat16)
    p["w_v"] = (0.2 * jax.random.normal(tk[4], (embed_dim, embed_dim),
                                        jnp.float32)).astype(jnp.bfloat16)
    p["w_proj"] = (0.2 * jax.random.normal(tk[5], (embed_dim, embed_dim),
                                           jnp.float32)).astype(jnp.bfloat16)
    p["b_proj"] = 0.1 * jax.random.normal(tk[6], (1, embed_dim), jnp.float32)
    p["ln2_g"] = (1.0 + 0.1 * jax.random.normal(tk[7], (embed_dim,), jnp.float32)
                  ).reshape(1, embed_dim)
    p["ln2_b"] = 0.1 * jax.random.normal(tk[8], (1, embed_dim), jnp.float32)
    p["w_fc1"] = (0.2 * jax.random.normal(tk[9], (embed_dim, hidden),
                                          jnp.float32)).astype(jnp.bfloat16)
    p["b_fc1"] = 0.1 * jax.random.normal(tk[10], (1, hidden), jnp.float32)
    p["w_fc2"] = (0.2 * jax.random.normal(tk[11], (hidden, embed_dim),
                                          jnp.float32)).astype(jnp.bfloat16)
    p["b_fc2"] = jnp.zeros((1, embed_dim), jnp.float32)
    return p


# ----------------------------------------------------------------------------
# Forward pass (mirrors ConvTransBlock.forward, stride=1, res_conv=False,
# num_med_block=0, last_fusion=False, drop rates 0)
# ----------------------------------------------------------------------------
def conv_trans_block_forward(p, x_nchw, x_t, *, dw_stride, num_heads):
    b, cin, h, w = x_nchw.shape
    _, n_tok, e = x_t.shape
    cout = p["cnn"]["w3"].shape[1]
    med = p["cnn"]["w1"].shape[1]
    hs, ws = h // dw_stride, w // dw_stride
    npad = ((n_tok + 15) // 16) * 16      # bf16 sublane-tile friendly padding

    x_rows = jnp.transpose(x_nchw, (0, 2, 3, 1)).reshape(b * h * w, cin)
    x_rows = x_rows.astype(jnp.float32)
    xt_pad = jnp.zeros((b, npad, e), jnp.float32).at[:, :n_tok, :].set(
        x_t.astype(jnp.float32)).reshape(b * npad, e)

    kernel = functools.partial(_conv_trans_kernel, batch=b, height=h, width=w,
                               stride=dw_stride, heads=num_heads,
                               n_tok=n_tok, npad=npad)
    x_out_rows, x_t_new = pl.pallas_call(
        kernel,
        out_shape=(jax.ShapeDtypeStruct((b * h * w, cout), jnp.float32),
                   jax.ShapeDtypeStruct((b, n_tok, e), jnp.float32)),
        scratch_shapes=[
            pltpu.VMEM((b * hs * ws, med), jnp.float32),     # pooled tokens
            pltpu.VMEM((b * npad, e), jnp.float32),          # z slab
            pltpu.VMEM((b * npad, e), jnp.float32),          # attention out
            pltpu.VMEM((b * h * w, med), jnp.float32),       # upsampled x_t_r
        ],
        compiler_params=_COMPILER_PARAMS,
    )(x_rows, xt_pad, p["mask9"],
      p["cnn"]["w1"], p["cnn"]["t1"], p["cnn"]["w2"], p["cnn"]["t2"],
      p["cnn"]["w3"], p["cnn"]["t3"],
      p["down_wd"], p["down_bd"], p["down_lng"], p["down_lnb"],
      p["ln1_g"], p["ln1_b"], p["w_q"], p["w_k"], p["w_v"], p["w_proj"],
      p["b_proj"], p["ln2_g"], p["ln2_b"], p["w_fc1"], p["b_fc1"],
      p["w_fc2"], p["b_fc2"],
      p["up_w"], p["up_t"],
      p["fusion"]["w1"], p["fusion"]["t1"], p["fusion"]["w2"], p["fusion"]["t2"],
      p["fusion"]["w3"], p["fusion"]["t3"])

    x_out = jnp.transpose(x_out_rows.reshape(b, h, w, cout), (0, 3, 1, 2))
    return x_out, x_t_new


if __name__ == "__main__":
    # ConvTransBlock(inplanes=16, outplanes=16, res_conv=False, stride=1,
    #                dw_stride=2, embed_dim=32, num_heads=4, mlp_ratio=4.0)
    B, C_IN, C_OUT, H, W = 2, 16, 16, 8, 8
    DW_STRIDE, EMBED_DIM, NUM_HEADS, MLP_RATIO = 2, 32, 4, 4.0

    key = jax.random.PRNGKey(0)
    kp, kx, kt = jax.random.split(key, 3)
    params = init_params(kp, C_IN, C_OUT, EMBED_DIM, NUM_HEADS, MLP_RATIO,
                         B, H, W, DW_STRIDE)

    x = jax.random.normal(kx, (B, C_IN, H, W), jnp.float32)
    n_tok = 1 + (H // DW_STRIDE) * (W // DW_STRIDE)
    x_t = jax.random.normal(kt, (B, n_tok, EMBED_DIM), jnp.float32)

    fwd = jax.jit(functools.partial(conv_trans_block_forward,
                                    dw_stride=DW_STRIDE, num_heads=NUM_HEADS))
    x_out, x_t_out = fwd(params, x, x_t)
    jax.block_until_ready((x_out, x_t_out))
    assert x_out.shape == (B, C_OUT, H, W)
    assert x_t_out.shape == (B, n_tok, EMBED_DIM)
    print("KERNEL_OK")
</pallas_src>

<mosaic_0001>
module attributes {stable_mosaic.version = 11 : i64} {
  func.func @_conv_trans_kernel(%arg0: memref<128x16xf32, #tpu.memory_space<vmem>>, %arg1: memref<64x32xf32, #tpu.memory_space<vmem>>, %arg2: memref<128x9xf32, #tpu.memory_space<vmem>>, %arg3: memref<16x4xbf16, #tpu.memory_space<vmem>>, %arg4: memref<1x4xf32, #tpu.memory_space<vmem>>, %arg5: memref<4x36xbf16, #tpu.memory_space<vmem>>, %arg6: memref<1x4xf32, #tpu.memory_space<vmem>>, %arg7: memref<4x16xbf16, #tpu.memory_space<vmem>>, %arg8: memref<1x16xf32, #tpu.memory_space<vmem>>, %arg9: memref<4x32xbf16, #tpu.memory_space<vmem>>, %arg10: memref<1x32xf32, #tpu.memory_space<vmem>>, %arg11: memref<1x32xf32, #tpu.memory_space<vmem>>, %arg12: memref<1x32xf32, #tpu.memory_space<vmem>>, %arg13: memref<1x32xf32, #tpu.memory_space<vmem>>, %arg14: memref<1x32xf32, #tpu.memory_space<vmem>>, %arg15: memref<32x32xbf16, #tpu.memory_space<vmem>>, %arg16: memref<32x32xbf16, #tpu.memory_space<vmem>>, %arg17: memref<32x32xbf16, #tpu.memory_space<vmem>>, %arg18: memref<32x32xbf16, #tpu.memory_space<vmem>>, %arg19: memref<1x32xf32, #tpu.memory_space<vmem>>, %arg20: memref<1x32xf32, #tpu.memory_space<vmem>>, %arg21: memref<1x32xf32, #tpu.memory_space<vmem>>, %arg22: memref<32x128xbf16, #tpu.memory_space<vmem>>, %arg23: memref<1x128xf32, #tpu.memory_space<vmem>>, %arg24: memref<128x32xbf16, #tpu.memory_space<vmem>>, %arg25: memref<1x32xf32, #tpu.memory_space<vmem>>, %arg26: memref<32x4xbf16, #tpu.memory_space<vmem>>, %arg27: memref<1x4xf32, #tpu.memory_space<vmem>>, %arg28: memref<16x4xbf16, #tpu.memory_space<vmem>>, %arg29: memref<1x4xf32, #tpu.memory_space<vmem>>, %arg30: memref<4x36xbf16, #tpu.memory_space<vmem>>, %arg31: memref<1x4xf32, #tpu.memory_space<vmem>>, %arg32: memref<4x16xbf16, #tpu.memory_space<vmem>>, %arg33: memref<1x16xf32, #tpu.memory_space<vmem>>, %arg34: memref<128x16xf32, #tpu.memory_space<vmem>>, %arg35: memref<2x17x32xf32, #tpu.memory_space<vmem>>, %arg36: memref<32x4xf32, #tpu.memory_space<vmem>>, %arg37: memref<64x32xf32, #tpu.memory_space<vmem>>, %arg38: memref<64x32xf32, #tpu.memory_space<vmem>>, %arg39: memref<128x4xf32, #tpu.memory_space<vmem>>) attributes {dimension_semantics = [], scalar_prefetch = 0 : i64, scratch_operands = 4 : i64, tpu.core_type = #tpu.core_type<tc>} {
    %c0 = arith.constant 0 : index
    %c0_0 = arith.constant 0 : index
    %0 = vector.load %arg2[%c0, %c0_0] : memref<128x9xf32, #tpu.memory_space<vmem>>, vector<128x9xf32>
    %c0_1 = arith.constant 0 : index
    %c0_2 = arith.constant 0 : index
    %1 = vector.load %arg0[%c0_1, %c0_2] : memref<128x16xf32, #tpu.memory_space<vmem>>, vector<128x16xf32>
    %2 = arith.truncf %1 : vector<128x16xf32> to vector<128x16xbf16>
    %c0_3 = arith.constant 0 : index
    %c0_4 = arith.constant 0 : index
    %3 = vector.load %arg3[%c0_3, %c0_4] : memref<16x4xbf16, #tpu.memory_space<vmem>>, vector<16x4xbf16>
    %cst = arith.constant dense<0.000000e+00> : vector<128x4xf32>
    %4 = tpu.matmul %2, %3, %cst {dimension_numbers = #tpu.dot_dimension_numbers<[1], [0], [0], [1], [0, 0, 1, 1], [], []>} : vector<128x16xbf16>, vector<16x4xbf16>, vector<128x4xf32> -> vector<128x4xf32>
    %c0_5 = arith.constant 0 : index
    %c0_6 = arith.constant 0 : index
    %5 = vector.load %arg4[%c0_5, %c0_6] : memref<1x4xf32, #tpu.memory_space<vmem>>, vector<1x4xf32>
    %6 = vector.broadcast %5 : vector<1x4xf32> to vector<128x4xf32>
    %7 = arith.addf %4, %6 : vector<128x4xf32>
    %cst_7 = arith.constant 0.000000e+00 : f32
    %8 = vector.broadcast %cst_7 : f32 to vector<128x4xf32>
    %9 = arith.maximumf %7, %8 : vector<128x4xf32>
    %10 = arith.truncf %9 : vector<128x4xf32> to vector<128x4xbf16>
    %c0_8 = arith.constant 0 : index
    %c0_9 = arith.constant 0 : index
    %11 = vector.load %arg5[%c0_8, %c0_9] : memref<4x36xbf16, #tpu.memory_space<vmem>>, vector<4x36xbf16>
    %cst_10 = arith.constant dense<0.000000e+00> : vector<128x36xf32>
    %12 = tpu.matmul %10, %11, %cst_10 {dimension_numbers = #tpu.dot_dimension_numbers<[1], [0], [0], [1], [0, 0, 1, 1], [], []>} : vector<128x4xbf16>, vector<4x36xbf16>, vector<128x36xf32> -> vector<128x36xf32>
    %13 = vector.extract_strided_slice %12 {offsets = [0, 16], sizes = [128, 4], strides = [1, 1]} : vector<128x36xf32> to vector<128x4xf32>
    %14 = vector.extract_strided_slice %12 {offsets = [0, 0], sizes = [128, 4], strides = [1, 1]} : vector<128x36xf32> to vector<128x4xf32>
    %c9_i32 = arith.constant 9 : i32
    %15 = tpu.dynamic_rotate %14 by %c9_i32 dim 0 : vector<128x4xf32>, i32 -> vector<128x4xf32>
    %16 = vector.extract_strided_slice %0 {offsets = [0, 0], sizes = [128, 1], strides = [1, 1]} : vector<128x9xf32> to vector<128x1xf32>
    %17 = vector.broadcast %16 : vector<128x1xf32> to vector<128x4xf32>
    %18 = arith.mulf %15, %17 : vector<128x4xf32>
    %19 = arith.addf %13, %18 : vector<128x4xf32>
    %20 = vector.extract_strided_slice %12 {offsets = [0, 4], sizes = [128, 4], strides = [1, 1]} : vector<128x36xf32> to vector<128x4xf32>
    %c8_i32 = arith.constant 8 : i32
    %21 = tpu.dynamic_rotate %20 by %c8_i32 dim 0 : vector<128x4xf32>, i32 -> vector<128x4xf32>
    %22 = vector.extract_strided_slice %0 {offsets = [0, 1], sizes = [128, 1], strides = [1, 1]} : vector<128x9xf32> to vector<128x1xf32>
    %23 = vector.broadcast %22 : vector<128x1xf32> to vector<128x4xf32>
    %24 = arith.mulf %21, %23 : vector<128x4xf32>
    %25 = arith.addf %19, %24 : vector<128x4xf32>
    %26 = vector.extract_strided_slice %12 {offsets = [0, 8], sizes = [128, 4], strides = [1, 1]} : vector<128x36xf32> to vector<128x4xf32>
    %c7_i32 = arith.constant 7 : i32
    %27 = tpu.dynamic_rotate %26 by %c7_i32 dim 0 : vector<128x4xf32>, i32 -> vector<128x4xf32>
    %28 = vector.extract_strided_slice %0 {offsets = [0, 2], sizes = [128, 1], strides = [1, 1]} : vector<128x9xf32> to vector<128x1xf32>
    %29 = vector.broadcast %28 : vector<128x1xf32> to vector<128x4xf32>
    %30 = arith.mulf %27, %29 : vector<128x4xf32>
    %31 = arith.addf %25, %30 : vector<128x4xf32>
    %32 = vector.extract_strided_slice %12 {offsets = [0, 12], sizes = [128, 4], strides = [1, 1]} : vector<128x36xf32> to vector<128x4xf32>
    %c1_i32 = arith.constant 1 : i32
    %33 = tpu.dynamic_rotate %32 by %c1_i32 dim 0 : vector<128x4xf32>, i32 -> vector<128x4xf32>
    %34 = vector.extract_strided_slice %0 {offsets = [0, 3], sizes = [128, 1], strides = [1, 1]} : vector<128x9xf32> to vector<128x1xf32>
    %35 = vector.broadcast %34 : vector<128x1xf32> to vector<128x4xf32>
    %36 = arith.mulf %33, %35 : vector<128x4xf32>
    %37 = arith.addf %31, %36 : vector<128x4xf32>
    %38 = vector.extract_strided_slice %12 {offsets = [0, 20], sizes = [128, 4], strides = [1, 1]} : vector<128x36xf32> to vector<128x4xf32>
    %c127_i32 = arith.constant 127 : i32
    %39 = tpu.dynamic_rotate %38 by %c127_i32 dim 0 : vector<128x4xf32>, i32 -> vector<128x4xf32>
    %40 = vector.extract_strided_slice %0 {offsets = [0, 5], sizes = [128, 1], strides = [1, 1]} : vector<128x9xf32> to vector<128x1xf32>
    %41 = vector.broadcast %40 : vector<128x1xf32> to vector<128x4xf32>
    %42 = arith.mulf %39, %41 : vector<128x4xf32>
    %43 = arith.addf %37, %42 : vector<128x4xf32>
    %44 = vector.extract_strided_slice %12 {offsets = [0, 24], sizes = [128, 4], strides = [1, 1]} : vector<128x36xf32> to vector<128x4xf32>
    %c121_i32 = arith.constant 121 : i32
    %45 = tpu.dynamic_rotate %44 by %c121_i32 dim 0 : vector<128x4xf32>, i32 -> vector<128x4xf32>
    %46 = vector.extract_strided_slice %0 {offsets = [0, 6], sizes = [128, 1], strides = [1, 1]} : vector<128x9xf32> to vector<128x1xf32>
    %47 = vector.broadcast %46 : vector<128x1xf32> to vector<128x4xf32>
    %48 = arith.mulf %45, %47 : vector<128x4xf32>
    %49 = arith.addf %43, %48 : vector<128x4xf32>
    %50 = vector.extract_strided_slice %12 {offsets = [0, 28], sizes = [128, 4], strides = [1, 1]} : vector<128x36xf32> to vector<128x4xf32>
    %c120_i32 = arith.constant 120 : i32
    %51 = tpu.dynamic_rotate %50 by %c120_i32 dim 0 : vector<128x4xf32>, i32 -> vector<128x4xf32>
    %52 = vector.extract_strided_slice %0 {offsets = [0, 7], sizes = [128, 1], strides = [1, 1]} : vector<128x9xf32> to vector<128x1xf32>
    %53 = vector.broadcast %52 : vector<128x1xf32> to vector<128x4xf32>
    %54 = arith.mulf %51, %53 : vector<128x4xf32>
    %55 = arith.addf %49, %54 : vector<128x4xf32>
    %56 = vector.extract_strided_slice %12 {offsets = [0, 32], sizes = [128, 4], strides = [1, 1]} : vector<128x36xf32> to vector<128x4xf32>
    %c119_i32 = arith.constant 119 : i32
    %57 = tpu.dynamic_rotate %56 by %c119_i32 dim 0 : vector<128x4xf32>, i32 -> vector<128x4xf32>
    %58 = vector.extract_strided_slice %0 {offsets = [0, 8], sizes = [128, 1], strides = [1, 1]} : vector<128x9xf32> to vector<128x1xf32>
    %59 = vector.broadcast %58 : vector<128x1xf32> to vector<128x4xf32>
    %60 = arith.mulf %57, %59 : vector<128x4xf32>
    %61 = arith.addf %55, %60 : vector<128x4xf32>
    %c0_11 = arith.constant 0 : index
    %c0_12 = arith.constant 0 : index
    %62 = vector.load %arg6[%c0_11, %c0_12] : memref<1x4xf32, #tpu.memory_space<vmem>>, vector<1x4xf32>
    %63 = vector.broadcast %62 : vector<1x4xf32> to vector<128x4xf32>
    %64 = arith.addf %61, %63 : vector<128x4xf32>
    %cst_13 = arith.constant 0.000000e+00 : f32
    %65 = vector.broadcast %cst_13 : f32 to vector<128x4xf32>
    %66 = arith.maximumf %64, %65 : vector<128x4xf32>
    %67 = arith.truncf %66 : vector<128x4xf32> to vector<128x4xbf16>
    %c0_14 = arith.constant 0 : index
    %c0_15 = arith.constant 0 : index
    %68 = vector.load %arg7[%c0_14, %c0_15] : memref<4x16xbf16, #tpu.memory_space<vmem>>, vector<4x16xbf16>
    %cst_16 = arith.constant dense<0.000000e+00> : vector<128x16xf32>
    %69 = tpu.matmul %67, %68, %cst_16 {dimension_numbers = #tpu.dot_dimension_numbers<[1], [0], [0], [1], [0, 0, 1, 1], [], []>} : vector<128x4xbf16>, vector<4x16xbf16>, vector<128x16xf32> -> vector<128x16xf32>
    %c0_17 = arith.constant 0 : index
    %c0_18 = arith.constant 0 : index
    %70 = vector.load %arg8[%c0_17, %c0_18] : memref<1x16xf32, #tpu.memory_space<vmem>>, vector<1x16xf32>
    %71 = vector.broadcast %70 : vector<1x16xf32> to vector<128x16xf32>
    %72 = arith.addf %69, %71 : vector<128x16xf32>
    %73 = arith.addf %72, %1 : vector<128x16xf32>
    %cst_19 = arith.constant 0.000000e+00 : f32
    %74 = vector.broadcast %cst_19 : f32 to vector<128x16xf32>
    %75 = arith.maximumf %73, %74 : vector<128x16xf32>
    %c127_i32_20 = arith.constant 127 : i32
    %76 = tpu.dynamic_rotate %66 by %c127_i32_20 dim 0 : vector<128x4xf32>, i32 -> vector<128x4xf32>
    %77 = arith.addf %66, %76 : vector<128x4xf32>
    %c120_i32_21 = arith.constant 120 : i32
    %78 = tpu.dynamic_rotate %66 by %c120_i32_21 dim 0 : vector<128x4xf32>, i32 -> vector<128x4xf32>
    %79 = arith.addf %77, %78 : vector<128x4xf32>
    %c119_i32_22 = arith.constant 119 : i32
    %80 = tpu.dynamic_rotate %66 by %c119_i32_22 dim 0 : vector<128x4xf32>, i32 -> vector<128x4xf32>
    %81 = arith.addf %79, %80 : vector<128x4xf32>
    %cst_23 = arith.constant 2.500000e-01 : f32
    %82 = vector.broadcast %cst_23 : f32 to vector<128x4xf32>
    %83 = arith.mulf %81, %82 : vector<128x4xf32>
    %84 = vector.extract_strided_slice %83 {offsets = [0, 0], sizes = [1, 4], strides = [1, 1]} : vector<128x4xf32> to vector<1x4xf32>
    %c0_24 = arith.constant 0 : index
    %c0_25 = arith.constant 0 : index
    %85 = vector.load %arg36[%c0_24, %c0_25] : memref<32x4xf32, #tpu.memory_space<vmem>>, vector<1x4xf32>
    tpu.vector_store %arg36[%c0_24, %c0_25], %84 {strides = array<i32>} : memref<32x4xf32, #tpu.memory_space<vmem>>, vector<1x4xf32>,
    %86 = vector.extract_strided_slice %83 {offsets = [2, 0], sizes = [1, 4], strides = [1, 1]} : vector<128x4xf32> to vector<1x4xf32>
    %c1 = arith.constant 1 : index
    %c0_26 = arith.constant 0 : index
    %87 = vector.load %arg36[%c1, %c0_26] : memref<32x4xf32, #tpu.memory_space<vmem>>, vector<1x4xf32>
    tpu.vector_store %arg36[%c1, %c0_26], %86 {strides = array<i32>} : memref<32x4xf32, #tpu.memory_space<vmem>>, vector<1x4xf32>,
    %88 = vector.extract_strided_slice %83 {offsets = [4, 0], sizes = [1, 4], strides = [1, 1]} : vector<128x4xf32> to vector<1x4xf32>
    %c2 = arith.constant 2 : index
    %c0_27 = arith.constant 0 : index
    %89 = vector.load %arg36[%c2, %c0_27] : memref<32x4xf32, #tpu.memory_space<vmem>>, vector<1x4xf32>
    tpu.vector_store %arg36[%c2, %c0_27], %88 {strides = array<i32>} : memref<32x4xf32, #tpu.memory_space<vmem>>, vector<1x4xf32>,
    %90 = vector.extract_strided_slice %83 {offsets = [6, 0], sizes = [1, 4], strides = [1, 1]} : vector<128x4xf32> to vector<1x4xf32>
    %c3 = arith.constant 3 : index
    %c0_28 = arith.constant 0 : index
    %91 = vector.load %arg36[%c3, %c0_28] : memref<32x4xf32, #tpu.memory_space<vmem>>, vector<1x4xf32>
    tpu.vector_store %arg36[%c3, %c0_28], %90 {strides = array<i32>} : memref<32x4xf32, #tpu.memory_space<vmem>>, vector<1x4xf32>,
    %92 = vector.extract_strided_slice %83 {offsets = [16, 0], sizes = [1, 4], strides = [1, 1]} : vector<128x4xf32> to vector<1x4xf32>
    %c4 = arith.constant 4 : index
    %c0_29 = arith.constant 0 : index
    %93 = vector.load %arg36[%c4, %c0_29] : memref<32x4xf32, #tpu.memory_space<vmem>>, vector<1x4xf32>
    tpu.vector_store %arg36[%c4, %c0_29], %92 {strides = array<i32>} : memref<32x4xf32, #tpu.memory_space<vmem>>, vector<1x4xf32>,
    %94 = vector.extract_strided_slice %83 {offsets = [18, 0], sizes = [1, 4], strides = [1, 1]} : vector<128x4xf32> to vector<1x4xf32>
    %c5 = arith.constant 5 : index
    %c0_30 = arith.constant 0 : index
    %95 = vector.load %arg36[%c5, %c0_30] : memref<32x4xf32, #tpu.memory_space<vmem>>, vector<1x4xf32>
    tpu.vector_store %arg36[%c5, %c0_30], %94 {strides = array<i32>} : memref<32x4xf32, #tpu.memory_space<vmem>>, vector<1x4xf32>,
    %96 = vector.extract_strided_slice %83 {offsets = [20, 0], sizes = [1, 4], strides = [1, 1]} : vector<128x4xf32> to vector<1x4xf32>
    %c6 = arith.constant 6 : index
    %c0_31 = arith.constant 0 : index
    %97 = vector.load %arg36[%c6, %c0_31] : memref<32x4xf32, #tpu.memory_space<vmem>>, vector<1x4xf32>
    tpu.vector_store %arg36[%c6, %c0_31], %96 {strides = array<i32>} : memref<32x4xf32, #tpu.memory_space<vmem>>, vector<1x4xf32>,
    %98 = vector.extract_strided_slice %83 {offsets = [22, 0], sizes = [1, 4], strides = [1, 1]} : vector<128x4xf32> to vector<1x4xf32>
    %c7 = arith.constant 7 : index
    %c0_32 = arith.constant 0 : index
    %99 = vector.load %arg36[%c7, %c0_32] : memref<32x4xf32, #tpu.memory_space<vmem>>, vector<1x4xf32>
    tpu.vector_store %arg36[%c7, %c0_32], %98 {strides = array<i32>} : memref<32x4xf32, #tpu.memory_space<vmem>>, vector<1x4xf32>,
    %100 = vector.extract_strided_slice %83 {offsets = [32, 0], sizes = [1, 4], strides = [1, 1]} : vector<128x4xf32> to vector<1x4xf32>
    %c8 = arith.constant 8 : index
    %c0_33 = arith.constant 0 : index
    %101 = vector.load %arg36[%c8, %c0_33] : memref<32x4xf32, #tpu.memory_space<vmem>>, vector<1x4xf32>
    tpu.vector_store %arg36[%c8, %c0_33], %100 {strides = array<i32>} : memref<32x4xf32, #tpu.memory_space<vmem>>, vector<1x4xf32>,
    %102 = vector.extract_strided_slice %83 {offsets = [34, 0], sizes = [1, 4], strides = [1, 1]} : vector<128x4xf32> to vector<1x4xf32>
    %c9 = arith.constant 9 : index
    %c0_34 = arith.constant 0 : index
    %103 = vector.load %arg36[%c9, %c0_34] : memref<32x4xf32, #tpu.memory_space<vmem>>, vector<1x4xf32>
    tpu.vector_store %arg36[%c9, %c0_34], %102 {strides = array<i32>} : memref<32x4xf32, #tpu.memory_space<vmem>>, vector<1x4xf32>,
    %104 = vector.extract_strided_slice %83 {offsets = [36, 0], sizes = [1, 4], strides = [1, 1]} : vector<128x4xf32> to vector<1x4xf32>
    %c10 = arith.constant 10 : index
    %c0_35 = arith.constant 0 : index
    %105 = vector.load %arg36[%c10, %c0_35] : memref<32x4xf32, #tpu.memory_space<vmem>>, vector<1x4xf32>
    tpu.vector_store %arg36[%c10, %c0_35], %104 {strides = array<i32>} : memref<32x4xf32, #tpu.memory_space<vmem>>, vector<1x4xf32>,
    %106 = vector.extract_strided_slice %83 {offsets = [38, 0], sizes = [1, 4], strides = [1, 1]} : vector<128x4xf32> to vector<1x4xf32>
    %c11 = arith.constant 11 : index
    %c0_36 = arith.constant 0 : index
    %107 = vector.load %arg36[%c11, %c0_36] : memref<32x4xf32, #tpu.memory_space<vmem>>, vector<1x4xf32>
    tpu.vector_store %arg36[%c11, %c0_36], %106 {strides = array<i32>} : memref<32x4xf32, #tpu.memory_space<vmem>>, vector<1x4xf32>,
    %108 = vector.extract_strided_slice %83 {offsets = [48, 0], sizes = [1, 4], strides = [1, 1]} : vector<128x4xf32> to vector<1x4xf32>
    %c12 = arith.constant 12 : index
    %c0_37 = arith.constant 0 : index
    %109 = vector.load %arg36[%c12, %c0_37] : memref<32x4xf32, #tpu.memory_space<vmem>>, vector<1x4xf32>
    tpu.vector_store %arg36[%c12, %c0_37], %108 {strides = array<i32>} : memref<32x4xf32, #tpu.memory_space<vmem>>, vector<1x4xf32>,
    %110 = vector.extract_strided_slice %83 {offsets = [50, 0], sizes = [1, 4], strides = [1, 1]} : vector<128x4xf32> to vector<1x4xf32>
    %c13 = arith.constant 13 : index
    %c0_38 = arith.constant 0 : index
    %111 = vector.load %arg36[%c13, %c0_38] : memref<32x4xf32, #tpu.memory_space<vmem>>, vector<1x4xf32>
    tpu.vector_store %arg36[%c13, %c0_38], %110 {strides = array<i32>} : memref<32x4xf32, #tpu.memory_space<vmem>>, vector<1x4xf32>,
    %112 = vector.extract_strided_slice %83 {offsets = [52, 0], sizes = [1, 4], strides = [1, 1]} : vector<128x4xf32> to vector<1x4xf32>
    %c14 = arith.constant 14 : index
    %c0_39 = arith.constant 0 : index
    %113 = vector.load %arg36[%c14, %c0_39] : memref<32x4xf32, #tpu.memory_space<vmem>>, vector<1x4xf32>
    tpu.vector_store %arg36[%c14, %c0_39], %112 {strides = array<i32>} : memref<32x4xf32, #tpu.memory_space<vmem>>, vector<1x4xf32>,
    %114 = vector.extract_strided_slice %83 {offsets = [54, 0], sizes = [1, 4], strides = [1, 1]} : vector<128x4xf32> to vector<1x4xf32>
    %c15 = arith.constant 15 : index
    %c0_40 = arith.constant 0 : index
    %115 = vector.load %arg36[%c15, %c0_40] : memref<32x4xf32, #tpu.memory_space<vmem>>, vector<1x4xf32>
    tpu.vector_store %arg36[%c15, %c0_40], %114 {strides = array<i32>} : memref<32x4xf32, #tpu.memory_space<vmem>>, vector<1x4xf32>,
    %116 = vector.extract_strided_slice %83 {offsets = [64, 0], sizes = [1, 4], strides = [1, 1]} : vector<128x4xf32> to vector<1x4xf32>
    %c16 = arith.constant 16 : index
    %c0_41 = arith.constant 0 : index
    %117 = vector.load %arg36[%c16, %c0_41] : memref<32x4xf32, #tpu.memory_space<vmem>>, vector<1x4xf32>
    tpu.vector_store %arg36[%c16, %c0_41], %116 {strides = array<i32>} : memref<32x4xf32, #tpu.memory_space<vmem>>, vector<1x4xf32>,
    %118 = vector.extract_strided_slice %83 {offsets = [66, 0], sizes = [1, 4], strides = [1, 1]} : vector<128x4xf32> to vector<1x4xf32>
    %c17 = arith.constant 17 : index
    %c0_42 = arith.constant 0 : index
    %119 = vector.load %arg36[%c17, %c0_42] : memref<32x4xf32, #tpu.memory_space<vmem>>, vector<1x4xf32>
    tpu.vector_store %arg36[%c17, %c0_42], %118 {strides = array<i32>} : memref<32x4xf32, #tpu.memory_space<vmem>>, vector<1x4xf32>,
    %120 = vector.extract_strided_slice %83 {offsets = [68, 0], sizes = [1, 4], strides = [1, 1]} : vector<128x4xf32> to vector<1x4xf32>
    %c18 = arith.constant 18 : index
    %c0_43 = arith.constant 0 : index
    %121 = vector.load %arg36[%c18, %c0_43] : memref<32x4xf32, #tpu.memory_space<vmem>>, vector<1x4xf32>
    tpu.vector_store %arg36[%c18, %c0_43], %120 {strides = array<i32>} : memref<32x4xf32, #tpu.memory_space<vmem>>, vector<1x4xf32>,
    %122 = vector.extract_strided_slice %83 {offsets = [70, 0], sizes = [1, 4], strides = [1, 1]} : vector<128x4xf32> to vector<1x4xf32>
    %c19 = arith.constant 19 : index
    %c0_44 = arith.constant 0 : index
    %123 = vector.load %arg36[%c19, %c0_44] : memref<32x4xf32, #tpu.memory_space<vmem>>, vector<1x4xf32>
    tpu.vector_store %arg36[%c19, %c0_44], %122 {strides = array<i32>} : memref<32x4xf32, #tpu.memory_space<vmem>>, vector<1x4xf32>,
    %124 = vector.extract_strided_slice %83 {offsets = [80, 0], sizes = [1, 4], strides = [1, 1]} : vector<128x4xf32> to vector<1x4xf32>
    %c20 = arith.constant 20 : index
    %c0_45 = arith.constant 0 : index
    %125 = vector.load %arg36[%c20, %c0_45] : memref<32x4xf32, #tpu.memory_space<vmem>>, vector<1x4xf32>
    tpu.vector_store %arg36[%c20, %c0_45], %124 {strides = array<i32>} : memref<32x4xf32, #tpu.memory_space<vmem>>, vector<1x4xf32>,
    %126 = vector.extract_strided_slice %83 {offsets = [82, 0], sizes = [1, 4], strides = [1, 1]} : vector<128x4xf32> to vector<1x4xf32>
    %c21 = arith.constant 21 : index
    %c0_46 = arith.constant 0 : index
    %127 = vector.load %arg36[%c21, %c0_46] : memref<32x4xf32, #tpu.memory_space<vmem>>, vector<1x4xf32>
    tpu.vector_store %arg36[%c21, %c0_46], %126 {strides = array<i32>} : memref<32x4xf32, #tpu.memory_space<vmem>>, vector<1x4xf32>,
    %128 = vector.extract_strided_slice %83 {offsets = [84, 0], sizes = [1, 4], strides = [1, 1]} : vector<128x4xf32> to vector<1x4xf32>
    %c22 = arith.constant 22 : index
    %c0_47 = arith.constant 0 : index
    %129 = vector.load %arg36[%c22, %c0_47] : memref<32x4xf32, #tpu.memory_space<vmem>>, vector<1x4xf32>
    tpu.vector_store %arg36[%c22, %c0_47], %128 {strides = array<i32>} : memref<32x4xf32, #tpu.memory_space<vmem>>, vector<1x4xf32>,
    %130 = vector.extract_strided_slice %83 {offsets = [86, 0], sizes = [1, 4], strides = [1, 1]} : vector<128x4xf32> to vector<1x4xf32>
    %c23 = arith.constant 23 : index
    %c0_48 = arith.constant 0 : index
    %131 = vector.load %arg36[%c23, %c0_48] : memref<32x4xf32, #tpu.memory_space<vmem>>, vector<1x4xf32>
    tpu.vector_store %arg36[%c23, %c0_48], %130 {strides = array<i32>} : memref<32x4xf32, #tpu.memory_space<vmem>>, vector<1x4xf32>,
    %132 = vector.extract_strided_slice %83 {offsets = [96, 0], sizes = [1, 4], strides = [1, 1]} : vector<128x4xf32> to vector<1x4xf32>
    %c24 = arith.constant 24 : index
    %c0_49 = arith.constant 0 : index
    %133 = vector.load %arg36[%c24, %c0_49] : memref<32x4xf32, #tpu.memory_space<vmem>>, vector<1x4xf32>
    tpu.vector_store %arg36[%c24, %c0_49], %132 {strides = array<i32>} : memref<32x4xf32, #tpu.memory_space<vmem>>, vector<1x4xf32>,
    %134 = vector.extract_strided_slice %83 {offsets = [98, 0], sizes = [1, 4], strides = [1, 1]} : vector<128x4xf32> to vector<1x4xf32>
    %c25 = arith.constant 25 : index
    %c0_50 = arith.constant 0 : index
    %135 = vector.load %arg36[%c25, %c0_50] : memref<32x4xf32, #tpu.memory_space<vmem>>, vector<1x4xf32>
    tpu.vector_store %arg36[%c25, %c0_50], %134 {strides = array<i32>} : memref<32x4xf32, #tpu.memory_space<vmem>>, vector<1x4xf32>,
    %136 = vector.extract_strided_slice %83 {offsets = [100, 0], sizes = [1, 4], strides = [1, 1]} : vector<128x4xf32> to vector<1x4xf32>
    %c26 = arith.constant 26 : index
    %c0_51 = arith.constant 0 : index
    %137 = vector.load %arg36[%c26, %c0_51] : memref<32x4xf32, #tpu.memory_space<vmem>>, vector<1x4xf32>
    tpu.vector_store %arg36[%c26, %c0_51], %136 {strides = array<i32>} : memref<32x4xf32, #tpu.memory_space<vmem>>, vector<1x4xf32>,
    %138 = vector.extract_strided_slice %83 {offsets = [102, 0], sizes = [1, 4], strides = [1, 1]} : vector<128x4xf32> to vector<1x4xf32>
    %c27 = arith.constant 27 : index
    %c0_52 = arith.constant 0 : index
    %139 = vector.load %arg36[%c27, %c0_52] : memref<32x4xf32, #tpu.memory_space<vmem>>, vector<1x4xf32>
    tpu.vector_store %arg36[%c27, %c0_52], %138 {strides = array<i32>} : memref<32x4xf32, #tpu.memory_space<vmem>>, vector<1x4xf32>,
    %140 = vector.extract_strided_slice %83 {offsets = [112, 0], sizes = [1, 4], strides = [1, 1]} : vector<128x4xf32> to vector<1x4xf32>
    %c28 = arith.constant 28 : index
    %c0_53 = arith.constant 0 : index
    %141 = vector.load %arg36[%c28, %c0_53] : memref<32x4xf32, #tpu.memory_space<vmem>>, vector<1x4xf32>
    tpu.vector_store %arg36[%c28, %c0_53], %140 {strides = array<i32>} : memref<32x4xf32, #tpu.memory_space<vmem>>, vector<1x4xf32>,
    %142 = vector.extract_strided_slice %83 {offsets = [114, 0], sizes = [1, 4], strides = [1, 1]} : vector<128x4xf32> to vector<1x4xf32>
    %c29 = arith.constant 29 : index
    %c0_54 = arith.constant 0 : index
    %143 = vector.load %arg36[%c29, %c0_54] : memref<32x4xf32, #tpu.memory_space<vmem>>, vector<1x4xf32>
    tpu.vector_store %arg36[%c29, %c0_54], %142 {strides = array<i32>} : memref<32x4xf32, #tpu.memory_space<vmem>>, vector<1x4xf32>,
    %144 = vector.extract_strided_slice %83 {offsets = [116, 0], sizes = [1, 4], strides = [1, 1]} : vector<128x4xf32> to vector<1x4xf32>
    %c30 = arith.constant 30 : index
    %c0_55 = arith.constant 0 : index
    %145 = vector.load %arg36[%c30, %c0_55] : memref<32x4xf32, #tpu.memory_space<vmem>>, vector<1x4xf32>
    tpu.vector_store %arg36[%c30, %c0_55], %144 {strides = array<i32>} : memref<32x4xf32, #tpu.memory_space<vmem>>, vector<1x4xf32>,
    %146 = vector.extract_strided_slice %83 {offsets = [118, 0], sizes = [1, 4], strides = [1, 1]} : vector<128x4xf32> to vector<1x4xf32>
    %c31 = arith.constant 31 : index
    %c0_56 = arith.constant 0 : index
    %147 = vector.load %arg36[%c31, %c0_56] : memref<32x4xf32, #tpu.memory_space<vmem>>, vector<1x4xf32>
    tpu.vector_store %arg36[%c31, %c0_56], %146 {strides = array<i32>} : memref<32x4xf32, #tpu.memory_space<vmem>>, vector<1x4xf32>,
    %c0_57 = arith.constant 0 : index
    %c0_58 = arith.constant 0 : index
    %148 = vector.load %arg36[%c0_57, %c0_58] : memref<32x4xf32, #tpu.memory_space<vmem>>, vector<32x4xf32>
    %149 = arith.truncf %148 : vector<32x4xf32> to vector<32x4xbf16>
    %c0_59 = arith.constant 0 : index
    %c0_60 = arith.constant 0 : index
    %150 = vector.load %arg9[%c0_59, %c0_60] : memref<4x32xbf16, #tpu.memory_space<vmem>>, vector<4x32xbf16>
    %cst_61 = arith.constant dense<0.000000e+00> : vector<32x32xf32>
    %151 = tpu.matmul %149, %150, %cst_61 {dimension_numbers = #tpu.dot_dimension_numbers<[1], [0], [0], [1], [0, 0, 1, 1], [], []>} : vector<32x4xbf16>, vector<4x32xbf16>, vector<32x32xf32> -> vector<32x32xf32>
    %c0_62 = arith.constant 0 : index
    %c0_63 = arith.constant 0 : index
    %152 = vector.load %arg10[%c0_62, %c0_63] : memref<1x32xf32, #tpu.memory_space<vmem>>, vector<1x32xf32>
    %153 = vector.broadcast %152 : vector<1x32xf32> to vector<32x32xf32>
    %154 = arith.addf %151, %153 : vector<32x32xf32>
    %c0_64 = arith.constant 0 : index
    %c0_65 = arith.constant 0 : index
    %155 = vector.load %arg11[%c0_64, %c0_65] : memref<1x32xf32, #tpu.memory_space<vmem>>, vector<1x32xf32>
    %c0_66 = arith.constant 0 : index
    %c0_67 = arith.constant 0 : index
    %156 = vector.load %arg12[%c0_66, %c0_67] : memref<1x32xf32, #tpu.memory_space<vmem>>, vector<1x32xf32>
    %cst_68 = arith.constant dense<0.000000e+00> : vector<32xf32>
    %157 = vector.multi_reduction <add>, %154, %cst_68 [1] : vector<32x32xf32> to vector<32xf32>
    %158 = vector.shape_cast %157 : vector<32xf32> to vector<32x1xf32>
    %cst_69 = arith.constant 3.200000e+01 : f32
    %159 = vector.broadcast %cst_69 : f32 to vector<32x1xf32>
    %160 = arith.divf %158, %159 : vector<32x1xf32>
    %161 = vector.broadcast %160 : vector<32x1xf32> to vector<32x32xf32>
    %162 = arith.subf %154, %161 : vector<32x32xf32>
    %163 = arith.mulf %162, %162 : vector<32x32xf32>
    %cst_70 = arith.constant dense<0.000000e+00> : vector<32xf32>
    %164 = vector.multi_reduction <add>, %163, %cst_70 [1] : vector<32x32xf32> to vector<32xf32>
    %165 = vector.shape_cast %164 : vector<32xf32> to vector<32x1xf32>
    %cst_71 = arith.constant 3.200000e+01 : f32
    %166 = vector.broadcast %cst_71 : f32 to vector<32x1xf32>
    %167 = arith.divf %165, %166 : vector<32x1xf32>
    %168 = vector.broadcast %160 : vector<32x1xf32> to vector<32x32xf32>
    %169 = arith.subf %154, %168 : vector<32x32xf32>
    %cst_72 = arith.constant 9.99999997E-7 : f32
    %170 = vector.broadcast %cst_72 : f32 to vector<32x1xf32>
    %171 = arith.addf %167, %170 : vector<32x1xf32>
    %172 = math.rsqrt %171 : vector<32x1xf32>
    %173 = vector.broadcast %172 : vector<32x1xf32> to vector<32x32xf32>
    %174 = arith.mulf %169, %173 : vector<32x32xf32>
    %175 = vector.broadcast %155 : vector<1x32xf32> to vector<32x32xf32>
    %176 = arith.mulf %174, %175 : vector<32x32xf32>
    %177 = vector.broadcast %156 : vector<1x32xf32> to vector<32x32xf32>
    %178 = arith.addf %176, %177 : vector<32x32xf32>
    %cst_73 = arith.constant 5.000000e-01 : f32
    %179 = vector.broadcast %cst_73 : f32 to vector<32x32xf32>
    %180 = arith.mulf %179, %178 : vector<32x32xf32>
    %cst_74 = arith.constant 0.707106769 : f32
    %181 = vector.broadcast %cst_74 : f32 to vector<32x32xf32>
    %182 = arith.mulf %178, %181 : vector<32x32xf32>
    %183 = math.absf %182 : vector<32x32xf32>
    %cst_75 = arith.constant 0.327591091 : f32
    %184 = vector.broadcast %cst_75 : f32 to vector<32x32xf32>
    %185 = arith.mulf %184, %183 : vector<32x32xf32>
    %cst_76 = arith.constant 1.000000e+00 : f32
    %186 = vector.broadcast %cst_76 : f32 to vector<32x32xf32>
    %187 = arith.addf %186, %185 : vector<32x32xf32>
    %188 = tpu.reciprocal %187 {approx = true} : vector<32x32xf32> -> vector<32x32xf32>
    %cst_77 = arith.constant 1.06140542 : f32
    %189 = vector.broadcast %cst_77 : f32 to vector<32x32xf32>
    %190 = arith.mulf %189, %188 : vector<32x32xf32>
    %cst_78 = arith.constant 1.45315206 : f32
    %191 = vector.broadcast %cst_78 : f32 to vector<32x32xf32>
    %192 = arith.subf %190, %191 : vector<32x32xf32>
    %193 = arith.mulf %192, %188 : vector<32x32xf32>
    %cst_79 = arith.constant 1.42141378 : f32
    %194 = vector.broadcast %cst_79 : f32 to vector<32x32xf32>
    %195 = arith.addf %193, %194 : vector<32x32xf32>
    %196 = arith.mulf %195, %188 : vector<32x32xf32>
    %cst_80 = arith.constant 0.284496725 : f32
    %197 = vector.broadcast %cst_80 : f32 to vector<32x32xf32>
    %198 = arith.subf %196, %197 : vector<32x32xf32>
    %199 = arith.mulf %198, %188 : vector<32x32xf32>
    %cst_81 = arith.constant 0.254829586 : f32
    %200 = vector.broadcast %cst_81 : f32 to vector<32x32xf32>
    %201 = arith.addf %199, %200 : vector<32x32xf32>
    %202 = arith.mulf %201, %188 : vector<32x32xf32>
    %cst_82 = arith.constant 0.000000e+00 : f32
    %203 = vector.broadcast %cst_82 : f32 to vector<32x32xf32>
    %204 = arith.subf %203, %183 : vector<32x32xf32>
    %205 = arith.mulf %204, %183 : vector<32x32xf32>
    %206 = math.exp %205 : vector<32x32xf32>
    %207 = arith.mulf %202, %206 : vector<32x32xf32>
    %cst_83 = arith.constant 1.000000e+00 : f32
    %208 = vector.broadcast %cst_83 : f32 to vector<32x32xf32>
    %209 = arith.subf %208, %207 : vector<32x32xf32>
    %cst_84 = arith.constant 0.000000e+00 : f32
    %210 = vector.broadcast %cst_84 : f32 to vector<32x32xf32>
    %211 = arith.cmpf oge, %182, %210 : vector<32x32xf32>
    %cst_85 = arith.constant 0.000000e+00 : f32
    %212 = vector.broadcast %cst_85 : f32 to vector<32x32xf32>
    %213 = arith.subf %212, %209 : vector<32x32xf32>
    %214 = arith.select %211, %209, %213 : vector<32x32xi1>, vector<32x32xf32>
    %cst_86 = arith.constant 1.000000e+00 : f32
    %215 = vector.broadcast %cst_86 : f32 to vector<32x32xf32>
    %216 = arith.addf %215, %214 : vector<32x32xf32>
    %217 = arith.mulf %180, %216 : vector<32x32xf32>
    %c0_87 = arith.constant 0 : index
    %c0_88 = arith.constant 0 : index
    %218 = vector.load %arg1[%c0_87, %c0_88] : memref<64x32xf32, #tpu.memory_space<vmem>>, vector<64x32xf32>
    %c0_89 = arith.constant 0 : index
    %c0_90 = arith.constant 0 : index
    %219 = vector.load %arg37[%c0_89, %c0_90] : memref<64x32xf32, #tpu.memory_space<vmem>>, vector<64x32xf32>
    tpu.vector_store %arg37[%c0_89, %c0_90], %218 {strides = array<i32>} : memref<64x32xf32, #tpu.memory_space<vmem>>, vector<64x32xf32>,
    %220 = vector.extract_strided_slice %218 {offsets = [0, 0], sizes = [1, 32], strides = [1, 1]} : vector<64x32xf32> to vector<1x32xf32>
    %cst_91 = arith.constant 2.000000e+00 : f32
    %221 = vector.broadcast %cst_91 : f32 to vector<1x32xf32>
    %222 = arith.mulf %220, %221 : vector<1x32xf32>
    %c0_92 = arith.constant 0 : index
    %c0_93 = arith.constant 0 : index
    %223 = vector.load %arg37[%c0_92, %c0_93] : memref<64x32xf32, #tpu.memory_space<vmem>>, vector<1x32xf32>
    tpu.vector_store %arg37[%c0_92, %c0_93], %222 {strides = array<i32>} : memref<64x32xf32, #tpu.memory_space<vmem>>, vector<1x32xf32>,
    %224 = vector.extract_strided_slice %217 {offsets = [0, 0], sizes = [16, 32], strides = [1, 1]} : vector<32x32xf32> to vector<16x32xf32>
    %225 = vector.extract_strided_slice %218 {offsets = [1, 0], sizes = [16, 32], strides = [1, 1]} : vector<64x32xf32> to vector<16x32xf32>
    %226 = arith.addf %224, %225 : vector<16x32xf32>
    %c1_94 = arith.constant 1 : index
    %c0_95 = arith.constant 0 : index
    %227 = vector.load %arg37[%c1_94, %c0_95] : memref<64x32xf32, #tpu.memory_space<vmem>>, vector<16x32xf32>
    tpu.vector_store %arg37[%c1_94, %c0_95], %226 {strides = array<i32>} : memref<64x32xf32, #tpu.memory_space<vmem>>, vector<16x32xf32>,
    %228 = vector.extract_strided_slice %218 {offsets = [32, 0], sizes = [1, 32], strides = [1, 1]} : vector<64x32xf32> to vector<1x32xf32>
    %cst_96 = arith.constant 2.000000e+00 : f32
    %229 = vector.broadcast %cst_96 : f32 to vector<1x32xf32>
    %230 = arith.mulf %228, %229 : vector<1x32xf32>
    %c32 = arith.constant 32 : index
    %c0_97 = arith.constant 0 : index
    %231 = vector.load %arg37[%c32, %c0_97] : memref<64x32xf32, #tpu.memory_space<vmem>>, vector<1x32xf32>
    tpu.vector_store %arg37[%c32, %c0_97], %230 {strides = array<i32>} : memref<64x32xf32, #tpu.memory_space<vmem>>, vector<1x32xf32>,
    %232 = vector.extract_strided_slice %217 {offsets = [16, 0], sizes = [16, 32], strides = [1, 1]} : vector<32x32xf32> to vector<16x32xf32>
    %233 = vector.extract_strided_slice %218 {offsets = [33, 0], sizes = [16, 32], strides = [1, 1]} : vector<64x32xf32> to vector<16x32xf32>
    %234 = arith.addf %232, %233 : vector<16x32xf32>
    %c33 = arith.constant 33 : index
    %c0_98 = arith.constant 0 : index
    %235 = vector.load %arg37[%c33, %c0_98] : memref<64x32xf32, #tpu.memory_space<vmem>>, vector<16x32xf32>
    tpu.vector_store %arg37[%c33, %c0_98], %234 {strides = array<i32>} : memref<64x32xf32, #tpu.memory_space<vmem>>, vector<16x32xf32>,
    %c0_99 = arith.constant 0 : index
    %c0_100 = arith.constant 0 : index
    %236 = vector.load %arg37[%c0_99, %c0_100] : memref<64x32xf32, #tpu.memory_space<vmem>>, vector<64x32xf32>
    %c0_101 = arith.constant 0 : index
    %c0_102 = arith.constant 0 : index
    %237 = vector.load %arg13[%c0_101, %c0_102] : memref<1x32xf32, #tpu.memory_space<vmem>>, vector<1x32xf32>
    %c0_103 = arith.constant 0 : index
    %c0_104 = arith.constant 0 : index
    %238 = vector.load %arg14[%c0_103, %c0_104] : memref<1x32xf32, #tpu.memory_space<vmem>>, vector<1x32xf32>
    %cst_105 = arith.constant dense<0.000000e+00> : vector<64xf32>
    %239 = vector.multi_reduction <add>, %236, %cst_105 [1] : vector<64x32xf32> to vector<64xf32>
    %240 = vector.shape_cast %239 : vector<64xf32> to vector<64x1xf32>
    %cst_106 = arith.constant 3.200000e+01 : f32
    %241 = vector.broadcast %cst_106 : f32 to vector<64x1xf32>
    %242 = arith.divf %240, %241 : vector<64x1xf32>
    %243 = vector.broadcast %242 : vector<64x1xf32> to vector<64x32xf32>
    %244 = arith.subf %236, %243 : vector<64x32xf32>
    %245 = arith.mulf %244, %244 : vector<64x32xf32>
    %cst_107 = arith.constant dense<0.000000e+00> : vector<64xf32>
    %246 = vector.multi_reduction <add>, %245, %cst_107 [1] : vector<64x32xf32> to vector<64xf32>
    %247 = vector.shape_cast %246 : vector<64xf32> to vector<64x1xf32>
    %cst_108 = arith.constant 3.200000e+01 : f32
    %248 = vector.broadcast %cst_108 : f32 to vector<64x1xf32>
    %249 = arith.divf %247, %248 : vector<64x1xf32>
    %250 = vector.broadcast %242 : vector<64x1xf32> to vector<64x32xf32>
    %251 = arith.subf %236, %250 : vector<64x32xf32>
    %cst_109 = arith.constant 9.99999997E-7 : f32
    %252 = vector.broadcast %cst_109 : f32 to vector<64x1xf32>
    %253 = arith.addf %249, %252 : vector<64x1xf32>
    %254 = math.rsqrt %253 : vector<64x1xf32>
    %255 = vector.broadcast %254 : vector<64x1xf32> to vector<64x32xf32>
    %256 = arith.mulf %251, %255 : vector<64x32xf32>
    %257 = vector.broadcast %237 : vector<1x32xf32> to vector<64x32xf32>
    %258 = arith.mulf %256, %257 : vector<64x32xf32>
    %259 = vector.broadcast %238 : vector<1x32xf32> to vector<64x32xf32>
    %260 = arith.addf %258, %259 : vector<64x32xf32>
    %261 = arith.truncf %260 : vector<64x32xf32> to vector<64x32xbf16>
    %c0_110 = arith.constant 0 : index
    %c0_111 = arith.constant 0 : index
    %262 = vector.load %arg15[%c0_110, %c0_111] : memref<32x32xbf16, #tpu.memory_space<vmem>>, vector<32x32xbf16>
    %cst_112 = arith.constant dense<0.000000e+00> : vector<64x32xf32>
    %263 = tpu.matmul %261, %262, %cst_112 {dimension_numbers = #tpu.dot_dimension_numbers<[1], [0], [0], [1], [0, 0, 1, 1], [], []>} : vector<64x32xbf16>, vector<32x32xbf16>, vector<64x32xf32> -> vector<64x32xf32>
    %cst_113 = arith.constant 0.353553385 : f32
    %264 = vector.broadcast %cst_113 : f32 to vector<64x32xf32>
    %265 = arith.mulf %263, %264 : vector<64x32xf32>
    %c0_114 = arith.constant 0 : index
    %c0_115 = arith.constant 0 : index
    %266 = vector.load %arg16[%c0_114, %c0_115] : memref<32x32xbf16, #tpu.memory_space<vmem>>, vector<32x32xbf16>
    %cst_116 = arith.constant dense<0.000000e+00> : vector<64x32xf32>
    %267 = tpu.matmul %261, %266, %cst_116 {dimension_numbers = #tpu.dot_dimension_numbers<[1], [0], [0], [1], [0, 0, 1, 1], [], []>} : vector<64x32xbf16>, vector<32x32xbf16>, vector<64x32xf32> -> vector<64x32xf32>
    %c0_117 = arith.constant 0 : index
    %c0_118 = arith.constant 0 : index
    %268 = vector.load %arg17[%c0_117, %c0_118] : memref<32x32xbf16, #tpu.memory_space<vmem>>, vector<32x32xbf16>
    %cst_119 = arith.constant dense<0.000000e+00> : vector<64x32xf32>
    %269 = tpu.matmul %261, %268, %cst_119 {dimension_numbers = #tpu.dot_dimension_numbers<[1], [0], [0], [1], [0, 0, 1, 1], [], []>} : vector<64x32xbf16>, vector<32x32xbf16>, vector<64x32xf32> -> vector<64x32xf32>
    %270 = arith.truncf %265 : vector<64x32xf32> to vector<64x32xbf16>
    %271 = arith.truncf %267 : vector<64x32xf32> to vector<64x32xbf16>
    %272 = arith.truncf %269 : vector<64x32xf32> to vector<64x32xbf16>
    %273 = tpu.iota {dimensions = array<i32: 1>} : vector<32x32xi32>
    %c17_i32 = arith.constant 17 : i32
    %274 = vector.broadcast %c17_i32 : i32 to vector<32x32xi32>
    %275 = arith.cmpi slt, %273, %274 : vector<32x32xi32>
    %cst_120 = arith.constant 0.000000e+00 : f32
    %cst_121 = arith.constant -1.000000e+30 : f32
    %276 = vector.broadcast %cst_120 : f32 to vector<32x32xf32>
    %277 = vector.broadcast %cst_121 : f32 to vector<32x32xf32>
    %278 = arith.select %275, %276, %277 : vector<32x32xi1>, vector<32x32xf32>
    %279 = vector.extract_strided_slice %270 {offsets = [0, 0], sizes = [32, 8], strides = [1, 1]} : vector<64x32xbf16> to vector<32x8xbf16>
    %280 = vector.extract_strided_slice %271 {offsets = [0, 0], sizes = [32, 8], strides = [1, 1]} : vector<64x32xbf16> to vector<32x8xbf16>
    %281 = vector.extract_strided_slice %272 {offsets = [0, 0], sizes = [32, 8], strides = [1, 1]} : vector<64x32xbf16> to vector<32x8xbf16>
    %cst_122 = arith.constant dense<0.000000e+00> : vector<32x32xf32>
    %282 = tpu.matmul %279, %280, %cst_122 {dimension_numbers = #tpu.dot_dimension_numbers<[1], [1], [0], [0], [0, 0, 1, 0], [], []>} : vector<32x8xbf16>, vector<32x8xbf16>, vector<32x32xf32> -> vector<32x32xf32>
    %283 = arith.addf %282, %278 : vector<32x32xf32>
    %cst_123 = arith.constant dense<0xFF800000> : vector<32xf32>
    %284 = vector.multi_reduction <maximumf>, %283, %cst_123 [1] : vector<32x32xf32> to vector<32xf32>
    %285 = vector.shape_cast %284 : vector<32xf32> to vector<32x1xf32>
    %286 = vector.broadcast %285 : vector<32x1xf32> to vector<32x32xf32>
    %287 = arith.subf %283, %286 : vector<32x32xf32>
    %288 = math.exp %287 : vector<32x32xf32>
    %cst_124 = arith.constant dense<0.000000e+00> : vector<32xf32>
    %289 = vector.multi_reduction <add>, %288, %cst_124 [1] : vector<32x32xf32> to vector<32xf32>
    %290 = vector.shape_cast %289 : vector<32xf32> to vector<32x1xf32>
    %291 = tpu.reciprocal %290 {approx = true} : vector<32x1xf32> -> vector<32x1xf32>
    %292 = vector.broadcast %291 : vector<32x1xf32> to vector<32x32xf32>
    %293 = arith.mulf %288, %292 : vector<32x32xf32>
    %294 = arith.truncf %293 : vector<32x32xf32> to vector<32x32xbf16>
    %cst_125 = arith.constant dense<0.000000e+00> : vector<32x8xf32>
    %295 = tpu.matmul %294, %281, %cst_125 {dimension_numbers = #tpu.dot_dimension_numbers<[1], [0], [0], [1], [0, 0, 1, 1], [], []>} : vector<32x32xbf16>, vector<32x8xbf16>, vector<32x8xf32> -> vector<32x8xf32>
    %c0_126 = arith.constant 0 : index
    %c0_127 = arith.constant 0 : index
    %296 = vector.load %arg38[%c0_126, %c0_127] : memref<64x32xf32, #tpu.memory_space<vmem>>, vector<32x8xf32>
    tpu.vector_store %arg38[%c0_126, %c0_127], %295 {strides = array<i32>} : memref<64x32xf32, #tpu.memory_space<vmem>>, vector<32x8xf32>,
    %297 = vector.extract_strided_slice %270 {offsets = [0, 8], sizes = [32, 8], strides = [1, 1]} : vector<64x32xbf16> to vector<32x8xbf16>
    %298 = vector.extract_strided_slice %271 {offsets = [0, 8], sizes = [32, 8], strides = [1, 1]} : vector<64x32xbf16> to vector<32x8xbf16>
    %299 = vector.extract_strided_slice %272 {offsets = [0, 8], sizes = [32, 8], strides = [1, 1]} : vector<64x32xbf16> to vector<32x8xbf16>
    %cst_128 = arith.constant dense<0.000000e+00> : vector<32x32xf32>
    %300 = tpu.matmul %297, %298, %cst_128 {dimension_numbers = #tpu.dot_dimension_numbers<[1], [1], [0], [0], [0, 0, 1, 0], [], []>} : vector<32x8xbf16>, vector<32x8xbf16>, vector<32x32xf32> -> vector<32x32xf32>
    %301 = arith.addf %300, %278 : vector<32x32xf32>
    %cst_129 = arith.constant dense<0xFF800000> : vector<32xf32>
    %302 = vector.multi_reduction <maximumf>, %301, %cst_129 [1] : vector<32x32xf32> to vector<32xf32>
    %303 = vector.shape_cast %302 : vector<32xf32> to vector<32x1xf32>
    %304 = vector.broadcast %303 : vector<32x1xf32> to vector<32x32xf32>
    %305 = arith.subf %301, %304 : vector<32x32xf32>
    %306 = math.exp %305 : vector<32x32xf32>
    %cst_130 = arith.constant dense<0.000000e+00> : vector<32xf32>
    %307 = vector.multi_reduction <add>, %306, %cst_130 [1] : vector<32x32xf32> to vector<32xf32>
    %308 = vector.shape_cast %307 : vector<32xf32> to vector<32x1xf32>
    %309 = tpu.reciprocal %308 {approx = true} : vector<32x1xf32> -> vector<32x1xf32>
    %310 = vector.broadcast %309 : vector<32x1xf32> to vector<32x32xf32>
    %311 = arith.mulf %306, %310 : vector<32x32xf32>
    %312 = arith.truncf %311 : vector<32x32xf32> to vector<32x32xbf16>
    %cst_131 = arith.constant dense<0.000000e+00> : vector<32x8xf32>
    %313 = tpu.matmul %312, %299, %cst_131 {dimension_numbers = #tpu.dot_dimension_numbers<[1], [0], [0], [1], [0, 0, 1, 1], [], []>} : vector<32x32xbf16>, vector<32x8xbf16>, vector<32x8xf32> -> vector<32x8xf32>
    %c0_132 = arith.constant 0 : index
    %c8_133 = arith.constant 8 : index
    %314 = vector.load %arg38[%c0_132, %c8_133] : memref<64x32xf32, #tpu.memory_space<vmem>>, vector<32x8xf32>
    tpu.vector_store %arg38[%c0_132, %c8_133], %313 {strides = array<i32>} : memref<64x32xf32, #tpu.memory_space<vmem>>, vector<32x8xf32>,
    %315 = vector.extract_strided_slice %270 {offsets = [0, 16], sizes = [32, 8], strides = [1, 1]} : vector<64x32xbf16> to vector<32x8xbf16>
    %316 = vector.extract_strided_slice %271 {offsets = [0, 16], sizes = [32, 8], strides = [1, 1]} : vector<64x32xbf16> to vector<32x8xbf16>
    %317 = vector.extract_strided_slice %272 {offsets = [0, 16], sizes = [32, 8], strides = [1, 1]} : vector<64x32xbf16> to vector<32x8xbf16>
    %cst_134 = arith.constant dense<0.000000e+00> : vector<32x32xf32>
    %318 = tpu.matmul %315, %316, %cst_134 {dimension_numbers = #tpu.dot_dimension_numbers<[1], [1], [0], [0], [0, 0, 1, 0], [], []>} : vector<32x8xbf16>, vector<32x8xbf16>, vector<32x32xf32> -> vector<32x32xf32>
    %319 = arith.addf %318, %278 : vector<32x32xf32>
    %cst_135 = arith.constant dense<0xFF800000> : vector<32xf32>
    %320 = vector.multi_reduction <maximumf>, %319, %cst_135 [1] : vector<32x32xf32> to vector<32xf32>
    %321 = vector.shape_cast %320 : vector<32xf32> to vector<32x1xf32>
    %322 = vector.broadcast %321 : vector<32x1xf32> to vector<32x32xf32>
    %323 = arith.subf %319, %322 : vector<32x32xf32>
    %324 = math.exp %323 : vector<32x32xf32>
    %cst_136 = arith.constant dense<0.000000e+00> : vector<32xf32>
    %325 = vector.multi_reduction <add>, %324, %cst_136 [1] : vector<32x32xf32> to vector<32xf32>
    %326 = vector.shape_cast %325 : vector<32xf32> to vector<32x1xf32>
    %327 = tpu.reciprocal %326 {approx = true} : vector<32x1xf32> -> vector<32x1xf32>
    %328 = vector.broadcast %327 : vector<32x1xf32> to vector<32x32xf32>
    %329 = arith.mulf %324, %328 : vector<32x32xf32>
    %330 = arith.truncf %329 : vector<32x32xf32> to vector<32x32xbf16>
    %cst_137 = arith.constant dense<0.000000e+00> : vector<32x8xf32>
    %331 = tpu.matmul %330, %317, %cst_137 {dimension_numbers = #tpu.dot_dimension_numbers<[1], [0], [0], [1], [0, 0, 1, 1], [], []>} : vector<32x32xbf16>, vector<32x8xbf16>, vector<32x8xf32> -> vector<32x8xf32>
    %c0_138 = arith.constant 0 : index
    %c16_139 = arith.constant 16 : index
    %332 = vector.load %arg38[%c0_138, %c16_139] : memref<64x32xf32, #tpu.memory_space<vmem>>, vector<32x8xf32>
    tpu.vector_store %arg38[%c0_138, %c16_139], %331 {strides = array<i32>} : memref<64x32xf32, #tpu.memory_space<vmem>>, vector<32x8xf32>,
    %333 = vector.extract_strided_slice %270 {offsets = [0, 24], sizes = [32, 8], strides = [1, 1]} : vector<64x32xbf16> to vector<32x8xbf16>
    %334 = vector.extract_strided_slice %271 {offsets = [0, 24], sizes = [32, 8], strides = [1, 1]} : vector<64x32xbf16> to vector<32x8xbf16>
    %335 = vector.extract_strided_slice %272 {offsets = [0, 24], sizes = [32, 8], strides = [1, 1]} : vector<64x32xbf16> to vector<32x8xbf16>
    %cst_140 = arith.constant dense<0.000000e+00> : vector<32x32xf32>
    %336 = tpu.matmul %333, %334, %cst_140 {dimension_numbers = #tpu.dot_dimension_numbers<[1], [1], [0], [0], [0, 0, 1, 0], [], []>} : vector<32x8xbf16>, vector<32x8xbf16>, vector<32x32xf32> -> vector<32x32xf32>
    %337 = arith.addf %336, %278 : vector<32x32xf32>
    %cst_141 = arith.constant dense<0xFF800000> : vector<32xf32>
    %338 = vector.multi_reduction <maximumf>, %337, %cst_141 [1] : vector<32x32xf32> to vector<32xf32>
    %339 = vector.shape_cast %338 : vector<32xf32> to vector<32x1xf32>
    %340 = vector.broadcast %339 : vector<32x1xf32> to vector<32x32xf32>
    %341 = arith.subf %337, %340 : vector<32x32xf32>
    %342 = math.exp %341 : vector<32x32xf32>
    %cst_142 = arith.constant dense<0.000000e+00> : vector<32xf32>
    %343 = vector.multi_reduction <add>, %342, %cst_142 [1] : vector<32x32xf32> to vector<32xf32>
    %344 = vector.shape_cast %343 : vector<32xf32> to vector<32x1xf32>
    %345 = tpu.reciprocal %344 {approx = true} : vector<32x1xf32> -> vector<32x1xf32>
    %346 = vector.broadcast %345 : vector<32x1xf32> to vector<32x32xf32>
    %347 = arith.mulf %342, %346 : vector<32x32xf32>
    %348 = arith.truncf %347 : vector<32x32xf32> to vector<32x32xbf16>
    %cst_143 = arith.constant dense<0.000000e+00> : vector<32x8xf32>
    %349 = tpu.matmul %348, %335, %cst_143 {dimension_numbers = #tpu.dot_dimension_numbers<[1], [0], [0], [1], [0, 0, 1, 1], [], []>} : vector<32x32xbf16>, vector<32x8xbf16>, vector<32x8xf32> -> vector<32x8xf32>
    %c0_144 = arith.constant 0 : index
    %c24_145 = arith.constant 24 : index
    %350 = vector.load %arg38[%c0_144, %c24_145] : memref<64x32xf32, #tpu.memory_space<vmem>>, vector<32x8xf32>
    tpu.vector_store %arg38[%c0_144, %c24_145], %349 {strides = array<i32>} : memref<64x32xf32, #tpu.memory_space<vmem>>, vector<32x8xf32>,
    %351 = vector.extract_strided_slice %270 {offsets = [32, 0], sizes = [32, 8], strides = [1, 1]} : vector<64x32xbf16> to vector<32x8xbf16>
    %352 = vector.extract_strided_slice %271 {offsets = [32, 0], sizes = [32, 8], strides = [1, 1]} : vector<64x32xbf16> to vector<32x8xbf16>
    %353 = vector.extract_strided_slice %272 {offsets = [32, 0], sizes = [32, 8], strides = [1, 1]} : vector<64x32xbf16> to vector<32x8xbf16>
    %cst_146 = arith.constant dense<0.000000e+00> : vector<32x32xf32>
    %354 = tpu.matmul %351, %352, %cst_146 {dimension_numbers = #tpu.dot_dimension_numbers<[1], [1], [0], [0], [0, 0, 1, 0], [], []>} : vector<32x8xbf16>, vector<32x8xbf16>, vector<32x32xf32> -> vector<32x32xf32>
    %355 = arith.addf %354, %278 : vector<32x32xf32>
    %cst_147 = arith.constant dense<0xFF800000> : vector<32xf32>
    %356 = vector.multi_reduction <maximumf>, %355, %cst_147 [1] : vector<32x32xf32> to vector<32xf32>
    %357 = vector.shape_cast %356 : vector<32xf32> to vector<32x1xf32>
    %358 = vector.broadcast %357 : vector<32x1xf32> to vector<32x32xf32>
    %359 = arith.subf %355, %358 : vector<32x32xf32>
    %360 = math.exp %359 : vector<32x32xf32>
    %cst_148 = arith.constant dense<0.000000e+00> : vector<32xf32>
    %361 = vector.multi_reduction <add>, %360, %cst_148 [1] : vector<32x32xf32> to vector<32xf32>
    %362 = vector.shape_cast %361 : vector<32xf32> to vector<32x1xf32>
    %363 = tpu.reciprocal %362 {approx = true} : vector<32x1xf32> -> vector<32x1xf32>
    %364 = vector.broadcast %363 : vector<32x1xf32> to vector<32x32xf32>
    %365 = arith.mulf %360, %364 : vector<32x32xf32>
    %366 = arith.truncf %365 : vector<32x32xf32> to vector<32x32xbf16>
    %cst_149 = arith.constant dense<0.000000e+00> : vector<32x8xf32>
    %367 = tpu.matmul %366, %353, %cst_149 {dimension_numbers = #tpu.dot_dimension_numbers<[1], [0], [0], [1], [0, 0, 1, 1], [], []>} : vector<32x32xbf16>, vector<32x8xbf16>, vector<32x8xf32> -> vector<32x8xf32>
    %c32_150 = arith.constant 32 : index
    %c0_151 = arith.constant 0 : index
    %368 = vector.load %arg38[%c32_150, %c0_151] : memref<64x32xf32, #tpu.memory_space<vmem>>, vector<32x8xf32>
    tpu.vector_store %arg38[%c32_150, %c0_151], %367 {strides = array<i32>} : memref<64x32xf32, #tpu.memory_space<vmem>>, vector<32x8xf32>,
    %369 = vector.extract_strided_slice %270 {offsets = [32, 8], sizes = [32, 8], strides = [1, 1]} : vector<64x32xbf16> to vector<32x8xbf16>
    %370 = vector.extract_strided_slice %271 {offsets = [32, 8], sizes = [32, 8], strides = [1, 1]} : vector<64x32xbf16> to vector<32x8xbf16>
    %371 = vector.extract_strided_slice %272 {offsets = [32, 8], sizes = [32, 8], strides = [1, 1]} : vector<64x32xbf16> to vector<32x8xbf16>
    %cst_152 = arith.constant dense<0.000000e+00> : vector<32x32xf32>
    %372 = tpu.matmul %369, %370, %cst_152 {dimension_numbers = #tpu.dot_dimension_numbers<[1], [1], [0], [0], [0, 0, 1, 0], [], []>} : vector<32x8xbf16>, vector<32x8xbf16>, vector<32x32xf32> -> vector<32x32xf32>
    %373 = arith.addf %372, %278 : vector<32x32xf32>
    %cst_153 = arith.constant dense<0xFF800000> : vector<32xf32>
    %374 = vector.multi_reduction <maximumf>, %373, %cst_153 [1] : vector<32x32xf32> to vector<32xf32>
    %375 = vector.shape_cast %374 : vector<32xf32> to vector<32x1xf32>
    %376 = vector.broadcast %375 : vector<32x1xf32> to vector<32x32xf32>
    %377 = arith.subf %373, %376 : vector<32x32xf32>
    %378 = math.exp %377 : vector<32x32xf32>
    %cst_154 = arith.constant dense<0.000000e+00> : vector<32xf32>
    %379 = vector.multi_reduction <add>, %378, %cst_154 [1] : vector<32x32xf32> to vector<32xf32>
    %380 = vector.shape_cast %379 : vector<32xf32> to vector<32x1xf32>
    %381 = tpu.reciprocal %380 {approx = true} : vector<32x1xf32> -> vector<32x1xf32>
    %382 = vector.broadcast %381 : vector<32x1xf32> to vector<32x32xf32>
    %383 = arith.mulf %378, %382 : vector<32x32xf32>
    %384 = arith.truncf %383 : vector<32x32xf32> to vector<32x32xbf16>
    %cst_155 = arith.constant dense<0.000000e+00> : vector<32x8xf32>
    %385 = tpu.matmul %384, %371, %cst_155 {dimension_numbers = #tpu.dot_dimension_numbers<[1], [0], [0], [1], [0, 0, 1, 1], [], []>} : vector<32x32xbf16>, vector<32x8xbf16>, vector<32x8xf32> -> vector<32x8xf32>
    %c32_156 = arith.constant 32 : index
    %c8_157 = arith.constant 8 : index
    %386 = vector.load %arg38[%c32_156, %c8_157] : memref<64x32xf32, #tpu.memory_space<vmem>>, vector<32x8xf32>
    tpu.vector_store %arg38[%c32_156, %c8_157], %385 {strides = array<i32>} : memref<64x32xf32, #tpu.memory_space<vmem>>, vector<32x8xf32>,
    %387 = vector.extract_strided_slice %270 {offsets = [32, 16], sizes = [32, 8], strides = [1, 1]} : vector<64x32xbf16> to vector<32x8xbf16>
    %388 = vector.extract_strided_slice %271 {offsets = [32, 16], sizes = [32, 8], strides = [1, 1]} : vector<64x32xbf16> to vector<32x8xbf16>
    %389 = vector.extract_strided_slice %272 {offsets = [32, 16], sizes = [32, 8], strides = [1, 1]} : vector<64x32xbf16> to vector<32x8xbf16>
    %cst_158 = arith.constant dense<0.000000e+00> : vector<32x32xf32>
    %390 = tpu.matmul %387, %388, %cst_158 {dimension_numbers = #tpu.dot_dimension_numbers<[1], [1], [0], [0], [0, 0, 1, 0], [], []>} : vector<32x8xbf16>, vector<32x8xbf16>, vector<32x32xf32> -> vector<32x32xf32>
    %391 = arith.addf %390, %278 : vector<32x32xf32>
    %cst_159 = arith.constant dense<0xFF800000> : vector<32xf32>
    %392 = vector.multi_reduction <maximumf>, %391, %cst_159 [1] : vector<32x32xf32> to vector<32xf32>
    %393 = vector.shape_cast %392 : vector<32xf32> to vector<32x1xf32>
    %394 = vector.broadcast %393 : vector<32x1xf32> to vector<32x32xf32>
    %395 = arith.subf %391, %394 : vector<32x32xf32>
    %396 = math.exp %395 : vector<32x32xf32>
    %cst_160 = arith.constant dense<0.000000e+00> : vector<32xf32>
    %397 = vector.multi_reduction <add>, %396, %cst_160 [1] : vector<32x32xf32> to vector<32xf32>
    %398 = vector.shape_cast %397 : vector<32xf32> to vector<32x1xf32>
    %399 = tpu.reciprocal %398 {approx = true} : vector<32x1xf32> -> vector<32x1xf32>
    %400 = vector.broadcast %399 : vector<32x1xf32> to vector<32x32xf32>
    %401 = arith.mulf %396, %400 : vector<32x32xf32>
    %402 = arith.truncf %401 : vector<32x32xf32> to vector<32x32xbf16>
    %cst_161 = arith.constant dense<0.000000e+00> : vector<32x8xf32>
    %403 = tpu.matmul %402, %389, %cst_161 {dimension_numbers = #tpu.dot_dimension_numbers<[1], [0], [0], [1], [0, 0, 1, 1], [], []>} : vector<32x32xbf16>, vector<32x8xbf16>, vector<32x8xf32> -> vector<32x8xf32>
    %c32_162 = arith.constant 32 : index
    %c16_163 = arith.constant 16 : index
    %404 = vector.load %arg38[%c32_162, %c16_163] : memref<64x32xf32, #tpu.memory_space<vmem>>, vector<32x8xf32>
    tpu.vector_store %arg38[%c32_162, %c16_163], %403 {strides = array<i32>} : memref<64x32xf32, #tpu.memory_space<vmem>>, vector<32x8xf32>,
    %405 = vector.extract_strided_slice %270 {offsets = [32, 24], sizes = [32, 8], strides = [1, 1]} : vector<64x32xbf16> to vector<32x8xbf16>
    %406 = vector.extract_strided_slice %271 {offsets = [32, 24], sizes = [32, 8], strides = [1, 1]} : vector<64x32xbf16> to vector<32x8xbf16>
    %407 = vector.extract_strided_slice %272 {offsets = [32, 24], sizes = [32, 8], strides = [1, 1]} : vector<64x32xbf16> to vector<32x8xbf16>
    %cst_164 = arith.constant dense<0.000000e+00> : vector<32x32xf32>
    %408 = tpu.matmul %405, %406, %cst_164 {dimension_numbers = #tpu.dot_dimension_numbers<[1], [1], [0], [0], [0, 0, 1, 0], [], []>} : vector<32x8xbf16>, vector<32x8xbf16>, vector<32x32xf32> -> vector<32x32xf32>
    %409 = arith.addf %408, %278 : vector<32x32xf32>
    %cst_165 = arith.constant dense<0xFF800000> : vector<32xf32>
    %410 = vector.multi_reduction <maximumf>, %409, %cst_165 [1] : vector<32x32xf32> to vector<32xf32>
    %411 = vector.shape_cast %410 : vector<32xf32> to vector<32x1xf32>
    %412 = vector.broadcast %411 : vector<32x1xf32> to vector<32x32xf32>
    %413 = arith.subf %409, %412 : vector<32x32xf32>
    %414 = math.exp %413 : vector<32x32xf32>
    %cst_166 = arith.constant dense<0.000000e+00> : vector<32xf32>
    %415 = vector.multi_reduction <add>, %414, %cst_166 [1] : vector<32x32xf32> to vector<32xf32>
    %416 = vector.shape_cast %415 : vector<32xf32> to vector<32x1xf32>
    %417 = tpu.reciprocal %416 {approx = true} : vector<32x1xf32> -> vector<32x1xf32>
    %418 = vector.broadcast %417 : vector<32x1xf32> to vector<32x32xf32>
    %419 = arith.mulf %414, %418 : vector<32x32xf32>
    %420 = arith.truncf %419 : vector<32x32xf32> to vector<32x32xbf16>
    %cst_167 = arith.constant dense<0.000000e+00> : vector<32x8xf32>
    %421 = tpu.matmul %420, %407, %cst_167 {dimension_numbers = #tpu.dot_dimension_numbers<[1], [0], [0], [1], [0, 0, 1, 1], [], []>} : vector<32x32xbf16>, vector<32x8xbf16>, vector<32x8xf32> -> vector<32x8xf32>
    %c32_168 = arith.constant 32 : index
    %c24_169 = arith.constant 24 : index
    %422 = vector.load %arg38[%c32_168, %c24_169] : memref<64x32xf32, #tpu.memory_space<vmem>>, vector<32x8xf32>
    tpu.vector_store %arg38[%c32_168, %c24_169], %421 {strides = array<i32>} : memref<64x32xf32, #tpu.memory_space<vmem>>, vector<32x8xf32>,
    %c0_170 = arith.constant 0 : index
    %c0_171 = arith.constant 0 : index
    %423 = vector.load %arg38[%c0_170, %c0_171] : memref<64x32xf32, #tpu.memory_space<vmem>>, vector<64x32xf32>
    %424 = arith.truncf %423 : vector<64x32xf32> to vector<64x32xbf16>
    %c0_172 = arith.constant 0 : index
    %c0_173 = arith.constant 0 : index
    %425 = vector.load %arg18[%c0_172, %c0_173] : memref<32x32xbf16, #tpu.memory_space<vmem>>, vector<32x32xbf16>
    %cst_174 = arith.constant dense<0.000000e+00> : vector<64x32xf32>
    %426 = tpu.matmul %424, %425, %cst_174 {dimension_numbers = #tpu.dot_dimension_numbers<[1], [0], [0], [1], [0, 0, 1, 1], [], []>} : vector<64x32xbf16>, vector<32x32xbf16>, vector<64x32xf32> -> vector<64x32xf32>
    %427 = arith.addf %236, %426 : vector<64x32xf32>
    %c0_175 = arith.constant 0 : index
    %c0_176 = arith.constant 0 : index
    %428 = vector.load %arg19[%c0_175, %c0_176] : memref<1x32xf32, #tpu.memory_space<vmem>>, vector<1x32xf32>
    %429 = vector.broadcast %428 : vector<1x32xf32> to vector<64x32xf32>
    %430 = arith.addf %427, %429 : vector<64x32xf32>
    %c0_177 = arith.constant 0 : index
    %c0_178 = arith.constant 0 : index
    %431 = vector.load %arg20[%c0_177, %c0_178] : memref<1x32xf32, #tpu.memory_space<vmem>>, vector<1x32xf32>
    %c0_179 = arith.constant 0 : index
    %c0_180 = arith.constant 0 : index
    %432 = vector.load %arg21[%c0_179, %c0_180] : memref<1x32xf32, #tpu.memory_space<vmem>>, vector<1x32xf32>
    %cst_181 = arith.constant dense<0.000000e+00> : vector<64xf32>
    %433 = vector.multi_reduction <add>, %430, %cst_181 [1] : vector<64x32xf32> to vector<64xf32>
    %434 = vector.shape_cast %433 : vector<64xf32> to vector<64x1xf32>
    %cst_182 = arith.constant 3.200000e+01 : f32
    %435 = vector.broadcast %cst_182 : f32 to vector<64x1xf32>
    %436 = arith.divf %434, %435 : vector<64x1xf32>
    %437 = vector.broadcast %436 : vector<64x1xf32> to vector<64x32xf32>
    %438 = arith.subf %430, %437 : vector<64x32xf32>
    %439 = arith.mulf %438, %438 : vector<64x32xf32>
    %cst_183 = arith.constant dense<0.000000e+00> : vector<64xf32>
    %440 = vector.multi_reduction <add>, %439, %cst_183 [1] : vector<64x32xf32> to vector<64xf32>
    %441 = vector.shape_cast %440 : vector<64xf32> to vector<64x1xf32>
    %cst_184 = arith.constant 3.200000e+01 : f32
    %442 = vector.broadcast %cst_184 : f32 to vector<64x1xf32>
    %443 = arith.divf %441, %442 : vector<64x1xf32>
    %444 = vector.broadcast %436 : vector<64x1xf32> to vector<64x32xf32>
    %445 = arith.subf %430, %444 : vector<64x32xf32>
    %cst_185 = arith.constant 9.99999997E-7 : f32
    %446 = vector.broadcast %cst_185 : f32 to vector<64x1xf32>
    %447 = arith.addf %443, %446 : vector<64x1xf32>
    %448 = math.rsqrt %447 : vector<64x1xf32>
    %449 = vector.broadcast %448 : vector<64x1xf32> to vector<64x32xf32>
    %450 = arith.mulf %445, %449 : vector<64x32xf32>
    %451 = vector.broadcast %431 : vector<1x32xf32> to vector<64x32xf32>
    %452 = arith.mulf %450, %451 : vector<64x32xf32>
    %453 = vector.broadcast %432 : vector<1x32xf32> to vector<64x32xf32>
    %454 = arith.addf %452, %453 : vector<64x32xf32>
    %455 = arith.truncf %454 : vector<64x32xf32> to vector<64x32xbf16>
    %c0_186 = arith.constant 0 : index
    %c0_187 = arith.constant 0 : index
    %456 = vector.load %arg22[%c0_186, %c0_187] : memref<32x128xbf16, #tpu.memory_space<vmem>>, vector<32x128xbf16>
    %cst_188 = arith.constant dense<0.000000e+00> : vector<64x128xf32>
    %457 = tpu.matmul %455, %456, %cst_188 {dimension_numbers = #tpu.dot_dimension_numbers<[1], [0], [0], [1], [0, 0, 1, 1], [], []>} : vector<64x32xbf16>, vector<32x128xbf16>, vector<64x128xf32> -> vector<64x128xf32>
    %c0_189 = arith.constant 0 : index
    %c0_190 = arith.constant 0 : index
    %458 = vector.load %arg23[%c0_189, %c0_190] : memref<1x128xf32, #tpu.memory_space<vmem>>, vector<1x128xf32>
    %459 = vector.broadcast %458 : vector<1x128xf32> to vector<64x128xf32>
    %460 = arith.addf %457, %459 : vector<64x128xf32>
    %cst_191 = arith.constant 5.000000e-01 : f32
    %461 = vector.broadcast %cst_191 : f32 to vector<64x128xf32>
    %462 = arith.mulf %461, %460 : vector<64x128xf32>
    %cst_192 = arith.constant 0.707106769 : f32
    %463 = vector.broadcast %cst_192 : f32 to vector<64x128xf32>
    %464 = arith.mulf %460, %463 : vector<64x128xf32>
    %465 = math.absf %464 : vector<64x128xf32>
    %cst_193 = arith.constant 0.327591091 : f32
    %466 = vector.broadcast %cst_193 : f32 to vector<64x128xf32>
    %467 = arith.mulf %466, %465 : vector<64x128xf32>
    %cst_194 = arith.constant 1.000000e+00 : f32
    %468 = vector.broadcast %cst_194 : f32 to vector<64x128xf32>
    %469 = arith.addf %468, %467 : vector<64x128xf32>
    %470 = tpu.reciprocal %469 {approx = true} : vector<64x128xf32> -> vector<64x128xf32>
    %cst_195 = arith.constant 1.06140542 : f32
    %471 = vector.broadcast %cst_195 : f32 to vector<64x128xf32>
    %472 = arith.mulf %471, %470 : vector<64x128xf32>
    %cst_196 = arith.constant 1.45315206 : f32
    %473 = vector.broadcast %cst_196 : f32 to vector<64x128xf32>
    %474 = arith.subf %472, %473 : vector<64x128xf32>
    %475 = arith.mulf %474, %470 : vector<64x128xf32>
    %cst_197 = arith.constant 1.42141378 : f32
    %476 = vector.broadcast %cst_197 : f32 to vector<64x128xf32>
    %477 = arith.addf %475, %476 : vector<64x128xf32>
    %478 = arith.mulf %477, %470 : vector<64x128xf32>
    %cst_198 = arith.constant 0.284496725 : f32
    %479 = vector.broadcast %cst_198 : f32 to vector<64x128xf32>
    %480 = arith.subf %478, %479 : vector<64x128xf32>
    %481 = arith.mulf %480, %470 : vector<64x128xf32>
    %cst_199 = arith.constant 0.254829586 : f32
    %482 = vector.broadcast %cst_199 : f32 to vector<64x128xf32>
    %483 = arith.addf %481, %482 : vector<64x128xf32>
    %484 = arith.mulf %483, %470 : vector<64x128xf32>
    %cst_200 = arith.constant 0.000000e+00 : f32
    %485 = vector.broadcast %cst_200 : f32 to vector<64x128xf32>
    %486 = arith.subf %485, %465 : vector<64x128xf32>
    %487 = arith.mulf %486, %465 : vector<64x128xf32>
    %488 = math.exp %487 : vector<64x128xf32>
    %489 = arith.mulf %484, %488 : vector<64x128xf32>
    %cst_201 = arith.constant 1.000000e+00 : f32
    %490 = vector.broadcast %cst_201 : f32 to vector<64x128xf32>
    %491 = arith.subf %490, %489 : vector<64x128xf32>
    %cst_202 = arith.constant 0.000000e+00 : f32
    %492 = vector.broadcast %cst_202 : f32 to vector<64x128xf32>
    %493 = arith.cmpf oge, %464, %492 : vector<64x128xf32>
    %cst_203 = arith.constant 0.000000e+00 : f32
    %494 = vector.broadcast %cst_203 : f32 to vector<64x128xf32>
    %495 = arith.subf %494, %491 : vector<64x128xf32>
    %496 = arith.select %493, %491, %495 : vector<64x128xi1>, vector<64x128xf32>
    %cst_204 = arith.constant 1.000000e+00 : f32
    %497 = vector.broadcast %cst_204 : f32 to vector<64x128xf32>
    %498 = arith.addf %497, %496 : vector<64x128xf32>
    %499 = arith.mulf %462, %498 : vector<64x128xf32>
    %500 = arith.truncf %499 : vector<64x128xf32> to vector<64x128xbf16>
    %c0_205 = arith.constant 0 : index
    %c0_206 = arith.constant 0 : index
    %501 = vector.load %arg24[%c0_205, %c0_206] : memref<128x32xbf16, #tpu.memory_space<vmem>>, vector<128x32xbf16>
    %cst_207 = arith.constant dense<0.000000e+00> : vector<64x32xf32>
    %502 = tpu.matmul %500, %501, %cst_207 {dimension_numbers = #tpu.dot_dimension_numbers<[1], [0], [0], [1], [0, 0, 1, 1], [], []>} : vector<64x128xbf16>, vector<128x32xbf16>, vector<64x32xf32> -> vector<64x32xf32>
    %503 = arith.addf %430, %502 : vector<64x32xf32>
    %c0_208 = arith.constant 0 : index
    %c0_209 = arith.constant 0 : index
    %504 = vector.load %arg25[%c0_208, %c0_209] : memref<1x32xf32, #tpu.memory_space<vmem>>, vector<1x32xf32>
    %505 = vector.broadcast %504 : vector<1x32xf32> to vector<64x32xf32>
    %506 = arith.addf %503, %505 : vector<64x32xf32>
    %507 = vector.extract_strided_slice %506 {offsets = [0, 0], sizes = [17, 32], strides = [1, 1]} : vector<64x32xf32> to vector<17x32xf32>
    %c0_210 = arith.constant 0 : index
    %c0_211 = arith.constant 0 : index
    %c0_212 = arith.constant 0 : index
    %508 = vector.load %arg35[%c0_210, %c0_211, %c0_212] : memref<2x17x32xf32, #tpu.memory_space<vmem>>, vector<1x17x32xf32>
    %509 = vector.shape_cast %508 : vector<1x17x32xf32> to vector<17x32xf32>
    %510 = vector.shape_cast %507 : vector<17x32xf32> to vector<1x17x32xf32>
    tpu.vector_store %arg35[%c0_210, %c0_211, %c0_212], %510 {strides = array<i32>} : memref<2x17x32xf32, #tpu.memory_space<vmem>>, vector<1x17x32xf32>,
    %511 = vector.extract_strided_slice %506 {offsets = [32, 0], sizes = [17, 32], strides = [1, 1]} : vector<64x32xf32> to vector<17x32xf32>
    %c1_213 = arith.constant 1 : index
    %c0_214 = arith.constant 0 : index
    %c0_215 = arith.constant 0 : index
    %512 = vector.load %arg35[%c1_213, %c0_214, %c0_215] : memref<2x17x32xf32, #tpu.memory_space<vmem>>, vector<1x17x32xf32>
    %513 = vector.shape_cast %512 : vector<1x17x32xf32> to vector<17x32xf32>
    %514 = vector.shape_cast %511 : vector<17x32xf32> to vector<1x17x32xf32>
    tpu.vector_store %arg35[%c1_213, %c0_214, %c0_215], %514 {strides = array<i32>} : memref<2x17x32xf32, #tpu.memory_space<vmem>>, vector<1x17x32xf32>,
    %515 = arith.truncf %506 : vector<64x32xf32> to vector<64x32xbf16>
    %c0_216 = arith.constant 0 : index
    %c0_217 = arith.constant 0 : index
    %516 = vector.load %arg26[%c0_216, %c0_217] : memref<32x4xbf16, #tpu.memory_space<vmem>>, vector<32x4xbf16>
    %cst_218 = arith.constant dense<0.000000e+00> : vector<64x4xf32>
    %517 = tpu.matmul %515, %516, %cst_218 {dimension_numbers = #tpu.dot_dimension_numbers<[1], [0], [0], [1], [0, 0, 1, 1], [], []>} : vector<64x32xbf16>, vector<32x4xbf16>, vector<64x4xf32> -> vector<64x4xf32>
    %c0_219 = arith.constant 0 : index
    %c0_220 = arith.constant 0 : index
    %518 = vector.load %arg27[%c0_219, %c0_220] : memref<1x4xf32, #tpu.memory_space<vmem>>, vector<1x4xf32>
    %519 = vector.broadcast %518 : vector<1x4xf32> to vector<64x4xf32>
    %520 = arith.addf %517, %519 : vector<64x4xf32>
    %cst_221 = arith.constant 0.000000e+00 : f32
    %521 = vector.broadcast %cst_221 : f32 to vector<64x4xf32>
    %522 = arith.maximumf %520, %521 : vector<64x4xf32>
    %523 = vector.extract_strided_slice %522 {offsets = [1, 0], sizes = [1, 4], strides = [1, 1]} : vector<64x4xf32> to vector<1x4xf32>
    %524 = vector.shape_cast %523 : vector<1x4xf32> to vector<1x4xf32>
    %525 = vector.broadcast %524 : vector<1x4xf32> to vector<2x4xf32>
    %c0_222 = arith.constant 0 : index
    %c0_223 = arith.constant 0 : index
    %526 = vector.load %arg39[%c0_222, %c0_223] : memref<128x4xf32, #tpu.memory_space<vmem>>, vector<2x4xf32>
    tpu.vector_store %arg39[%c0_222, %c0_223], %525 {strides = array<i32>} : memref<128x4xf32, #tpu.memory_space<vmem>>, vector<2x4xf32>,
    %c8_224 = arith.constant 8 : index
    %c0_225 = arith.constant 0 : index
    %527 = vector.load %arg39[%c8_224, %c0_225] : memref<128x4xf32, #tpu.memory_space<vmem>>, vector<2x4xf32>
    tpu.vector_store %arg39[%c8_224, %c0_225], %525 {strides = array<i32>} : memref<128x4xf32, #tpu.memory_space<vmem>>, vector<2x4xf32>,
    %528 = vector.extract_strided_slice %522 {offsets = [2, 0], sizes = [1, 4], strides = [1, 1]} : vector<64x4xf32> to vector<1x4xf32>
    %529 = vector.shape_cast %528 : vector<1x4xf32> to vector<1x4xf32>
    %530 = vector.broadcast %529 : vector<1x4xf32> to vector<2x4xf32>
    %c2_226 = arith.constant 2 : index
    %c0_227 = arith.constant 0 : index
    %531 = vector.load %arg39[%c2_226, %c0_227] : memref<128x4xf32, #tpu.memory_space<vmem>>, vector<2x4xf32>
    tpu.vector_store %arg39[%c2_226, %c0_227], %530 {strides = array<i32>} : memref<128x4xf32, #tpu.memory_space<vmem>>, vector<2x4xf32>,
    %c10_228 = arith.constant 10 : index
    %c0_229 = arith.constant 0 : index
    %532 = vector.load %arg39[%c10_228, %c0_229] : memref<128x4xf32, #tpu.memory_space<vmem>>, vector<2x4xf32>
    tpu.vector_store %arg39[%c10_228, %c0_229], %530 {strides = array<i32>} : memref<128x4xf32, #tpu.memory_space<vmem>>, vector<2x4xf32>,
    %533 = vector.extract_strided_slice %522 {offsets = [3, 0], sizes = [1, 4], strides = [1, 1]} : vector<64x4xf32> to vector<1x4xf32>
    %534 = vector.shape_cast %533 : vector<1x4xf32> to vector<1x4xf32>
    %535 = vector.broadcast %534 : vector<1x4xf32> to vector<2x4xf32>
    %c4_230 = arith.constant 4 : index
    %c0_231 = arith.constant 0 : index
    %536 = vector.load %arg39[%c4_230, %c0_231] : memref<128x4xf32, #tpu.memory_space<vmem>>, vector<2x4xf32>
    tpu.vector_store %arg39[%c4_230, %c0_231], %535 {strides = array<i32>} : memref<128x4xf32, #tpu.memory_space<vmem>>, vector<2x4xf32>,
    %c12_232 = arith.constant 12 : index
    %c0_233 = arith.constant 0 : index
    %537 = vector.load %arg39[%c12_232, %c0_233] : memref<128x4xf32, #tpu.memory_space<vmem>>, vector<2x4xf32>
    tpu.vector_store %arg39[%c12_232, %c0_233], %535 {strides = array<i32>} : memref<128x4xf32, #tpu.memory_space<vmem>>, vector<2x4xf32>,
    %538 = vector.extract_strided_slice %522 {offsets = [4, 0], sizes = [1, 4], strides = [1, 1]} : vector<64x4xf32> to vector<1x4xf32>
    %539 = vector.shape_cast %538 : vector<1x4xf32> to vector<1x4xf32>
    %540 = vector.broadcast %539 : vector<1x4xf32> to vector<2x4xf32>
    %c6_234 = arith.constant 6 : index
    %c0_235 = arith.constant 0 : index
    %541 = vector.load %arg39[%c6_234, %c0_235] : memref<128x4xf32, #tpu.memory_space<vmem>>, vector<2x4xf32>
    tpu.vector_store %arg39[%c6_234, %c0_235], %540 {strides = array<i32>} : memref<128x4xf32, #tpu.memory_space<vmem>>, vector<2x4xf32>,
    %c14_236 = arith.constant 14 : index
    %c0_237 = arith.constant 0 : index
    %542 = vector.load %arg39[%c14_236, %c0_237] : memref<128x4xf32, #tpu.memory_space<vmem>>, vector<2x4xf32>
    tpu.vector_store %arg39[%c14_236, %c0_237], %540 {strides = array<i32>} : memref<128x4xf32, #tpu.memory_space<vmem>>, vector<2x4xf32>,
    %543 = vector.extract_strided_slice %522 {offsets = [5, 0], sizes = [1, 4], strides = [1, 1]} : vector<64x4xf32> to vector<1x4xf32>
    %544 = vector.shape_cast %543 : vector<1x4xf32> to vector<1x4xf32>
    %545 = vector.broadcast %544 : vector<1x4xf32> to vector<2x4xf32>
    %c16_238 = arith.constant 16 : index
    %c0_239 = arith.constant 0 : index
    %546 = vector.load %arg39[%c16_238, %c0_239] : memref<128x4xf32, #tpu.memory_space<vmem>>, vector<2x4xf32>
    tpu.vector_store %arg39[%c16_238, %c0_239], %545 {strides = array<i32>} : memref<128x4xf32, #tpu.memory_space<vmem>>, vector<2x4xf32>,
    %c24_240 = arith.constant 24 : index
    %c0_241 = arith.constant 0 : index
    %547 = vector.load %arg39[%c24_240, %c0_241] : memref<128x4xf32, #tpu.memory_space<vmem>>, vector<2x4xf32>
    tpu.vector_store %arg39[%c24_240, %c0_241], %545 {strides = array<i32>} : memref<128x4xf32, #tpu.memory_space<vmem>>, vector<2x4xf32>,
    %548 = vector.extract_strided_slice %522 {offsets = [6, 0], sizes = [1, 4], strides = [1, 1]} : vector<64x4xf32> to vector<1x4xf32>
    %549 = vector.shape_cast %548 : vector<1x4xf32> to vector<1x4xf32>
    %550 = vector.broadcast %549 : vector<1x4xf32> to vector<2x4xf32>
    %c18_242 = arith.constant 18 : index
    %c0_243 = arith.constant 0 : index
    %551 = vector.load %arg39[%c18_242, %c0_243] : memref<128x4xf32, #tpu.memory_space<vmem>>, vector<2x4xf32>
    tpu.vector_store %arg39[%c18_242, %c0_243], %550 {strides = array<i32>} : memref<128x4xf32, #tpu.memory_space<vmem>>, vector<2x4xf32>,
    %c26_244 = arith.constant 26 : index
    %c0_245 = arith.constant 0 : index
    %552 = vector.load %arg39[%c26_244, %c0_245] : memref<128x4xf32, #tpu.memory_space<vmem>>, vector<2x4xf32>
    tpu.vector_store %arg39[%c26_244, %c0_245], %550 {strides = array<i32>} : memref<128x4xf32, #tpu.memory_space<vmem>>, vector<2x4xf32>,
    %553 = vector.extract_strided_slice %522 {offsets = [7, 0], sizes = [1, 4], strides = [1, 1]} : vector<64x4xf32> to vector<1x4xf32>
    %554 = vector.shape_cast %553 : vector<1x4xf32> to vector<1x4xf32>
    %555 = vector.broadcast %554 : vector<1x4xf32> to vector<2x4xf32>
    %c20_246 = arith.constant 20 : index
    %c0_247 = arith.constant 0 : index
    %556 = vector.load %arg39[%c20_246, %c0_247] : memref<128x4xf32, #tpu.memory_space<vmem>>, vector<2x4xf32>
    tpu.vector_store %arg39[%c20_246, %c0_247], %555 {strides = array<i32>} : memref<128x4xf32, #tpu.memory_space<vmem>>, vector<2x4xf32>,
    %c28_248 = arith.constant 28 : index
    %c0_249 = arith.constant 0 : index
    %557 = vector.load %arg39[%c28_248, %c0_249] : memref<128x4xf32, #tpu.memory_space<vmem>>, vector<2x4xf32>
    tpu.vector_store %arg39[%c28_248, %c0_249], %555 {strides = array<i32>} : memref<128x4xf32, #tpu.memory_space<vmem>>, vector<2x4xf32>,
    %558 = vector.extract_strided_slice %522 {offsets = [8, 0], sizes = [1, 4], strides = [1, 1]} : vector<64x4xf32> to vector<1x4xf32>
    %559 = vector.shape_cast %558 : vector<1x4xf32> to vector<1x4xf32>
    %560 = vector.broadcast %559 : vector<1x4xf32> to vector<2x4xf32>
    %c22_250 = arith.constant 22 : index
    %c0_251 = arith.constant 0 : index
    %561 = vector.load %arg39[%c22_250, %c0_251] : memref<128x4xf32, #tpu.memory_space<vmem>>, vector<2x4xf32>
    tpu.vector_store %arg39[%c22_250, %c0_251], %560 {strides = array<i32>} : memref<128x4xf32, #tpu.memory_space<vmem>>, vector<2x4xf32>,
    %c30_252 = arith.constant 30 : index
    %c0_253 = arith.constant 0 : index
    %562 = vector.load %arg39[%c30_252, %c0_253] : memref<128x4xf32, #tpu.memory_space<vmem>>, vector<2x4xf32>
    tpu.vector_store %arg39[%c30_252, %c0_253], %560 {strides = array<i32>} : memref<128x4xf32, #tpu.memory_space<vmem>>, vector<2x4xf32>,
    %563 = vector.extract_strided_slice %522 {offsets = [9, 0], sizes = [1, 4], strides = [1, 1]} : vector<64x4xf32> to vector<1x4xf32>
    %564 = vector.shape_cast %563 : vector<1x4xf32> to vector<1x4xf32>
    %565 = vector.broadcast %564 : vector<1x4xf32> to vector<2x4xf32>
    %c32_254 = arith.constant 32 : index
    %c0_255 = arith.constant 0 : index
    %566 = vector.load %arg39[%c32_254, %c0_255] : memref<128x4xf32, #tpu.memory_space<vmem>>, vector<2x4xf32>
    tpu.vector_store %arg39[%c32_254, %c0_255], %565 {strides = array<i32>} : memref<128x4xf32, #tpu.memory_space<vmem>>, vector<2x4xf32>,
    %c40 = arith.constant 40 : index
    %c0_256 = arith.constant 0 : index
    %567 = vector.load %arg39[%c40, %c0_256] : memref<128x4xf32, #tpu.memory_space<vmem>>, vector<2x4xf32>
    tpu.vector_store %arg39[%c40, %c0_256], %565 {strides = array<i32>} : memref<128x4xf32, #tpu.memory_space<vmem>>, vector<2x4xf32>,
    %568 = vector.extract_strided_slice %522 {offsets = [10, 0], sizes = [1, 4], strides = [1, 1]} : vector<64x4xf32> to vector<1x4xf32>
    %569 = vector.shape_cast %568 : vector<1x4xf32> to vector<1x4xf32>
    %570 = vector.broadcast %569 : vector<1x4xf32> to vector<2x4xf32>
    %c34 = arith.constant 34 : index
    %c0_257 = arith.constant 0 : index
    %571 = vector.load %arg39[%c34, %c0_257] : memref<128x4xf32, #tpu.memory_space<vmem>>, vector<2x4xf32>
    tpu.vector_store %arg39[%c34, %c0_257], %570 {strides = array<i32>} : memref<128x4xf32, #tpu.memory_space<vmem>>, vector<2x4xf32>,
    %c42 = arith.constant 42 : index
    %c0_258 = arith.constant 0 : index
    %572 = vector.load %arg39[%c42, %c0_258] : memref<128x4xf32, #tpu.memory_space<vmem>>, vector<2x4xf32>
    tpu.vector_store %arg39[%c42, %c0_258], %570 {strides = array<i32>} : memref<128x4xf32, #tpu.memory_space<vmem>>, vector<2x4xf32>,
    %573 = vector.extract_strided_slice %522 {offsets = [11, 0], sizes = [1, 4], strides = [1, 1]} : vector<64x4xf32> to vector<1x4xf32>
    %574 = vector.shape_cast %573 : vector<1x4xf32> to vector<1x4xf32>
    %575 = vector.broadcast %574 : vector<1x4xf32> to vector<2x4xf32>
    %c36 = arith.constant 36 : index
    %c0_259 = arith.constant 0 : index
    %576 = vector.load %arg39[%c36, %c0_259] : memref<128x4xf32, #tpu.memory_space<vmem>>, vector<2x4xf32>
    tpu.vector_store %arg39[%c36, %c0_259], %575 {strides = array<i32>} : memref<128x4xf32, #tpu.memory_space<vmem>>, vector<2x4xf32>,
    %c44 = arith.constant 44 : index
    %c0_260 = arith.constant 0 : index
    %577 = vector.load %arg39[%c44, %c0_260] : memref<128x4xf32, #tpu.memory_space<vmem>>, vector<2x4xf32>
    tpu.vector_store %arg39[%c44, %c0_260], %575 {strides = array<i32>} : memref<128x4xf32, #tpu.memory_space<vmem>>, vector<2x4xf32>,
    %578 = vector.extract_strided_slice %522 {offsets = [12, 0], sizes = [1, 4], strides = [1, 1]} : vector<64x4xf32> to vector<1x4xf32>
    %579 = vector.shape_cast %578 : vector<1x4xf32> to vector<1x4xf32>
    %580 = vector.broadcast %579 : vector<1x4xf32> to vector<2x4xf32>
    %c38 = arith.constant 38 : index
    %c0_261 = arith.constant 0 : index
    %581 = vector.load %arg39[%c38, %c0_261] : memref<128x4xf32, #tpu.memory_space<vmem>>, vector<2x4xf32>
    tpu.vector_store %arg39[%c38, %c0_261], %580 {strides = array<i32>} : memref<128x4xf32, #tpu.memory_space<vmem>>, vector<2x4xf32>,
    %c46 = arith.constant 46 : index
    %c0_262 = arith.constant 0 : index
    %582 = vector.load %arg39[%c46, %c0_262] : memref<128x4xf32, #tpu.memory_space<vmem>>, vector<2x4xf32>
    tpu.vector_store %arg39[%c46, %c0_262], %580 {strides = array<i32>} : memref<128x4xf32, #tpu.memory_space<vmem>>, vector<2x4xf32>,
    %583 = vector.extract_strided_slice %522 {offsets = [13, 0], sizes = [1, 4], strides = [1, 1]} : vector<64x4xf32> to vector<1x4xf32>
    %584 = vector.shape_cast %583 : vector<1x4xf32> to vector<1x4xf32>
    %585 = vector.broadcast %584 : vector<1x4xf32> to vector<2x4xf32>
    %c48 = arith.constant 48 : index
    %c0_263 = arith.constant 0 : index
    %586 = vector.load %arg39[%c48, %c0_263] : memref<128x4xf32, #tpu.memory_space<vmem>>, vector<2x4xf32>
    tpu.vector_store %arg39[%c48, %c0_263], %585 {strides = array<i32>} : memref<128x4xf32, #tpu.memory_space<vmem>>, vector<2x4xf32>,
    %c56 = arith.constant 56 : index
    %c0_264 = arith.constant 0 : index
    %587 = vector.load %arg39[%c56, %c0_264] : memref<128x4xf32, #tpu.memory_space<vmem>>, vector<2x4xf32>
    tpu.vector_store %arg39[%c56, %c0_264], %585 {strides = array<i32>} : memref<128x4xf32, #tpu.memory_space<vmem>>, vector<2x4xf32>,
    %588 = vector.extract_strided_slice %522 {offsets = [14, 0], sizes = [1, 4], strides = [1, 1]} : vector<64x4xf32> to vector<1x4xf32>
    %589 = vector.shape_cast %588 : vector<1x4xf32> to vector<1x4xf32>
    %590 = vector.broadcast %589 : vector<1x4xf32> to vector<2x4xf32>
    %c50 = arith.constant 50 : index
    %c0_265 = arith.constant 0 : index
    %591 = vector.load %arg39[%c50, %c0_265] : memref<128x4xf32, #tpu.memory_space<vmem>>, vector<2x4xf32>
    tpu.vector_store %arg39[%c50, %c0_265], %590 {strides = array<i32>} : memref<128x4xf32, #tpu.memory_space<vmem>>, vector<2x4xf32>,
    %c58 = arith.constant 58 : index
    %c0_266 = arith.constant 0 : index
    %592 = vector.load %arg39[%c58, %c0_266] : memref<128x4xf32, #tpu.memory_space<vmem>>, vector<2x4xf32>
    tpu.vector_store %arg39[%c58, %c0_266], %590 {strides = array<i32>} : memref<128x4xf32, #tpu.memory_space<vmem>>, vector<2x4xf32>,
    %593 = vector.extract_strided_slice %522 {offsets = [15, 0], sizes = [1, 4], strides = [1, 1]} : vector<64x4xf32> to vector<1x4xf32>
    %594 = vector.shape_cast %593 : vector<1x4xf32> to vector<1x4xf32>
    %595 = vector.broadcast %594 : vector<1x4xf32> to vector<2x4xf32>
    %c52 = arith.constant 52 : index
    %c0_267 = arith.constant 0 : index
    %596 = vector.load %arg39[%c52, %c0_267] : memref<128x4xf32, #tpu.memory_space<vmem>>, vector<2x4xf32>
    tpu.vector_store %arg39[%c52, %c0_267], %595 {strides = array<i32>} : memref<128x4xf32, #tpu.memory_space<vmem>>, vector<2x4xf32>,
    %c60 = arith.constant 60 : index
    %c0_268 = arith.constant 0 : index
    %597 = vector.load %arg39[%c60, %c0_268] : memref<128x4xf32, #tpu.memory_space<vmem>>, vector<2x4xf32>
    tpu.vector_store %arg39[%c60, %c0_268], %595 {strides = array<i32>} : memref<128x4xf32, #tpu.memory_space<vmem>>, vector<2x4xf32>,
    %598 = vector.extract_strided_slice %522 {offsets = [16, 0], sizes = [1, 4], strides = [1, 1]} : vector<64x4xf32> to vector<1x4xf32>
    %599 = vector.shape_cast %598 : vector<1x4xf32> to vector<1x4xf32>
    %600 = vector.broadcast %599 : vector<1x4xf32> to vector<2x4xf32>
    %c54 = arith.constant 54 : index
    %c0_269 = arith.constant 0 : index
    %601 = vector.load %arg39[%c54, %c0_269] : memref<128x4xf32, #tpu.memory_space<vmem>>, vector<2x4xf32>
    tpu.vector_store %arg39[%c54, %c0_269], %600 {strides = array<i32>} : memref<128x4xf32, #tpu.memory_space<vmem>>, vector<2x4xf32>,
    %c62 = arith.constant 62 : index
    %c0_270 = arith.constant 0 : index
    %602 = vector.load %arg39[%c62, %c0_270] : memref<128x4xf32, #tpu.memory_space<vmem>>, vector<2x4xf32>
    tpu.vector_store %arg39[%c62, %c0_270], %600 {strides = array<i32>} : memref<128x4xf32, #tpu.memory_space<vmem>>, vector<2x4xf32>,
    %603 = vector.extract_strided_slice %522 {offsets = [33, 0], sizes = [1, 4], strides = [1, 1]} : vector<64x4xf32> to vector<1x4xf32>
    %604 = vector.shape_cast %603 : vector<1x4xf32> to vector<1x4xf32>
    %605 = vector.broadcast %604 : vector<1x4xf32> to vector<2x4xf32>
    %c64 = arith.constant 64 : index
    %c0_271 = arith.constant 0 : index
    %606 = vector.load %arg39[%c64, %c0_271] : memref<128x4xf32, #tpu.memory_space<vmem>>, vector<2x4xf32>
    tpu.vector_store %arg39[%c64, %c0_271], %605 {strides = array<i32>} : memref<128x4xf32, #tpu.memory_space<vmem>>, vector<2x4xf32>,
    %c72 = arith.constant 72 : index
    %c0_272 = arith.constant 0 : index
    %607 = vector.load %arg39[%c72, %c0_272] : memref<128x4xf32, #tpu.memory_space<vmem>>, vector<2x4xf32>
    tpu.vector_store %arg39[%c72, %c0_272], %605 {strides = array<i32>} : memref<128x4xf32, #tpu.memory_space<vmem>>, vector<2x4xf32>,
    %608 = vector.extract_strided_slice %522 {offsets = [34, 0], sizes = [1, 4], strides = [1, 1]} : vector<64x4xf32> to vector<1x4xf32>
    %609 = vector.shape_cast %608 : vector<1x4xf32> to vector<1x4xf32>
    %610 = vector.broadcast %609 : vector<1x4xf32> to vector<2x4xf32>
    %c66 = arith.constant 66 : index
    %c0_273 = arith.constant 0 : index
    %611 = vector.load %arg39[%c66, %c0_273] : memref<128x4xf32, #tpu.memory_space<vmem>>, vector<2x4xf32>
    tpu.vector_store %arg39[%c66, %c0_273], %610 {strides = array<i32>} : memref<128x4xf32, #tpu.memory_space<vmem>>, vector<2x4xf32>,
    %c74 = arith.constant 74 : index
    %c0_274 = arith.constant 0 : index
    %612 = vector.load %arg39[%c74, %c0_274] : memref<128x4xf32, #tpu.memory_space<vmem>>, vector<2x4xf32>
    tpu.vector_store %arg39[%c74, %c0_274], %610 {strides = array<i32>} : memref<128x4xf32, #tpu.memory_space<vmem>>, vector<2x4xf32>,
    %613 = vector.extract_strided_slice %522 {offsets = [35, 0], sizes = [1, 4], strides = [1, 1]} : vector<64x4xf32> to vector<1x4xf32>
    %614 = vector.shape_cast %613 : vector<1x4xf32> to vector<1x4xf32>
    %615 = vector.broadcast %614 : vector<1x4xf32> to vector<2x4xf32>
    %c68 = arith.constant 68 : index
    %c0_275 = arith.constant 0 : index
    %616 = vector.load %arg39[%c68, %c0_275] : memref<128x4xf32, #tpu.memory_space<vmem>>, vector<2x4xf32>
    tpu.vector_store %arg39[%c68, %c0_275], %615 {strides = array<i32>} : memref<128x4xf32, #tpu.memory_space<vmem>>, vector<2x4xf32>,
    %c76 = arith.constant 76 : index
    %c0_276 = arith.constant 0 : index
    %617 = vector.load %arg39[%c76, %c0_276] : memref<128x4xf32, #tpu.memory_space<vmem>>, vector<2x4xf32>
    tpu.vector_store %arg39[%c76, %c0_276], %615 {strides = array<i32>} : memref<128x4xf32, #tpu.memory_space<vmem>>, vector<2x4xf32>,
    %618 = vector.extract_strided_slice %522 {offsets = [36, 0], sizes = [1, 4], strides = [1, 1]} : vector<64x4xf32> to vector<1x4xf32>
    %619 = vector.shape_cast %618 : vector<1x4xf32> to vector<1x4xf32>
    %620 = vector.broadcast %619 : vector<1x4xf32> to vector<2x4xf32>
    %c70 = arith.constant 70 : index
    %c0_277 = arith.constant 0 : index
    %621 = vector.load %arg39[%c70, %c0_277] : memref<128x4xf32, #tpu.memory_space<vmem>>, vector<2x4xf32>
    tpu.vector_store %arg39[%c70, %c0_277], %620 {strides = array<i32>} : memref<128x4xf32, #tpu.memory_space<vmem>>, vector<2x4xf32>,
    %c78 = arith.constant 78 : index
    %c0_278 = arith.constant 0 : index
    %622 = vector.load %arg39[%c78, %c0_278] : memref<128x4xf32, #tpu.memory_space<vmem>>, vector<2x4xf32>
    tpu.vector_store %arg39[%c78, %c0_278], %620 {strides = array<i32>} : memref<128x4xf32, #tpu.memory_space<vmem>>, vector<2x4xf32>,
    %623 = vector.extract_strided_slice %522 {offsets = [37, 0], sizes = [1, 4], strides = [1, 1]} : vector<64x4xf32> to vector<1x4xf32>
    %624 = vector.shape_cast %623 : vector<1x4xf32> to vector<1x4xf32>
    %625 = vector.broadcast %624 : vector<1x4xf32> to vector<2x4xf32>
    %c80 = arith.constant 80 : index
    %c0_279 = arith.constant 0 : index
    %626 = vector.load %arg39[%c80, %c0_279] : memref<128x4xf32, #tpu.memory_space<vmem>>, vector<2x4xf32>
    tpu.vector_store %arg39[%c80, %c0_279], %625 {strides = array<i32>} : memref<128x4xf32, #tpu.memory_space<vmem>>, vector<2x4xf32>,
    %c88 = arith.constant 88 : index
    %c0_280 = arith.constant 0 : index
    %627 = vector.load %arg39[%c88, %c0_280] : memref<128x4xf32, #tpu.memory_space<vmem>>, vector<2x4xf32>
    tpu.vector_store %arg39[%c88, %c0_280], %625 {strides = array<i32>} : memref<128x4xf32, #tpu.memory_space<vmem>>, vector<2x4xf32>,
    %628 = vector.extract_strided_slice %522 {offsets = [38, 0], sizes = [1, 4], strides = [1, 1]} : vector<64x4xf32> to vector<1x4xf32>
    %629 = vector.shape_cast %628 : vector<1x4xf32> to vector<1x4xf32>
    %630 = vector.broadcast %629 : vector<1x4xf32> to vector<2x4xf32>
    %c82 = arith.constant 82 : index
    %c0_281 = arith.constant 0 : index
    %631 = vector.load %arg39[%c82, %c0_281] : memref<128x4xf32, #tpu.memory_space<vmem>>, vector<2x4xf32>
    tpu.vector_store %arg39[%c82, %c0_281], %630 {strides = array<i32>} : memref<128x4xf32, #tpu.memory_space<vmem>>, vector<2x4xf32>,
    %c90 = arith.constant 90 : index
    %c0_282 = arith.constant 0 : index
    %632 = vector.load %arg39[%c90, %c0_282] : memref<128x4xf32, #tpu.memory_space<vmem>>, vector<2x4xf32>
    tpu.vector_store %arg39[%c90, %c0_282], %630 {strides = array<i32>} : memref<128x4xf32, #tpu.memory_space<vmem>>, vector<2x4xf32>,
    %633 = vector.extract_strided_slice %522 {offsets = [39, 0], sizes = [1, 4], strides = [1, 1]} : vector<64x4xf32> to vector<1x4xf32>
    %634 = vector.shape_cast %633 : vector<1x4xf32> to vector<1x4xf32>
    %635 = vector.broadcast %634 : vector<1x4xf32> to vector<2x4xf32>
    %c84 = arith.constant 84 : index
    %c0_283 = arith.constant 0 : index
    %636 = vector.load %arg39[%c84, %c0_283] : memref<128x4xf32, #tpu.memory_space<vmem>>, vector<2x4xf32>
    tpu.vector_store %arg39[%c84, %c0_283], %635 {strides = array<i32>} : memref<128x4xf32, #tpu.memory_space<vmem>>, vector<2x4xf32>,
    %c92 = arith.constant 92 : index
    %c0_284 = arith.constant 0 : index
    %637 = vector.load %arg39[%c92, %c0_284] : memref<128x4xf32, #tpu.memory_space<vmem>>, vector<2x4xf32>
    tpu.vector_store %arg39[%c92, %c0_284], %635 {strides = array<i32>} : memref<128x4xf32, #tpu.memory_space<vmem>>, vector<2x4xf32>,
    %638 = vector.extract_strided_slice %522 {offsets = [40, 0], sizes = [1, 4], strides = [1, 1]} : vector<64x4xf32> to vector<1x4xf32>
    %639 = vector.shape_cast %638 : vector<1x4xf32> to vector<1x4xf32>
    %640 = vector.broadcast %639 : vector<1x4xf32> to vector<2x4xf32>
    %c86 = arith.constant 86 : index
    %c0_285 = arith.constant 0 : index
    %641 = vector.load %arg39[%c86, %c0_285] : memref<128x4xf32, #tpu.memory_space<vmem>>, vector<2x4xf32>
    tpu.vector_store %arg39[%c86, %c0_285], %640 {strides = array<i32>} : memref<128x4xf32, #tpu.memory_space<vmem>>, vector<2x4xf32>,
    %c94 = arith.constant 94 : index
    %c0_286 = arith.constant 0 : index
    %642 = vector.load %arg39[%c94, %c0_286] : memref<128x4xf32, #tpu.memory_space<vmem>>, vector<2x4xf32>
    tpu.vector_store %arg39[%c94, %c0_286], %640 {strides = array<i32>} : memref<128x4xf32, #tpu.memory_space<vmem>>, vector<2x4xf32>,
    %643 = vector.extract_strided_slice %522 {offsets = [41, 0], sizes = [1, 4], strides = [1, 1]} : vector<64x4xf32> to vector<1x4xf32>
    %644 = vector.shape_cast %643 : vector<1x4xf32> to vector<1x4xf32>
    %645 = vector.broadcast %644 : vector<1x4xf32> to vector<2x4xf32>
    %c96 = arith.constant 96 : index
    %c0_287 = arith.constant 0 : index
    %646 = vector.load %arg39[%c96, %c0_287] : memref<128x4xf32, #tpu.memory_space<vmem>>, vector<2x4xf32>
    tpu.vector_store %arg39[%c96, %c0_287], %645 {strides = array<i32>} : memref<128x4xf32, #tpu.memory_space<vmem>>, vector<2x4xf32>,
    %c104 = arith.constant 104 : index
    %c0_288 = arith.constant 0 : index
    %647 = vector.load %arg39[%c104, %c0_288] : memref<128x4xf32, #tpu.memory_space<vmem>>, vector<2x4xf32>
    tpu.vector_store %arg39[%c104, %c0_288], %645 {strides = array<i32>} : memref<128x4xf32, #tpu.memory_space<vmem>>, vector<2x4xf32>,
    %648 = vector.extract_strided_slice %522 {offsets = [42, 0], sizes = [1, 4], strides = [1, 1]} : vector<64x4xf32> to vector<1x4xf32>
    %649 = vector.shape_cast %648 : vector<1x4xf32> to vector<1x4xf32>
    %650 = vector.broadcast %649 : vector<1x4xf32> to vector<2x4xf32>
    %c98 = arith.constant 98 : index
    %c0_289 = arith.constant 0 : index
    %651 = vector.load %arg39[%c98, %c0_289] : memref<128x4xf32, #tpu.memory_space<vmem>>, vector<2x4xf32>
    tpu.vector_store %arg39[%c98, %c0_289], %650 {strides = array<i32>} : memref<128x4xf32, #tpu.memory_space<vmem>>, vector<2x4xf32>,
    %c106 = arith.constant 106 : index
    %c0_290 = arith.constant 0 : index
    %652 = vector.load %arg39[%c106, %c0_290] : memref<128x4xf32, #tpu.memory_space<vmem>>, vector<2x4xf32>
    tpu.vector_store %arg39[%c106, %c0_290], %650 {strides = array<i32>} : memref<128x4xf32, #tpu.memory_space<vmem>>, vector<2x4xf32>,
    %653 = vector.extract_strided_slice %522 {offsets = [43, 0], sizes = [1, 4], strides = [1, 1]} : vector<64x4xf32> to vector<1x4xf32>
    %654 = vector.shape_cast %653 : vector<1x4xf32> to vector<1x4xf32>
    %655 = vector.broadcast %654 : vector<1x4xf32> to vector<2x4xf32>
    %c100 = arith.constant 100 : index
    %c0_291 = arith.constant 0 : index
    %656 = vector.load %arg39[%c100, %c0_291] : memref<128x4xf32, #tpu.memory_space<vmem>>, vector<2x4xf32>
    tpu.vector_store %arg39[%c100, %c0_291], %655 {strides = array<i32>} : memref<128x4xf32, #tpu.memory_space<vmem>>, vector<2x4xf32>,
    %c108 = arith.constant 108 : index
    %c0_292 = arith.constant 0 : index
    %657 = vector.load %arg39[%c108, %c0_292] : memref<128x4xf32, #tpu.memory_space<vmem>>, vector<2x4xf32>
    tpu.vector_store %arg39[%c108, %c0_292], %655 {strides = array<i32>} : memref<128x4xf32, #tpu.memory_space<vmem>>, vector<2x4xf32>,
    %658 = vector.extract_strided_slice %522 {offsets = [44, 0], sizes = [1, 4], strides = [1, 1]} : vector<64x4xf32> to vector<1x4xf32>
    %659 = vector.shape_cast %658 : vector<1x4xf32> to vector<1x4xf32>
    %660 = vector.broadcast %659 : vector<1x4xf32> to vector<2x4xf32>
    %c102 = arith.constant 102 : index
    %c0_293 = arith.constant 0 : index
    %661 = vector.load %arg39[%c102, %c0_293] : memref<128x4xf32, #tpu.memory_space<vmem>>, vector<2x4xf32>
    tpu.vector_store %arg39[%c102, %c0_293], %660 {strides = array<i32>} : memref<128x4xf32, #tpu.memory_space<vmem>>, vector<2x4xf32>,
    %c110 = arith.constant 110 : index
    %c0_294 = arith.constant 0 : index
    %662 = vector.load %arg39[%c110, %c0_294] : memref<128x4xf32, #tpu.memory_space<vmem>>, vector<2x4xf32>
    tpu.vector_store %arg39[%c110, %c0_294], %660 {strides = array<i32>} : memref<128x4xf32, #tpu.memory_space<vmem>>, vector<2x4xf32>,
    %663 = vector.extract_strided_slice %522 {offsets = [45, 0], sizes = [1, 4], strides = [1, 1]} : vector<64x4xf32> to vector<1x4xf32>
    %664 = vector.shape_cast %663 : vector<1x4xf32> to vector<1x4xf32>
    %665 = vector.broadcast %664 : vector<1x4xf32> to vector<2x4xf32>
    %c112 = arith.constant 112 : index
    %c0_295 = arith.constant 0 : index
    %666 = vector.load %arg39[%c112, %c0_295] : memref<128x4xf32, #tpu.memory_space<vmem>>, vector<2x4xf32>
    tpu.vector_store %arg39[%c112, %c0_295], %665 {strides = array<i32>} : memref<128x4xf32, #tpu.memory_space<vmem>>, vector<2x4xf32>,
    %c120 = arith.constant 120 : index
    %c0_296 = arith.constant 0 : index
    %667 = vector.load %arg39[%c120, %c0_296] : memref<128x4xf32, #tpu.memory_space<vmem>>, vector<2x4xf32>
    tpu.vector_store %arg39[%c120, %c0_296], %665 {strides = array<i32>} : memref<128x4xf32, #tpu.memory_space<vmem>>, vector<2x4xf32>,
    %668 = vector.extract_strided_slice %522 {offsets = [46, 0], sizes = [1, 4], strides = [1, 1]} : vector<64x4xf32> to vector<1x4xf32>
    %669 = vector.shape_cast %668 : vector<1x4xf32> to vector<1x4xf32>
    %670 = vector.broadcast %669 : vector<1x4xf32> to vector<2x4xf32>
    %c114 = arith.constant 114 : index
    %c0_297 = arith.constant 0 : index
    %671 = vector.load %arg39[%c114, %c0_297] : memref<128x4xf32, #tpu.memory_space<vmem>>, vector<2x4xf32>
    tpu.vector_store %arg39[%c114, %c0_297], %670 {strides = array<i32>} : memref<128x4xf32, #tpu.memory_space<vmem>>, vector<2x4xf32>,
    %c122 = arith.constant 122 : index
    %c0_298 = arith.constant 0 : index
    %672 = vector.load %arg39[%c122, %c0_298] : memref<128x4xf32, #tpu.memory_space<vmem>>, vector<2x4xf32>
    tpu.vector_store %arg39[%c122, %c0_298], %670 {strides = array<i32>} : memref<128x4xf32, #tpu.memory_space<vmem>>, vector<2x4xf32>,
    %673 = vector.extract_strided_slice %522 {offsets = [47, 0], sizes = [1, 4], strides = [1, 1]} : vector<64x4xf32> to vector<1x4xf32>
    %674 = vector.shape_cast %673 : vector<1x4xf32> to vector<1x4xf32>
    %675 = vector.broadcast %674 : vector<1x4xf32> to vector<2x4xf32>
    %c116 = arith.constant 116 : index
    %c0_299 = arith.constant 0 : index
    %676 = vector.load %arg39[%c116, %c0_299] : memref<128x4xf32, #tpu.memory_space<vmem>>, vector<2x4xf32>
    tpu.vector_store %arg39[%c116, %c0_299], %675 {strides = array<i32>} : memref<128x4xf32, #tpu.memory_space<vmem>>, vector<2x4xf32>,
    %c124 = arith.constant 124 : index
    %c0_300 = arith.constant 0 : index
    %677 = vector.load %arg39[%c124, %c0_300] : memref<128x4xf32, #tpu.memory_space<vmem>>, vector<2x4xf32>
    tpu.vector_store %arg39[%c124, %c0_300], %675 {strides = array<i32>} : memref<128x4xf32, #tpu.memory_space<vmem>>, vector<2x4xf32>,
    %678 = vector.extract_strided_slice %522 {offsets = [48, 0], sizes = [1, 4], strides = [1, 1]} : vector<64x4xf32> to vector<1x4xf32>
    %679 = vector.shape_cast %678 : vector<1x4xf32> to vector<1x4xf32>
    %680 = vector.broadcast %679 : vector<1x4xf32> to vector<2x4xf32>
    %c118 = arith.constant 118 : index
    %c0_301 = arith.constant 0 : index
    %681 = vector.load %arg39[%c118, %c0_301] : memref<128x4xf32, #tpu.memory_space<vmem>>, vector<2x4xf32>
    tpu.vector_store %arg39[%c118, %c0_301], %680 {strides = array<i32>} : memref<128x4xf32, #tpu.memory_space<vmem>>, vector<2x4xf32>,
    %c126 = arith.constant 126 : index
    %c0_302 = arith.constant 0 : index
    %682 = vector.load %arg39[%c126, %c0_302] : memref<128x4xf32, #tpu.memory_space<vmem>>, vector<2x4xf32>
    tpu.vector_store %arg39[%c126, %c0_302], %680 {strides = array<i32>} : memref<128x4xf32, #tpu.memory_space<vmem>>, vector<2x4xf32>,
    %c0_303 = arith.constant 0 : index
    %c0_304 = arith.constant 0 : index
    %683 = vector.load %arg39[%c0_303, %c0_304] : memref<128x4xf32, #tpu.memory_space<vmem>>, vector<128x4xf32>
    %684 = arith.truncf %75 : vector<128x16xf32> to vector<128x16xbf16>
    %c0_305 = arith.constant 0 : index
    %c0_306 = arith.constant 0 : index
    %685 = vector.load %arg28[%c0_305, %c0_306] : memref<16x4xbf16, #tpu.memory_space<vmem>>, vector<16x4xbf16>
    %cst_307 = arith.constant dense<0.000000e+00> : vector<128x4xf32>
    %686 = tpu.matmul %684, %685, %cst_307 {dimension_numbers = #tpu.dot_dimension_numbers<[1], [0], [0], [1], [0, 0, 1, 1], [], []>} : vector<128x16xbf16>, vector<16x4xbf16>, vector<128x4xf32> -> vector<128x4xf32>
    %c0_308 = arith.constant 0 : index
    %c0_309 = arith.constant 0 : index
    %687 = vector.load %arg29[%c0_308, %c0_309] : memref<1x4xf32, #tpu.memory_space<vmem>>, vector<1x4xf32>
    %688 = vector.broadcast %687 : vector<1x4xf32> to vector<128x4xf32>
    %689 = arith.addf %686, %688 : vector<128x4xf32>
    %cst_310 = arith.constant 0.000000e+00 : f32
    %690 = vector.broadcast %cst_310 : f32 to vector<128x4xf32>
    %691 = arith.maximumf %689, %690 : vector<128x4xf32>
    %692 = arith.addf %691, %683 : vector<128x4xf32>
    %693 = arith.truncf %692 : vector<128x4xf32> to vector<128x4xbf16>
    %c0_311 = arith.constant 0 : index
    %c0_312 = arith.constant 0 : index
    %694 = vector.load %arg30[%c0_311, %c0_312] : memref<4x36xbf16, #tpu.memory_space<vmem>>, vector<4x36xbf16>
    %cst_313 = arith.constant dense<0.000000e+00> : vector<128x36xf32>
    %695 = tpu.matmul %693, %694, %cst_313 {dimension_numbers = #tpu.dot_dimension_numbers<[1], [0], [0], [1], [0, 0, 1, 1], [], []>} : vector<128x4xbf16>, vector<4x36xbf16>, vector<128x36xf32> -> vector<128x36xf32>
    %696 = vector.extract_strided_slice %695 {offsets = [0, 16], sizes = [128, 4], strides = [1, 1]} : vector<128x36xf32> to vector<128x4xf32>
    %697 = vector.extract_strided_slice %695 {offsets = [0, 0], sizes = [128, 4], strides = [1, 1]} : vector<128x36xf32> to vector<128x4xf32>
    %c9_i32_314 = arith.constant 9 : i32
    %698 = tpu.dynamic_rotate %697 by %c9_i32_314 dim 0 : vector<128x4xf32>, i32 -> vector<128x4xf32>
    %699 = vector.extract_strided_slice %0 {offsets = [0, 0], sizes = [128, 1], strides = [1, 1]} : vector<128x9xf32> to vector<128x1xf32>
    %700 = vector.broadcast %699 : vector<128x1xf32> to vector<128x4xf32>
    %701 = arith.mulf %698, %700 : vector<128x4xf32>
    %702 = arith.addf %696, %701 : vector<128x4xf32>
    %703 = vector.extract_strided_slice %695 {offsets = [0, 4], sizes = [128, 4], strides = [1, 1]} : vector<128x36xf32> to vector<128x4xf32>
    %c8_i32_315 = arith.constant 8 : i32
    %704 = tpu.dynamic_rotate %703 by %c8_i32_315 dim 0 : vector<128x4xf32>, i32 -> vector<128x4xf32>
    %705 = vector.extract_strided_slice %0 {offsets = [0, 1], sizes = [128, 1], strides = [1, 1]} : vector<128x9xf32> to vector<128x1xf32>
    %706 = vector.broadcast %705 : vector<128x1xf32> to vector<128x4xf32>
    %707 = arith.mulf %704, %706 : vector<128x4xf32>
    %708 = arith.addf %702, %707 : vector<128x4xf32>
    %709 = vector.extract_strided_slice %695 {offsets = [0, 8], sizes = [128, 4], strides = [1, 1]} : vector<128x36xf32> to vector<128x4xf32>
    %c7_i32_316 = arith.constant 7 : i32
    %710 = tpu.dynamic_rotate %709 by %c7_i32_316 dim 0 : vector<128x4xf32>, i32 -> vector<128x4xf32>
    %711 = vector.extract_strided_slice %0 {offsets = [0, 2], sizes = [128, 1], strides = [1, 1]} : vector<128x9xf32> to vector<128x1xf32>
    %712 = vector.broadcast %711 : vector<128x1xf32> to vector<128x4xf32>
    %713 = arith.mulf %710, %712 : vector<128x4xf32>
    %714 = arith.addf %708, %713 : vector<128x4xf32>
    %715 = vector.extract_strided_slice %695 {offsets = [0, 12], sizes = [128, 4], strides = [1, 1]} : vector<128x36xf32> to vector<128x4xf32>
    %c1_i32_317 = arith.constant 1 : i32
    %716 = tpu.dynamic_rotate %715 by %c1_i32_317 dim 0 : vector<128x4xf32>, i32 -> vector<128x4xf32>
    %717 = vector.extract_strided_slice %0 {offsets = [0, 3], sizes = [128, 1], strides = [1, 1]} : vector<128x9xf32> to vector<128x1xf32>
    %718 = vector.broadcast %717 : vector<128x1xf32> to vector<128x4xf32>
    %719 = arith.mulf %716, %718 : vector<128x4xf32>
    %720 = arith.addf %714, %719 : vector<128x4xf32>
    %721 = vector.extract_strided_slice %695 {offsets = [0, 20], sizes = [128, 4], strides = [1, 1]} : vector<128x36xf32> to vector<128x4xf32>
    %c127_i32_318 = arith.constant 127 : i32
    %722 = tpu.dynamic_rotate %721 by %c127_i32_318 dim 0 : vector<128x4xf32>, i32 -> vector<128x4xf32>
    %723 = vector.extract_strided_slice %0 {offsets = [0, 5], sizes = [128, 1], strides = [1, 1]} : vector<128x9xf32> to vector<128x1xf32>
    %724 = vector.broadcast %723 : vector<128x1xf32> to vector<128x4xf32>
    %725 = arith.mulf %722, %724 : vector<128x4xf32>
    %726 = arith.addf %720, %725 : vector<128x4xf32>
    %727 = vector.extract_strided_slice %695 {offsets = [0, 24], sizes = [128, 4], strides = [1, 1]} : vector<128x36xf32> to vector<128x4xf32>
    %c121_i32_319 = arith.constant 121 : i32
    %728 = tpu.dynamic_rotate %727 by %c121_i32_319 dim 0 : vector<128x4xf32>, i32 -> vector<128x4xf32>
    %729 = vector.extract_strided_slice %0 {offsets = [0, 6], sizes = [128, 1], strides = [1, 1]} : vector<128x9xf32> to vector<128x1xf32>
    %730 = vector.broadcast %729 : vector<128x1xf32> to vector<128x4xf32>
    %731 = arith.mulf %728, %730 : vector<128x4xf32>
    %732 = arith.addf %726, %731 : vector<128x4xf32>
    %733 = vector.extract_strided_slice %695 {offsets = [0, 28], sizes = [128, 4], strides = [1, 1]} : vector<128x36xf32> to vector<128x4xf32>
    %c120_i32_320 = arith.constant 120 : i32
    %734 = tpu.dynamic_rotate %733 by %c120_i32_320 dim 0 : vector<128x4xf32>, i32 -> vector<128x4xf32>
    %735 = vector.extract_strided_slice %0 {offsets = [0, 7], sizes = [128, 1], strides = [1, 1]} : vector<128x9xf32> to vector<128x1xf32>
    %736 = vector.broadcast %735 : vector<128x1xf32> to vector<128x4xf32>
    %737 = arith.mulf %734, %736 : vector<128x4xf32>
    %738 = arith.addf %732, %737 : vector<128x4xf32>
    %739 = vector.extract_strided_slice %695 {offsets = [0, 32], sizes = [128, 4], strides = [1, 1]} : vector<128x36xf32> to vector<128x4xf32>
    %c119_i32_321 = arith.constant 119 : i32
    %740 = tpu.dynamic_rotate %739 by %c119_i32_321 dim 0 : vector<128x4xf32>, i32 -> vector<128x4xf32>
    %741 = vector.extract_strided_slice %0 {offsets = [0, 8], sizes = [128, 1], strides = [1, 1]} : vector<128x9xf32> to vector<128x1xf32>
    %742 = vector.broadcast %741 : vector<128x1xf32> to vector<128x4xf32>
    %743 = arith.mulf %740, %742 : vector<128x4xf32>
    %744 = arith.addf %738, %743 : vector<128x4xf32>
    %c0_322 = arith.constant 0 : index
    %c0_323 = arith.constant 0 : index
    %745 = vector.load %arg31[%c0_322, %c0_323] : memref<1x4xf32, #tpu.memory_space<vmem>>, vector<1x4xf32>
    %746 = vector.broadcast %745 : vector<1x4xf32> to vector<128x4xf32>
    %747 = arith.addf %744, %746 : vector<128x4xf32>
    %cst_324 = arith.constant 0.000000e+00 : f32
    %748 = vector.broadcast %cst_324 : f32 to vector<128x4xf32>
    %749 = arith.maximumf %747, %748 : vector<128x4xf32>
    %750 = arith.truncf %749 : vector<128x4xf32> to vector<128x4xbf16>
    %c0_325 = arith.constant 0 : index
    %c0_326 = arith.constant 0 : index
    %751 = vector.load %arg32[%c0_325, %c0_326] : memref<4x16xbf16, #tpu.memory_space<vmem>>, vector<4x16xbf16>
    %cst_327 = arith.constant dense<0.000000e+00> : vector<128x16xf32>
    %752 = tpu.matmul %750, %751, %cst_327 {dimension_numbers = #tpu.dot_dimension_numbers<[1], [0], [0], [1], [0, 0, 1, 1], [], []>} : vector<128x4xbf16>, vector<4x16xbf16>, vector<128x16xf32> -> vector<128x16xf32>
    %c0_328 = arith.constant 0 : index
    %c0_329 = arith.constant 0 : index
    %753 = vector.load %arg33[%c0_328, %c0_329] : memref<1x16xf32, #tpu.memory_space<vmem>>, vector<1x16xf32>
    %754 = vector.broadcast %753 : vector<1x16xf32> to vector<128x16xf32>
    %755 = arith.addf %752, %754 : vector<128x16xf32>
    %756 = arith.addf %755, %75 : vector<128x16xf32>
    %cst_330 = arith.constant 0.000000e+00 : f32
    %757 = vector.broadcast %cst_330 : f32 to vector<128x16xf32>
    %758 = arith.maximumf %756, %757 : vector<128x16xf32>
    %c0_331 = arith.constant 0 : index
    %c0_332 = arith.constant 0 : index
    %759 = vector.load %arg34[%c0_331, %c0_332] : memref<128x16xf32, #tpu.memory_space<vmem>>, vector<128x16xf32>
    tpu.vector_store %arg34[%c0_331, %c0_332], %758 {strides = array<i32>} : memref<128x16xf32, #tpu.memory_space<vmem>>, vector<128x16xf32>,
    return
  }
}

</mosaic_0001>

<llo_original>
// kernel: conv_trans_block_forward.1
$region0: #{conv_trans_block_forward.1}
  #allocation0 [shape = 'u32[]', space=smem, size = 0x4, offset = 0x4, fixed_abs, tag = 'smem constant byte address 0x4 - core index']
  #allocation1 [shape = 'u32[144,128]{1,0:T(1,128)}', space=vmem, size = 0x12000, scoped, tag = 'internal scratch']
  #allocation2 [shape = 'f32[32,4]{1,0:T(8,128)}', space=vmem, size = 0x4000, scoped, tag = 'scratch operand']
  #allocation3 [shape = 'f32[64,32]{1,0:T(8,128)}', space=vmem, size = 0x8000, scoped, tag = 'scratch operand']
  #allocation4 [shape = 'f32[64,32]{1,0:T(8,128)}', space=vmem, size = 0x8000, scoped, tag = 'scratch operand']
  #allocation5 [shape = 'f32[128,4]{1,0:T(8,128)}', space=vmem, size = 0x10000, scoped, tag = 'scratch operand']
  %s0 = inlined_call_operand.smem [shape: u32[36], index: -1, kind: input, shape index: {}]
  %s1 = sld [smem:[%s0]]
  %s2 = scalar_lea.smem %s0, 1
  %s3 = sld [smem:[%s2]]
  %s4 = scalar_lea.smem %s0, 2
  %s5 = sld [smem:[%s4]]
  %s6 = scalar_lea.smem %s0, 3
  %s7 = sld [smem:[%s6]]
  %s8 = scalar_lea.smem %s0, 4
  %s9 = sld [smem:[%s8]]
  %s10 = scalar_lea.smem %s0, 5
  %s11 = sld [smem:[%s10]]
  %s12 = scalar_lea.smem %s0, 6
  %s13 = sld [smem:[%s12]]
  %s14 = scalar_lea.smem %s0, 7
  %s15 = sld [smem:[%s14]]
  %s16 = scalar_lea.smem %s0, 8
  %s17 = sld [smem:[%s16]]
  %s18 = scalar_lea.smem %s0, 9
  %s19 = sld [smem:[%s18]]
  %s20 = scalar_lea.smem %s0, 10
  %s21 = sld [smem:[%s20]]
  %s22 = scalar_lea.smem %s0, 11
  %s23 = sld [smem:[%s22]]
  %s24 = scalar_lea.smem %s0, 12
  %s25 = sld [smem:[%s24]]
  %s26 = scalar_lea.smem %s0, 13
  %s27 = sld [smem:[%s26]]
  %s28 = scalar_lea.smem %s0, 14
  %s29 = sld [smem:[%s28]]
  %s30 = scalar_lea.smem %s0, 15
  %s31 = sld [smem:[%s30]]
  %s32 = scalar_lea.smem %s0, 16
  %s33 = sld [smem:[%s32]]
  %s34 = scalar_lea.smem %s0, 17
  %s35 = sld [smem:[%s34]]
  %s36 = scalar_lea.smem %s0, 18
  %s37 = sld [smem:[%s36]]
  %s38 = scalar_lea.smem %s0, 19
  %s39 = sld [smem:[%s38]]
  %s40 = scalar_lea.smem %s0, 20
  %s41 = sld [smem:[%s40]]
  %s42 = scalar_lea.smem %s0, 21
  %s43 = sld [smem:[%s42]]
  %s44 = scalar_lea.smem %s0, 22
  %s45 = sld [smem:[%s44]]
  %s46 = scalar_lea.smem %s0, 23
  %s47 = sld [smem:[%s46]]
  %s48 = scalar_lea.smem %s0, 24
  %s49 = sld [smem:[%s48]]
  %s50 = scalar_lea.smem %s0, 25
  %s51 = sld [smem:[%s50]]
  %s52 = scalar_lea.smem %s0, 26
  %s53 = sld [smem:[%s52]]
  %s54 = scalar_lea.smem %s0, 27
  %s55 = sld [smem:[%s54]]
  %s56 = scalar_lea.smem %s0, 28
  %s57 = sld [smem:[%s56]]
  %s58 = scalar_lea.smem %s0, 29
  %s59 = sld [smem:[%s58]]
  %s60 = scalar_lea.smem %s0, 30
  %s61 = sld [smem:[%s60]]
  %s62 = scalar_lea.smem %s0, 31
  %s63 = sld [smem:[%s62]]
  %s64 = scalar_lea.smem %s0, 32
  %s65 = sld [smem:[%s64]]
  %s66 = scalar_lea.smem %s0, 33
  %s67 = sld [smem:[%s66]]
  %s68 = scalar_lea.smem %s0, 34
  %s69 = sld [smem:[%s68]]
  %s70 = scalar_lea.smem %s0, 35
  %s71 = sld [smem:[%s70]]
  %72 = xla_tuple %s69, %s71
  %s73 = sld [smem:[#allocation0]]
  $region154: #{conv_trans_block_forward.1} parent=0
    _
  %s75 = ssub.s32 1, %s73
  %s76 = scalar_select 0, %s75, %s73
  $region1: #{conv_trans_block_forward.1} parent=0
    #allocation6 [shape = 'u8[65536]{0}', space=vmem, size = 0x10000, scoped, tag = 'output window, operand 0, single buffered']
    #allocation7 [shape = 's32[1]{0}', space=sflag, size = 0x4, scoped, tag = 'scoped memory for conv_trans_block_forward.1']
    %77 = vsyncpa [#allocation7], 0
    // Predicated region
    $region2: #{conv_trans_block_forward.1} parent=1 // pred_check
      _
    $region3: #{conv_trans_block_forward.1} parent=1 // pred_check_branch
      %79 = sbr.rel (0) target = $region5
    $region4: #{conv_trans_block_forward.1} parent=1 // pred_region
      _
    $region5: #{conv_trans_block_forward.1} parent=1 // pred_fallthru
      _
    // Predicated region
    $region6: #{conv_trans_block_forward.1} parent=1 // pred_check
      _
    $region7: #{conv_trans_block_forward.1} parent=1 // pred_check_branch
      %81 = sbr.rel (0) target = $region9
    $region8: #{conv_trans_block_forward.1} parent=1 // pred_region
      _
    $region9: #{conv_trans_block_forward.1} parent=1 // pred_fallthru
      _
    // Predicated region
    $region10: #{conv_trans_block_forward.1} parent=1 // pred_check
      _
    $region11: #{conv_trans_block_forward.1} parent=1 // pred_check_branch
      %83 = sbr.rel (0) target = $region13
    $region12: #{conv_trans_block_forward.1} parent=1 // pred_region
      _
    $region13: #{conv_trans_block_forward.1} parent=1 // pred_fallthru
      _
    // Predicated region
    $region14: #{conv_trans_block_forward.1} parent=1 // pred_check
      _
    $region15: #{conv_trans_block_forward.1} parent=1 // pred_check_branch
      %85 = sbr.rel (0) target = $region17
    $region16: #{conv_trans_block_forward.1} parent=1 // pred_region
      _
    $region17: #{conv_trans_block_forward.1} parent=1 // pred_fallthru
      _
    // Predicated region
    $region18: #{conv_trans_block_forward.1} parent=1 // pred_check
      _
    $region19: #{conv_trans_block_forward.1} parent=1 // pred_check_branch
      %87 = sbr.rel (0) target = $region21
    $region20: #{conv_trans_block_forward.1} parent=1 // pred_region
      _
    $region21: #{conv_trans_block_forward.1} parent=1 // pred_fallthru
      _
    // Predicated region
    $region22: #{conv_trans_block_forward.1} parent=1 // pred_check
      _
    $region23: #{conv_trans_block_forward.1} parent=1 // pred_check_branch
      %89 = sbr.rel (0) target = $region25
    $region24: #{conv_trans_block_forward.1} parent=1 // pred_region
      _
    $region25: #{conv_trans_block_forward.1} parent=1 // pred_fallthru
      _
    // Predicated region
    $region26: #{conv_trans_block_forward.1} parent=1 // pred_check
      _
    $region27: #{conv_trans_block_forward.1} parent=1 // pred_check_branch
      %91 = sbr.rel (0) target = $region29
    $region28: #{conv_trans_block_forward.1} parent=1 // pred_region
      _
    $region29: #{conv_trans_block_forward.1} parent=1 // pred_fallthru
      _
    // Predicated region
    $region30: #{conv_trans_block_forward.1} parent=1 // pred_check
      _
    $region31: #{conv_trans_block_forward.1} parent=1 // pred_check_branch
      %93 = sbr.rel (0) target = $region33
    $region32: #{conv_trans_block_forward.1} parent=1 // pred_region
      _
    $region33: #{conv_trans_block_forward.1} parent=1 // pred_fallthru
      _
    // Predicated region
    $region34: #{conv_trans_block_forward.1} parent=1 // pred_check
      _
    $region35: #{conv_trans_block_forward.1} parent=1 // pred_check_branch
      %95 = sbr.rel (0) target = $region37
    $region36: #{conv_trans_block_forward.1} parent=1 // pred_region
      _
    $region37: #{conv_trans_block_forward.1} parent=1 // pred_fallthru
      _
    // Predicated region
    $region38: #{conv_trans_block_forward.1} parent=1 // pred_check
      _
    $region39: #{conv_trans_block_forward.1} parent=1 // pred_check_branch
      %97 = sbr.rel (0) target = $region41
    $region40: #{conv_trans_block_forward.1} parent=1 // pred_region
      _
    $region41: #{conv_trans_block_forward.1} parent=1 // pred_fallthru
      _
    // Predicated region
    $region42: #{conv_trans_block_forward.1} parent=1 // pred_check
      _
    $region43: #{conv_trans_block_forward.1} parent=1 // pred_check_branch
      %99 = sbr.rel (0) target = $region45
    $region44: #{conv_trans_block_forward.1} parent=1 // pred_region
      _
    $region45: #{conv_trans_block_forward.1} parent=1 // pred_fallthru
      _
    // Predicated region
    $region46: #{conv_trans_block_forward.1} parent=1 // pred_check
      _
    $region47: #{conv_trans_block_forward.1} parent=1 // pred_check_branch
      %101 = sbr.rel (0) target = $region49
    $region48: #{conv_trans_block_forward.1} parent=1 // pred_region
      _
    $region49: #{conv_trans_block_forward.1} parent=1 // pred_fallthru
      _
    // Predicated region
    $region50: #{conv_trans_block_forward.1} parent=1 // pred_check
      _
    $region51: #{conv_trans_block_forward.1} parent=1 // pred_check_branch
      %103 = sbr.rel (0) target = $region53
    $region52: #{conv_trans_block_forward.1} parent=1 // pred_region
      _
    $region53: #{conv_trans_block_forward.1} parent=1 // pred_fallthru
      _
    // Predicated region
    $region54: #{conv_trans_block_forward.1} parent=1 // pred_check
      _
    $region55: #{conv_trans_block_forward.1} parent=1 // pred_check_branch
      %105 = sbr.rel (0) target = $region57
    $region56: #{conv_trans_block_forward.1} parent=1 // pred_region
      _
    $region57: #{conv_trans_block_forward.1} parent=1 // pred_fallthru
      _
    // Predicated region
    $region58: #{conv_trans_block_forward.1} parent=1 // pred_check
      _
    $region59: #{conv_trans_block_forward.1} parent=1 // pred_check_branch
      %107 = sbr.rel (0) target = $region61
    $region60: #{conv_trans_block_forward.1} parent=1 // pred_region
      _
    $region61: #{conv_trans_block_forward.1} parent=1 // pred_fallthru
      _
    // Predicated region
    $region62: #{conv_trans_block_forward.1} parent=1 // pred_check
      _
    $region63: #{conv_trans_block_forward.1} parent=1 // pred_check_branch
      %109 = sbr.rel (0) target = $region65
    $region64: #{conv_trans_block_forward.1} parent=1 // pred_region
      _
    $region65: #{conv_trans_block_forward.1} parent=1 // pred_fallthru
      _
    // Predicated region
    $region66: #{conv_trans_block_forward.1} parent=1 // pred_check
      _
    $region67: #{conv_trans_block_forward.1} parent=1 // pred_check_branch
      %111 = sbr.rel (0) target = $region69
    $region68: #{conv_trans_block_forward.1} parent=1 // pred_region
      _
    $region69: #{conv_trans_block_forward.1} parent=1 // pred_fallthru
      _
    // Predicated region
    $region70: #{conv_trans_block_forward.1} parent=1 // pred_check
      _
    $region71: #{conv_trans_block_forward.1} parent=1 // pred_check_branch
      %113 = sbr.rel (0) target = $region73
    $region72: #{conv_trans_block_forward.1} parent=1 // pred_region
      _
    $region73: #{conv_trans_block_forward.1} parent=1 // pred_fallthru
      _
    // Predicated region
    $region74: #{conv_trans_block_forward.1} parent=1 // pred_check
      _
    $region75: #{conv_trans_block_forward.1} parent=1 // pred_check_branch
      %115 = sbr.rel (0) target = $region77
    $region76: #{conv_trans_block_forward.1} parent=1 // pred_region
      _
    $region77: #{conv_trans_block_forward.1} parent=1 // pred_fallthru
      _
    // Predicated region
    $region78: #{conv_trans_block_forward.1} parent=1 // pred_check
      _
    $region79: #{conv_trans_block_forward.1} parent=1 // pred_check_branch
      %117 = sbr.rel (0) target = $region81
    $region80: #{conv_trans_block_forward.1} parent=1 // pred_region
      _
    $region81: #{conv_trans_block_forward.1} parent=1 // pred_fallthru
      _
    // Predicated region
    $region82: #{conv_trans_block_forward.1} parent=1 // pred_check
      _
    $region83: #{conv_trans_block_forward.1} parent=1 // pred_check_branch
      %119 = sbr.rel (0) target = $region85
    $region84: #{conv_trans_block_forward.1} parent=1 // pred_region
      _
    $region85: #{conv_trans_block_forward.1} parent=1 // pred_fallthru
      _
    // Predicated region
    $region86: #{conv_trans_block_forward.1} parent=1 // pred_check
      _
    $region87: #{conv_trans_block_forward.1} parent=1 // pred_check_branch
      %121 = sbr.rel (0) target = $region89
    $region88: #{conv_trans_block_forward.1} parent=1 // pred_region
      _
    $region89: #{conv_trans_block_forward.1} parent=1 // pred_fallthru
      _
    // Predicated region
    $region90: #{conv_trans_block_forward.1} parent=1 // pred_check
      _
    $region91: #{conv_trans_block_forward.1} parent=1 // pred_check_branch
      %123 = sbr.rel (0) target = $region93
    $region92: #{conv_trans_block_forward.1} parent=1 // pred_region
      _
    $region93: #{conv_trans_block_forward.1} parent=1 // pred_fallthru
      _
    // Predicated region
    $region94: #{conv_trans_block_forward.1} parent=1 // pred_check
      _
    $region95: #{conv_trans_block_forward.1} parent=1 // pred_check_branch
      %125 = sbr.rel (0) target = $region97
    $region96: #{conv_trans_block_forward.1} parent=1 // pred_region
      _
    $region97: #{conv_trans_block_forward.1} parent=1 // pred_fallthru
      _
    // Predicated region
    $region98: #{conv_trans_block_forward.1} parent=1 // pred_check
      _
    $region99: #{conv_trans_block_forward.1} parent=1 // pred_check_branch
      %127 = sbr.rel (0) target = $region101
    $region100: #{conv_trans_block_forward.1} parent=1 // pred_region
      _
    $region101: #{conv_trans_block_forward.1} parent=1 // pred_fallthru
      _
    // Predicated region
    $region102: #{conv_trans_block_forward.1} parent=1 // pred_check
      _
    $region103: #{conv_trans_block_forward.1} parent=1 // pred_check_branch
      %129 = sbr.rel (0) target = $region105
    $region104: #{conv_trans_block_forward.1} parent=1 // pred_region
      _
    $region105: #{conv_trans_block_forward.1} parent=1 // pred_fallthru
      _
    // Predicated region
    $region106: #{conv_trans_block_forward.1} parent=1 // pred_check
      _
    $region107: #{conv_trans_block_forward.1} parent=1 // pred_check_branch
      %131 = sbr.rel (0) target = $region109
    $region108: #{conv_trans_block_forward.1} parent=1 // pred_region
      _
    $region109: #{conv_trans_block_forward.1} parent=1 // pred_fallthru
      _
    // Predicated region
    $region110: #{conv_trans_block_forward.1} parent=1 // pred_check
      _
    $region111: #{conv_trans_block_forward.1} parent=1 // pred_check_branch
      %133 = sbr.rel (0) target = $region113
    $region112: #{conv_trans_block_forward.1} parent=1 // pred_region
      _
    $region113: #{conv_trans_block_forward.1} parent=1 // pred_fallthru
      _
    // Predicated region
    $region114: #{conv_trans_block_forward.1} parent=1 // pred_check
      _
    $region115: #{conv_trans_block_forward.1} parent=1 // pred_check_branch
      %135 = sbr.rel (0) target = $region117
    $region116: #{conv_trans_block_forward.1} parent=1 // pred_region
      _
    $region117: #{conv_trans_block_forward.1} parent=1 // pred_fallthru
      _
    // Predicated region
    $region118: #{conv_trans_block_forward.1} parent=1 // pred_check
      _
    $region119: #{conv_trans_block_forward.1} parent=1 // pred_check_branch
      %137 = sbr.rel (0) target = $region121
    $region120: #{conv_trans_block_forward.1} parent=1 // pred_region
      _
    $region121: #{conv_trans_block_forward.1} parent=1 // pred_fallthru
      _
    // Predicated region
    $region122: #{conv_trans_block_forward.1} parent=1 // pred_check
      _
    $region123: #{conv_trans_block_forward.1} parent=1 // pred_check_branch
      %139 = sbr.rel (0) target = $region125
    $region124: #{conv_trans_block_forward.1} parent=1 // pred_region
      _
    $region125: #{conv_trans_block_forward.1} parent=1 // pred_fallthru
      _
    // Predicated region
    $region126: #{conv_trans_block_forward.1} parent=1 // pred_check
      _
    $region127: #{conv_trans_block_forward.1} parent=1 // pred_check_branch
      %141 = sbr.rel (0) target = $region129
    $region128: #{conv_trans_block_forward.1} parent=1 // pred_region
      _
    $region129: #{conv_trans_block_forward.1} parent=1 // pred_fallthru
      _
    // Predicated region
    $region130: #{conv_trans_block_forward.1} parent=1 // pred_check
      _
    $region131: #{conv_trans_block_forward.1} parent=1 // pred_check_branch
      %143 = sbr.rel (0) target = $region133
    $region132: #{conv_trans_block_forward.1} parent=1 // pred_region
      _
    $region133: #{conv_trans_block_forward.1} parent=1 // pred_fallthru
      _
    // Predicated region
    $region134: #{conv_trans_block_forward.1} parent=1 // pred_check
      _
    $region135: #{conv_trans_block_forward.1} parent=1 // pred_check_branch
      %145 = sbr.rel (0) target = $region137
    $region136: #{conv_trans_block_forward.1} parent=1 // pred_region
      _
    $region137: #{conv_trans_block_forward.1} parent=1 // pred_fallthru
      _
    %v147 = vld [vmem:[%s5] sm:$0xff]
    %v148 = vld [vmem:[%s5 + $0x8] sm:$0xff]
    %v149 = vld [vmem:[%s5 + $0x10] sm:$0xff]
    %v150 = vld [vmem:[%s5 + $0x18] sm:$0xff]
    %v151 = vld [vmem:[%s5 + $0x20] sm:$0xff]
    %v152 = vld [vmem:[%s5 + $0x28] sm:$0xff]
    %v153 = vld [vmem:[%s5 + $0x30] sm:$0xff]
    %v154 = vld [vmem:[%s5 + $0x38] sm:$0xff]
    %v155 = vld [vmem:[%s5 + $0x40] sm:$0xff]
    %v156 = vld [vmem:[%s5 + $0x48] sm:$0xff]
    %v157 = vld [vmem:[%s5 + $0x50] sm:$0xff]
    %v158 = vld [vmem:[%s5 + $0x58] sm:$0xff]
    %v159 = vld [vmem:[%s5 + $0x60] sm:$0xff]
    %v160 = vld [vmem:[%s5 + $0x68] sm:$0xff]
    %v161 = vld [vmem:[%s5 + $0x70] sm:$0xff]
    %v162 = vld [vmem:[%s5 + $0x78] sm:$0xff]
    %v163 = vld [vmem:[%s1] sm:$0xff]
    %v164 = vld [vmem:[%s1 + $0x8] sm:$0xff]
    %v165 = vld [vmem:[%s1 + $0x10] sm:$0xff]
    %v166 = vld [vmem:[%s1 + $0x18] sm:$0xff]
    %v167 = vld [vmem:[%s1 + $0x20] sm:$0xff]
    %v168 = vld [vmem:[%s1 + $0x28] sm:$0xff]
    %v169 = vld [vmem:[%s1 + $0x30] sm:$0xff]
    %v170 = vld [vmem:[%s1 + $0x38] sm:$0xff]
    %v171 = vld [vmem:[%s1 + $0x40] sm:$0xff]
    %v172 = vld [vmem:[%s1 + $0x48] sm:$0xff]
    %v173 = vld [vmem:[%s1 + $0x50] sm:$0xff]
    %v174 = vld [vmem:[%s1 + $0x58] sm:$0xff]
    %v175 = vld [vmem:[%s1 + $0x60] sm:$0xff]
    %v176 = vld [vmem:[%s1 + $0x68] sm:$0xff]
    %v177 = vld [vmem:[%s1 + $0x70] sm:$0xff]
    %v178 = vld [vmem:[%s1 + $0x78] sm:$0xff]
    %v179 = vpack.c.bf16 %v164, %v163
    %v180 = vpack.c.bf16 %v166, %v165
    %v181 = vpack.c.bf16 %v168, %v167
    %v182 = vpack.c.bf16 %v170, %v169
    %v183 = vpack.c.bf16 %v172, %v171
    %v184 = vpack.c.bf16 %v174, %v173
    %v185 = vpack.c.bf16 %v176, %v175
    %v186 = vpack.c.bf16 %v178, %v177
    %v187 = vld [vmem:[%s7] sm:$0xf]
    %v188 = vld [vmem:[%s7 + $0x4] sm:$0xf]
    %v189 = vld [vmem:[%s9] sm:$0x1]
    %v191 = vlaneseq
    %v192 = vshrl.u32 %v191, 7
    %v193 = vsub.s32 0, %v192
    %v194 = vrot.slane %v189, %v193
    %v198 = vunpack.c.l.b16 %v187
    %v199 = vunpack.c.l.b16 %v188
    %v200 = vpack.c.b16 %v199, %v198
    %vm202 = vcmask 130048
    %v204 = vsel %vm202, %v179, 0
    %v207 = vsel %vm202, %v180, 0
    %v210 = vsel %vm202, %v181, 0
    %v213 = vsel %vm202, %v182, 0
    %v216 = vsel %vm202, %v183, 0
    %v219 = vsel %vm202, %v184, 0
    %v222 = vsel %vm202, %v185, 0
    %v225 = vsel %vm202, %v186, 0
    %227 = vmatprep.subr.bf16.mxu0 0
    %228 = vmatpush1.bf16.msra.mxu0 0
    %229 = vmatprep.subr.bf16.mxu0 0
    %230 = vmatpush1.bf16.msra.mxu0 0
    %231 = vmatprep.subr.bf16.mxu0 0
    %232 = vmatpush1.bf16.msra.mxu0 0
    %233 = vmatprep.subr.bf16.mxu0 0
    %234 = vmatpush1.bf16.msra.mxu0 0
    %235 = vmatprep.subr.bf16.mxu0 0
    %236 = vmatpush1.bf16.msra.mxu0 0
    %237 = vmatprep.subr.bf16.mxu0 0
    %238 = vmatpush1.bf16.msra.mxu0 0
    %239 = vmatprep.subr.bf16.mxu0 0
    %240 = vmatpush1.bf16.msra.mxu0 0
    %241 = vmatprep.subr.bf16.mxu0 0
    %242 = vmatpush1.bf16.msra.mxu0 %v200
    %243 = vmatprep.subr.bf16.mxu0 0
    %244 = vmatpush2.bf16.msra.mxu0 0
    %245 = vmatprep.subr.bf16.mxu0 0
    %246 = vmatpush2.bf16.msra.mxu0 0
    %247 = vmatprep.subr.bf16.mxu0 0
    %248 = vmatpush2.bf16.msra.mxu0 0
    %249 = vmatprep.subr.bf16.mxu0 0
    %250 = vmatpush2.bf16.msra.mxu0 0
    %251 = vmatprep.subr.bf16.mxu0 0
    %252 = vmatpush2.bf16.msra.mxu0 0
    %253 = vmatprep.subr.bf16.mxu0 0
    %254 = vmatpush2.bf16.msra.mxu0 0
    %255 = vmatprep.subr.bf16.mxu0 0
    %256 = vmatpush2.bf16.msra.mxu0 0
    %257 = vmatprep.subr.bf16.mxu0 0
    %258 = vmatpush2.bf16.msra.mxu0 0
    %259 = vmatprep.mubr.bf16.mxu0 0
    %260 = vmatmul.mubr.bf16.gmra.mxu0 %v204
    %v261 = vpop.f32.mrf.mxu0
    %v262 = vadd.f32 %v194, %v261
    %v263 = vpop.f32.mrf.mxu0
    %v264 = vpop.f32.mrf.mxu0
    %v265 = vadd.f32 %v194, %v264
    %v266 = vpop.f32.mrf.mxu0
    %267 = vmatprep.mubr.bf16.mxu0 0
    %268 = vmatmul.mubr.bf16.gmra.mxu0 %v207
    %v269 = vpop.f32.mrf.mxu0
    %v270 = vadd.f32 %v194, %v269
    %v271 = vpop.f32.mrf.mxu0
    %v272 = vpop.f32.mrf.mxu0
    %v273 = vadd.f32 %v194, %v272
    %v274 = vpop.f32.mrf.mxu0
    %275 = vmatprep.mubr.bf16.mxu0 0
    %276 = vmatmul.mubr.bf16.gmra.mxu0 %v210
    %v277 = vpop.f32.mrf.mxu0
    %v278 = vadd.f32 %v194, %v277
    %v279 = vpop.f32.mrf.mxu0
    %v280 = vpop.f32.mrf.mxu0
    %v281 = vadd.f32 %v194, %v280
    %v282 = vpop.f32.mrf.mxu0
    %283 = vmatprep.mubr.bf16.mxu0 0
    %284 = vmatmul.mubr.bf16.gmra.mxu0 %v213
    %v285 = vpop.f32.mrf.mxu0
    %v286 = vadd.f32 %v194, %v285
    %v287 = vpop.f32.mrf.mxu0
    %v288 = vpop.f32.mrf.mxu0
    %v289 = vadd.f32 %v194, %v288
    %v290 = vpop.f32.mrf.mxu0
    %291 = vmatprep.mubr.bf16.mxu0 0
    %292 = vmatmul.mubr.bf16.gmra.mxu0 %v216
    %v293 = vpop.f32.mrf.mxu0
    %v294 = vadd.f32 %v194, %v293
    %v295 = vpop.f32.mrf.mxu0
    %v296 = vpop.f32.mrf.mxu0
    %v297 = vadd.f32 %v194, %v296
    %v298 = vpop.f32.mrf.mxu0
    %299 = vmatprep.mubr.bf16.mxu0 0
    %300 = vmatmul.mubr.bf16.gmra.mxu0 %v219
    %v301 = vpop.f32.mrf.mxu0
    %v302 = vadd.f32 %v194, %v301
    %v303 = vpop.f32.mrf.mxu0
    %v304 = vpop.f32.mrf.mxu0
    %v305 = vadd.f32 %v194, %v304
    %v306 = vpop.f32.mrf.mxu0
    %307 = vmatprep.mubr.bf16.mxu0 0
    %308 = vmatmul.mubr.bf16.gmra.mxu0 %v222
    %v309 = vpop.f32.mrf.mxu0
    %v310 = vadd.f32 %v194, %v309
    %v311 = vpop.f32.mrf.mxu0
    %v312 = vpop.f32.mrf.mxu0
    %v313 = vadd.f32 %v194, %v312
    %v314 = vpop.f32.mrf.mxu0
    %315 = vmatprep.mubr.bf16.mxu0 0
    %316 = vmatmul.mubr.bf16.gmra.mxu0 %v225
    %v317 = vpop.f32.mrf.mxu0
    %v318 = vadd.f32 %v194, %v317
    %v319 = vpop.f32.mrf.mxu0
    %v320 = vpop.f32.mrf.mxu0
    %v321 = vadd.f32 %v194, %v320
    %v322 = vpop.f32.mrf.mxu0
    %323 = vdwg.mxu0
    %v324 = vmax.f32 %v262, 0.0
    %v325 = vmax.f32 %v265, 0.0
    %v326 = vmax.f32 %v270, 0.0
    %v327 = vmax.f32 %v273, 0.0
    %v328 = vmax.f32 %v278, 0.0
    %v329 = vmax.f32 %v281, 0.0
    %v330 = vmax.f32 %v286, 0.0
    %v331 = vmax.f32 %v289, 0.0
    %v332 = vmax.f32 %v294, 0.0
    %v333 = vmax.f32 %v297, 0.0
    %v334 = vmax.f32 %v302, 0.0
    %v335 = vmax.f32 %v305, 0.0
    %v336 = vmax.f32 %v310, 0.0
    %v337 = vmax.f32 %v313, 0.0
    %v338 = vmax.f32 %v318, 0.0
    %v339 = vmax.f32 %v321, 0.0
    %v340 = vpack.c.bf16 %v325, %v324
    %v341 = vpack.c.bf16 %v327, %v326
    %v342 = vpack.c.bf16 %v329, %v328
    %v343 = vpack.c.bf16 %v331, %v330
    %v344 = vpack.c.bf16 %v333, %v332
    %v345 = vpack.c.bf16 %v335, %v334
    %v346 = vpack.c.bf16 %v337, %v336
    %v347 = vpack.c.bf16 %v339, %v338
    %v348 = vld [vmem:[%s11] sm:$0x3]
    %vm349 = vcmask 31744
    %v351 = vsel %vm349, %v340, 0
    %v354 = vsel %vm349, %v341, 0
    %v357 = vsel %vm349, %v342, 0
    %v360 = vsel %vm349, %v343, 0
    %v363 = vsel %vm349, %v344, 0
    %v366 = vsel %vm349, %v345, 0
    %v369 = vsel %vm349, %v346, 0
    %v372 = vsel %vm349, %v347, 0
    %vm374 = vcmask 1041408
    %v376 = vsel %vm374, %v348, 0
    %378 = vmatprep.subr.bf16.mxu0 0
    %379 = vmatpush1.bf16.msra.mxu0 0
    %380 = vmatprep.subr.bf16.mxu0 0
    %381 = vmatpush1.bf16.msra.mxu0 0
    %382 = vmatprep.subr.bf16.mxu0 0
    %383 = vmatpush1.bf16.msra.mxu0 0
    %384 = vmatprep.subr.bf16.mxu0 0
    %385 = vmatpush1.bf16.msra.mxu0 0
    %386 = vmatprep.subr.bf16.mxu0 0
    %387 = vmatpush1.bf16.msra.mxu0 0
    %388 = vmatprep.subr.bf16.mxu0 0
    %389 = vmatpush1.bf16.msra.mxu0 0
    %390 = vmatprep.subr.bf16.mxu0 0
    %391 = vmatpush1.bf16.msra.mxu0 0
    %392 = vmatprep.subr.bf16.mxu0 0
    %393 = vmatpush1.bf16.msra.mxu0 %v376
    %394 = vmatprep.subr.bf16.mxu0 0
    %395 = vmatpush2.bf16.msra.mxu0 0
    %396 = vmatprep.subr.bf16.mxu0 0
    %397 = vmatpush2.bf16.msra.mxu0 0
    %398 = vmatprep.subr.bf16.mxu0 0
    %399 = vmatpush2.bf16.msra.mxu0 0
    %400 = vmatprep.subr.bf16.mxu0 0
    %401 = vmatpush2.bf16.msra.mxu0 0
    %402 = vmatprep.subr.bf16.mxu0 0
    %403 = vmatpush2.bf16.msra.mxu0 0
    %404 = vmatprep.subr.bf16.mxu0 0
    %405 = vmatpush2.bf16.msra.mxu0 0
    %406 = vmatprep.subr.bf16.mxu0 0
    %407 = vmatpush2.bf16.msra.mxu0 0
    %408 = vmatprep.subr.bf16.mxu0 0
    %409 = vmatpush2.bf16.msra.mxu0 0
    %410 = vmatprep.mubr.bf16.mxu0 0
    %411 = vmatmul.mubr.bf16.gmra.mxu0 %v351
    %v412 = vpop.f32.mrf.mxu0
    %v413 = vadd.f32 0.0, %v412
    %v414 = vpop.f32.mrf.mxu0
    %v415 = vpop.f32.mrf.mxu0
    %v416 = vadd.f32 0.0, %v415
    %v417 = vpop.f32.mrf.mxu0
    %418 = vmatprep.mubr.bf16.mxu0 0
    %419 = vmatmul.mubr.bf16.gmra.mxu0 %v354
    %v420 = vpop.f32.mrf.mxu0
    %v421 = vadd.f32 0.0, %v420
    %v422 = vpop.f32.mrf.mxu0
    %v423 = vpop.f32.mrf.mxu0
    %v424 = vadd.f32 0.0, %v423
    %v425 = vpop.f32.mrf.mxu0
    %426 = vmatprep.mubr.bf16.mxu0 0
    %427 = vmatmul.mubr.bf16.gmra.mxu0 %v357
    %v428 = vpop.f32.mrf.mxu0
    %v429 = vadd.f32 0.0, %v428
    %v430 = vpop.f32.mrf.mxu0
    %v431 = vpop.f32.mrf.mxu0
    %v432 = vadd.f32 0.0, %v431
    %v433 = vpop.f32.mrf.mxu0
    %434 = vmatprep.mubr.bf16.mxu0 0
    %435 = vmatmul.mubr.bf16.gmra.mxu0 %v360
    %v436 = vpop.f32.mrf.mxu0
    %v437 = vadd.f32 0.0, %v436
    %v438 = vpop.f32.mrf.mxu0
    %v439 = vpop.f32.mrf.mxu0
    %v440 = vadd.f32 0.0, %v439
    %v441 = vpop.f32.mrf.mxu0
    %442 = vmatprep.mubr.bf16.mxu0 0
    %443 = vmatmul.mubr.bf16.gmra.mxu0 %v363
    %v444 = vpop.f32.mrf.mxu0
    %v445 = vadd.f32 0.0, %v444
    %v446 = vpop.f32.mrf.mxu0
    %v447 = vpop.f32.mrf.mxu0
    %v448 = vadd.f32 0.0, %v447
    %v449 = vpop.f32.mrf.mxu0
    %450 = vmatprep.mubr.bf16.mxu0 0
    %451 = vmatmul.mubr.bf16.gmra.mxu0 %v366
    %v452 = vpop.f32.mrf.mxu0
    %v453 = vadd.f32 0.0, %v452
    %v454 = vpop.f32.mrf.mxu0
    %v455 = vpop.f32.mrf.mxu0
    %v456 = vadd.f32 0.0, %v455
    %v457 = vpop.f32.mrf.mxu0
    %458 = vmatprep.mubr.bf16.mxu0 0
    %459 = vmatmul.mubr.bf16.gmra.mxu0 %v369
    %v460 = vpop.f32.mrf.mxu0
    %v461 = vadd.f32 0.0, %v460
    %v462 = vpop.f32.mrf.mxu0
    %v463 = vpop.f32.mrf.mxu0
    %v464 = vadd.f32 0.0, %v463
    %v465 = vpop.f32.mrf.mxu0
    %466 = vmatprep.mubr.bf16.mxu0 0
    %467 = vmatmul.mubr.bf16.gmra.mxu0 %v372
    %v468 = vpop.f32.mrf.mxu0
    %v469 = vadd.f32 0.0, %v468
    %v470 = vpop.f32.mrf.mxu0
    %v471 = vpop.f32.mrf.mxu0
    %v472 = vadd.f32 0.0, %v471
    %v473 = vpop.f32.mrf.mxu0
    %474 = vdwg.mxu0
    %v475 = vrot.slane %v413, 7
    %v476 = vrot.slane %v416, 7
    %v477 = vrot.slane %v421, 7
    %v478 = vrot.slane %v424, 7
    %v479 = vrot.slane %v429, 7
    %v480 = vrot.slane %v432, 7
    %v481 = vrot.slane %v437, 7
    %v482 = vrot.slane %v440, 7
    %v483 = vrot.slane %v445, 7
    %v484 = vrot.slane %v448, 7
    %v485 = vrot.slane %v453, 7
    %v486 = vrot.slane %v456, 7
    %v487 = vrot.slane %v461, 7
    %v488 = vrot.slane %v464, 7
    %v489 = vrot.slane %v469, 7
    %v490 = vrot.slane %v472, 7
    %v491 = vlaneseq
    %v492 = vshrl.u32 %v491, 7
    %vm493 = vcmp.lt.s32.totalorder %v492, 1
    %v494 = vsel %vm493, %v489, %v490
    %v495 = vsel %vm493, %v488, %v489
    %v496 = vsel %vm493, %v487, %v488
    %v497 = vsel %vm493, %v486, %v487
    %v498 = vsel %vm493, %v485, %v486
    %v499 = vsel %vm493, %v484, %v485
    %v500 = vsel %vm493, %v483, %v484
    %v501 = vsel %vm493, %v482, %v483
    %v502 = vsel %vm493, %v481, %v482
    %v503 = vsel %vm493, %v480, %v481
    %v504 = vsel %vm493, %v479, %v480
    %v505 = vsel %vm493, %v478, %v479
    %v506 = vsel %vm493, %v477, %v478
    %v507 = vsel %vm493, %v476, %v477
    %v508 = vsel %vm493, %v475, %v476
    %v509 = vsel %vm493, %v490, %v475
    %511 = vset.pattern.permute.xlu0 0
    %512 = vperm.xlu0 %511, %v147
    %v513 = vpop.permute.xlu0 %512
    %516 = vset.pattern.permute.xlu0 0
    %517 = vperm.xlu0 %516, %v148
    %v518 = vpop.permute.xlu0 %517
    %521 = vset.pattern.permute.xlu0 0
    %522 = vperm.xlu0 %521, %v149
    %v523 = vpop.permute.xlu0 %522
    %526 = vset.pattern.permute.xlu0 0
    %527 = vperm.xlu0 %526, %v150
    %v528 = vpop.permute.xlu0 %527
    %531 = vset.pattern.permute.xlu0 0
    %532 = vperm.xlu0 %531, %v151
    %v533 = vpop.permute.xlu0 %532
    %536 = vset.pattern.permute.xlu0 0
    %537 = vperm.xlu0 %536, %v152
    %v538 = vpop.permute.xlu0 %537
    %541 = vset.pattern.permute.xlu0 0
    %542 = vperm.xlu0 %541, %v153
    %v543 = vpop.permute.xlu0 %542
    %546 = vset.pattern.permute.xlu0 0
    %547 = vperm.xlu0 %546, %v154
    %v548 = vpop.permute.xlu0 %547
    %551 = vset.pattern.permute.xlu0 0
    %552 = vperm.xlu0 %551, %v155
    %v553 = vpop.permute.xlu0 %552
    %556 = vset.pattern.permute.xlu0 0
    %557 = vperm.xlu0 %556, %v156
    %v558 = vpop.permute.xlu0 %557
    %561 = vset.pattern.permute.xlu0 0
    %562 = vperm.xlu0 %561, %v157
    %v563 = vpop.permute.xlu0 %562
    %566 = vset.pattern.permute.xlu0 0
    %567 = vperm.xlu0 %566, %v158
    %v568 = vpop.permute.xlu0 %567
    %571 = vset.pattern.permute.xlu0 0
    %572 = vperm.xlu0 %571, %v159
    %v573 = vpop.permute.xlu0 %572
    %576 = vset.pattern.permute.xlu0 0
    %577 = vperm.xlu0 %576, %v160
    %v578 = vpop.permute.xlu0 %577
    %581 = vset.pattern.permute.xlu0 0
    %582 = vperm.xlu0 %581, %v161
    %v583 = vpop.permute.xlu0 %582
    %586 = vset.pattern.permute.xlu0 0
    %587 = vperm.xlu0 %586, %v162
    %v588 = vpop.permute.xlu0 %587
    %v590 = vmul.f32 %v494, %v513
    %v591 = vmul.f32 %v509, %v518
    %v592 = vmul.f32 %v508, %v523
    %v593 = vmul.f32 %v507, %v528
    %v594 = vmul.f32 %v506, %v533
    %v595 = vmul.f32 %v505, %v538
    %v596 = vmul.f32 %v504, %v543
    %v597 = vmul.f32 %v503, %v548
    %v598 = vmul.f32 %v502, %v553
    %v599 = vmul.f32 %v501, %v558
    %v600 = vmul.f32 %v500, %v563
    %v601 = vmul.f32 %v499, %v568
    %v602 = vmul.f32 %v498, %v573
    %v603 = vmul.f32 %v497, %v578
    %v604 = vmul.f32 %v496, %v583
    %v605 = vmul.f32 %v495, %v588
    %622 = vrot.lane.b32.xlu0 %v590, 16
    %v623 = vpop.permute.xlu0 %622
    %624 = vrot.lane.b32.xlu0 %v591, 16
    %v625 = vpop.permute.xlu0 %624
    %626 = vrot.lane.b32.xlu0 %v592, 16
    %v627 = vpop.permute.xlu0 %626
    %628 = vrot.lane.b32.xlu0 %v593, 16
    %v629 = vpop.permute.xlu0 %628
    %630 = vrot.lane.b32.xlu0 %v594, 16
    %v631 = vpop.permute.xlu0 %630
    %632 = vrot.lane.b32.xlu0 %v595, 16
    %v633 = vpop.permute.xlu0 %632
    %634 = vrot.lane.b32.xlu0 %v596, 16
    %v635 = vpop.permute.xlu0 %634
    %636 = vrot.lane.b32.xlu0 %v597, 16
    %v637 = vpop.permute.xlu0 %636
    %638 = vrot.lane.b32.xlu0 %v598, 16
    %v639 = vpop.permute.xlu0 %638
    %640 = vrot.lane.b32.xlu0 %v599, 16
    %v641 = vpop.permute.xlu0 %640
    %642 = vrot.lane.b32.xlu0 %v600, 16
    %v643 = vpop.permute.xlu0 %642
    %644 = vrot.lane.b32.xlu0 %v601, 16
    %v645 = vpop.permute.xlu0 %644
    %646 = vrot.lane.b32.xlu0 %v602, 16
    %v647 = vpop.permute.xlu0 %646
    %648 = vrot.lane.b32.xlu0 %v603, 16
    %v649 = vpop.permute.xlu0 %648
    %650 = vrot.lane.b32.xlu0 %v604, 16
    %v651 = vpop.permute.xlu0 %650
    %652 = vrot.lane.b32.xlu0 %v605, 16
    %v653 = vpop.permute.xlu0 %652
    %v670 = vadd.f32 %v413, %v623
    %v671 = vadd.f32 %v416, %v625
    %v672 = vadd.f32 %v421, %v627
    %v673 = vadd.f32 %v424, %v629
    %v674 = vadd.f32 %v429, %v631
    %v675 = vadd.f32 %v432, %v633
    %v676 = vadd.f32 %v437, %v635
    %v677 = vadd.f32 %v440, %v637
    %v678 = vadd.f32 %v445, %v639
    %v679 = vadd.f32 %v448, %v641
    %v680 = vadd.f32 %v453, %v643
    %v681 = vadd.f32 %v456, %v645
    %v682 = vadd.f32 %v461, %v647
    %v683 = vadd.f32 %v464, %v649
    %v684 = vadd.f32 %v469, %v651
    %v685 = vadd.f32 %v472, %v653
    %702 = vrot.lane.b32.xlu0 %v413, 124
    %v703 = vpop.permute.xlu0 %702
    %704 = vrot.lane.b32.xlu0 %v416, 124
    %v705 = vpop.permute.xlu0 %704
    %706 = vrot.lane.b32.xlu0 %v421, 124
    %v707 = vpop.permute.xlu0 %706
    %708 = vrot.lane.b32.xlu0 %v424, 124
    %v709 = vpop.permute.xlu0 %708
    %710 = vrot.lane.b32.xlu0 %v429, 124
    %v711 = vpop.permute.xlu0 %710
    %712 = vrot.lane.b32.xlu0 %v432, 124
    %v713 = vpop.permute.xlu0 %712
    %714 = vrot.lane.b32.xlu0 %v437, 124
    %v715 = vpop.permute.xlu0 %714
    %716 = vrot.lane.b32.xlu0 %v440, 124
    %v717 = vpop.permute.xlu0 %716
    %718 = vrot.lane.b32.xlu0 %v445, 124
    %v719 = vpop.permute.xlu0 %718
    %720 = vrot.lane.b32.xlu0 %v448, 124
    %v721 = vpop.permute.xlu0 %720
    %722 = vrot.lane.b32.xlu0 %v453, 124
    %v723 = vpop.permute.xlu0 %722
    %724 = vrot.lane.b32.xlu0 %v456, 124
    %v725 = vpop.permute.xlu0 %724
    %726 = vrot.lane.b32.xlu0 %v461, 124
    %v727 = vpop.permute.xlu0 %726
    %728 = vrot.lane.b32.xlu0 %v464, 124
    %v729 = vpop.permute.xlu0 %728
    %730 = vrot.lane.b32.xlu0 %v469, 124
    %v731 = vpop.permute.xlu0 %730
    %732 = vrot.lane.b32.xlu0 %v472, 124
    %v733 = vpop.permute.xlu0 %732
    %750 = vset.pattern.permute.xlu0 1
    %751 = vperm.xlu0 %750, %v147
    %v752 = vpop.permute.xlu0 %751
    %754 = vset.pattern.permute.xlu0 1
    %755 = vperm.xlu0 %754, %v148
    %v756 = vpop.permute.xlu0 %755
    %758 = vset.pattern.permute.xlu0 1
    %759 = vperm.xlu0 %758, %v149
    %v760 = vpop.permute.xlu0 %759
    %762 = vset.pattern.permute.xlu0 1
    %763 = vperm.xlu0 %762, %v150
    %v764 = vpop.permute.xlu0 %763
    %766 = vset.pattern.permute.xlu0 1
    %767 = vperm.xlu0 %766, %v151
    %v768 = vpop.permute.xlu0 %767
    %770 = vset.pattern.permute.xlu0 1
    %771 = vperm.xlu0 %770, %v152
    %v772 = vpop.permute.xlu0 %771
    %774 = vset.pattern.permute.xlu0 1
    %775 = vperm.xlu0 %774, %v153
    %v776 = vpop.permute.xlu0 %775
    %778 = vset.pattern.permute.xlu0 1
    %779 = vperm.xlu0 %778, %v154
    %v780 = vpop.permute.xlu0 %779
    %782 = vset.pattern.permute.xlu0 1
    %783 = vperm.xlu0 %782, %v155
    %v784 = vpop.permute.xlu0 %783
    %786 = vset.pattern.permute.xlu0 1
    %787 = vperm.xlu0 %786, %v156
    %v788 = vpop.permute.xlu0 %787
    %790 = vset.pattern.permute.xlu0 1
    %791 = vperm.xlu0 %790, %v157
    %v792 = vpop.permute.xlu0 %791
    %794 = vset.pattern.permute.xlu0 1
    %795 = vperm.xlu0 %794, %v158
    %v796 = vpop.permute.xlu0 %795
    %798 = vset.pattern.permute.xlu0 1
    %799 = vperm.xlu0 %798, %v159
    %v800 = vpop.permute.xlu0 %799
    %802 = vset.pattern.permute.xlu0 1
    %803 = vperm.xlu0 %802, %v160
    %v804 = vpop.permute.xlu0 %803
    %806 = vset.pattern.permute.xlu0 1
    %807 = vperm.xlu0 %806, %v161
    %v808 = vpop.permute.xlu0 %807
    %810 = vset.pattern.permute.xlu0 1
    %811 = vperm.xlu0 %810, %v162
    %v812 = vpop.permute.xlu0 %811
    %v814 = vmul.f32 %v733, %v752
    %v815 = vmul.f32 %v703, %v756
    %v816 = vmul.f32 %v705, %v760
    %v817 = vmul.f32 %v707, %v764
    %v818 = vmul.f32 %v709, %v768
    %v819 = vmul.f32 %v711, %v772
    %v820 = vmul.f32 %v713, %v776
    %v821 = vmul.f32 %v715, %v780
    %v822 = vmul.f32 %v717, %v784
    %v823 = vmul.f32 %v719, %v788
    %v824 = vmul.f32 %v721, %v792
    %v825 = vmul.f32 %v723, %v796
    %v826 = vmul.f32 %v725, %v800
    %v827 = vmul.f32 %v727, %v804
    %v828 = vmul.f32 %v729, %v808
    %v829 = vmul.f32 %v731, %v812
    %846 = vrot.lane.b32.xlu0 %v814, 16
    %v847 = vpop.permute.xlu0 %846
    %848 = vrot.lane.b32.xlu0 %v815, 16
    %v849 = vpop.permute.xlu0 %848
    %850 = vrot.lane.b32.xlu0 %v816, 16
    %v851 = vpop.permute.xlu0 %850
    %852 = vrot.lane.b32.xlu0 %v817, 16
    %v853 = vpop.permute.xlu0 %852
    %854 = vrot.lane.b32.xlu0 %v818, 16
    %v855 = vpop.permute.xlu0 %854
    %856 = vrot.lane.b32.xlu0 %v819, 16
    %v857 = vpop.permute.xlu0 %856
    %858 = vrot.lane.b32.xlu0 %v820, 16
    %v859 = vpop.permute.xlu0 %858
    %860 = vrot.lane.b32.xlu0 %v821, 16
    %v861 = vpop.permute.xlu0 %860
    %862 = vrot.lane.b32.xlu0 %v822, 16
    %v863 = vpop.permute.xlu0 %862
    %864 = vrot.lane.b32.xlu0 %v823, 16
    %v865 = vpop.permute.xlu0 %864
    %866 = vrot.lane.b32.xlu0 %v824, 16
    %v867 = vpop.permute.xlu0 %866
    %868 = vrot.lane.b32.xlu0 %v825, 16
    %v869 = vpop.permute.xlu0 %868
    %870 = vrot.lane.b32.xlu0 %v826, 16
    %v871 = vpop.permute.xlu0 %870
    %872 = vrot.lane.b32.xlu0 %v827, 16
    %v873 = vpop.permute.xlu0 %872
    %874 = vrot.lane.b32.xlu0 %v828, 16
    %v875 = vpop.permute.xlu0 %874
    %876 = vrot.lane.b32.xlu0 %v829, 16
    %v877 = vpop.permute.xlu0 %876
    %v894 = vadd.f32 %v670, %v847
    %v895 = vadd.f32 %v671, %v849
    %v896 = vadd.f32 %v672, %v851
    %v897 = vadd.f32 %v673, %v853
    %v898 = vadd.f32 %v674, %v855
    %v899 = vadd.f32 %v675, %v857
    %v900 = vadd.f32 %v676, %v859
    %v901 = vadd.f32 %v677, %v861
    %v902 = vadd.f32 %v678, %v863
    %v903 = vadd.f32 %v679, %v865
    %v904 = vadd.f32 %v680, %v867
    %v905 = vadd.f32 %v681, %v869
    %v906 = vadd.f32 %v682, %v871
    %v907 = vadd.f32 %v683, %v873
    %v908 = vadd.f32 %v684, %v875
    %v909 = vadd.f32 %v685, %v877
    %910 = vrot.lane.b32.xlu0 %v413, 120
    %v911 = vpop.permute.xlu0 %910
    %912 = vrot.lane.b32.xlu0 %v416, 120
    %v913 = vpop.permute.xlu0 %912
    %914 = vrot.lane.b32.xlu0 %v421, 120
    %v915 = vpop.permute.xlu0 %914
    %916 = vrot.lane.b32.xlu0 %v424, 120
    %v917 = vpop.permute.xlu0 %916
    %918 = vrot.lane.b32.xlu0 %v429, 120
    %v919 = vpop.permute.xlu0 %918
    %920 = vrot.lane.b32.xlu0 %v432, 120
    %v921 = vpop.permute.xlu0 %920
    %922 = vrot.lane.b32.xlu0 %v437, 120
    %v923 = vpop.permute.xlu0 %922
    %924 = vrot.lane.b32.xlu0 %v440, 120
    %v925 = vpop.permute.xlu0 %924
    %926 = vrot.lane.b32.xlu0 %v445, 120
    %v927 = vpop.permute.xlu0 %926
    %928 = vrot.lane.b32.xlu0 %v448, 120
    %v929 = vpop.permute.xlu0 %928
    %930 = vrot.lane.b32.xlu0 %v453, 120
    %v931 = vpop.permute.xlu0 %930
    %932 = vrot.lane.b32.xlu0 %v456, 120
    %v933 = vpop.permute.xlu0 %932
    %934 = vrot.lane.b32.xlu0 %v461, 120
    %v935 = vpop.permute.xlu0 %934
    %936 = vrot.lane.b32.xlu0 %v464, 120
    %v937 = vpop.permute.xlu0 %936
    %938 = vrot.lane.b32.xlu0 %v469, 120
    %v939 = vpop.permute.xlu0 %938
    %940 = vrot.lane.b32.xlu0 %v472, 120
    %v941 = vpop.permute.xlu0 %940
    %v958 = vrot.slane %v911, 1
    %v959 = vrot.slane %v913, 1
    %v960 = vrot.slane %v915, 1
    %v961 = vrot.slane %v917, 1
    %v962 = vrot.slane %v919, 1
    %v963 = vrot.slane %v921, 1
    %v964 = vrot.slane %v923, 1
    %v965 = vrot.slane %v925, 1
    %v966 = vrot.slane %v927, 1
    %v967 = vrot.slane %v929, 1
    %v968 = vrot.slane %v931, 1
    %v969 = vrot.slane %v933, 1
    %v970 = vrot.slane %v935, 1
    %v971 = vrot.slane %v937, 1
    %v972 = vrot.slane %v939, 1
    %v973 = vrot.slane %v941, 1
    %vm974 = vcmp.lt.s32.totalorder %v492, 7
    %v975 = vsel %vm974, %v972, %v973
    %v976 = vsel %vm974, %v971, %v972
    %v977 = vsel %vm974, %v970, %v971
    %v978 = vsel %vm974, %v969, %v970
    %v979 = vsel %vm974, %v968, %v969
    %v980 = vsel %vm974, %v967, %v968
    %v981 = vsel %vm974, %v966, %v967
    %v982 = vsel %vm974, %v965, %v966
    %v983 = vsel %vm974, %v964, %v965
    %v984 = vsel %vm974, %v963, %v964
    %v985 = vsel %vm974, %v962, %v963
    %v986 = vsel %vm974, %v961, %v962
    %v987 = vsel %vm974, %v960, %v961
    %v988 = vsel %vm974, %v959, %v960
    %v989 = vsel %vm974, %v958, %v959
    %v990 = vsel %vm974, %v973, %v958
    %991 = vset.pattern.permute.xlu0 2
    %992 = vperm.xlu0 %991, %v147
    %v993 = vpop.permute.xlu0 %992
    %995 = vset.pattern.permute.xlu0 2
    %996 = vperm.xlu0 %995, %v148
    %v997 = vpop.permute.xlu0 %996
    %999 = vset.pattern.permute.xlu0 2
    %1000 = vperm.xlu0 %999, %v149
    %v1001 = vpop.permute.xlu0 %1000
    %1003 = vset.pattern.permute.xlu0 2
    %1004 = vperm.xlu0 %1003, %v150
    %v1005 = vpop.permute.xlu0 %1004
    %1007 = vset.pattern.permute.xlu0 2
    %1008 = vperm.xlu0 %1007, %v151
    %v1009 = vpop.permute.xlu0 %1008
    %1011 = vset.pattern.permute.xlu0 2
    %1012 = vperm.xlu0 %1011, %v152
    %v1013 = vpop.permute.xlu0 %1012
    %1015 = vset.pattern.permute.xlu0 2
    %1016 = vperm.xlu0 %1015, %v153
    %v1017 = vpop.permute.xlu0 %1016
    %1019 = vset.pattern.permute.xlu0 2
    %1020 = vperm.xlu0 %1019, %v154
    %v1021 = vpop.permute.xlu0 %1020
    %1023 = vset.pattern.permute.xlu0 2
    %1024 = vperm.xlu0 %1023, %v155
    %v1025 = vpop.permute.xlu0 %1024
    %1027 = vset.pattern.permute.xlu0 2
    %1028 = vperm.xlu0 %1027, %v156
    %v1029 = vpop.permute.xlu0 %1028
    %1031 = vset.pattern.permute.xlu0 2
    %1032 = vperm.xlu0 %1031, %v157
    %v1033 = vpop.permute.xlu0 %1032
    %1035 = vset.pattern.permute.xlu0 2
    %1036 = vperm.xlu0 %1035, %v158
    %v1037 = vpop.permute.xlu0 %1036
    %1039 = vset.pattern.permute.xlu0 2
    %1040 = vperm.xlu0 %1039, %v159
    %v1041 = vpop.permute.xlu0 %1040
    %1043 = vset.pattern.permute.xlu0 2
    %1044 = vperm.xlu0 %1043, %v160
    %v1045 = vpop.permute.xlu0 %1044
    %1047 = vset.pattern.permute.xlu0 2
    %1048 = vperm.xlu0 %1047, %v161
    %v1049 = vpop.permute.xlu0 %1048
    %1051 = vset.pattern.permute.xlu0 2
    %1052 = vperm.xlu0 %1051, %v162
    %v1053 = vpop.permute.xlu0 %1052
    %v1055 = vmul.f32 %v990, %v993
    %v1056 = vmul.f32 %v989, %v997
    %v1057 = vmul.f32 %v988, %v1001
    %v1058 = vmul.f32 %v987, %v1005
    %v1059 = vmul.f32 %v986, %v1009
    %v1060 = vmul.f32 %v985, %v1013
    %v1061 = vmul.f32 %v984, %v1017
    %v1062 = vmul.f32 %v983, %v1021
    %v1063 = vmul.f32 %v982, %v1025
    %v1064 = vmul.f32 %v981, %v1029
    %v1065 = vmul.f32 %v980, %v1033
    %v1066 = vmul.f32 %v979, %v1037
    %v1067 = vmul.f32 %v978, %v1041
    %v1068 = vmul.f32 %v977, %v1045
    %v1069 = vmul.f32 %v976, %v1049
    %v1070 = vmul.f32 %v975, %v1053
    %1087 = vrot.lane.b32.xlu0 %v1055, 16
    %v1088 = vpop.permute.xlu0 %1087
    %1089 = vrot.lane.b32.xlu0 %v1056, 16
    %v1090 = vpop.permute.xlu0 %1089
    %1091 = vrot.lane.b32.xlu0 %v1057, 16
    %v1092 = vpop.permute.xlu0 %1091
    %1093 = vrot.lane.b32.xlu0 %v1058, 16
    %v1094 = vpop.permute.xlu0 %1093
    %1095 = vrot.lane.b32.xlu0 %v1059, 16
    %v1096 = vpop.permute.xlu0 %1095
    %1097 = vrot.lane.b32.xlu0 %v1060, 16
    %v1098 = vpop.permute.xlu0 %1097
    %1099 = vrot.lane.b32.xlu0 %v1061, 16
    %v1100 = vpop.permute.xlu0 %1099
    %1101 = vrot.lane.b32.xlu0 %v1062, 16
    %v1102 = vpop.permute.xlu0 %1101
    %1103 = vrot.lane.b32.xlu0 %v1063, 16
    %v1104 = vpop.permute.xlu0 %1103
    %1105 = vrot.lane.b32.xlu0 %v1064, 16
    %v1106 = vpop.permute.xlu0 %1105
    %1107 = vrot.lane.b32.xlu0 %v1065, 16
    %v1108 = vpop.permute.xlu0 %1107
    %1109 = vrot.lane.b32.xlu0 %v1066, 16
    %v1110 = vpop.permute.xlu0 %1109
    %1111 = vrot.lane.b32.xlu0 %v1067, 16
    %v1112 = vpop.permute.xlu0 %1111
    %1113 = vrot.lane.b32.xlu0 %v1068, 16
    %v1114 = vpop.permute.xlu0 %1113
    %1115 = vrot.lane.b32.xlu0 %v1069, 16
    %v1116 = vpop.permute.xlu0 %1115
    %1117 = vrot.lane.b32.xlu0 %v1070, 16
    %v1118 = vpop.permute.xlu0 %1117
    %v1135 = vadd.f32 %v894, %v1088
    %v1136 = vadd.f32 %v895, %v1090
    %v1137 = vadd.f32 %v896, %v1092
    %v1138 = vadd.f32 %v897, %v1094
    %v1139 = vadd.f32 %v898, %v1096
    %v1140 = vadd.f32 %v899, %v1098
    %v1141 = vadd.f32 %v900, %v1100
    %v1142 = vadd.f32 %v901, %v1102
    %v1143 = vadd.f32 %v902, %v1104
    %v1144 = vadd.f32 %v903, %v1106
    %v1145 = vadd.f32 %v904, %v1108
    %v1146 = vadd.f32 %v905, %v1110
    %v1147 = vadd.f32 %v906, %v1112
    %v1148 = vadd.f32 %v907, %v1114
    %v1149 = vadd.f32 %v908, %v1116
    %v1150 = vadd.f32 %v909, %v1118
    %1151 = vrot.lane.b32.xlu0 %v413, 116
    %v1152 = vpop.permute.xlu0 %1151
    %1153 = vrot.lane.b32.xlu0 %v416, 116
    %v1154 = vpop.permute.xlu0 %1153
    %1155 = vrot.lane.b32.xlu0 %v421, 116
    %v1156 = vpop.permute.xlu0 %1155
    %1157 = vrot.lane.b32.xlu0 %v424, 116
    %v1158 = vpop.permute.xlu0 %1157
    %1159 = vrot.lane.b32.xlu0 %v429, 116
    %v1160 = vpop.permute.xlu0 %1159
    %1161 = vrot.lane.b32.xlu0 %v432, 116
    %v1162 = vpop.permute.xlu0 %1161
    %1163 = vrot.lane.b32.xlu0 %v437, 116
    %v1164 = vpop.permute.xlu0 %1163
    %1165 = vrot.lane.b32.xlu0 %v440, 116
    %v1166 = vpop.permute.xlu0 %1165
    %1167 = vrot.lane.b32.xlu0 %v445, 116
    %v1168 = vpop.permute.xlu0 %1167
    %1169 = vrot.lane.b32.xlu0 %v448, 116
    %v1170 = vpop.permute.xlu0 %1169
    %1171 = vrot.lane.b32.xlu0 %v453, 116
    %v1172 = vpop.permute.xlu0 %1171
    %1173 = vrot.lane.b32.xlu0 %v456, 116
    %v1174 = vpop.permute.xlu0 %1173
    %1175 = vrot.lane.b32.xlu0 %v461, 116
    %v1176 = vpop.permute.xlu0 %1175
    %1177 = vrot.lane.b32.xlu0 %v464, 116
    %v1178 = vpop.permute.xlu0 %1177
    %1179 = vrot.lane.b32.xlu0 %v469, 116
    %v1180 = vpop.permute.xlu0 %1179
    %1181 = vrot.lane.b32.xlu0 %v472, 116
    %v1182 = vpop.permute.xlu0 %1181
    %v1199 = vrot.slane %v1152, 7
    %v1200 = vrot.slane %v1154, 7
    %v1201 = vrot.slane %v1156, 7
    %v1202 = vrot.slane %v1158, 7
    %v1203 = vrot.slane %v1160, 7
    %v1204 = vrot.slane %v1162, 7
    %v1205 = vrot.slane %v1164, 7
    %v1206 = vrot.slane %v1166, 7
    %v1207 = vrot.slane %v1168, 7
    %v1208 = vrot.slane %v1170, 7
    %v1209 = vrot.slane %v1172, 7
    %v1210 = vrot.slane %v1174, 7
    %v1211 = vrot.slane %v1176, 7
    %v1212 = vrot.slane %v1178, 7
    %v1213 = vrot.slane %v1180, 7
    %v1214 = vrot.slane %v1182, 7
    %v1215 = vsel %vm493, %v1213, %v1214
    %v1216 = vsel %vm493, %v1212, %v1213
    %v1217 = vsel %vm493, %v1211, %v1212
    %v1218 = vsel %vm493, %v1210, %v1211
    %v1219 = vsel %vm493, %v1209, %v1210
    %v1220 = vsel %vm493, %v1208, %v1209
    %v1221 = vsel %vm493, %v1207, %v1208
    %v1222 = vsel %vm493, %v1206, %v1207
    %v1223 = vsel %vm493, %v1205, %v1206
    %v1224 = vsel %vm493, %v1204, %v1205
    %v1225 = vsel %vm493, %v1203, %v1204
    %v1226 = vsel %vm493, %v1202, %v1203
    %v1227 = vsel %vm493, %v1201, %v1202
    %v1228 = vsel %vm493, %v1200, %v1201
    %v1229 = vsel %vm493, %v1199, %v1200
    %v1230 = vsel %vm493, %v1214, %v1199
    %1231 = vset.pattern.permute.xlu0 3
    %1232 = vperm.xlu0 %1231, %v147
    %v1233 = vpop.permute.xlu0 %1232
    %1235 = vset.pattern.permute.xlu0 3
    %1236 = vperm.xlu0 %1235, %v148
    %v1237 = vpop.permute.xlu0 %1236
    %1239 = vset.pattern.permute.xlu0 3
    %1240 = vperm.xlu0 %1239, %v149
    %v1241 = vpop.permute.xlu0 %1240
    %1243 = vset.pattern.permute.xlu0 3
    %1244 = vperm.xlu0 %1243, %v150
    %v1245 = vpop.permute.xlu0 %1244
    %1247 = vset.pattern.permute.xlu0 3
    %1248 = vperm.xlu0 %1247, %v151
    %v1249 = vpop.permute.xlu0 %1248
    %1251 = vset.pattern.permute.xlu0 3
    %1252 = vperm.xlu0 %1251, %v152
    %v1253 = vpop.permute.xlu0 %1252
    %1255 = vset.pattern.permute.xlu0 3
    %1256 = vperm.xlu0 %1255, %v153
    %v1257 = vpop.permute.xlu0 %1256
    %1259 = vset.pattern.permute.xlu0 3
    %1260 = vperm.xlu0 %1259, %v154
    %v1261 = vpop.permute.xlu0 %1260
    %1263 = vset.pattern.permute.xlu0 3
    %1264 = vperm.xlu0 %1263, %v155
    %v1265 = vpop.permute.xlu0 %1264
    %1267 = vset.pattern.permute.xlu0 3
    %1268 = vperm.xlu0 %1267, %v156
    %v1269 = vpop.permute.xlu0 %1268
    %1271 = vset.pattern.permute.xlu0 3
    %1272 = vperm.xlu0 %1271, %v157
    %v1273 = vpop.permute.xlu0 %1272
    %1275 = vset.pattern.permute.xlu0 3
    %1276 = vperm.xlu0 %1275, %v158
    %v1277 = vpop.permute.xlu0 %1276
    %1279 = vset.pattern.permute.xlu0 3
    %1280 = vperm.xlu0 %1279, %v159
    %v1281 = vpop.permute.xlu0 %1280
    %1283 = vset.pattern.permute.xlu0 3
    %1284 = vperm.xlu0 %1283, %v160
    %v1285 = vpop.permute.xlu0 %1284
    %1287 = vset.pattern.permute.xlu0 3
    %1288 = vperm.xlu0 %1287, %v161
    %v1289 = vpop.permute.xlu0 %1288
    %1291 = vset.pattern.permute.xlu0 3
    %1292 = vperm.xlu0 %1291, %v162
    %v1293 = vpop.permute.xlu0 %1292
    %v1295 = vmul.f32 %v1230, %v1233
    %v1296 = vmul.f32 %v1229, %v1237
    %v1297 = vmul.f32 %v1228, %v1241
    %v1298 = vmul.f32 %v1227, %v1245
    %v1299 = vmul.f32 %v1226, %v1249
    %v1300 = vmul.f32 %v1225, %v1253
    %v1301 = vmul.f32 %v1224, %v1257
    %v1302 = vmul.f32 %v1223, %v1261
    %v1303 = vmul.f32 %v1222, %v1265
    %v1304 = vmul.f32 %v1221, %v1269
    %v1305 = vmul.f32 %v1220, %v1273
    %v1306 = vmul.f32 %v1219, %v1277
    %v1307 = vmul.f32 %v1218, %v1281
    %v1308 = vmul.f32 %v1217, %v1285
    %v1309 = vmul.f32 %v1216, %v1289
    %v1310 = vmul.f32 %v1215, %v1293
    %1327 = vrot.lane.b32.xlu0 %v1295, 16
    %v1328 = vpop.permute.xlu0 %1327
    %1329 = vrot.lane.b32.xlu0 %v1296, 16
    %v1330 = vpop.permute.xlu0 %1329
    %1331 = vrot.lane.b32.xlu0 %v1297, 16
    %v1332 = vpop.permute.xlu0 %1331
    %1333 = vrot.lane.b32.xlu0 %v1298, 16
    %v1334 = vpop.permute.xlu0 %1333
    %1335 = vrot.lane.b32.xlu0 %v1299, 16
    %v1336 = vpop.permute.xlu0 %1335
    %1337 = vrot.lane.b32.xlu0 %v1300, 16
    %v1338 = vpop.permute.xlu0 %1337
    %1339 = vrot.lane.b32.xlu0 %v1301, 16
    %v1340 = vpop.permute.xlu0 %1339
    %1341 = vrot.lane.b32.xlu0 %v1302, 16
    %v1342 = vpop.permute.xlu0 %1341
    %1343 = vrot.lane.b32.xlu0 %v1303, 16
    %v1344 = vpop.permute.xlu0 %1343
    %1345 = vrot.lane.b32.xlu0 %v1304, 16
    %v1346 = vpop.permute.xlu0 %1345
    %1347 = vrot.lane.b32.xlu0 %v1305, 16
    %v1348 = vpop.permute.xlu0 %1347
    %1349 = vrot.lane.b32.xlu0 %v1306, 16
    %v1350 = vpop.permute.xlu0 %1349
    %1351 = vrot.lane.b32.xlu0 %v1307, 16
    %v1352 = vpop.permute.xlu0 %1351
    %1353 = vrot.lane.b32.xlu0 %v1308, 16
    %v1354 = vpop.permute.xlu0 %1353
    %1355 = vrot.lane.b32.xlu0 %v1309, 16
    %v1356 = vpop.permute.xlu0 %1355
    %1357 = vrot.lane.b32.xlu0 %v1310, 16
    %v1358 = vpop.permute.xlu0 %1357
    %v1375 = vadd.f32 %v1135, %v1328
    %v1376 = vadd.f32 %v1136, %v1330
    %v1377 = vadd.f32 %v1137, %v1332
    %v1378 = vadd.f32 %v1138, %v1334
    %v1379 = vadd.f32 %v1139, %v1336
    %v1380 = vadd.f32 %v1140, %v1338
    %v1381 = vadd.f32 %v1141, %v1340
    %v1382 = vadd.f32 %v1142, %v1342
    %v1383 = vadd.f32 %v1143, %v1344
    %v1384 = vadd.f32 %v1144, %v1346
    %v1385 = vadd.f32 %v1145, %v1348
    %v1386 = vadd.f32 %v1146, %v1350
    %v1387 = vadd.f32 %v1147, %v1352
    %v1388 = vadd.f32 %v1148, %v1354
    %v1389 = vadd.f32 %v1149, %v1356
    %v1390 = vadd.f32 %v1150, %v1358
    %1391 = vrot.lane.b32.xlu0 %v413, 108
    %v1392 = vpop.permute.xlu0 %1391
    %1393 = vrot.lane.b32.xlu0 %v416, 108
    %v1394 = vpop.permute.xlu0 %1393
    %1395 = vrot.lane.b32.xlu0 %v421, 108
    %v1396 = vpop.permute.xlu0 %1395
    %1397 = vrot.lane.b32.xlu0 %v424, 108
    %v1398 = vpop.permute.xlu0 %1397
    %1399 = vrot.lane.b32.xlu0 %v429, 108
    %v1400 = vpop.permute.xlu0 %1399
    %1401 = vrot.lane.b32.xlu0 %v432, 108
    %v1402 = vpop.permute.xlu0 %1401
    %1403 = vrot.lane.b32.xlu0 %v437, 108
    %v1404 = vpop.permute.xlu0 %1403
    %1405 = vrot.lane.b32.xlu0 %v440, 108
    %v1406 = vpop.permute.xlu0 %1405
    %1407 = vrot.lane.b32.xlu0 %v445, 108
    %v1408 = vpop.permute.xlu0 %1407
    %1409 = vrot.lane.b32.xlu0 %v448, 108
    %v1410 = vpop.permute.xlu0 %1409
    %1411 = vrot.lane.b32.xlu0 %v453, 108
    %v1412 = vpop.permute.xlu0 %1411
    %1413 = vrot.lane.b32.xlu0 %v456, 108
    %v1414 = vpop.permute.xlu0 %1413
    %1415 = vrot.lane.b32.xlu0 %v461, 108
    %v1416 = vpop.permute.xlu0 %1415
    %1417 = vrot.lane.b32.xlu0 %v464, 108
    %v1418 = vpop.permute.xlu0 %1417
    %1419 = vrot.lane.b32.xlu0 %v469, 108
    %v1420 = vpop.permute.xlu0 %1419
    %1421 = vrot.lane.b32.xlu0 %v472, 108
    %v1422 = vpop.permute.xlu0 %1421
    %v1439 = vrot.slane %v1392, 1
    %v1440 = vrot.slane %v1394, 1
    %v1441 = vrot.slane %v1396, 1
    %v1442 = vrot.slane %v1398, 1
    %v1443 = vrot.slane %v1400, 1
    %v1444 = vrot.slane %v1402, 1
    %v1445 = vrot.slane %v1404, 1
    %v1446 = vrot.slane %v1406, 1
    %v1447 = vrot.slane %v1408, 1
    %v1448 = vrot.slane %v1410, 1
    %v1449 = vrot.slane %v1412, 1
    %v1450 = vrot.slane %v1414, 1
    %v1451 = vrot.slane %v1416, 1
    %v1452 = vrot.slane %v1418, 1
    %v1453 = vrot.slane %v1420, 1
    %v1454 = vrot.slane %v1422, 1
    %v1455 = vsel %vm974, %v1453, %v1454
    %v1456 = vsel %vm974, %v1452, %v1453
    %v1457 = vsel %vm974, %v1451, %v1452
    %v1458 = vsel %vm974, %v1450, %v1451
    %v1459 = vsel %vm974, %v1449, %v1450
    %v1460 = vsel %vm974, %v1448, %v1449
    %v1461 = vsel %vm974, %v1447, %v1448
    %v1462 = vsel %vm974, %v1446, %v1447
    %v1463 = vsel %vm974, %v1445, %v1446
    %v1464 = vsel %vm974, %v1444, %v1445
    %v1465 = vsel %vm974, %v1443, %v1444
    %v1466 = vsel %vm974, %v1442, %v1443
    %v1467 = vsel %vm974, %v1441, %v1442
    %v1468 = vsel %vm974, %v1440, %v1441
    %v1469 = vsel %vm974, %v1439, %v1440
    %v1470 = vsel %vm974, %v1454, %v1439
    %1471 = vset.pattern.permute.xlu0 5
    %1472 = vperm.xlu0 %1471, %v147
    %v1473 = vpop.permute.xlu0 %1472
    %1475 = vset.pattern.permute.xlu0 5
    %1476 = vperm.xlu0 %1475, %v148
    %v1477 = vpop.permute.xlu0 %1476
    %1479 = vset.pattern.permute.xlu0 5
    %1480 = vperm.xlu0 %1479, %v149
    %v1481 = vpop.permute.xlu0 %1480
    %1483 = vset.pattern.permute.xlu0 5
    %1484 = vperm.xlu0 %1483, %v150
    %v1485 = vpop.permute.xlu0 %1484
    %1487 = vset.pattern.permute.xlu0 5
    %1488 = vperm.xlu0 %1487, %v151
    %v1489 = vpop.permute.xlu0 %1488
    %1491 = vset.pattern.permute.xlu0 5
    %1492 = vperm.xlu0 %1491, %v152
    %v1493 = vpop.permute.xlu0 %1492
    %1495 = vset.pattern.permute.xlu0 5
    %1496 = vperm.xlu0 %1495, %v153
    %v1497 = vpop.permute.xlu0 %1496
    %1499 = vset.pattern.permute.xlu0 5
    %1500 = vperm.xlu0 %1499, %v154
    %v1501 = vpop.permute.xlu0 %1500
    %1503 = vset.pattern.permute.xlu0 5
    %1504 = vperm.xlu0 %1503, %v155
    %v1505 = vpop.permute.xlu0 %1504
    %1507 = vset.pattern.permute.xlu0 5
    %1508 = vperm.xlu0 %1507, %v156
    %v1509 = vpop.permute.xlu0 %1508
    %1511 = vset.pattern.permute.xlu0 5
    %1512 = vperm.xlu0 %1511, %v157
    %v1513 = vpop.permute.xlu0 %1512
    %1515 = vset.pattern.permute.xlu0 5
    %1516 = vperm.xlu0 %1515, %v158
    %v1517 = vpop.permute.xlu0 %1516
    %1519 = vset.pattern.permute.xlu0 5
    %1520 = vperm.xlu0 %1519, %v159
    %v1521 = vpop.permute.xlu0 %1520
    %1523 = vset.pattern.permute.xlu0 5
    %1524 = vperm.xlu0 %1523, %v160
    %v1525 = vpop.permute.xlu0 %1524
    %1527 = vset.pattern.permute.xlu0 5
    %1528 = vperm.xlu0 %1527, %v161
    %v1529 = vpop.permute.xlu0 %1528
    %1531 = vset.pattern.permute.xlu0 5
    %1532 = vperm.xlu0 %1531, %v162
    %v1533 = vpop.permute.xlu0 %1532
    %v1535 = vmul.f32 %v1469, %v1473
    %v1536 = vmul.f32 %v1468, %v1477
    %v1537 = vmul.f32 %v1467, %v1481
    %v1538 = vmul.f32 %v1466, %v1485
    %v1539 = vmul.f32 %v1465, %v1489
    %v1540 = vmul.f32 %v1464, %v1493
    %v1541 = vmul.f32 %v1463, %v1497
    %v1542 = vmul.f32 %v1462, %v1501
    %v1543 = vmul.f32 %v1461, %v1505
    %v1544 = vmul.f32 %v1460, %v1509
    %v1545 = vmul.f32 %v1459, %v1513
    %v1546 = vmul.f32 %v1458, %v1517
    %v1547 = vmul.f32 %v1457, %v1521
    %v1548 = vmul.f32 %v1456, %v1525
    %v1549 = vmul.f32 %v1455, %v1529
    %v1550 = vmul.f32 %v1470, %v1533
    %1567 = vrot.lane.b32.xlu0 %v1535, 16
    %v1568 = vpop.permute.xlu0 %1567
    %1569 = vrot.lane.b32.xlu0 %v1536, 16
    %v1570 = vpop.permute.xlu0 %1569
    %1571 = vrot.lane.b32.xlu0 %v1537, 16
    %v1572 = vpop.permute.xlu0 %1571
    %1573 = vrot.lane.b32.xlu0 %v1538, 16
    %v1574 = vpop.permute.xlu0 %1573
    %1575 = vrot.lane.b32.xlu0 %v1539, 16
    %v1576 = vpop.permute.xlu0 %1575
    %1577 = vrot.lane.b32.xlu0 %v1540, 16
    %v1578 = vpop.permute.xlu0 %1577
    %1579 = vrot.lane.b32.xlu0 %v1541, 16
    %v1580 = vpop.permute.xlu0 %1579
    %1581 = vrot.lane.b32.xlu0 %v1542, 16
    %v1582 = vpop.permute.xlu0 %1581
    %1583 = vrot.lane.b32.xlu0 %v1543, 16
    %v1584 = vpop.permute.xlu0 %1583
    %1585 = vrot.lane.b32.xlu0 %v1544, 16
    %v1586 = vpop.permute.xlu0 %1585
    %1587 = vrot.lane.b32.xlu0 %v1545, 16
    %v1588 = vpop.permute.xlu0 %1587
    %1589 = vrot.lane.b32.xlu0 %v1546, 16
    %v1590 = vpop.permute.xlu0 %1589
    %1591 = vrot.lane.b32.xlu0 %v1547, 16
    %v1592 = vpop.permute.xlu0 %1591
    %1593 = vrot.lane.b32.xlu0 %v1548, 16
    %v1594 = vpop.permute.xlu0 %1593
    %1595 = vrot.lane.b32.xlu0 %v1549, 16
    %v1596 = vpop.permute.xlu0 %1595
    %1597 = vrot.lane.b32.xlu0 %v1550, 16
    %v1598 = vpop.permute.xlu0 %1597
    %v1615 = vadd.f32 %v1375, %v1568
    %v1616 = vadd.f32 %v1376, %v1570
    %v1617 = vadd.f32 %v1377, %v1572
    %v1618 = vadd.f32 %v1378, %v1574
    %v1619 = vadd.f32 %v1379, %v1576
    %v1620 = vadd.f32 %v1380, %v1578
    %v1621 = vadd.f32 %v1381, %v1580
    %v1622 = vadd.f32 %v1382, %v1582
    %v1623 = vadd.f32 %v1383, %v1584
    %v1624 = vadd.f32 %v1384, %v1586
    %v1625 = vadd.f32 %v1385, %v1588
    %v1626 = vadd.f32 %v1386, %v1590
    %v1627 = vadd.f32 %v1387, %v1592
    %v1628 = vadd.f32 %v1388, %v1594
    %v1629 = vadd.f32 %v1389, %v1596
    %v1630 = vadd.f32 %v1390, %v1598
    %1631 = vrot.lane.b32.xlu0 %v413, 104
    %v1632 = vpop.permute.xlu0 %1631
    %1633 = vrot.lane.b32.xlu0 %v416, 104
    %v1634 = vpop.permute.xlu0 %1633
    %1635 = vrot.lane.b32.xlu0 %v421, 104
    %v1636 = vpop.permute.xlu0 %1635
    %1637 = vrot.lane.b32.xlu0 %v424, 104
    %v1638 = vpop.permute.xlu0 %1637
    %1639 = vrot.lane.b32.xlu0 %v429, 104
    %v1640 = vpop.permute.xlu0 %1639
    %1641 = vrot.lane.b32.xlu0 %v432, 104
    %v1642 = vpop.permute.xlu0 %1641
    %1643 = vrot.lane.b32.xlu0 %v437, 104
    %v1644 = vpop.permute.xlu0 %1643
    %1645 = vrot.lane.b32.xlu0 %v440, 104
    %v1646 = vpop.permute.xlu0 %1645
    %1647 = vrot.lane.b32.xlu0 %v445, 104
    %v1648 = vpop.permute.xlu0 %1647
    %1649 = vrot.lane.b32.xlu0 %v448, 104
    %v1650 = vpop.permute.xlu0 %1649
    %1651 = vrot.lane.b32.xlu0 %v453, 104
    %v1652 = vpop.permute.xlu0 %1651
    %1653 = vrot.lane.b32.xlu0 %v456, 104
    %v1654 = vpop.permute.xlu0 %1653
    %1655 = vrot.lane.b32.xlu0 %v461, 104
    %v1656 = vpop.permute.xlu0 %1655
    %1657 = vrot.lane.b32.xlu0 %v464, 104
    %v1658 = vpop.permute.xlu0 %1657
    %1659 = vrot.lane.b32.xlu0 %v469, 104
    %v1660 = vpop.permute.xlu0 %1659
    %1661 = vrot.lane.b32.xlu0 %v472, 104
    %v1662 = vpop.permute.xlu0 %1661
    %v1679 = vrot.slane %v1632, 7
    %v1680 = vrot.slane %v1634, 7
    %v1681 = vrot.slane %v1636, 7
    %v1682 = vrot.slane %v1638, 7
    %v1683 = vrot.slane %v1640, 7
    %v1684 = vrot.slane %v1642, 7
    %v1685 = vrot.slane %v1644, 7
    %v1686 = vrot.slane %v1646, 7
    %v1687 = vrot.slane %v1648, 7
    %v1688 = vrot.slane %v1650, 7
    %v1689 = vrot.slane %v1652, 7
    %v1690 = vrot.slane %v1654, 7
    %v1691 = vrot.slane %v1656, 7
    %v1692 = vrot.slane %v1658, 7
    %v1693 = vrot.slane %v1660, 7
    %v1694 = vrot.slane %v1662, 7
    %v1695 = vsel %vm493, %v1693, %v1694
    %v1696 = vsel %vm493, %v1692, %v1693
    %v1697 = vsel %vm493, %v1691, %v1692
    %v1698 = vsel %vm493, %v1690, %v1691
    %v1699 = vsel %vm493, %v1689, %v1690
    %v1700 = vsel %vm493, %v1688, %v1689
    %v1701 = vsel %vm493, %v1687, %v1688
    %v1702 = vsel %vm493, %v1686, %v1687
    %v1703 = vsel %vm493, %v1685, %v1686
    %v1704 = vsel %vm493, %v1684, %v1685
    %v1705 = vsel %vm493, %v1683, %v1684
    %v1706 = vsel %vm493, %v1682, %v1683
    %v1707 = vsel %vm493, %v1681, %v1682
    %v1708 = vsel %vm493, %v1680, %v1681
    %v1709 = vsel %vm493, %v1679, %v1680
    %v1710 = vsel %vm493, %v1694, %v1679
    %1711 = vset.pattern.permute.xlu0 6
    %1712 = vperm.xlu0 %1711, %v147
    %v1713 = vpop.permute.xlu0 %1712
    %1715 = vset.pattern.permute.xlu0 6
    %1716 = vperm.xlu0 %1715, %v148
    %v1717 = vpop.permute.xlu0 %1716
    %1719 = vset.pattern.permute.xlu0 6
    %1720 = vperm.xlu0 %1719, %v149
    %v1721 = vpop.permute.xlu0 %1720
    %1723 = vset.pattern.permute.xlu0 6
    %1724 = vperm.xlu0 %1723, %v150
    %v1725 = vpop.permute.xlu0 %1724
    %1727 = vset.pattern.permute.xlu0 6
    %1728 = vperm.xlu0 %1727, %v151
    %v1729 = vpop.permute.xlu0 %1728
    %1731 = vset.pattern.permute.xlu0 6
    %1732 = vperm.xlu0 %1731, %v152
    %v1733 = vpop.permute.xlu0 %1732
    %1735 = vset.pattern.permute.xlu0 6
    %1736 = vperm.xlu0 %1735, %v153
    %v1737 = vpop.permute.xlu0 %1736
    %1739 = vset.pattern.permute.xlu0 6
    %1740 = vperm.xlu0 %1739, %v154
    %v1741 = vpop.permute.xlu0 %1740
    %1743 = vset.pattern.permute.xlu0 6
    %1744 = vperm.xlu0 %1743, %v155
    %v1745 = vpop.permute.xlu0 %1744
    %1747 = vset.pattern.permute.xlu0 6
    %1748 = vperm.xlu0 %1747, %v156
    %v1749 = vpop.permute.xlu0 %1748
    %1751 = vset.pattern.permute.xlu0 6
    %1752 = vperm.xlu0 %1751, %v157
    %v1753 = vpop.permute.xlu0 %1752
    %1755 = vset.pattern.permute.xlu0 6
    %1756 = vperm.xlu0 %1755, %v158
    %v1757 = vpop.permute.xlu0 %1756
    %1759 = vset.pattern.permute.xlu0 6
    %1760 = vperm.xlu0 %1759, %v159
    %v1761 = vpop.permute.xlu0 %1760
    %1763 = vset.pattern.permute.xlu0 6
    %1764 = vperm.xlu0 %1763, %v160
    %v1765 = vpop.permute.xlu0 %1764
    %1767 = vset.pattern.permute.xlu0 6
    %1768 = vperm.xlu0 %1767, %v161
    %v1769 = vpop.permute.xlu0 %1768
    %1771 = vset.pattern.permute.xlu0 6
    %1772 = vperm.xlu0 %1771, %v162
    %v1773 = vpop.permute.xlu0 %1772
    %v1775 = vmul.f32 %v1709, %v1713
    %v1776 = vmul.f32 %v1708, %v1717
    %v1777 = vmul.f32 %v1707, %v1721
    %v1778 = vmul.f32 %v1706, %v1725
    %v1779 = vmul.f32 %v1705, %v1729
    %v1780 = vmul.f32 %v1704, %v1733
    %v1781 = vmul.f32 %v1703, %v1737
    %v1782 = vmul.f32 %v1702, %v1741
    %v1783 = vmul.f32 %v1701, %v1745
    %v1784 = vmul.f32 %v1700, %v1749
    %v1785 = vmul.f32 %v1699, %v1753
    %v1786 = vmul.f32 %v1698, %v1757
    %v1787 = vmul.f32 %v1697, %v1761
    %v1788 = vmul.f32 %v1696, %v1765
    %v1789 = vmul.f32 %v1695, %v1769
    %v1790 = vmul.f32 %v1710, %v1773
    %1807 = vrot.lane.b32.xlu0 %v1775, 16
    %v1808 = vpop.permute.xlu0 %1807
    %1809 = vrot.lane.b32.xlu0 %v1776, 16
    %v1810 = vpop.permute.xlu0 %1809
    %1811 = vrot.lane.b32.xlu0 %v1777, 16
    %v1812 = vpop.permute.xlu0 %1811
    %1813 = vrot.lane.b32.xlu0 %v1778, 16
    %v1814 = vpop.permute.xlu0 %1813
    %1815 = vrot.lane.b32.xlu0 %v1779, 16
    %v1816 = vpop.permute.xlu0 %1815
    %1817 = vrot.lane.b32.xlu0 %v1780, 16
    %v1818 = vpop.permute.xlu0 %1817
    %1819 = vrot.lane.b32.xlu0 %v1781, 16
    %v1820 = vpop.permute.xlu0 %1819
    %1821 = vrot.lane.b32.xlu0 %v1782, 16
    %v1822 = vpop.permute.xlu0 %1821
    %1823 = vrot.lane.b32.xlu0 %v1783, 16
    %v1824 = vpop.permute.xlu0 %1823
    %1825 = vrot.lane.b32.xlu0 %v1784, 16
    %v1826 = vpop.permute.xlu0 %1825
    %1827 = vrot.lane.b32.xlu0 %v1785, 16
    %v1828 = vpop.permute.xlu0 %1827
    %1829 = vrot.lane.b32.xlu0 %v1786, 16
    %v1830 = vpop.permute.xlu0 %1829
    %1831 = vrot.lane.b32.xlu0 %v1787, 16
    %v1832 = vpop.permute.xlu0 %1831
    %1833 = vrot.lane.b32.xlu0 %v1788, 16
    %v1834 = vpop.permute.xlu0 %1833
    %1835 = vrot.lane.b32.xlu0 %v1789, 16
    %v1836 = vpop.permute.xlu0 %1835
    %1837 = vrot.lane.b32.xlu0 %v1790, 16
    %v1838 = vpop.permute.xlu0 %1837
    %v1855 = vadd.f32 %v1615, %v1808
    %v1856 = vadd.f32 %v1616, %v1810
    %v1857 = vadd.f32 %v1617, %v1812
    %v1858 = vadd.f32 %v1618, %v1814
    %v1859 = vadd.f32 %v1619, %v1816
    %v1860 = vadd.f32 %v1620, %v1818
    %v1861 = vadd.f32 %v1621, %v1820
    %v1862 = vadd.f32 %v1622, %v1822
    %v1863 = vadd.f32 %v1623, %v1824
    %v1864 = vadd.f32 %v1624, %v1826
    %v1865 = vadd.f32 %v1625, %v1828
    %v1866 = vadd.f32 %v1626, %v1830
    %v1867 = vadd.f32 %v1627, %v1832
    %v1868 = vadd.f32 %v1628, %v1834
    %v1869 = vadd.f32 %v1629, %v1836
    %v1870 = vadd.f32 %v1630, %v1838
    %1871 = vrot.lane.b32.xlu0 %v413, 100
    %v1872 = vpop.permute.xlu0 %1871
    %1873 = vrot.lane.b32.xlu0 %v416, 100
    %v1874 = vpop.permute.xlu0 %1873
    %1875 = vrot.lane.b32.xlu0 %v421, 100
    %v1876 = vpop.permute.xlu0 %1875
    %1877 = vrot.lane.b32.xlu0 %v424, 100
    %v1878 = vpop.permute.xlu0 %1877
    %1879 = vrot.lane.b32.xlu0 %v429, 100
    %v1880 = vpop.permute.xlu0 %1879
    %1881 = vrot.lane.b32.xlu0 %v432, 100
    %v1882 = vpop.permute.xlu0 %1881
    %1883 = vrot.lane.b32.xlu0 %v437, 100
    %v1884 = vpop.permute.xlu0 %1883
    %1885 = vrot.lane.b32.xlu0 %v440, 100
    %v1886 = vpop.permute.xlu0 %1885
    %1887 = vrot.lane.b32.xlu0 %v445, 100
    %v1888 = vpop.permute.xlu0 %1887
    %1889 = vrot.lane.b32.xlu0 %v448, 100
    %v1890 = vpop.permute.xlu0 %1889
    %1891 = vrot.lane.b32.xlu0 %v453, 100
    %v1892 = vpop.permute.xlu0 %1891
    %1893 = vrot.lane.b32.xlu0 %v456, 100
    %v1894 = vpop.permute.xlu0 %1893
    %1895 = vrot.lane.b32.xlu0 %v461, 100
    %v1896 = vpop.permute.xlu0 %1895
    %1897 = vrot.lane.b32.xlu0 %v464, 100
    %v1898 = vpop.permute.xlu0 %1897
    %1899 = vrot.lane.b32.xlu0 %v469, 100
    %v1900 = vpop.permute.xlu0 %1899
    %1901 = vrot.lane.b32.xlu0 %v472, 100
    %v1902 = vpop.permute.xlu0 %1901
    %1919 = vset.pattern.permute.xlu0 7
    %1920 = vperm.xlu0 %1919, %v147
    %v1921 = vpop.permute.xlu0 %1920
    %1923 = vset.pattern.permute.xlu0 7
    %1924 = vperm.xlu0 %1923, %v148
    %v1925 = vpop.permute.xlu0 %1924
    %1927 = vset.pattern.permute.xlu0 7
    %1928 = vperm.xlu0 %1927, %v149
    %v1929 = vpop.permute.xlu0 %1928
    %1931 = vset.pattern.permute.xlu0 7
    %1932 = vperm.xlu0 %1931, %v150
    %v1933 = vpop.permute.xlu0 %1932
    %1935 = vset.pattern.permute.xlu0 7
    %1936 = vperm.xlu0 %1935, %v151
    %v1937 = vpop.permute.xlu0 %1936
    %1939 = vset.pattern.permute.xlu0 7
    %1940 = vperm.xlu0 %1939, %v152
    %v1941 = vpop.permute.xlu0 %1940
    %1943 = vset.pattern.permute.xlu0 7
    %1944 = vperm.xlu0 %1943, %v153
    %v1945 = vpop.permute.xlu0 %1944
    %1947 = vset.pattern.permute.xlu0 7
    %1948 = vperm.xlu0 %1947, %v154
    %v1949 = vpop.permute.xlu0 %1948
    %1951 = vset.pattern.permute.xlu0 7
    %1952 = vperm.xlu0 %1951, %v155
    %v1953 = vpop.permute.xlu0 %1952
    %1955 = vset.pattern.permute.xlu0 7
    %1956 = vperm.xlu0 %1955, %v156
    %v1957 = vpop.permute.xlu0 %1956
    %1959 = vset.pattern.permute.xlu0 7
    %1960 = vperm.xlu0 %1959, %v157
    %v1961 = vpop.permute.xlu0 %1960
    %1963 = vset.pattern.permute.xlu0 7
    %1964 = vperm.xlu0 %1963, %v158
    %v1965 = vpop.permute.xlu0 %1964
    %1967 = vset.pattern.permute.xlu0 7
    %1968 = vperm.xlu0 %1967, %v159
    %v1969 = vpop.permute.xlu0 %1968
    %1971 = vset.pattern.permute.xlu0 7
    %1972 = vperm.xlu0 %1971, %v160
    %v1973 = vpop.permute.xlu0 %1972
    %1975 = vset.pattern.permute.xlu0 7
    %1976 = vperm.xlu0 %1975, %v161
    %v1977 = vpop.permute.xlu0 %1976
    %1979 = vset.pattern.permute.xlu0 7
    %1980 = vperm.xlu0 %1979, %v162
    %v1981 = vpop.permute.xlu0 %1980
    %v1983 = vmul.f32 %v1874, %v1921
    %v1984 = vmul.f32 %v1876, %v1925
    %v1985 = vmul.f32 %v1878, %v1929
    %v1986 = vmul.f32 %v1880, %v1933
    %v1987 = vmul.f32 %v1882, %v1937
    %v1988 = vmul.f32 %v1884, %v1941
    %v1989 = vmul.f32 %v1886, %v1945
    %v1990 = vmul.f32 %v1888, %v1949
    %v1991 = vmul.f32 %v1890, %v1953
    %v1992 = vmul.f32 %v1892, %v1957
    %v1993 = vmul.f32 %v1894, %v1961
    %v1994 = vmul.f32 %v1896, %v1965
    %v1995 = vmul.f32 %v1898, %v1969
    %v1996 = vmul.f32 %v1900, %v1973
    %v1997 = vmul.f32 %v1902, %v1977
    %v1998 = vmul.f32 %v1872, %v1981
    %2015 = vrot.lane.b32.xlu0 %v1983, 16
    %v2016 = vpop.permute.xlu0 %2015
    %2017 = vrot.lane.b32.xlu0 %v1984, 16
    %v2018 = vpop.permute.xlu0 %2017
    %2019 = vrot.lane.b32.xlu0 %v1985, 16
    %v2020 = vpop.permute.xlu0 %2019
    %2021 = vrot.lane.b32.xlu0 %v1986, 16
    %v2022 = vpop.permute.xlu0 %2021
    %2023 = vrot.lane.b32.xlu0 %v1987, 16
    %v2024 = vpop.permute.xlu0 %2023
    %2025 = vrot.lane.b32.xlu0 %v1988, 16
    %v2026 = vpop.permute.xlu0 %2025
    %2027 = vrot.lane.b32.xlu0 %v1989, 16
    %v2028 = vpop.permute.xlu0 %2027
    %2029 = vrot.lane.b32.xlu0 %v1990, 16
    %v2030 = vpop.permute.xlu0 %2029
    %2031 = vrot.lane.b32.xlu0 %v1991, 16
    %v2032 = vpop.permute.xlu0 %2031
    %2033 = vrot.lane.b32.xlu0 %v1992, 16
    %v2034 = vpop.permute.xlu0 %2033
    %2035 = vrot.lane.b32.xlu0 %v1993, 16
    %v2036 = vpop.permute.xlu0 %2035
    %2037 = vrot.lane.b32.xlu0 %v1994, 16
    %v2038 = vpop.permute.xlu0 %2037
    %2039 = vrot.lane.b32.xlu0 %v1995, 16
    %v2040 = vpop.permute.xlu0 %2039
    %2041 = vrot.lane.b32.xlu0 %v1996, 16
    %v2042 = vpop.permute.xlu0 %2041
    %2043 = vrot.lane.b32.xlu0 %v1997, 16
    %v2044 = vpop.permute.xlu0 %2043
    %2045 = vrot.lane.b32.xlu0 %v1998, 16
    %v2046 = vpop.permute.xlu0 %2045
    %v2063 = vadd.f32 %v1855, %v2016
    %v2064 = vadd.f32 %v1856, %v2018
    %v2065 = vadd.f32 %v1857, %v2020
    %v2066 = vadd.f32 %v1858, %v2022
    %v2067 = vadd.f32 %v1859, %v2024
    %v2068 = vadd.f32 %v1860, %v2026
    %v2069 = vadd.f32 %v1861, %v2028
    %v2070 = vadd.f32 %v1862, %v2030
    %v2071 = vadd.f32 %v1863, %v2032
    %v2072 = vadd.f32 %v1864, %v2034
    %v2073 = vadd.f32 %v1865, %v2036
    %v2074 = vadd.f32 %v1866, %v2038
    %v2075 = vadd.f32 %v1867, %v2040
    %v2076 = vadd.f32 %v1868, %v2042
    %v2077 = vadd.f32 %v1869, %v2044
    %v2078 = vadd.f32 %v1870, %v2046
    %2079 = vrot.lane.b32.xlu0 %v413, 96
    %v2080 = vpop.permute.xlu0 %2079
    %2081 = vrot.lane.b32.xlu0 %v416, 96
    %v2082 = vpop.permute.xlu0 %2081
    %2083 = vrot.lane.b32.xlu0 %v421, 96
    %v2084 = vpop.permute.xlu0 %2083
    %2085 = vrot.lane.b32.xlu0 %v424, 96
    %v2086 = vpop.permute.xlu0 %2085
    %2087 = vrot.lane.b32.xlu0 %v429, 96
    %v2088 = vpop.permute.xlu0 %2087
    %2089 = vrot.lane.b32.xlu0 %v432, 96
    %v2090 = vpop.permute.xlu0 %2089
    %2091 = vrot.lane.b32.xlu0 %v437, 96
    %v2092 = vpop.permute.xlu0 %2091
    %2093 = vrot.lane.b32.xlu0 %v440, 96
    %v2094 = vpop.permute.xlu0 %2093
    %2095 = vrot.lane.b32.xlu0 %v445, 96
    %v2096 = vpop.permute.xlu0 %2095
    %2097 = vrot.lane.b32.xlu0 %v448, 96
    %v2098 = vpop.permute.xlu0 %2097
    %2099 = vrot.lane.b32.xlu0 %v453, 96
    %v2100 = vpop.permute.xlu0 %2099
    %2101 = vrot.lane.b32.xlu0 %v456, 96
    %v2102 = vpop.permute.xlu0 %2101
    %2103 = vrot.lane.b32.xlu0 %v461, 96
    %v2104 = vpop.permute.xlu0 %2103
    %2105 = vrot.lane.b32.xlu0 %v464, 96
    %v2106 = vpop.permute.xlu0 %2105
    %2107 = vrot.lane.b32.xlu0 %v469, 96
    %v2108 = vpop.permute.xlu0 %2107
    %2109 = vrot.lane.b32.xlu0 %v472, 96
    %v2110 = vpop.permute.xlu0 %2109
    %v2127 = vrot.slane %v2080, 1
    %v2128 = vrot.slane %v2082, 1
    %v2129 = vrot.slane %v2084, 1
    %v2130 = vrot.slane %v2086, 1
    %v2131 = vrot.slane %v2088, 1
    %v2132 = vrot.slane %v2090, 1
    %v2133 = vrot.slane %v2092, 1
    %v2134 = vrot.slane %v2094, 1
    %v2135 = vrot.slane %v2096, 1
    %v2136 = vrot.slane %v2098, 1
    %v2137 = vrot.slane %v2100, 1
    %v2138 = vrot.slane %v2102, 1
    %v2139 = vrot.slane %v2104, 1
    %v2140 = vrot.slane %v2106, 1
    %v2141 = vrot.slane %v2108, 1
    %v2142 = vrot.slane %v2110, 1
    %v2143 = vsel %vm974, %v2141, %v2142
    %v2144 = vsel %vm974, %v2140, %v2141
    %v2145 = vsel %vm974, %v2139, %v2140
    %v2146 = vsel %vm974, %v2138, %v2139
    %v2147 = vsel %vm974, %v2137, %v2138
    %v2148 = vsel %vm974, %v2136, %v2137
    %v2149 = vsel %vm974, %v2135, %v2136
    %v2150 = vsel %vm974, %v2134, %v2135
    %v2151 = vsel %vm974, %v2133, %v2134
    %v2152 = vsel %vm974, %v2132, %v2133
    %v2153 = vsel %vm974, %v2131, %v2132
    %v2154 = vsel %vm974, %v2130, %v2131
    %v2155 = vsel %vm974, %v2129, %v2130
    %v2156 = vsel %vm974, %v2128, %v2129
    %v2157 = vsel %vm974, %v2127, %v2128
    %v2158 = vsel %vm974, %v2142, %v2127
    %2159 = vset.pattern.permute.xlu0 8
    %2160 = vperm.xlu0 %2159, %v147
    %v2161 = vpop.permute.xlu0 %2160
    %2163 = vset.pattern.permute.xlu0 8
    %2164 = vperm.xlu0 %2163, %v148
    %v2165 = vpop.permute.xlu0 %2164
    %2167 = vset.pattern.permute.xlu0 8
    %2168 = vperm.xlu0 %2167, %v149
    %v2169 = vpop.permute.xlu0 %2168
    %2171 = vset.pattern.permute.xlu0 8
    %2172 = vperm.xlu0 %2171, %v150
    %v2173 = vpop.permute.xlu0 %2172
    %2175 = vset.pattern.permute.xlu0 8
    %2176 = vperm.xlu0 %2175, %v151
    %v2177 = vpop.permute.xlu0 %2176
    %2179 = vset.pattern.permute.xlu0 8
    %2180 = vperm.xlu0 %2179, %v152
    %v2181 = vpop.permute.xlu0 %2180
    %2183 = vset.pattern.permute.xlu0 8
    %2184 = vperm.xlu0 %2183, %v153
    %v2185 = vpop.permute.xlu0 %2184
    %2187 = vset.pattern.permute.xlu0 8
    %2188 = vperm.xlu0 %2187, %v154
    %v2189 = vpop.permute.xlu0 %2188
    %2191 = vset.pattern.permute.xlu0 8
    %2192 = vperm.xlu0 %2191, %v155
    %v2193 = vpop.permute.xlu0 %2192
    %2195 = vset.pattern.permute.xlu0 8
    %2196 = vperm.xlu0 %2195, %v156
    %v2197 = vpop.permute.xlu0 %2196
    %2199 = vset.pattern.permute.xlu0 8
    %2200 = vperm.xlu0 %2199, %v157
    %v2201 = vpop.permute.xlu0 %2200
    %2203 = vset.pattern.permute.xlu0 8
    %2204 = vperm.xlu0 %2203, %v158
    %v2205 = vpop.permute.xlu0 %2204
    %2207 = vset.pattern.permute.xlu0 8
    %2208 = vperm.xlu0 %2207, %v159
    %v2209 = vpop.permute.xlu0 %2208
    %2211 = vset.pattern.permute.xlu0 8
    %2212 = vperm.xlu0 %2211, %v160
    %v2213 = vpop.permute.xlu0 %2212
    %2215 = vset.pattern.permute.xlu0 8
    %2216 = vperm.xlu0 %2215, %v161
    %v2217 = vpop.permute.xlu0 %2216
    %2219 = vset.pattern.permute.xlu0 8
    %2220 = vperm.xlu0 %2219, %v162
    %v2221 = vpop.permute.xlu0 %2220
    %v2223 = vmul.f32 %v2156, %v2161
    %v2224 = vmul.f32 %v2155, %v2165
    %v2225 = vmul.f32 %v2154, %v2169
    %v2226 = vmul.f32 %v2153, %v2173
    %v2227 = vmul.f32 %v2152, %v2177
    %v2228 = vmul.f32 %v2151, %v2181
    %v2229 = vmul.f32 %v2150, %v2185
    %v2230 = vmul.f32 %v2149, %v2189
    %v2231 = vmul.f32 %v2148, %v2193
    %v2232 = vmul.f32 %v2147, %v2197
    %v2233 = vmul.f32 %v2146, %v2201
    %v2234 = vmul.f32 %v2145, %v2205
    %v2235 = vmul.f32 %v2144, %v2209
    %v2236 = vmul.f32 %v2143, %v2213
    %v2237 = vmul.f32 %v2158, %v2217
    %v2238 = vmul.f32 %v2157, %v2221
    %2255 = vrot.lane.b32.xlu0 %v2223, 16
    %v2256 = vpop.permute.xlu0 %2255
    %2257 = vrot.lane.b32.xlu0 %v2224, 16
    %v2258 = vpop.permute.xlu0 %2257
    %2259 = vrot.lane.b32.xlu0 %v2225, 16
    %v2260 = vpop.permute.xlu0 %2259
    %2261 = vrot.lane.b32.xlu0 %v2226, 16
    %v2262 = vpop.permute.xlu0 %2261
    %2263 = vrot.lane.b32.xlu0 %v2227, 16
    %v2264 = vpop.permute.xlu0 %2263
    %2265 = vrot.lane.b32.xlu0 %v2228, 16
    %v2266 = vpop.permute.xlu0 %2265
    %2267 = vrot.lane.b32.xlu0 %v2229, 16
    %v2268 = vpop.permute.xlu0 %2267
    %2269 = vrot.lane.b32.xlu0 %v2230, 16
    %v2270 = vpop.permute.xlu0 %2269
    %2271 = vrot.lane.b32.xlu0 %v2231, 16
    %v2272 = vpop.permute.xlu0 %2271
    %2273 = vrot.lane.b32.xlu0 %v2232, 16
    %v2274 = vpop.permute.xlu0 %2273
    %2275 = vrot.lane.b32.xlu0 %v2233, 16
    %v2276 = vpop.permute.xlu0 %2275
    %2277 = vrot.lane.b32.xlu0 %v2234, 16
    %v2278 = vpop.permute.xlu0 %2277
    %2279 = vrot.lane.b32.xlu0 %v2235, 16
    %v2280 = vpop.permute.xlu0 %2279
    %2281 = vrot.lane.b32.xlu0 %v2236, 16
    %v2282 = vpop.permute.xlu0 %2281
    %2283 = vrot.lane.b32.xlu0 %v2237, 16
    %v2284 = vpop.permute.xlu0 %2283
    %2285 = vrot.lane.b32.xlu0 %v2238, 16
    %v2286 = vpop.permute.xlu0 %2285
    %v2303 = vadd.f32 %v2063, %v2256
    %v2304 = vadd.f32 %v2064, %v2258
    %v2305 = vadd.f32 %v2065, %v2260
    %v2306 = vadd.f32 %v2066, %v2262
    %v2307 = vadd.f32 %v2067, %v2264
    %v2308 = vadd.f32 %v2068, %v2266
    %v2309 = vadd.f32 %v2069, %v2268
    %v2310 = vadd.f32 %v2070, %v2270
    %v2311 = vadd.f32 %v2071, %v2272
    %v2312 = vadd.f32 %v2072, %v2274
    %v2313 = vadd.f32 %v2073, %v2276
    %v2314 = vadd.f32 %v2074, %v2278
    %v2315 = vadd.f32 %v2075, %v2280
    %v2316 = vadd.f32 %v2076, %v2282
    %v2317 = vadd.f32 %v2077, %v2284
    %v2318 = vadd.f32 %v2078, %v2286
    %v2319 = vld [vmem:[%s13] sm:$0x1]
    %v2321 = vlaneseq
    %v2322 = vshrl.u32 %v2321, 7
    %v2323 = vsub.s32 0, %v2322
    %v2324 = vrot.slane %v2319, %v2323
    %2325 = vrot.lane.b32.xlu0 %v2324, 16
    %v2326 = vpop.permute.xlu0 %2325
    %v2328 = vadd.f32 %v2303, %v2326
    %v2329 = vadd.f32 %v2304, %v2326
    %v2330 = vadd.f32 %v2305, %v2326
    %v2331 = vadd.f32 %v2306, %v2326
    %v2332 = vadd.f32 %v2307, %v2326
    %v2333 = vadd.f32 %v2308, %v2326
    %v2334 = vadd.f32 %v2309, %v2326
    %v2335 = vadd.f32 %v2310, %v2326
    %v2336 = vadd.f32 %v2311, %v2326
    %v2337 = vadd.f32 %v2312, %v2326
    %v2338 = vadd.f32 %v2313, %v2326
    %v2339 = vadd.f32 %v2314, %v2326
    %v2340 = vadd.f32 %v2315, %v2326
    %v2341 = vadd.f32 %v2316, %v2326
    %v2342 = vadd.f32 %v2317, %v2326
    %v2343 = vadd.f32 %v2318, %v2326
    %v2344 = vmax.f32 %v2328, 0.0
    %v2345 = vmax.f32 %v2329, 0.0
    %v2346 = vmax.f32 %v2330, 0.0
    %v2347 = vmax.f32 %v2331, 0.0
    %v2348 = vmax.f32 %v2332, 0.0
    %v2349 = vmax.f32 %v2333, 0.0
    %v2350 = vmax.f32 %v2334, 0.0
    %v2351 = vmax.f32 %v2335, 0.0
    %v2352 = vmax.f32 %v2336, 0.0
    %v2353 = vmax.f32 %v2337, 0.0
    %v2354 = vmax.f32 %v2338, 0.0
    %v2355 = vmax.f32 %v2339, 0.0
    %v2356 = vmax.f32 %v2340, 0.0
    %v2357 = vmax.f32 %v2341, 0.0
    %v2358 = vmax.f32 %v2342, 0.0
    %v2359 = vmax.f32 %v2343, 0.0
    %v2360 = vpack.c.bf16 %v2345, %v2344
    %v2361 = vpack.c.bf16 %v2347, %v2346
    %v2362 = vpack.c.bf16 %v2349, %v2348
    %v2363 = vpack.c.bf16 %v2351, %v2350
    %v2364 = vpack.c.bf16 %v2353, %v2352
    %v2365 = vpack.c.bf16 %v2355, %v2354
    %v2366 = vpack.c.bf16 %v2357, %v2356
    %v2367 = vpack.c.bf16 %v2359, %v2358
    %v2368 = vld [vmem:[%s15] sm:$0x3]
    %v2369 = vld [vmem:[%s17] sm:$0x1]
    %v2371 = vlaneseq
    %v2372 = vshrl.u32 %v2371, 7
    %v2373 = vsub.s32 0, %v2372
    %v2374 = vrot.slane %v2369, %v2373
    %2384 = vrot.lane.b32.xlu0 %v2360, 112
    %v2385 = vpop.permute.xlu0 %2384
    %2386 = vrot.lane.b32.xlu0 %v2361, 112
    %v2387 = vpop.permute.xlu0 %2386
    %2388 = vrot.lane.b32.xlu0 %v2362, 112
    %v2389 = vpop.permute.xlu0 %2388
    %2390 = vrot.lane.b32.xlu0 %v2363, 112
    %v2391 = vpop.permute.xlu0 %2390
    %2392 = vrot.lane.b32.xlu0 %v2364, 112
    %v2393 = vpop.permute.xlu0 %2392
    %2394 = vrot.lane.b32.xlu0 %v2365, 112
    %v2395 = vpop.permute.xlu0 %2394
    %2396 = vrot.lane.b32.xlu0 %v2366, 112
    %v2397 = vpop.permute.xlu0 %2396
    %2398 = vrot.lane.b32.xlu0 %v2367, 112
    %v2399 = vpop.permute.xlu0 %2398
    %v2401 = vsel %vm349, %v2385, 0
    %v2404 = vsel %vm349, %v2387, 0
    %v2407 = vsel %vm349, %v2389, 0
    %v2410 = vsel %vm349, %v2391, 0
    %v2413 = vsel %vm349, %v2393, 0
    %v2416 = vsel %vm349, %v2395, 0
    %v2419 = vsel %vm349, %v2397, 0
    %v2422 = vsel %vm349, %v2399, 0
    %v2425 = vsel %vm374, %v2368, 0
    %2427 = vmatprep.subr.bf16.mxu0 0
    %2428 = vmatpush1.bf16.msra.mxu0 0
    %2429 = vmatprep.subr.bf16.mxu0 0
    %2430 = vmatpush1.bf16.msra.mxu0 0
    %2431 = vmatprep.subr.bf16.mxu0 0
    %2432 = vmatpush1.bf16.msra.mxu0 0
    %2433 = vmatprep.subr.bf16.mxu0 0
    %2434 = vmatpush1.bf16.msra.mxu0 0
    %2435 = vmatprep.subr.bf16.mxu0 0
    %2436 = vmatpush1.bf16.msra.mxu0 0
    %2437 = vmatprep.subr.bf16.mxu0 0
    %2438 = vmatpush1.bf16.msra.mxu0 0
    %2439 = vmatprep.subr.bf16.mxu0 0
    %2440 = vmatpush1.bf16.msra.mxu0 0
    %2441 = vmatprep.subr.bf16.mxu0 0
    %2442 = vmatpush1.bf16.msra.mxu0 %v2425
    %2443 = vmatprep.subr.bf16.mxu0 0
    %2444 = vmatpush2.bf16.msra.mxu0 0
    %2445 = vmatprep.subr.bf16.mxu0 0
    %2446 = vmatpush2.bf16.msra.mxu0 0
    %2447 = vmatprep.subr.bf16.mxu0 0
    %2448 = vmatpush2.bf16.msra.mxu0 0
    %2449 = vmatprep.subr.bf16.mxu0 0
    %2450 = vmatpush2.bf16.msra.mxu0 0
    %2451 = vmatprep.subr.bf16.mxu0 0
    %2452 = vmatpush2.bf16.msra.mxu0 0
    %2453 = vmatprep.subr.bf16.mxu0 0
    %2454 = vmatpush2.bf16.msra.mxu0 0
    %2455 = vmatprep.subr.bf16.mxu0 0
    %2456 = vmatpush2.bf16.msra.mxu0 0
    %2457 = vmatprep.subr.bf16.mxu0 0
    %2458 = vmatpush2.bf16.msra.mxu0 0
    %2459 = vmatprep.mubr.bf16.mxu0 0
    %2460 = vmatmul.mubr.bf16.gmra.mxu0 %v2401
    %v2461 = vpop.f32.mrf.mxu0
    %v2462 = vadd.f32 %v2374, %v2461
    %v2463 = vpop.f32.mrf.mxu0
    %v2464 = vpop.f32.mrf.mxu0
    %v2465 = vadd.f32 %v2374, %v2464
    %v2466 = vpop.f32.mrf.mxu0
    %2467 = vmatprep.mubr.bf16.mxu0 0
    %2468 = vmatmul.mubr.bf16.gmra.mxu0 %v2404
    %v2469 = vpop.f32.mrf.mxu0
    %v2470 = vadd.f32 %v2374, %v2469
    %v2471 = vpop.f32.mrf.mxu0
    %v2472 = vpop.f32.mrf.mxu0
    %v2473 = vadd.f32 %v2374, %v2472
    %v2474 = vpop.f32.mrf.mxu0
    %2475 = vmatprep.mubr.bf16.mxu0 0
    %2476 = vmatmul.mubr.bf16.gmra.mxu0 %v2407
    %v2477 = vpop.f32.mrf.mxu0
    %v2478 = vadd.f32 %v2374, %v2477
    %v2479 = vpop.f32.mrf.mxu0
    %v2480 = vpop.f32.mrf.mxu0
    %v2481 = vadd.f32 %v2374, %v2480
    %v2482 = vpop.f32.mrf.mxu0
    %2483 = vmatprep.mubr.bf16.mxu0 0
    %2484 = vmatmul.mubr.bf16.gmra.mxu0 %v2410
    %v2485 = vpop.f32.mrf.mxu0
    %v2486 = vadd.f32 %v2374, %v2485
    %v2487 = vpop.f32.mrf.mxu0
    %v2488 = vpop.f32.mrf.mxu0
    %v2489 = vadd.f32 %v2374, %v2488
    %v2490 = vpop.f32.mrf.mxu0
    %2491 = vmatprep.mubr.bf16.mxu0 0
    %2492 = vmatmul.mubr.bf16.gmra.mxu0 %v2413
    %v2493 = vpop.f32.mrf.mxu0
    %v2494 = vadd.f32 %v2374, %v2493
    %v2495 = vpop.f32.mrf.mxu0
    %v2496 = vpop.f32.mrf.mxu0
    %v2497 = vadd.f32 %v2374, %v2496
    %v2498 = vpop.f32.mrf.mxu0
    %2499 = vmatprep.mubr.bf16.mxu0 0
    %2500 = vmatmul.mubr.bf16.gmra.mxu0 %v2416
    %v2501 = vpop.f32.mrf.mxu0
    %v2502 = vadd.f32 %v2374, %v2501
    %v2503 = vpop.f32.mrf.mxu0
    %v2504 = vpop.f32.mrf.mxu0
    %v2505 = vadd.f32 %v2374, %v2504
    %v2506 = vpop.f32.mrf.mxu0
    %2507 = vmatprep.mubr.bf16.mxu0 0
    %2508 = vmatmul.mubr.bf16.gmra.mxu0 %v2419
    %v2509 = vpop.f32.mrf.mxu0
    %v2510 = vadd.f32 %v2374, %v2509
    %v2511 = vpop.f32.mrf.mxu0
    %v2512 = vpop.f32.mrf.mxu0
    %v2513 = vadd.f32 %v2374, %v2512
    %v2514 = vpop.f32.mrf.mxu0
    %2515 = vmatprep.mubr.bf16.mxu0 0
    %2516 = vmatmul.mubr.bf16.gmra.mxu0 %v2422
    %v2517 = vpop.f32.mrf.mxu0
    %v2518 = vadd.f32 %v2374, %v2517
    %v2519 = vpop.f32.mrf.mxu0
    %v2520 = vpop.f32.mrf.mxu0
    %v2521 = vadd.f32 %v2374, %v2520
    %v2522 = vpop.f32.mrf.mxu0
    %2523 = vdwg.mxu0
    %v2524 = vadd.f32 %v2462, %v163
    %v2525 = vadd.f32 %v2465, %v164
    %v2526 = vadd.f32 %v2470, %v165
    %v2527 = vadd.f32 %v2473, %v166
    %v2528 = vadd.f32 %v2478, %v167
    %v2529 = vadd.f32 %v2481, %v168
    %v2530 = vadd.f32 %v2486, %v169
    %v2531 = vadd.f32 %v2489, %v170
    %v2532 = vadd.f32 %v2494, %v171
    %v2533 = vadd.f32 %v2497, %v172
    %v2534 = vadd.f32 %v2502, %v173
    %v2535 = vadd.f32 %v2505, %v174
    %v2536 = vadd.f32 %v2510, %v175
    %v2537 = vadd.f32 %v2513, %v176
    %v2538 = vadd.f32 %v2518, %v177
    %v2539 = vadd.f32 %v2521, %v178
    %v2540 = vmax.f32 %v2524, 0.0
    %v2541 = vmax.f32 %v2525, 0.0
    %v2542 = vmax.f32 %v2526, 0.0
    %v2543 = vmax.f32 %v2527, 0.0
    %v2544 = vmax.f32 %v2528, 0.0
    %v2545 = vmax.f32 %v2529, 0.0
    %v2546 = vmax.f32 %v2530, 0.0
    %v2547 = vmax.f32 %v2531, 0.0
    %v2548 = vmax.f32 %v2532, 0.0
    %v2549 = vmax.f32 %v2533, 0.0
    %v2550 = vmax.f32 %v2534, 0.0
    %v2551 = vmax.f32 %v2535, 0.0
    %v2552 = vmax.f32 %v2536, 0.0
    %v2553 = vmax.f32 %v2537, 0.0
    %v2554 = vmax.f32 %v2538, 0.0
    %v2555 = vmax.f32 %v2539, 0.0
    %2572 = vrot.lane.b32.xlu0 %v2344, 112
    %v2573 = vpop.permute.xlu0 %2572
    %2574 = vrot.lane.b32.xlu0 %v2345, 112
    %v2575 = vpop.permute.xlu0 %2574
    %2576 = vrot.lane.b32.xlu0 %v2346, 112
    %v2577 = vpop.permute.xlu0 %2576
    %2578 = vrot.lane.b32.xlu0 %v2347, 112
    %v2579 = vpop.permute.xlu0 %2578
    %2580 = vrot.lane.b32.xlu0 %v2348, 112
    %v2581 = vpop.permute.xlu0 %2580
    %2582 = vrot.lane.b32.xlu0 %v2349, 112
    %v2583 = vpop.permute.xlu0 %2582
    %2584 = vrot.lane.b32.xlu0 %v2350, 112
    %v2585 = vpop.permute.xlu0 %2584
    %2586 = vrot.lane.b32.xlu0 %v2351, 112
    %v2587 = vpop.permute.xlu0 %2586
    %2588 = vrot.lane.b32.xlu0 %v2352, 112
    %v2589 = vpop.permute.xlu0 %2588
    %2590 = vrot.lane.b32.xlu0 %v2353, 112
    %v2591 = vpop.permute.xlu0 %2590
    %2592 = vrot.lane.b32.xlu0 %v2354, 112
    %v2593 = vpop.permute.xlu0 %2592
    %2594 = vrot.lane.b32.xlu0 %v2355, 112
    %v2595 = vpop.permute.xlu0 %2594
    %2596 = vrot.lane.b32.xlu0 %v2356, 112
    %v2597 = vpop.permute.xlu0 %2596
    %2598 = vrot.lane.b32.xlu0 %v2357, 112
    %v2599 = vpop.permute.xlu0 %2598
    %2600 = vrot.lane.b32.xlu0 %v2358, 112
    %v2601 = vpop.permute.xlu0 %2600
    %2602 = vrot.lane.b32.xlu0 %v2359, 112
    %v2603 = vpop.permute.xlu0 %2602
    %v2620 = vrot.slane %v2573, 1
    %v2621 = vrot.slane %v2575, 1
    %v2622 = vrot.slane %v2577, 1
    %v2623 = vrot.slane %v2579, 1
    %v2624 = vrot.slane %v2581, 1
    %v2625 = vrot.slane %v2583, 1
    %v2626 = vrot.slane %v2585, 1
    %v2627 = vrot.slane %v2587, 1
    %v2628 = vrot.slane %v2589, 1
    %v2629 = vrot.slane %v2591, 1
    %v2630 = vrot.slane %v2593, 1
    %v2631 = vrot.slane %v2595, 1
    %v2632 = vrot.slane %v2597, 1
    %v2633 = vrot.slane %v2599, 1
    %v2634 = vrot.slane %v2601, 1
    %v2635 = vrot.slane %v2603, 1
    %v2636 = vsel %vm974, %v2634, %v2635
    %v2637 = vsel %vm974, %v2632, %v2633
    %v2638 = vsel %vm974, %v2630, %v2631
    %v2639 = vsel %vm974, %v2628, %v2629
    %v2640 = vsel %vm974, %v2626, %v2627
    %v2641 = vsel %vm974, %v2624, %v2625
    %v2642 = vsel %vm974, %v2622, %v2623
    %v2643 = vsel %vm974, %v2620, %v2621
    %2652 = vrot.lane.b32.xlu0 %v2643, 16
    %v2653 = vpop.permute.xlu0 %2652
    %2654 = vrot.lane.b32.xlu0 %v2642, 16
    %v2655 = vpop.permute.xlu0 %2654
    %2656 = vrot.lane.b32.xlu0 %v2641, 16
    %v2657 = vpop.permute.xlu0 %2656
    %2658 = vrot.lane.b32.xlu0 %v2640, 16
    %v2659 = vpop.permute.xlu0 %2658
    %2660 = vrot.lane.b32.xlu0 %v2639, 16
    %v2661 = vpop.permute.xlu0 %2660
    %2662 = vrot.lane.b32.xlu0 %v2638, 16
    %v2663 = vpop.permute.xlu0 %2662
    %2664 = vrot.lane.b32.xlu0 %v2637, 16
    %v2665 = vpop.permute.xlu0 %2664
    %2666 = vrot.lane.b32.xlu0 %v2636, 16
    %v2667 = vpop.permute.xlu0 %2666
    %v2676 = vadd.f32 %v2344, %v2653
    %v2677 = vadd.f32 %v2346, %v2655
    %v2678 = vadd.f32 %v2348, %v2657
    %v2679 = vadd.f32 %v2350, %v2659
    %v2680 = vadd.f32 %v2352, %v2661
    %v2681 = vadd.f32 %v2354, %v2663
    %v2682 = vadd.f32 %v2356, %v2665
    %v2683 = vadd.f32 %v2358, %v2667
    %2684 = vrot.lane.b32.xlu0 %v2575, 16
    %v2685 = vpop.permute.xlu0 %2684
    %2686 = vrot.lane.b32.xlu0 %v2579, 16
    %v2687 = vpop.permute.xlu0 %2686
    %2688 = vrot.lane.b32.xlu0 %v2583, 16
    %v2689 = vpop.permute.xlu0 %2688
    %2690 = vrot.lane.b32.xlu0 %v2587, 16
    %v2691 = vpop.permute.xlu0 %2690
    %2692 = vrot.lane.b32.xlu0 %v2591, 16
    %v2693 = vpop.permute.xlu0 %2692
    %2694 = vrot.lane.b32.xlu0 %v2595, 16
    %v2695 = vpop.permute.xlu0 %2694
    %2696 = vrot.lane.b32.xlu0 %v2599, 16
    %v2697 = vpop.permute.xlu0 %2696
    %2698 = vrot.lane.b32.xlu0 %v2603, 16
    %v2699 = vpop.permute.xlu0 %2698
    %v2708 = vadd.f32 %v2676, %v2685
    %v2709 = vadd.f32 %v2677, %v2687
    %v2710 = vadd.f32 %v2678, %v2689
    %v2711 = vadd.f32 %v2679, %v2691
    %v2712 = vadd.f32 %v2680, %v2693
    %v2713 = vadd.f32 %v2681, %v2695
    %v2714 = vadd.f32 %v2682, %v2697
    %v2715 = vadd.f32 %v2683, %v2699
    %v2716 = vsel %vm974, %v2633, %v2634
    %v2717 = vsel %vm974, %v2631, %v2632
    %v2718 = vsel %vm974, %v2629, %v2630
    %v2719 = vsel %vm974, %v2627, %v2628
    %v2720 = vsel %vm974, %v2625, %v2626
    %v2721 = vsel %vm974, %v2623, %v2624
    %v2722 = vsel %vm974, %v2621, %v2622
    %v2723 = vsel %vm974, %v2635, %v2620
    %2732 = vrot.lane.b32.xlu0 %v2722, 16
    %v2733 = vpop.permute.xlu0 %2732
    %2734 = vrot.lane.b32.xlu0 %v2721, 16
    %v2735 = vpop.permute.xlu0 %2734
    %2736 = vrot.lane.b32.xlu0 %v2720, 16
    %v2737 = vpop.permute.xlu0 %2736
    %2738 = vrot.lane.b32.xlu0 %v2719, 16
    %v2739 = vpop.permute.xlu0 %2738
    %2740 = vrot.lane.b32.xlu0 %v2718, 16
    %v2741 = vpop.permute.xlu0 %2740
    %2742 = vrot.lane.b32.xlu0 %v2717, 16
    %v2743 = vpop.permute.xlu0 %2742
    %2744 = vrot.lane.b32.xlu0 %v2716, 16
    %v2745 = vpop.permute.xlu0 %2744
    %2746 = vrot.lane.b32.xlu0 %v2723, 16
    %v2747 = vpop.permute.xlu0 %2746
    %v2756 = vadd.f32 %v2708, %v2733
    %v2757 = vadd.f32 %v2709, %v2735
    %v2758 = vadd.f32 %v2710, %v2737
    %v2759 = vadd.f32 %v2711, %v2739
    %v2760 = vadd.f32 %v2712, %v2741
    %v2761 = vadd.f32 %v2713, %v2743
    %v2762 = vadd.f32 %v2714, %v2745
    %v2763 = vadd.f32 %v2715, %v2747
    %v2764 = vmul.f32 %v2756, 0.25
    %v2765 = vmul.f32 %v2757, 0.25
    %v2766 = vmul.f32 %v2758, 0.25
    %v2767 = vmul.f32 %v2759, 0.25
    %v2768 = vmul.f32 %v2760, 0.25
    %v2769 = vmul.f32 %v2761, 0.25
    %v2770 = vmul.f32 %v2762, 0.25
    %v2771 = vmul.f32 %v2763, 0.25
    %2773 = vrot.lane.b32.xlu0 %v2764, 112
    %v2774 = vpop.permute.xlu0 %2773
    %vm2776 = vcmask 24576
    %2777 = vst.msk [vmem:[#allocation2] sm:$0x1] %vm2776, %v2774
    %vm2778 = vcmask 26626
    %2779 = vst.msk [vmem:[#allocation2 - $0x1] sm:$0x4] %vm2778, %v2774
    %vm2780 = vcmask 28676
    %2781 = vst.msk [vmem:[#allocation2 - $0x2] sm:$0x10] %vm2780, %v2774
    %vm2782 = vcmask 30726
    %2783 = vst.msk [vmem:[#allocation2 - $0x3] sm:$0x40] %vm2782, %v2774
    %2785 = vrot.lane.b32.xlu0 %v2765, 112
    %v2786 = vpop.permute.xlu0 %2785
    %2788 = vst.msk [vmem:[#allocation2 + $0x4] sm:$0x1] %vm2776, %v2786
    %2789 = vst.msk [vmem:[#allocation2 + $0x3] sm:$0x4] %vm2778, %v2786
    %2790 = vst.msk [vmem:[#allocation2 + $0x2] sm:$0x10] %vm2780, %v2786
    %2791 = vst.msk [vmem:[#allocation2 + $0x1] sm:$0x40] %vm2782, %v2786
    %2793 = vrot.lane.b32.xlu0 %v2766, 112
    %v2794 = vpop.permute.xlu0 %2793
    %2796 = vst.msk [vmem:[#allocation2 + $0x8] sm:$0x1] %vm2776, %v2794
    %2797 = vst.msk [vmem:[#allocation2 + $0x7] sm:$0x4] %vm2778, %v2794
    %2798 = vst.msk [vmem:[#allocation2 + $0x6] sm:$0x10] %vm2780, %v2794
    %2799 = vst.msk [vmem:[#allocation2 + $0x5] sm:$0x40] %vm2782, %v2794
    %2801 = vrot.lane.b32.xlu0 %v2767, 112
    %v2802 = vpop.permute.xlu0 %2801
    %2804 = vst.msk [vmem:[#allocation2 + $0xc] sm:$0x1] %vm2776, %v2802
    %2805 = vst.msk [vmem:[#allocation2 + $0xb] sm:$0x4] %vm2778, %v2802
    %2806 = vst.msk [vmem:[#allocation2 + $0xa] sm:$0x10] %vm2780, %v2802
    %2807 = vst.msk [vmem:[#allocation2 + $0x9] sm:$0x40] %vm2782, %v2802
    %2809 = vrot.lane.b32.xlu0 %v2768, 112
    %v2810 = vpop.permute.xlu0 %2809
    %2812 = vst.msk [vmem:[#allocation2 + $0x10] sm:$0x1] %vm2776, %v2810
    %2813 = vst.msk [vmem:[#allocation2 + $0xf] sm:$0x4] %vm2778, %v2810
    %2814 = vst.msk [vmem:[#allocation2 + $0xe] sm:$0x10] %vm2780, %v2810
    %2815 = vst.msk [vmem:[#allocation2 + $0xd] sm:$0x40] %vm2782, %v2810
    %2817 = vrot.lane.b32.xlu0 %v2769, 112
    %v2818 = vpop.permute.xlu0 %2817
    %2820 = vst.msk [vmem:[#allocation2 + $0x14] sm:$0x1] %vm2776, %v2818
    %2821 = vst.msk [vmem:[#allocation2 + $0x13] sm:$0x4] %vm2778, %v2818
    %2822 = vst.msk [vmem:[#allocation2 + $0x12] sm:$0x10] %vm2780, %v2818
    %2823 = vst.msk [vmem:[#allocation2 + $0x11] sm:$0x40] %vm2782, %v2818
    %2825 = vrot.lane.b32.xlu0 %v2770, 112
    %v2826 = vpop.permute.xlu0 %2825
    %2828 = vst.msk [vmem:[#allocation2 + $0x18] sm:$0x1] %vm2776, %v2826
    %2829 = vst.msk [vmem:[#allocation2 + $0x17] sm:$0x4] %vm2778, %v2826
    %2830 = vst.msk [vmem:[#allocation2 + $0x16] sm:$0x10] %vm2780, %v2826
    %2831 = vst.msk [vmem:[#allocation2 + $0x15] sm:$0x40] %vm2782, %v2826
    %2833 = vrot.lane.b32.xlu0 %v2771, 112
    %v2834 = vpop.permute.xlu0 %2833
    %2836 = vst.msk [vmem:[#allocation2 + $0x1c] sm:$0x1] %vm2776, %v2834
    %2837 = vst.msk [vmem:[#allocation2 + $0x1b] sm:$0x4] %vm2778, %v2834
    %2838 = vst.msk [vmem:[#allocation2 + $0x1a] sm:$0x10] %vm2780, %v2834
    %2839 = vst.msk [vmem:[#allocation2 + $0x19] sm:$0x40] %vm2782, %v2834
    %v2840 = vld [vmem:[#allocation2] sm:$0xff]
    %v2841 = vld [vmem:[#allocation2 + $0x8] sm:$0xff]
    %v2842 = vld [vmem:[#allocation2 + $0x10] sm:$0xff]
    %v2843 = vld [vmem:[#allocation2 + $0x18] sm:$0xff]
    %v2844 = vpack.c.bf16 %v2841, %v2840
    %v2845 = vpack.c.bf16 %v2843, %v2842
    %v2846 = vld [vmem:[%s19] sm:$0x3]
    %v2847 = vld [vmem:[%s21] sm:$0x1]
    %v2849 = vlaneseq
    %v2850 = vshrl.u32 %v2849, 7
    %v2851 = vsub.s32 0, %v2850
    %v2852 = vrot.slane %v2847, %v2851
    %v2855 = vsel %vm349, %v2844, 0
    %v2858 = vsel %vm349, %v2845, 0
    %v2861 = vsel %vm374, %v2846, 0
    %2863 = vmatprep.subr.bf16.mxu0 0
    %2864 = vmatpush1.bf16.msra.mxu0 0
    %2865 = vmatprep.subr.bf16.mxu0 0
    %2866 = vmatpush1.bf16.msra.mxu0 0
    %2867 = vmatprep.subr.bf16.mxu0 0
    %2868 = vmatpush1.bf16.msra.mxu0 0
    %2869 = vmatprep.subr.bf16.mxu0 0
    %2870 = vmatpush1.bf16.msra.mxu0 0
    %2871 = vmatprep.subr.bf16.mxu0 0
    %2872 = vmatpush1.bf16.msra.mxu0 0
    %2873 = vmatprep.subr.bf16.mxu0 0
    %2874 = vmatpush1.bf16.msra.mxu0 0
    %2875 = vmatprep.subr.bf16.mxu0 0
    %2876 = vmatpush1.bf16.msra.mxu0 0
    %2877 = vmatprep.subr.bf16.mxu0 0
    %2878 = vmatpush1.bf16.msra.mxu0 %v2861
    %2879 = vmatprep.subr.bf16.mxu0 0
    %2880 = vmatpush2.bf16.msra.mxu0 0
    %2881 = vmatprep.subr.bf16.mxu0 0
    %2882 = vmatpush2.bf16.msra.mxu0 0
    %2883 = vmatprep.subr.bf16.mxu0 0
    %2884 = vmatpush2.bf16.msra.mxu0 0
    %2885 = vmatprep.subr.bf16.mxu0 0
    %2886 = vmatpush2.bf16.msra.mxu0 0
    %2887 = vmatprep.subr.bf16.mxu0 0
    %2888 = vmatpush2.bf16.msra.mxu0 0
    %2889 = vmatprep.subr.bf16.mxu0 0
    %2890 = vmatpush2.bf16.msra.mxu0 0
    %2891 = vmatprep.subr.bf16.mxu0 0
    %2892 = vmatpush2.bf16.msra.mxu0 0
    %2893 = vmatprep.subr.bf16.mxu0 0
    %2894 = vmatpush2.bf16.msra.mxu0 0
    %2895 = vmatprep.mubr.bf16.mxu0 0
    %2896 = vmatmul.mubr.bf16.gmra.mxu0 %v2855
    %v2897 = vpop.f32.mrf.mxu0
    %v2898 = vadd.f32 %v2852, %v2897
    %v2899 = vpop.f32.mrf.mxu0
    %v2900 = vpop.f32.mrf.mxu0
    %v2901 = vadd.f32 %v2852, %v2900
    %v2902 = vpop.f32.mrf.mxu0
    %2903 = vmatprep.mubr.bf16.mxu0 0
    %2904 = vmatmul.mubr.bf16.gmra.mxu0 %v2858
    %v2905 = vpop.f32.mrf.mxu0
    %v2906 = vadd.f32 %v2852, %v2905
    %v2907 = vpop.f32.mrf.mxu0
    %v2908 = vpop.f32.mrf.mxu0
    %v2909 = vadd.f32 %v2852, %v2908
    %v2910 = vpop.f32.mrf.mxu0
    %2911 = vdwg.mxu0
    %v2912 = vld [vmem:[%s23] sm:$0x1]
    %v2913 = vld [vmem:[%s25] sm:$0x1]
    %vm2914 = vcmask 261120
    %v2915 = vsel %vm2914, %v2898, 0.0
    %2916 = vadd.xlane.f32.xlu0 %v2915
    %v2917 = vpop.xlane.xlu0 %2916
    %v2918 = vsel %vm2914, %v2901, 0.0
    %2919 = vadd.xlane.f32.xlu0 %v2918
    %v2920 = vpop.xlane.xlu0 %2919
    %v2921 = vsel %vm2914, %v2906, 0.0
    %2922 = vadd.xlane.f32.xlu0 %v2921
    %v2923 = vpop.xlane.xlu0 %2922
    %v2924 = vsel %vm2914, %v2909, 0.0
    %2925 = vadd.xlane.f32.xlu0 %v2924
    %v2926 = vpop.xlane.xlu0 %2925
    %v2927 = vrcp.pop 32.0
    %v2928 = vmul.f32 %v2917, %v2927
    %v2929 = vmul.f32 %v2920, %v2927
    %v2930 = vmul.f32 %v2923, %v2927
    %v2931 = vmul.f32 %v2926, %v2927
    %v2932 = vsub.f32 %v2898, %v2928
    %v2933 = vsub.f32 %v2901, %v2929
    %v2934 = vsub.f32 %v2906, %v2930
    %v2935 = vsub.f32 %v2909, %v2931
    %v2936 = vmul.f32 %v2932, %v2932
    %v2937 = vmul.f32 %v2933, %v2933
    %v2938 = vmul.f32 %v2934, %v2934
    %v2939 = vmul.f32 %v2935, %v2935
    %v2940 = vsel %vm2914, %v2936, 0.0
    %2941 = vadd.xlane.f32.xlu0 %v2940
    %v2942 = vpop.xlane.xlu0 %2941
    %v2943 = vsel %vm2914, %v2937, 0.0
    %2944 = vadd.xlane.f32.xlu0 %v2943
    %v2945 = vpop.xlane.xlu0 %2944
    %v2946 = vsel %vm2914, %v2938, 0.0
    %2947 = vadd.xlane.f32.xlu0 %v2946
    %v2948 = vpop.xlane.xlu0 %2947
    %v2949 = vsel %vm2914, %v2939, 0.0
    %2950 = vadd.xlane.f32.xlu0 %v2949
    %v2951 = vpop.xlane.xlu0 %2950
    %v2952 = vmul.f32 %v2942, %v2927
    %v2953 = vmul.f32 %v2945, %v2927
    %v2954 = vmul.f32 %v2948, %v2927
    %v2955 = vmul.f32 %v2951, %v2927
    %v2956 = vadd.f32 %v2952, 1e-06
    %v2957 = vadd.f32 %v2953, 1e-06
    %v2958 = vadd.f32 %v2954, 1e-06
    %v2959 = vadd.f32 %v2955, 1e-06
    %v2960 = vrsqrt.pop %v2956
    %v2961 = vrsqrt.pop %v2957
    %v2962 = vrsqrt.pop %v2958
    %v2963 = vrsqrt.pop %v2959
    %v2964 = vmul.f32 %v2932, %v2960
    %v2965 = vmul.f32 %v2933, %v2961
    %v2966 = vmul.f32 %v2934, %v2962
    %v2967 = vmul.f32 %v2935, %v2963
    %v2969 = vlaneseq
    %v2970 = vshrl.u32 %v2969, 7
    %v2971 = vsub.s32 0, %v2970
    %v2972 = vrot.slane %v2912, %v2971
    %v2974 = vmul.f32 %v2964, %v2972
    %v2975 = vmul.f32 %v2965, %v2972
    %v2976 = vmul.f32 %v2966, %v2972
    %v2977 = vmul.f32 %v2967, %v2972
    %v2979 = vlaneseq
    %v2980 = vshrl.u32 %v2979, 7
    %v2981 = vsub.s32 0, %v2980
    %v2982 = vrot.slane %v2913, %v2981
    %v2984 = vadd.f32 %v2974, %v2982
    %v2985 = vadd.f32 %v2975, %v2982
    %v2986 = vadd.f32 %v2976, %v2982
    %v2987 = vadd.f32 %v2977, %v2982
    %v2988 = vmul.f32 %v2984, 0.5
    %v2989 = vmul.f32 %v2985, 0.5
    %v2990 = vmul.f32 %v2986, 0.5
    %v2991 = vmul.f32 %v2987, 0.5
    %v2992 = vmul.f32 %v2984, 0.70710677
    %v2993 = vmul.f32 %v2985, 0.70710677
    %v2994 = vmul.f32 %v2986, 0.70710677
    %v2995 = vmul.f32 %v2987, 0.70710677
    %v2996 = vand.u32 2147483647, %v2992
    %v2997 = vand.u32 2147483647, %v2993
    %v2998 = vand.u32 2147483647, %v2994
    %v2999 = vand.u32 2147483647, %v2995
    %v3000 = vmul.f32 %v2996, 0.3275911
    %v3001 = vmul.f32 %v2997, 0.3275911
    %v3002 = vmul.f32 %v2998, 0.3275911
    %v3003 = vmul.f32 %v2999, 0.3275911
    %v3004 = vadd.f32 %v3000, 1.0
    %v3005 = vadd.f32 %v3001, 1.0
    %v3006 = vadd.f32 %v3002, 1.0
    %v3007 = vadd.f32 %v3003, 1.0
    %v3008 = vrcp.pop %v3004
    %v3009 = vrcp.pop %v3005
    %v3010 = vrcp.pop %v3006
    %v3011 = vrcp.pop %v3007
    %v3012 = vmul.f32 %v3008, 1.0614054
    %v3013 = vmul.f32 %v3009, 1.0614054
    %v3014 = vmul.f32 %v3010, 1.0614054
    %v3015 = vmul.f32 %v3011, 1.0614054
    %v3016 = vsub.f32 %v3012, 1.4531521
    %v3017 = vsub.f32 %v3013, 1.4531521
    %v3018 = vsub.f32 %v3014, 1.4531521
    %v3019 = vsub.f32 %v3015, 1.4531521
    %v3020 = vmul.f32 %v3016, %v3008
    %v3021 = vmul.f32 %v3017, %v3009
    %v3022 = vmul.f32 %v3018, %v3010
    %v3023 = vmul.f32 %v3019, %v3011
    %v3024 = vadd.f32 %v3020, 1.4214138
    %v3025 = vadd.f32 %v3021, 1.4214138
    %v3026 = vadd.f32 %v3022, 1.4214138
    %v3027 = vadd.f32 %v3023, 1.4214138
    %v3028 = vmul.f32 %v3024, %v3008
    %v3029 = vmul.f32 %v3025, %v3009
    %v3030 = vmul.f32 %v3026, %v3010
    %v3031 = vmul.f32 %v3027, %v3011
    %v3032 = vsub.f32 %v3028, 0.28449672
    %v3033 = vsub.f32 %v3029, 0.28449672
    %v3034 = vsub.f32 %v3030, 0.28449672
    %v3035 = vsub.f32 %v3031, 0.28449672
    %v3036 = vmul.f32 %v3032, %v3008
    %v3037 = vmul.f32 %v3033, %v3009
    %v3038 = vmul.f32 %v3034, %v3010
    %v3039 = vmul.f32 %v3035, %v3011
    %v3040 = vadd.f32 %v3036, 0.2548296
    %v3041 = vadd.f32 %v3037, 0.2548296
    %v3042 = vadd.f32 %v3038, 0.2548296
    %v3043 = vadd.f32 %v3039, 0.2548296
    %v3044 = vmul.f32 %v3040, %v3008
    %v3045 = vmul.f32 %v3041, %v3009
    %v3046 = vmul.f32 %v3042, %v3010
    %v3047 = vmul.f32 %v3043, %v3011
    %v3048 = vsub.f32 0.0, %v2996
    %v3049 = vsub.f32 0.0, %v2997
    %v3050 = vsub.f32 0.0, %v2998
    %v3051 = vsub.f32 0.0, %v2999
    %v3052 = vmul.f32 %v3048, %v2996
    %v3053 = vmul.f32 %v3049, %v2997
    %v3054 = vmul.f32 %v3050, %v2998
    %v3055 = vmul.f32 %v3051, %v2999
    %v3056 = vmul.f32 %v3052, 1.442695
    %v3057 = vpow.pop %v3056
    %v3058 = vmul.f32 %v3053, 1.442695
    %v3059 = vpow.pop %v3058
    %v3060 = vmul.f32 %v3054, 1.442695
    %v3061 = vpow.pop %v3060
    %v3062 = vmul.f32 %v3055, 1.442695
    %v3063 = vpow.pop %v3062
    %v3064 = vmul.f32 %v3044, %v3057
    %v3065 = vmul.f32 %v3045, %v3059
    %v3066 = vmul.f32 %v3046, %v3061
    %v3067 = vmul.f32 %v3047, %v3063
    %v3068 = vsub.f32 1.0, %v3064
    %v3069 = vsub.f32 1.0, %v3065
    %v3070 = vsub.f32 1.0, %v3066
    %v3071 = vsub.f32 1.0, %v3067
    %vm3072 = vcmp.ge.f32.partialorder %v2992, 0.0
    %vm3073 = vcmp.ge.f32.partialorder %v2993, 0.0
    %vm3074 = vcmp.ge.f32.partialorder %v2994, 0.0
    %vm3075 = vcmp.ge.f32.partialorder %v2995, 0.0
    %v3076 = vsub.f32 0.0, %v3068
    %v3077 = vsub.f32 0.0, %v3069
    %v3078 = vsub.f32 0.0, %v3070
    %v3079 = vsub.f32 0.0, %v3071
    %v3080 = vsel %vm3072, %v3068, %v3076
    %v3081 = vsel %vm3073, %v3069, %v3077
    %v3082 = vsel %vm3074, %v3070, %v3078
    %v3083 = vsel %vm3075, %v3071, %v3079
    %v3084 = vadd.f32 %v3080, 1.0
    %v3085 = vadd.f32 %v3081, 1.0
    %v3086 = vadd.f32 %v3082, 1.0
    %v3087 = vadd.f32 %v3083, 1.0
    %v3088 = vmul.f32 %v2988, %v3084
    %v3089 = vmul.f32 %v2989, %v3085
    %v3090 = vmul.f32 %v2990, %v3086
    %v3091 = vmul.f32 %v2991, %v3087
    %v3092 = vld [vmem:[%s3] sm:$0xff]
    %v3093 = vld [vmem:[%s3 + $0x8] sm:$0xff]
    %v3094 = vld [vmem:[%s3 + $0x10] sm:$0xff]
    %v3095 = vld [vmem:[%s3 + $0x18] sm:$0xff]
    %v3096 = vld [vmem:[%s3 + $0x20] sm:$0xff]
    %v3097 = vld [vmem:[%s3 + $0x28] sm:$0xff]
    %v3098 = vld [vmem:[%s3 + $0x30] sm:$0xff]
    %v3099 = vld [vmem:[%s3 + $0x38] sm:$0xff]
    %3100 = vst.msk [vmem:[#allocation3] sm:$0xff] %vm2914, %v3092
    %3101 = vst.msk [vmem:[#allocation3 + $0x8] sm:$0xff] %vm2914, %v3093
    %3102 = vst.msk [vmem:[#allocation3 + $0x10] sm:$0xff] %vm2914, %v3094
    %3103 = vst.msk [vmem:[#allocation3 + $0x18] sm:$0xff] %vm2914, %v3095
    %3104 = vst.msk [vmem:[#allocation3 + $0x20] sm:$0xff] %vm2914, %v3096
    %3105 = vst.msk [vmem:[#allocation3 + $0x28] sm:$0xff] %vm2914, %v3097
    %3106 = vst.msk [vmem:[#allocation3 + $0x30] sm:$0xff] %vm2914, %v3098
    %3107 = vst.msk [vmem:[#allocation3 + $0x38] sm:$0xff] %vm2914, %v3099
    %v3108 = vmul.f32 %v3092, 2.0
    %vm3109 = vcmask 253952
    %3110 = vst.msk [vmem:[#allocation3] sm:$0x1] %vm3109, %v3108
    %vm3114 = vcmask 1046528
    %v3115 = vrot.slane %v3092, 1
    %v3116 = vrot.slane %v3093, 1
    %v3117 = vsel %vm3114, %v3115, %v3116
    %v3118 = vrot.slane %v3094, 1
    %v3119 = vsel %vm3114, %v3116, %v3118
    %v3122 = vadd.f32 %v3088, %v3117
    %v3123 = vadd.f32 %v3089, %v3119
    %3124 = vst.msk [vmem:[#allocation3 + $0x1] sm:$0xff] %vm2914, %v3122
    %3125 = vst.msk [vmem:[#allocation3 + $0x9] sm:$0xff] %vm2914, %v3123
    %v3126 = vmul.f32 %v3096, 2.0
    %3127 = vst.msk [vmem:[#allocation3 + $0x20] sm:$0x1] %vm3109, %v3126
    %v3131 = vrot.slane %v3096, 1
    %v3132 = vrot.slane %v3097, 1
    %v3133 = vsel %vm3114, %v3131, %v3132
    %v3134 = vrot.slane %v3098, 1
    %v3135 = vsel %vm3114, %v3132, %v3134
    %v3138 = vadd.f32 %v3090, %v3133
    %v3139 = vadd.f32 %v3091, %v3135
    %3140 = vst.msk [vmem:[#allocation3 + $0x21] sm:$0xff] %vm2914, %v3138
    %3141 = vst.msk [vmem:[#allocation3 + $0x29] sm:$0xff] %vm2914, %v3139
    %v3142 = vld [vmem:[#allocation3] sm:$0xff]
    %v3143 = vld [vmem:[#allocation3 + $0x8] sm:$0xff]
    %v3144 = vld [vmem:[#allocation3 + $0x10] sm:$0xff]
    %v3145 = vld [vmem:[#allocation3 + $0x18] sm:$0xff]
    %v3146 = vld [vmem:[#allocation3 + $0x20] sm:$0xff]
    %v3147 = vld [vmem:[#allocation3 + $0x28] sm:$0xff]
    %v3148 = vld [vmem:[#allocation3 + $0x30] sm:$0xff]
    %v3149 = vld [vmem:[#allocation3 + $0x38] sm:$0xff]
    %v3150 = vld [vmem:[%s27] sm:$0x1]
    %v3151 = vld [vmem:[%s29] sm:$0x1]
    %v3152 = vsel %vm2914, %v3142, 0.0
    %3153 = vadd.xlane.f32.xlu0 %v3152
    %v3154 = vpop.xlane.xlu0 %3153
    %v3155 = vsel %vm2914, %v3143, 0.0
    %3156 = vadd.xlane.f32.xlu0 %v3155
    %v3157 = vpop.xlane.xlu0 %3156
    %v3158 = vsel %vm2914, %v3144, 0.0
    %3159 = vadd.xlane.f32.xlu0 %v3158
    %v3160 = vpop.xlane.xlu0 %3159
    %v3161 = vsel %vm2914, %v3145, 0.0
    %3162 = vadd.xlane.f32.xlu0 %v3161
    %v3163 = vpop.xlane.xlu0 %3162
    %v3164 = vsel %vm2914, %v3146, 0.0
    %3165 = vadd.xlane.f32.xlu0 %v3164
    %v3166 = vpop.xlane.xlu0 %3165
    %v3167 = vsel %vm2914, %v3147, 0.0
    %3168 = vadd.xlane.f32.xlu0 %v3167
    %v3169 = vpop.xlane.xlu0 %3168
    %v3170 = vsel %vm2914, %v3148, 0.0
    %3171 = vadd.xlane.f32.xlu0 %v3170
    %v3172 = vpop.xlane.xlu0 %3171
    %v3173 = vsel %vm2914, %v3149, 0.0
    %3174 = vadd.xlane.f32.xlu0 %v3173
    %v3175 = vpop.xlane.xlu0 %3174
    %v3176 = vmul.f32 %v3154, %v2927
    %v3177 = vmul.f32 %v3157, %v2927
    %v3178 = vmul.f32 %v3160, %v2927
    %v3179 = vmul.f32 %v3163, %v2927
    %v3180 = vmul.f32 %v3166, %v2927
    %v3181 = vmul.f32 %v3169, %v2927
    %v3182 = vmul.f32 %v3172, %v2927
    %v3183 = vmul.f32 %v3175, %v2927
    %v3184 = vsub.f32 %v3142, %v3176
    %v3185 = vsub.f32 %v3143, %v3177
    %v3186 = vsub.f32 %v3144, %v3178
    %v3187 = vsub.f32 %v3145, %v3179
    %v3188 = vsub.f32 %v3146, %v3180
    %v3189 = vsub.f32 %v3147, %v3181
    %v3190 = vsub.f32 %v3148, %v3182
    %v3191 = vsub.f32 %v3149, %v3183
    %v3192 = vmul.f32 %v3184, %v3184
    %v3193 = vmul.f32 %v3185, %v3185
    %v3194 = vmul.f32 %v3186, %v3186
    %v3195 = vmul.f32 %v3187, %v3187
    %v3196 = vmul.f32 %v3188, %v3188
    %v3197 = vmul.f32 %v3189, %v3189
    %v3198 = vmul.f32 %v3190, %v3190
    %v3199 = vmul.f32 %v3191, %v3191
    %v3200 = vsel %vm2914, %v3192, 0.0
    %3201 = vadd.xlane.f32.xlu0 %v3200
    %v3202 = vpop.xlane.xlu0 %3201
    %v3203 = vsel %vm2914, %v3193, 0.0
    %3204 = vadd.xlane.f32.xlu0 %v3203
    %v3205 = vpop.xlane.xlu0 %3204
    %v3206 = vsel %vm2914, %v3194, 0.0
    %3207 = vadd.xlane.f32.xlu0 %v3206
    %v3208 = vpop.xlane.xlu0 %3207
    %v3209 = vsel %vm2914, %v3195, 0.0
    %3210 = vadd.xlane.f32.xlu0 %v3209
    %v3211 = vpop.xlane.xlu0 %3210
    %v3212 = vsel %vm2914, %v3196, 0.0
    %3213 = vadd.xlane.f32.xlu0 %v3212
    %v3214 = vpop.xlane.xlu0 %3213
    %v3215 = vsel %vm2914, %v3197, 0.0
    %3216 = vadd.xlane.f32.xlu0 %v3215
    %v3217 = vpop.xlane.xlu0 %3216
    %v3218 = vsel %vm2914, %v3198, 0.0
    %3219 = vadd.xlane.f32.xlu0 %v3218
    %v3220 = vpop.xlane.xlu0 %3219
    %v3221 = vsel %vm2914, %v3199, 0.0
    %3222 = vadd.xlane.f32.xlu0 %v3221
    %v3223 = vpop.xlane.xlu0 %3222
    %v3224 = vmul.f32 %v3202, %v2927
    %v3225 = vmul.f32 %v3205, %v2927
    %v3226 = vmul.f32 %v3208, %v2927
    %v3227 = vmul.f32 %v3211, %v2927
    %v3228 = vmul.f32 %v3214, %v2927
    %v3229 = vmul.f32 %v3217, %v2927
    %v3230 = vmul.f32 %v3220, %v2927
    %v3231 = vmul.f32 %v3223, %v2927
    %v3232 = vadd.f32 %v3224, 1e-06
    %v3233 = vadd.f32 %v3225, 1e-06
    %v3234 = vadd.f32 %v3226, 1e-06
    %v3235 = vadd.f32 %v3227, 1e-06
    %v3236 = vadd.f32 %v3228, 1e-06
    %v3237 = vadd.f32 %v3229, 1e-06
    %v3238 = vadd.f32 %v3230, 1e-06
    %v3239 = vadd.f32 %v3231, 1e-06
    %v3240 = vrsqrt.pop %v3232
    %v3241 = vrsqrt.pop %v3233
    %v3242 = vrsqrt.pop %v3234
    %v3243 = vrsqrt.pop %v3235
    %v3244 = vrsqrt.pop %v3236
    %v3245 = vrsqrt.pop %v3237
    %v3246 = vrsqrt.pop %v3238
    %v3247 = vrsqrt.pop %v3239
    %v3248 = vmul.f32 %v3184, %v3240
    %v3249 = vmul.f32 %v3185, %v3241
    %v3250 = vmul.f32 %v3186, %v3242
    %v3251 = vmul.f32 %v3187, %v3243
    %v3252 = vmul.f32 %v3188, %v3244
    %v3253 = vmul.f32 %v3189, %v3245
    %v3254 = vmul.f32 %v3190, %v3246
    %v3255 = vmul.f32 %v3191, %v3247
    %v3257 = vlaneseq
    %v3258 = vshrl.u32 %v3257, 7
    %v3259 = vsub.s32 0, %v3258
    %v3260 = vrot.slane %v3150, %v3259
    %v3262 = vmul.f32 %v3248, %v3260
    %v3263 = vmul.f32 %v3249, %v3260
    %v3264 = vmul.f32 %v3250, %v3260
    %v3265 = vmul.f32 %v3251, %v3260
    %v3266 = vmul.f32 %v3252, %v3260
    %v3267 = vmul.f32 %v3253, %v3260
    %v3268 = vmul.f32 %v3254, %v3260
    %v3269 = vmul.f32 %v3255, %v3260
    %v3271 = vlaneseq
    %v3272 = vshrl.u32 %v3271, 7
    %v3273 = vsub.s32 0, %v3272
    %v3274 = vrot.slane %v3151, %v3273
    %v3276 = vadd.f32 %v3262, %v3274
    %v3277 = vadd.f32 %v3263, %v3274
    %v3278 = vadd.f32 %v3264, %v3274
    %v3279 = vadd.f32 %v3265, %v3274
    %v3280 = vadd.f32 %v3266, %v3274
    %v3281 = vadd.f32 %v3267, %v3274
    %v3282 = vadd.f32 %v3268, %v3274
    %v3283 = vadd.f32 %v3269, %v3274
    %v3284 = vpack.c.bf16 %v3277, %v3276
    %v3285 = vpack.c.bf16 %v3279, %v3278
    %v3286 = vpack.c.bf16 %v3281, %v3280
    %v3287 = vpack.c.bf16 %v3283, %v3282
    %v3288 = vld [vmem:[%s31] sm:$0xf]
    %v3289 = vld [vmem:[%s31 + $0x4] sm:$0xf]
    %v3290 = vld [vmem:[%s31 + $0x8] sm:$0xf]
    %v3291 = vld [vmem:[%s31 + $0xc] sm:$0xf]
    %v3296 = vunpack.c.l.b16 %v3288
    %v3297 = vunpack.c.l.b16 %v3289
    %v3298 = vunpack.c.l.b16 %v3290
    %v3299 = vunpack.c.l.b16 %v3291
    %v3300 = vpack.c.b16 %v3297, %v3296
    %v3301 = vpack.c.b16 %v3299, %v3298
    %v3305 = vsel %vm2914, %v3284, 0
    %v3308 = vsel %vm2914, %v3285, 0
    %v3311 = vsel %vm2914, %v3286, 0
    %v3314 = vsel %vm2914, %v3287, 0
    %3316 = vmatprep.subr.bf16.mxu0 0
    %3317 = vmatpush1.bf16.msra.mxu0 0
    %3318 = vmatprep.subr.bf16.mxu0 0
    %3319 = vmatpush1.bf16.msra.mxu0 0
    %3320 = vmatprep.subr.bf16.mxu0 0
    %3321 = vmatpush1.bf16.msra.mxu0 0
    %3322 = vmatprep.subr.bf16.mxu0 0
    %3323 = vmatpush1.bf16.msra.mxu0 0
    %3324 = vmatprep.subr.bf16.mxu0 0
    %3325 = vmatpush1.bf16.msra.mxu0 0
    %3326 = vmatprep.subr.bf16.mxu0 0
    %3327 = vmatpush1.bf16.msra.mxu0 0
    %3328 = vmatprep.subr.bf16.mxu0 0
    %3329 = vmatpush1.bf16.msra.mxu0 %v3301
    %3330 = vmatprep.subr.bf16.mxu0 0
    %3331 = vmatpush1.bf16.msra.mxu0 %v3300
    %3332 = vmatprep.subr.bf16.mxu0 0
    %3333 = vmatpush2.bf16.msra.mxu0 0
    %3334 = vmatprep.subr.bf16.mxu0 0
    %3335 = vmatpush2.bf16.msra.mxu0 0
    %3336 = vmatprep.subr.bf16.mxu0 0
    %3337 = vmatpush2.bf16.msra.mxu0 0
    %3338 = vmatprep.subr.bf16.mxu0 0
    %3339 = vmatpush2.bf16.msra.mxu0 0
    %3340 = vmatprep.subr.bf16.mxu0 0
    %3341 = vmatpush2.bf16.msra.mxu0 0
    %3342 = vmatprep.subr.bf16.mxu0 0
    %3343 = vmatpush2.bf16.msra.mxu0 0
    %3344 = vmatprep.subr.bf16.mxu0 0
    %3345 = vmatpush2.bf16.msra.mxu0 0
    %3346 = vmatprep.subr.bf16.mxu0 0
    %3347 = vmatpush2.bf16.msra.mxu0 0
    %3348 = vmatprep.mubr.bf16.mxu0 0
    %3349 = vmatmul.mubr.bf16.gmra.mxu0 %v3305
    %v3350 = vpop.f32.mrf.mxu0
    %v3351 = vadd.f32 0.0, %v3350
    %v3352 = vpop.f32.mrf.mxu0
    %v3353 = vpop.f32.mrf.mxu0
    %v3354 = vadd.f32 0.0, %v3353
    %v3355 = vpop.f32.mrf.mxu0
    %3356 = vmatprep.mubr.bf16.mxu0 0
    %3357 = vmatmul.mubr.bf16.gmra.mxu0 %v3308
    %v3358 = vpop.f32.mrf.mxu0
    %v3359 = vadd.f32 0.0, %v3358
    %v3360 = vpop.f32.mrf.mxu0
    %v3361 = vpop.f32.mrf.mxu0
    %v3362 = vadd.f32 0.0, %v3361
    %v3363 = vpop.f32.mrf.mxu0
    %3364 = vmatprep.mubr.bf16.mxu0 0
    %3365 = vmatmul.mubr.bf16.gmra.mxu0 %v3311
    %v3366 = vpop.f32.mrf.mxu0
    %v3367 = vadd.f32 0.0, %v3366
    %v3368 = vpop.f32.mrf.mxu0
    %v3369 = vpop.f32.mrf.mxu0
    %v3370 = vadd.f32 0.0, %v3369
    %v3371 = vpop.f32.mrf.mxu0
    %3372 = vmatprep.mubr.bf16.mxu0 0
    %3373 = vmatmul.mubr.bf16.gmra.mxu0 %v3314
    %v3374 = vpop.f32.mrf.mxu0
    %v3375 = vadd.f32 0.0, %v3374
    %v3376 = vpop.f32.mrf.mxu0
    %v3377 = vpop.f32.mrf.mxu0
    %v3378 = vadd.f32 0.0, %v3377
    %v3379 = vpop.f32.mrf.mxu0
    %3380 = vdwg.mxu0
    %v3381 = vmul.f32 %v3351, 0.35355338
    %v3382 = vmul.f32 %v3354, 0.35355338
    %v3383 = vmul.f32 %v3359, 0.35355338
    %v3384 = vmul.f32 %v3362, 0.35355338
    %v3385 = vmul.f32 %v3367, 0.35355338
    %v3386 = vmul.f32 %v3370, 0.35355338
    %v3387 = vmul.f32 %v3375, 0.35355338
    %v3388 = vmul.f32 %v3378, 0.35355338
    %v3389 = vld [vmem:[%s33] sm:$0xf]
    %v3390 = vld [vmem:[%s33 + $0x4] sm:$0xf]
    %v3391 = vld [vmem:[%s33 + $0x8] sm:$0xf]
    %v3392 = vld [vmem:[%s33 + $0xc] sm:$0xf]
    %v3397 = vunpack.c.l.b16 %v3389
    %v3398 = vunpack.c.l.b16 %v3390
    %v3399 = vunpack.c.l.b16 %v3391
    %v3400 = vunpack.c.l.b16 %v3392
    %v3401 = vpack.c.b16 %v3398, %v3397
    %v3402 = vpack.c.b16 %v3400, %v3399
    %3405 = vmatprep.subr.bf16.mxu0 0
    %3406 = vmatpush1.bf16.msra.mxu0 0
    %3407 = vmatprep.subr.bf16.mxu0 0
    %3408 = vmatpush1.bf16.msra.mxu0 0
    %3409 = vmatprep.subr.bf16.mxu0 0
    %3410 = vmatpush1.bf16.msra.mxu0 0
    %3411 = vmatprep.subr.bf16.mxu0 0
    %3412 = vmatpush1.bf16.msra.mxu0 0
    %3413 = vmatprep.subr.bf16.mxu0 0
    %3414 = vmatpush1.bf16.msra.mxu0 0
    %3415 = vmatprep.subr.bf16.mxu0 0
    %3416 = vmatpush1.bf16.msra.mxu0 0
    %3417 = vmatprep.subr.bf16.mxu0 0
    %3418 = vmatpush1.bf16.msra.mxu0 %v3402
    %3419 = vmatprep.subr.bf16.mxu0 0
    %3420 = vmatpush1.bf16.msra.mxu0 %v3401
    %3421 = vmatprep.subr.bf16.mxu0 0
    %3422 = vmatpush2.bf16.msra.mxu0 0
    %3423 = vmatprep.subr.bf16.mxu0 0
    %3424 = vmatpush2.bf16.msra.mxu0 0
    %3425 = vmatprep.subr.bf16.mxu0 0
    %3426 = vmatpush2.bf16.msra.mxu0 0
    %3427 = vmatprep.subr.bf16.mxu0 0
    %3428 = vmatpush2.bf16.msra.mxu0 0
    %3429 = vmatprep.subr.bf16.mxu0 0
    %3430 = vmatpush2.bf16.msra.mxu0 0
    %3431 = vmatprep.subr.bf16.mxu0 0
    %3432 = vmatpush2.bf16.msra.mxu0 0
    %3433 = vmatprep.subr.bf16.mxu0 0
    %3434 = vmatpush2.bf16.msra.mxu0 0
    %3435 = vmatprep.subr.bf16.mxu0 0
    %3436 = vmatpush2.bf16.msra.mxu0 0
    %3437 = vmatprep.mubr.bf16.mxu0 0
    %3438 = vmatmul.mubr.bf16.gmra.mxu0 %v3305
    %v3439 = vpop.f32.mrf.mxu0
    %v3440 = vadd.f32 0.0, %v3439
    %v3441 = vpop.f32.mrf.mxu0
    %v3442 = vpop.f32.mrf.mxu0
    %v3443 = vadd.f32 0.0, %v3442
    %v3444 = vpop.f32.mrf.mxu0
    %3445 = vmatprep.mubr.bf16.mxu0 0
    %3446 = vmatmul.mubr.bf16.gmra.mxu0 %v3308
    %v3447 = vpop.f32.mrf.mxu0
    %v3448 = vadd.f32 0.0, %v3447
    %v3449 = vpop.f32.mrf.mxu0
    %v3450 = vpop.f32.mrf.mxu0
    %v3451 = vadd.f32 0.0, %v3450
    %v3452 = vpop.f32.mrf.mxu0
    %3453 = vmatprep.mubr.bf16.mxu0 0
    %3454 = vmatmul.mubr.bf16.gmra.mxu0 %v3311
    %v3455 = vpop.f32.mrf.mxu0
    %v3456 = vadd.f32 0.0, %v3455
    %v3457 = vpop.f32.mrf.mxu0
    %v3458 = vpop.f32.mrf.mxu0
    %v3459 = vadd.f32 0.0, %v3458
    %v3460 = vpop.f32.mrf.mxu0
    %3461 = vmatprep.mubr.bf16.mxu0 0
    %3462 = vmatmul.mubr.bf16.gmra.mxu0 %v3314
    %v3463 = vpop.f32.mrf.mxu0
    %v3464 = vadd.f32 0.0, %v3463
    %v3465 = vpop.f32.mrf.mxu0
    %v3466 = vpop.f32.mrf.mxu0
    %v3467 = vadd.f32 0.0, %v3466
    %v3468 = vpop.f32.mrf.mxu0
    %3469 = vdwg.mxu0
    %v3470 = vld [vmem:[%s35] sm:$0xf]
    %v3471 = vld [vmem:[%s35 + $0x4] sm:$0xf]
    %v3472 = vld [vmem:[%s35 + $0x8] sm:$0xf]
    %v3473 = vld [vmem:[%s35 + $0xc] sm:$0xf]
    %v3478 = vunpack.c.l.b16 %v3470
    %v3479 = vunpack.c.l.b16 %v3471
    %v3480 = vunpack.c.l.b16 %v3472
    %v3481 = vunpack.c.l.b16 %v3473
    %v3482 = vpack.c.b16 %v3479, %v3478
    %v3483 = vpack.c.b16 %v3481, %v3480
    %3486 = vmatprep.subr.bf16.mxu0 0
    %3487 = vmatpush1.bf16.msra.mxu0 0
    %3488 = vmatprep.subr.bf16.mxu0 0
    %3489 = vmatpush1.bf16.msra.mxu0 0
    %3490 = vmatprep.subr.bf16.mxu0 0
    %3491 = vmatpush1.bf16.msra.mxu0 0
    %3492 = vmatprep.subr.bf16.mxu0 0
    %3493 = vmatpush1.bf16.msra.mxu0 0
    %3494 = vmatprep.subr.bf16.mxu0 0
    %3495 = vmatpush1.bf16.msra.mxu0 0
    %3496 = vmatprep.subr.bf16.mxu0 0
    %3497 = vmatpush1.bf16.msra.mxu0 0
    %3498 = vmatprep.subr.bf16.mxu0 0
    %3499 = vmatpush1.bf16.msra.mxu0 %v3483
    %3500 = vmatprep.subr.bf16.mxu0 0
    %3501 = vmatpush1.bf16.msra.mxu0 %v3482
    %3502 = vmatprep.subr.bf16.mxu0 0
    %3503 = vmatpush2.bf16.msra.mxu0 0
    %3504 = vmatprep.subr.bf16.mxu0 0
    %3505 = vmatpush2.bf16.msra.mxu0 0
    %3506 = vmatprep.subr.bf16.mxu0 0
    %3507 = vmatpush2.bf16.msra.mxu0 0
    %3508 = vmatprep.subr.bf16.mxu0 0
    %3509 = vmatpush2.bf16.msra.mxu0 0
    %3510 = vmatprep.subr.bf16.mxu0 0
    %3511 = vmatpush2.bf16.msra.mxu0 0
    %3512 = vmatprep.subr.bf16.mxu0 0
    %3513 = vmatpush2.bf16.msra.mxu0 0
    %3514 = vmatprep.subr.bf16.mxu0 0
    %3515 = vmatpush2.bf16.msra.mxu0 0
    %3516 = vmatprep.subr.bf16.mxu0 0
    %3517 = vmatpush2.bf16.msra.mxu0 0
    %3518 = vmatprep.mubr.bf16.mxu0 0
    %3519 = vmatmul.mubr.bf16.gmra.mxu0 %v3305
    %v3520 = vpop.f32.mrf.mxu0
    %v3521 = vadd.f32 0.0, %v3520
    %v3522 = vpop.f32.mrf.mxu0
    %v3523 = vpop.f32.mrf.mxu0
    %v3524 = vadd.f32 0.0, %v3523
    %v3525 = vpop.f32.mrf.mxu0
    %3526 = vmatprep.mubr.bf16.mxu0 0
    %3527 = vmatmul.mubr.bf16.gmra.mxu0 %v3308
    %v3528 = vpop.f32.mrf.mxu0
    %v3529 = vadd.f32 0.0, %v3528
    %v3530 = vpop.f32.mrf.mxu0
    %v3531 = vpop.f32.mrf.mxu0
    %v3532 = vadd.f32 0.0, %v3531
    %v3533 = vpop.f32.mrf.mxu0
    %3534 = vmatprep.mubr.bf16.mxu0 0
    %3535 = vmatmul.mubr.bf16.gmra.mxu0 %v3311
    %v3536 = vpop.f32.mrf.mxu0
    %v3537 = vadd.f32 0.0, %v3536
    %v3538 = vpop.f32.mrf.mxu0
    %v3539 = vpop.f32.mrf.mxu0
    %v3540 = vadd.f32 0.0, %v3539
    %v3541 = vpop.f32.mrf.mxu0
    %3542 = vmatprep.mubr.bf16.mxu0 0
    %3543 = vmatmul.mubr.bf16.gmra.mxu0 %v3314
    %v3544 = vpop.f32.mrf.mxu0
    %v3545 = vadd.f32 0.0, %v3544
    %v3546 = vpop.f32.mrf.mxu0
    %v3547 = vpop.f32.mrf.mxu0
    %v3548 = vadd.f32 0.0, %v3547
    %v3549 = vpop.f32.mrf.mxu0
    %3550 = vdwg.mxu0
    %v3551 = vpack.c.bf16 %v3382, %v3381
    %v3552 = vpack.c.bf16 %v3384, %v3383
    %v3553 = vpack.c.bf16 %v3386, %v3385
    %v3554 = vpack.c.bf16 %v3388, %v3387
    %v3555 = vpack.c.bf16 %v3443, %v3440
    %v3556 = vpack.c.bf16 %v3451, %v3448
    %v3557 = vpack.c.bf16 %v3459, %v3456
    %v3558 = vpack.c.bf16 %v3467, %v3464
    %v3559 = vpack.c.bf16 %v3524, %v3521
    %v3560 = vpack.c.bf16 %v3532, %v3529
    %v3561 = vpack.c.bf16 %v3540, %v3537
    %v3562 = vpack.c.bf16 %v3548, %v3545
    %v3563 = vlaneseq
    %v3564 = vand.u32 %v3563, 127
    %vm3565 = vcmp.lt.s32.totalorder %v3564, 17
    %v3566 = vsel %vm3565, 0.0, -1e+30
    %vm3567 = vcmask 64512
    %v3569 = vsel %vm3567, %v3551, 0
    %v3572 = vsel %vm3567, %v3552, 0
    %v3575 = vsel %vm3567, %v3555, 0
    %v3578 = vsel %vm3567, %v3556, 0
    %3580 = vmatprep.subr.bf16.mxu0 0
    %3581 = vmatpush1.bf16.xpose.msra.mxu0 0
    %3582 = vmatprep.subr.bf16.mxu0 0
    %3583 = vmatpush1.bf16.xpose.msra.mxu0 0
    %3584 = vmatprep.subr.bf16.mxu0 0
    %3585 = vmatpush1.bf16.xpose.msra.mxu0 0
    %3586 = vmatprep.subr.bf16.mxu0 0
    %3587 = vmatpush1.bf16.xpose.msra.mxu0 0
    %3588 = vmatprep.subr.bf16.mxu0 0
    %3589 = vmatpush1.bf16.xpose.msra.mxu0 0
    %3590 = vmatprep.subr.bf16.mxu0 0
    %3591 = vmatpush1.bf16.xpose.msra.mxu0 0
    %3592 = vmatprep.subr.bf16.mxu0 0
    %3593 = vmatpush1.bf16.xpose.msra.mxu0 %v3578
    %3594 = vmatprep.subr.bf16.mxu0 0
    %3595 = vmatpush1.bf16.xpose.msra.mxu0 %v3575
    %3596 = vmatprep.subr.bf16.mxu0 0
    %3597 = vmatpush2.bf16.xpose.msra.mxu0 0
    %3598 = vmatprep.subr.bf16.mxu0 0
    %3599 = vmatpush2.bf16.xpose.msra.mxu0 0
    %3600 = vmatprep.subr.bf16.mxu0 0
    %3601 = vmatpush2.bf16.xpose.msra.mxu0 0
    %3602 = vmatprep.subr.bf16.mxu0 0
    %3603 = vmatpush2.bf16.xpose.msra.mxu0 0
    %3604 = vmatprep.subr.bf16.mxu0 0
    %3605 = vmatpush2.bf16.xpose.msra.mxu0 0
    %3606 = vmatprep.subr.bf16.mxu0 0
    %3607 = vmatpush2.bf16.xpose.msra.mxu0 0
    %3608 = vmatprep.subr.bf16.mxu0 0
    %3609 = vmatpush2.bf16.xpose.msra.mxu0 0
    %3610 = vmatprep.subr.bf16.mxu0 0
    %3611 = vmatpush2.bf16.xpose.msra.mxu0 0
    %3612 = vmatprep.mubr.bf16.mxu0 0
    %3613 = vmatmul.mubr.bf16.gmra.mxu0 %v3569
    %v3614 = vpop.f32.mrf.mxu0
    %v3615 = vadd.f32 %v3566, %v3614
    %v3616 = vpop.f32.mrf.mxu0
    %v3617 = vpop.f32.mrf.mxu0
    %v3618 = vadd.f32 %v3566, %v3617
    %v3619 = vpop.f32.mrf.mxu0
    %3620 = vmatprep.mubr.bf16.mxu0 0
    %3621 = vmatmul.mubr.bf16.gmra.mxu0 %v3572
    %v3622 = vpop.f32.mrf.mxu0
    %v3623 = vadd.f32 %v3566, %v3622
    %v3624 = vpop.f32.mrf.mxu0
    %v3625 = vpop.f32.mrf.mxu0
    %v3626 = vadd.f32 %v3566, %v3625
    %v3627 = vpop.f32.mrf.mxu0
    %3628 = vdwg.mxu0
    %v3629 = vsel %vm2914, %v3615, -inf
    %3630 = vmax.xlane.f32.xlu0 %v3629
    %v3631 = vpop.xlane.xlu0 %3630
    %v3632 = vsel %vm2914, %v3618, -inf
    %3633 = vmax.xlane.f32.xlu0 %v3632
    %v3634 = vpop.xlane.xlu0 %3633
    %v3635 = vsel %vm2914, %v3623, -inf
    %3636 = vmax.xlane.f32.xlu0 %v3635
    %v3637 = vpop.xlane.xlu0 %3636
    %v3638 = vsel %vm2914, %v3626, -inf
    %3639 = vmax.xlane.f32.xlu0 %v3638
    %v3640 = vpop.xlane.xlu0 %3639
    %v3641 = vsub.f32 %v3615, %v3631
    %v3642 = vsub.f32 %v3618, %v3634
    %v3643 = vsub.f32 %v3623, %v3637
    %v3644 = vsub.f32 %v3626, %v3640
    %v3645 = vmul.f32 %v3641, 1.442695
    %v3646 = vpow.pop %v3645
    %v3647 = vmul.f32 %v3642, 1.442695
    %v3648 = vpow.pop %v3647
    %v3649 = vmul.f32 %v3643, 1.442695
    %v3650 = vpow.pop %v3649
    %v3651 = vmul.f32 %v3644, 1.442695
    %v3652 = vpow.pop %v3651
    %v3653 = vsel %vm2914, %v3646, 0.0
    %3654 = vadd.xlane.f32.xlu0 %v3653
    %v3655 = vpop.xlane.xlu0 %3654
    %v3656 = vsel %vm2914, %v3648, 0.0
    %3657 = vadd.xlane.f32.xlu0 %v3656
    %v3658 = vpop.xlane.xlu0 %3657
    %v3659 = vsel %vm2914, %v3650, 0.0
    %3660 = vadd.xlane.f32.xlu0 %v3659
    %v3661 = vpop.xlane.xlu0 %3660
    %v3662 = vsel %vm2914, %v3652, 0.0
    %3663 = vadd.xlane.f32.xlu0 %v3662
    %v3664 = vpop.xlane.xlu0 %3663
    %v3665 = vrcp.pop %v3655
    %v3666 = vrcp.pop %v3658
    %v3667 = vrcp.pop %v3661
    %v3668 = vrcp.pop %v3664
    %v3669 = vmul.f32 %v3646, %v3665
    %v3670 = vmul.f32 %v3648, %v3666
    %v3671 = vmul.f32 %v3650, %v3667
    %v3672 = vmul.f32 %v3652, %v3668
    %v3673 = vpack.c.bf16 %v3670, %v3669
    %v3674 = vpack.c.bf16 %v3672, %v3671
    %v3676 = vsel %vm2914, %v3673, 0
    %v3679 = vsel %vm2914, %v3674, 0
    %3681 = vmatprep.subr.bf16.mxu0 0
    %3682 = vmatpush1.bf16.msra.mxu0 0
    %3683 = vmatprep.subr.bf16.mxu0 0
    %3684 = vmatpush1.bf16.msra.mxu0 0
    %3685 = vmatprep.subr.bf16.mxu0 0
    %3686 = vmatpush1.bf16.msra.mxu0 0
    %3687 = vmatprep.subr.bf16.mxu0 0
    %3688 = vmatpush1.bf16.msra.mxu0 0
    %3689 = vmatprep.subr.bf16.mxu0 0
    %3690 = vmatpush1.bf16.msra.mxu0 0
    %3691 = vmatprep.subr.bf16.mxu0 0
    %3692 = vmatpush1.bf16.msra.mxu0 0
    %3693 = vmatprep.subr.bf16.mxu0 0
    %3694 = vmatpush1.bf16.msra.mxu0 %v3560
    %3695 = vmatprep.subr.bf16.mxu0 0
    %3696 = vmatpush1.bf16.msra.mxu0 %v3559
    %3697 = vmatprep.subr.bf16.mxu0 0
    %3698 = vmatpush2.bf16.msra.mxu0 0
    %3699 = vmatprep.subr.bf16.mxu0 0
    %3700 = vmatpush2.bf16.msra.mxu0 0
    %3701 = vmatprep.subr.bf16.mxu0 0
    %3702 = vmatpush2.bf16.msra.mxu0 0
    %3703 = vmatprep.subr.bf16.mxu0 0
    %3704 = vmatpush2.bf16.msra.mxu0 0
    %3705 = vmatprep.subr.bf16.mxu0 0
    %3706 = vmatpush2.bf16.msra.mxu0 0
    %3707 = vmatprep.subr.bf16.mxu0 0
    %3708 = vmatpush2.bf16.msra.mxu0 0
    %3709 = vmatprep.subr.bf16.mxu0 0
    %3710 = vmatpush2.bf16.msra.mxu0 0
    %3711 = vmatprep.subr.bf16.mxu0 0
    %3712 = vmatpush2.bf16.msra.mxu0 0
    %3713 = vmatprep.mubr.bf16.mxu0 0
    %3714 = vmatmul.mubr.bf16.gmra.mxu0 %v3676
    %v3715 = vpop.f32.mrf.mxu0
    %v3716 = vadd.f32 0.0, %v3715
    %v3717 = vpop.f32.mrf.mxu0
    %v3718 = vpop.f32.mrf.mxu0
    %v3719 = vadd.f32 0.0, %v3718
    %v3720 = vpop.f32.mrf.mxu0
    %3721 = vmatprep.mubr.bf16.mxu0 0
    %3722 = vmatmul.mubr.bf16.gmra.mxu0 %v3679
    %v3723 = vpop.f32.mrf.mxu0
    %v3724 = vadd.f32 0.0, %v3723
    %v3725 = vpop.f32.mrf.mxu0
    %v3726 = vpop.f32.mrf.mxu0
    %v3727 = vadd.f32 0.0, %v3726
    %v3728 = vpop.f32.mrf.mxu0
    %3729 = vdwg.mxu0
    %3730 = vst.msk [vmem:[#allocation4] sm:$0xff] %vm3567, %v3716
    %3731 = vst.msk [vmem:[#allocation4 + $0x8] sm:$0xff] %vm3567, %v3719
    %3732 = vst.msk [vmem:[#allocation4 + $0x10] sm:$0xff] %vm3567, %v3724
    %3733 = vst.msk [vmem:[#allocation4 + $0x18] sm:$0xff] %vm3567, %v3727
    %3736 = vrot.lane.b32.xlu0 %v3551, 120
    %v3737 = vpop.permute.xlu0 %3736
    %3738 = vrot.lane.b32.xlu0 %v3552, 120
    %v3739 = vpop.permute.xlu0 %3738
    %3742 = vrot.lane.b32.xlu0 %v3555, 120
    %v3743 = vpop.permute.xlu0 %3742
    %3744 = vrot.lane.b32.xlu0 %v3556, 120
    %v3745 = vpop.permute.xlu0 %3744
    %v3747 = vsel %vm3567, %v3737, 0
    %v3750 = vsel %vm3567, %v3739, 0
    %v3753 = vsel %vm3567, %v3743, 0
    %v3756 = vsel %vm3567, %v3745, 0
    %3758 = vmatprep.subr.bf16.mxu0 0
    %3759 = vmatpush1.bf16.xpose.msra.mxu0 0
    %3760 = vmatprep.subr.bf16.mxu0 0
    %3761 = vmatpush1.bf16.xpose.msra.mxu0 0
    %3762 = vmatprep.subr.bf16.mxu0 0
    %3763 = vmatpush1.bf16.xpose.msra.mxu0 0
    %3764 = vmatprep.subr.bf16.mxu0 0
    %3765 = vmatpush1.bf16.xpose.msra.mxu0 0
    %3766 = vmatprep.subr.bf16.mxu0 0
    %3767 = vmatpush1.bf16.xpose.msra.mxu0 0
    %3768 = vmatprep.subr.bf16.mxu0 0
    %3769 = vmatpush1.bf16.xpose.msra.mxu0 0
    %3770 = vmatprep.subr.bf16.mxu0 0
    %3771 = vmatpush1.bf16.xpose.msra.mxu0 %v3756
    %3772 = vmatprep.subr.bf16.mxu0 0
    %3773 = vmatpush1.bf16.xpose.msra.mxu0 %v3753
    %3774 = vmatprep.subr.bf16.mxu0 0
    %3775 = vmatpush2.bf16.xpose.msra.mxu0 0
    %3776 = vmatprep.subr.bf16.mxu0 0
    %3777 = vmatpush2.bf16.xpose.msra.mxu0 0
    %3778 = vmatprep.subr.bf16.mxu0 0
    %3779 = vmatpush2.bf16.xpose.msra.mxu0 0
    %3780 = vmatprep.subr.bf16.mxu0 0
    %3781 = vmatpush2.bf16.xpose.msra.mxu0 0
    %3782 = vmatprep.subr.bf16.mxu0 0
    %3783 = vmatpush2.bf16.xpose.msra.mxu0 0
    %3784 = vmatprep.subr.bf16.mxu0 0
    %3785 = vmatpush2.bf16.xpose.msra.mxu0 0
    %3786 = vmatprep.subr.bf16.mxu0 0
    %3787 = vmatpush2.bf16.xpose.msra.mxu0 0
    %3788 = vmatprep.subr.bf16.mxu0 0
    %3789 = vmatpush2.bf16.xpose.msra.mxu0 0
    %3790 = vmatprep.mubr.bf16.mxu0 0
    %3791 = vmatmul.mubr.bf16.gmra.mxu0 %v3747
    %v3792 = vpop.f32.mrf.mxu0
    %v3793 = vadd.f32 %v3566, %v3792
    %v3794 = vpop.f32.mrf.mxu0
    %v3795 = vpop.f32.mrf.mxu0
    %v3796 = vadd.f32 %v3566, %v3795
    %v3797 = vpop.f32.mrf.mxu0
    %3798 = vmatprep.mubr.bf16.mxu0 0
    %3799 = vmatmul.mubr.bf16.gmra.mxu0 %v3750
    %v3800 = vpop.f32.mrf.mxu0
    %v3801 = vadd.f32 %v3566, %v3800
    %v3802 = vpop.f32.mrf.mxu0
    %v3803 = vpop.f32.mrf.mxu0
    %v3804 = vadd.f32 %v3566, %v3803
    %v3805 = vpop.f32.mrf.mxu0
    %3806 = vdwg.mxu0
    %v3807 = vsel %vm2914, %v3793, -inf
    %3808 = vmax.xlane.f32.xlu0 %v3807
    %v3809 = vpop.xlane.xlu0 %3808
    %v3810 = vsel %vm2914, %v3796, -inf
    %3811 = vmax.xlane.f32.xlu0 %v3810
    %v3812 = vpop.xlane.xlu0 %3811
    %v3813 = vsel %vm2914, %v3801, -inf
    %3814 = vmax.xlane.f32.xlu0 %v3813
    %v3815 = vpop.xlane.xlu0 %3814
    %v3816 = vsel %vm2914, %v3804, -inf
    %3817 = vmax.xlane.f32.xlu0 %v3816
    %v3818 = vpop.xlane.xlu0 %3817
    %v3819 = vsub.f32 %v3793, %v3809
    %v3820 = vsub.f32 %v3796, %v3812
    %v3821 = vsub.f32 %v3801, %v3815
    %v3822 = vsub.f32 %v3804, %v3818
    %v3823 = vmul.f32 %v3819, 1.442695
    %v3824 = vpow.pop %v3823
    %v3825 = vmul.f32 %v3820, 1.442695
    %v3826 = vpow.pop %v3825
    %v3827 = vmul.f32 %v3821, 1.442695
    %v3828 = vpow.pop %v3827
    %v3829 = vmul.f32 %v3822, 1.442695
    %v3830 = vpow.pop %v3829
    %v3831 = vsel %vm2914, %v3824, 0.0
    %3832 = vadd.xlane.f32.xlu0 %v3831
    %v3833 = vpop.xlane.xlu0 %3832
    %v3834 = vsel %vm2914, %v3826, 0.0
    %3835 = vadd.xlane.f32.xlu0 %v3834
    %v3836 = vpop.xlane.xlu0 %3835
    %v3837 = vsel %vm2914, %v3828, 0.0
    %3838 = vadd.xlane.f32.xlu0 %v3837
    %v3839 = vpop.xlane.xlu0 %3838
    %v3840 = vsel %vm2914, %v3830, 0.0
    %3841 = vadd.xlane.f32.xlu0 %v3840
    %v3842 = vpop.xlane.xlu0 %3841
    %v3843 = vrcp.pop %v3833
    %v3844 = vrcp.pop %v3836
    %v3845 = vrcp.pop %v3839
    %v3846 = vrcp.pop %v3842
    %v3847 = vmul.f32 %v3824, %v3843
    %v3848 = vmul.f32 %v3826, %v3844
    %v3849 = vmul.f32 %v3828, %v3845
    %v3850 = vmul.f32 %v3830, %v3846
    %v3851 = vpack.c.bf16 %v3848, %v3847
    %v3852 = vpack.c.bf16 %v3850, %v3849
    %3855 = vrot.lane.b32.xlu0 %v3559, 120
    %v3856 = vpop.permute.xlu0 %3855
    %3857 = vrot.lane.b32.xlu0 %v3560, 120
    %v3858 = vpop.permute.xlu0 %3857
    %v3862 = vsel %vm2914, %v3851, 0
    %v3865 = vsel %vm2914, %v3852, 0
    %3867 = vmatprep.subr.bf16.mxu0 0
    %3868 = vmatpush1.bf16.msra.mxu0 0
    %3869 = vmatprep.subr.bf16.mxu0 0
    %3870 = vmatpush1.bf16.msra.mxu0 0
    %3871 = vmatprep.subr.bf16.mxu0 0
    %3872 = vmatpush1.bf16.msra.mxu0 0
    %3873 = vmatprep.subr.bf16.mxu0 0
    %3874 = vmatpush1.bf16.msra.mxu0 0
    %3875 = vmatprep.subr.bf16.mxu0 0
    %3876 = vmatpush1.bf16.msra.mxu0 0
    %3877 = vmatprep.subr.bf16.mxu0 0
    %3878 = vmatpush1.bf16.msra.mxu0 0
    %3879 = vmatprep.subr.bf16.mxu0 0
    %3880 = vmatpush1.bf16.msra.mxu0 %v3858
    %3881 = vmatprep.subr.bf16.mxu0 0
    %3882 = vmatpush1.bf16.msra.mxu0 %v3856
    %3883 = vmatprep.subr.bf16.mxu0 0
    %3884 = vmatpush2.bf16.msra.mxu0 0
    %3885 = vmatprep.subr.bf16.mxu0 0
    %3886 = vmatpush2.bf16.msra.mxu0 0
    %3887 = vmatprep.subr.bf16.mxu0 0
    %3888 = vmatpush2.bf16.msra.mxu0 0
    %3889 = vmatprep.subr.bf16.mxu0 0
    %3890 = vmatpush2.bf16.msra.mxu0 0
    %3891 = vmatprep.subr.bf16.mxu0 0
    %3892 = vmatpush2.bf16.msra.mxu0 0
    %3893 = vmatprep.subr.bf16.mxu0 0
    %3894 = vmatpush2.bf16.msra.mxu0 0
    %3895 = vmatprep.subr.bf16.mxu0 0
    %3896 = vmatpush2.bf16.msra.mxu0 0
    %3897 = vmatprep.subr.bf16.mxu0 0
    %3898 = vmatpush2.bf16.msra.mxu0 0
    %3899 = vmatprep.mubr.bf16.mxu0 0
    %3900 = vmatmul.mubr.bf16.gmra.mxu0 %v3862
    %v3901 = vpop.f32.mrf.mxu0
    %v3902 = vadd.f32 0.0, %v3901
    %v3903 = vpop.f32.mrf.mxu0
    %v3904 = vpop.f32.mrf.mxu0
    %v3905 = vadd.f32 0.0, %v3904
    %v3906 = vpop.f32.mrf.mxu0
    %3907 = vmatprep.mubr.bf16.mxu0 0
    %3908 = vmatmul.mubr.bf16.gmra.mxu0 %v3865
    %v3909 = vpop.f32.mrf.mxu0
    %v3910 = vadd.f32 0.0, %v3909
    %v3911 = vpop.f32.mrf.mxu0
    %v3912 = vpop.f32.mrf.mxu0
    %v3913 = vadd.f32 0.0, %v3912
    %v3914 = vpop.f32.mrf.mxu0
    %3915 = vdwg.mxu0
    %3920 = vrot.lane.b32.xlu0 %v3902, 8
    %v3921 = vpop.permute.xlu0 %3920
    %3922 = vrot.lane.b32.xlu0 %v3905, 8
    %v3923 = vpop.permute.xlu0 %3922
    %3924 = vrot.lane.b32.xlu0 %v3910, 8
    %v3925 = vpop.permute.xlu0 %3924
    %3926 = vrot.lane.b32.xlu0 %v3913, 8
    %v3927 = vpop.permute.xlu0 %3926
    %vm3932 = vcmask 130112
    %3933 = vst.msk [vmem:[#allocation4] sm:$0xff] %vm3932, %v3921
    %3934 = vst.msk [vmem:[#allocation4 + $0x8] sm:$0xff] %vm3932, %v3923
    %3935 = vst.msk [vmem:[#allocation4 + $0x10] sm:$0xff] %vm3932, %v3925
    %3936 = vst.msk [vmem:[#allocation4 + $0x18] sm:$0xff] %vm3932, %v3927
    %3937 = vrot.lane.b32.xlu0 %v3551, 112
    %v3938 = vpop.permute.xlu0 %3937
    %3939 = vrot.lane.b32.xlu0 %v3552, 112
    %v3940 = vpop.permute.xlu0 %3939
    %3941 = vrot.lane.b32.xlu0 %v3555, 112
    %v3942 = vpop.permute.xlu0 %3941
    %3943 = vrot.lane.b32.xlu0 %v3556, 112
    %v3944 = vpop.permute.xlu0 %3943
    %v3946 = vsel %vm3567, %v3938, 0
    %v3949 = vsel %vm3567, %v3940, 0
    %v3952 = vsel %vm3567, %v3942, 0
    %v3955 = vsel %vm3567, %v3944, 0
    %3957 = vmatprep.subr.bf16.mxu0 0
    %3958 = vmatpush1.bf16.xpose.msra.mxu0 0
    %3959 = vmatprep.subr.bf16.mxu0 0
    %3960 = vmatpush1.bf16.xpose.msra.mxu0 0
    %3961 = vmatprep.subr.bf16.mxu0 0
    %3962 = vmatpush1.bf16.xpose.msra.mxu0 0
    %3963 = vmatprep.subr.bf16.mxu0 0
    %3964 = vmatpush1.bf16.xpose.msra.mxu0 0
    %3965 = vmatprep.subr.bf16.mxu0 0
    %3966 = vmatpush1.bf16.xpose.msra.mxu0 0
    %3967 = vmatprep.subr.bf16.mxu0 0
    %3968 = vmatpush1.bf16.xpose.msra.mxu0 0
    %3969 = vmatprep.subr.bf16.mxu0 0
    %3970 = vmatpush1.bf16.xpose.msra.mxu0 %v3955
    %3971 = vmatprep.subr.bf16.mxu0 0
    %3972 = vmatpush1.bf16.xpose.msra.mxu0 %v3952
    %3973 = vmatprep.subr.bf16.mxu0 0
    %3974 = vmatpush2.bf16.xpose.msra.mxu0 0
    %3975 = vmatprep.subr.bf16.mxu0 0
    %3976 = vmatpush2.bf16.xpose.msra.mxu0 0
    %3977 = vmatprep.subr.bf16.mxu0 0
    %3978 = vmatpush2.bf16.xpose.msra.mxu0 0
    %3979 = vmatprep.subr.bf16.mxu0 0
    %3980 = vmatpush2.bf16.xpose.msra.mxu0 0
    %3981 = vmatprep.subr.bf16.mxu0 0
    %3982 = vmatpush2.bf16.xpose.msra.mxu0 0
    %3983 = vmatprep.subr.bf16.mxu0 0
    %3984 = vmatpush2.bf16.xpose.msra.mxu0 0
    %3985 = vmatprep.subr.bf16.mxu0 0
    %3986 = vmatpush2.bf16.xpose.msra.mxu0 0
    %3987 = vmatprep.subr.bf16.mxu0 0
    %3988 = vmatpush2.bf16.xpose.msra.mxu0 0
    %3989 = vmatprep.mubr.bf16.mxu0 0
    %3990 = vmatmul.mubr.bf16.gmra.mxu0 %v3946
    %v3991 = vpop.f32.mrf.mxu0
    %v3992 = vadd.f32 %v3566, %v3991
    %v3993 = vpop.f32.mrf.mxu0
    %v3994 = vpop.f32.mrf.mxu0
    %v3995 = vadd.f32 %v3566, %v3994
    %v3996 = vpop.f32.mrf.mxu0
    %3997 = vmatprep.mubr.bf16.mxu0 0
    %3998 = vmatmul.mubr.bf16.gmra.mxu0 %v3949
    %v3999 = vpop.f32.mrf.mxu0
    %v4000 = vadd.f32 %v3566, %v3999
    %v4001 = vpop.f32.mrf.mxu0
    %v4002 = vpop.f32.mrf.mxu0
    %v4003 = vadd.f32 %v3566, %v4002
    %v4004 = vpop.f32.mrf.mxu0
    %4005 = vdwg.mxu0
    %v4006 = vsel %vm2914, %v3992, -inf
    %4007 = vmax.xlane.f32.xlu0 %v4006
    %v4008 = vpop.xlane.xlu0 %4007
    %v4009 = vsel %vm2914, %v3995, -inf
    %4010 = vmax.xlane.f32.xlu0 %v4009
    %v4011 = vpop.xlane.xlu0 %4010
    %v4012 = vsel %vm2914, %v4000, -inf
    %4013 = vmax.xlane.f32.xlu0 %v4012
    %v4014 = vpop.xlane.xlu0 %4013
    %v4015 = vsel %vm2914, %v4003, -inf
    %4016 = vmax.xlane.f32.xlu0 %v4015
    %v4017 = vpop.xlane.xlu0 %4016
    %v4018 = vsub.f32 %v3992, %v4008
    %v4019 = vsub.f32 %v3995, %v4011
    %v4020 = vsub.f32 %v4000, %v4014
    %v4021 = vsub.f32 %v4003, %v4017
    %v4022 = vmul.f32 %v4018, 1.442695
    %v4023 = vpow.pop %v4022
    %v4024 = vmul.f32 %v4019, 1.442695
    %v4025 = vpow.pop %v4024
    %v4026 = vmul.f32 %v4020, 1.442695
    %v4027 = vpow.pop %v4026
    %v4028 = vmul.f32 %v4021, 1.442695
    %v4029 = vpow.pop %v4028
    %v4030 = vsel %vm2914, %v4023, 0.0
    %4031 = vadd.xlane.f32.xlu0 %v4030
    %v4032 = vpop.xlane.xlu0 %4031
    %v4033 = vsel %vm2914, %v4025, 0.0
    %4034 = vadd.xlane.f32.xlu0 %v4033
    %v4035 = vpop.xlane.xlu0 %4034
    %v4036 = vsel %vm2914, %v4027, 0.0
    %4037 = vadd.xlane.f32.xlu0 %v4036
    %v4038 = vpop.xlane.xlu0 %4037
    %v4039 = vsel %vm2914, %v4029, 0.0
    %4040 = vadd.xlane.f32.xlu0 %v4039
    %v4041 = vpop.xlane.xlu0 %4040
    %v4042 = vrcp.pop %v4032
    %v4043 = vrcp.pop %v4035
    %v4044 = vrcp.pop %v4038
    %v4045 = vrcp.pop %v4041
    %v4046 = vmul.f32 %v4023, %v4042
    %v4047 = vmul.f32 %v4025, %v4043
    %v4048 = vmul.f32 %v4027, %v4044
    %v4049 = vmul.f32 %v4029, %v4045
    %v4050 = vpack.c.bf16 %v4047, %v4046
    %v4051 = vpack.c.bf16 %v4049, %v4048
    %4052 = vrot.lane.b32.xlu0 %v3559, 112
    %v4053 = vpop.permute.xlu0 %4052
    %4054 = vrot.lane.b32.xlu0 %v3560, 112
    %v4055 = vpop.permute.xlu0 %4054
    %v4059 = vsel %vm2914, %v4050, 0
    %v4062 = vsel %vm2914, %v4051, 0
    %4064 = vmatprep.subr.bf16.mxu0 0
    %4065 = vmatpush1.bf16.msra.mxu0 0
    %4066 = vmatprep.subr.bf16.mxu0 0
    %4067 = vmatpush1.bf16.msra.mxu0 0
    %4068 = vmatprep.subr.bf16.mxu0 0
    %4069 = vmatpush1.bf16.msra.mxu0 0
    %4070 = vmatprep.subr.bf16.mxu0 0
    %4071 = vmatpush1.bf16.msra.mxu0 0
    %4072 = vmatprep.subr.bf16.mxu0 0
    %4073 = vmatpush1.bf16.msra.mxu0 0
    %4074 = vmatprep.subr.bf16.mxu0 0
    %4075 = vmatpush1.bf16.msra.mxu0 0
    %4076 = vmatprep.subr.bf16.mxu0 0
    %4077 = vmatpush1.bf16.msra.mxu0 %v4055
    %4078 = vmatprep.subr.bf16.mxu0 0
    %4079 = vmatpush1.bf16.msra.mxu0 %v4053
    %4080 = vmatprep.subr.bf16.mxu0 0
    %4081 = vmatpush2.bf16.msra.mxu0 0
    %4082 = vmatprep.subr.bf16.mxu0 0
    %4083 = vmatpush2.bf16.msra.mxu0 0
    %4084 = vmatprep.subr.bf16.mxu0 0
    %4085 = vmatpush2.bf16.msra.mxu0 0
    %4086 = vmatprep.subr.bf16.mxu0 0
    %4087 = vmatpush2.bf16.msra.mxu0 0
    %4088 = vmatprep.subr.bf16.mxu0 0
    %4089 = vmatpush2.bf16.msra.mxu0 0
    %4090 = vmatprep.subr.bf16.mxu0 0
    %4091 = vmatpush2.bf16.msra.mxu0 0
    %4092 = vmatprep.subr.bf16.mxu0 0
    %4093 = vmatpush2.bf16.msra.mxu0 0
    %4094 = vmatprep.subr.bf16.mxu0 0
    %4095 = vmatpush2.bf16.msra.mxu0 0
    %4096 = vmatprep.mubr.bf16.mxu0 0
    %4097 = vmatmul.mubr.bf16.gmra.mxu0 %v4059
    %v4098 = vpop.f32.mrf.mxu0
    %v4099 = vadd.f32 0.0, %v4098
    %v4100 = vpop.f32.mrf.mxu0
    %v4101 = vpop.f32.mrf.mxu0
    %v4102 = vadd.f32 0.0, %v4101
    %v4103 = vpop.f32.mrf.mxu0
    %4104 = vmatprep.mubr.bf16.mxu0 0
    %4105 = vmatmul.mubr.bf16.gmra.mxu0 %v4062
    %v4106 = vpop.f32.mrf.mxu0
    %v4107 = vadd.f32 0.0, %v4106
    %v4108 = vpop.f32.mrf.mxu0
    %v4109 = vpop.f32.mrf.mxu0
    %v4110 = vadd.f32 0.0, %v4109
    %v4111 = vpop.f32.mrf.mxu0
    %4112 = vdwg.mxu0
    %4117 = vrot.lane.b32.xlu0 %v4099, 16
    %v4118 = vpop.permute.xlu0 %4117
    %4119 = vrot.lane.b32.xlu0 %v4102, 16
    %v4120 = vpop.permute.xlu0 %4119
    %4121 = vrot.lane.b32.xlu0 %v4107, 16
    %v4122 = vpop.permute.xlu0 %4121
    %4123 = vrot.lane.b32.xlu0 %v4110, 16
    %v4124 = vpop.permute.xlu0 %4123
    %vm4129 = vcmask 195712
    %4130 = vst.msk [vmem:[#allocation4] sm:$0xff] %vm4129, %v4118
    %4131 = vst.msk [vmem:[#allocation4 + $0x8] sm:$0xff] %vm4129, %v4120
    %4132 = vst.msk [vmem:[#allocation4 + $0x10] sm:$0xff] %vm4129, %v4122
    %4133 = vst.msk [vmem:[#allocation4 + $0x18] sm:$0xff] %vm4129, %v4124
    %4134 = vrot.lane.b32.xlu0 %v3551, 104
    %v4135 = vpop.permute.xlu0 %4134
    %4136 = vrot.lane.b32.xlu0 %v3552, 104
    %v4137 = vpop.permute.xlu0 %4136
    %4138 = vrot.lane.b32.xlu0 %v3555, 104
    %v4139 = vpop.permute.xlu0 %4138
    %4140 = vrot.lane.b32.xlu0 %v3556, 104
    %v4141 = vpop.permute.xlu0 %4140
    %v4143 = vsel %vm3567, %v4135, 0
    %v4146 = vsel %vm3567, %v4137, 0
    %v4149 = vsel %vm3567, %v4139, 0
    %v4152 = vsel %vm3567, %v4141, 0
    %4154 = vmatprep.subr.bf16.mxu0 0
    %4155 = vmatpush1.bf16.xpose.msra.mxu0 0
    %4156 = vmatprep.subr.bf16.mxu0 0
    %4157 = vmatpush1.bf16.xpose.msra.mxu0 0
    %4158 = vmatprep.subr.bf16.mxu0 0
    %4159 = vmatpush1.bf16.xpose.msra.mxu0 0
    %4160 = vmatprep.subr.bf16.mxu0 0
    %4161 = vmatpush1.bf16.xpose.msra.mxu0 0
    %4162 = vmatprep.subr.bf16.mxu0 0
    %4163 = vmatpush1.bf16.xpose.msra.mxu0 0
    %4164 = vmatprep.subr.bf16.mxu0 0
    %4165 = vmatpush1.bf16.xpose.msra.mxu0 0
    %4166 = vmatprep.subr.bf16.mxu0 0
    %4167 = vmatpush1.bf16.xpose.msra.mxu0 %v4152
    %4168 = vmatprep.subr.bf16.mxu0 0
    %4169 = vmatpush1.bf16.xpose.msra.mxu0 %v4149
    %4170 = vmatprep.subr.bf16.mxu0 0
    %4171 = vmatpush2.bf16.xpose.msra.mxu0 0
    %4172 = vmatprep.subr.bf16.mxu0 0
    %4173 = vmatpush2.bf16.xpose.msra.mxu0 0
    %4174 = vmatprep.subr.bf16.mxu0 0
    %4175 = vmatpush2.bf16.xpose.msra.mxu0 0
    %4176 = vmatprep.subr.bf16.mxu0 0
    %4177 = vmatpush2.bf16.xpose.msra.mxu0 0
    %4178 = vmatprep.subr.bf16.mxu0 0
    %4179 = vmatpush2.bf16.xpose.msra.mxu0 0
    %4180 = vmatprep.subr.bf16.mxu0 0
    %4181 = vmatpush2.bf16.xpose.msra.mxu0 0
    %4182 = vmatprep.subr.bf16.mxu0 0
    %4183 = vmatpush2.bf16.xpose.msra.mxu0 0
    %4184 = vmatprep.subr.bf16.mxu0 0
    %4185 = vmatpush2.bf16.xpose.msra.mxu0 0
    %4186 = vmatprep.mubr.bf16.mxu0 0
    %4187 = vmatmul.mubr.bf16.gmra.mxu0 %v4143
    %v4188 = vpop.f32.mrf.mxu0
    %v4189 = vadd.f32 %v3566, %v4188
    %v4190 = vpop.f32.mrf.mxu0
    %v4191 = vpop.f32.mrf.mxu0
    %v4192 = vadd.f32 %v3566, %v4191
    %v4193 = vpop.f32.mrf.mxu0
    %4194 = vmatprep.mubr.bf16.mxu0 0
    %4195 = vmatmul.mubr.bf16.gmra.mxu0 %v4146
    %v4196 = vpop.f32.mrf.mxu0
    %v4197 = vadd.f32 %v3566, %v4196
    %v4198 = vpop.f32.mrf.mxu0
    %v4199 = vpop.f32.mrf.mxu0
    %v4200 = vadd.f32 %v3566, %v4199
    %v4201 = vpop.f32.mrf.mxu0
    %4202 = vdwg.mxu0
    %v4203 = vsel %vm2914, %v4189, -inf
    %4204 = vmax.xlane.f32.xlu0 %v4203
    %v4205 = vpop.xlane.xlu0 %4204
    %v4206 = vsel %vm2914, %v4192, -inf
    %4207 = vmax.xlane.f32.xlu0 %v4206
    %v4208 = vpop.xlane.xlu0 %4207
    %v4209 = vsel %vm2914, %v4197, -inf
    %4210 = vmax.xlane.f32.xlu0 %v4209
    %v4211 = vpop.xlane.xlu0 %4210
    %v4212 = vsel %vm2914, %v4200, -inf
    %4213 = vmax.xlane.f32.xlu0 %v4212
    %v4214 = vpop.xlane.xlu0 %4213
    %v4215 = vsub.f32 %v4189, %v4205
    %v4216 = vsub.f32 %v4192, %v4208
    %v4217 = vsub.f32 %v4197, %v4211
    %v4218 = vsub.f32 %v4200, %v4214
    %v4219 = vmul.f32 %v4215, 1.442695
    %v4220 = vpow.pop %v4219
    %v4221 = vmul.f32 %v4216, 1.442695
    %v4222 = vpow.pop %v4221
    %v4223 = vmul.f32 %v4217, 1.442695
    %v4224 = vpow.pop %v4223
    %v4225 = vmul.f32 %v4218, 1.442695
    %v4226 = vpow.pop %v4225
    %v4227 = vsel %vm2914, %v4220, 0.0
    %4228 = vadd.xlane.f32.xlu0 %v4227
    %v4229 = vpop.xlane.xlu0 %4228
    %v4230 = vsel %vm2914, %v4222, 0.0
    %4231 = vadd.xlane.f32.xlu0 %v4230
    %v4232 = vpop.xlane.xlu0 %4231
    %v4233 = vsel %vm2914, %v4224, 0.0
    %4234 = vadd.xlane.f32.xlu0 %v4233
    %v4235 = vpop.xlane.xlu0 %4234
    %v4236 = vsel %vm2914, %v4226, 0.0
    %4237 = vadd.xlane.f32.xlu0 %v4236
    %v4238 = vpop.xlane.xlu0 %4237
    %v4239 = vrcp.pop %v4229
    %v4240 = vrcp.pop %v4232
    %v4241 = vrcp.pop %v4235
    %v4242 = vrcp.pop %v4238
    %v4243 = vmul.f32 %v4220, %v4239
    %v4244 = vmul.f32 %v4222, %v4240
    %v4245 = vmul.f32 %v4224, %v4241
    %v4246 = vmul.f32 %v4226, %v4242
    %v4247 = vpack.c.bf16 %v4244, %v4243
    %v4248 = vpack.c.bf16 %v4246, %v4245
    %4249 = vrot.lane.b32.xlu0 %v3559, 104
    %v4250 = vpop.permute.xlu0 %4249
    %4251 = vrot.lane.b32.xlu0 %v3560, 104
    %v4252 = vpop.permute.xlu0 %4251
    %v4256 = vsel %vm2914, %v4247, 0
    %v4259 = vsel %vm2914, %v4248, 0
    %4261 = vmatprep.subr.bf16.mxu0 0
    %4262 = vmatpush1.bf16.msra.mxu0 0
    %4263 = vmatprep.subr.bf16.mxu0 0
    %4264 = vmatpush1.bf16.msra.mxu0 0
    %4265 = vmatprep.subr.bf16.mxu0 0
    %4266 = vmatpush1.bf16.msra.mxu0 0
    %4267 = vmatprep.subr.bf16.mxu0 0
    %4268 = vmatpush1.bf16.msra.mxu0 0
    %4269 = vmatprep.subr.bf16.mxu0 0
    %4270 = vmatpush1.bf16.msra.mxu0 0
    %4271 = vmatprep.subr.bf16.mxu0 0
    %4272 = vmatpush1.bf16.msra.mxu0 0
    %4273 = vmatprep.subr.bf16.mxu0 0
    %4274 = vmatpush1.bf16.msra.mxu0 %v4252
    %4275 = vmatprep.subr.bf16.mxu0 0
    %4276 = vmatpush1.bf16.msra.mxu0 %v4250
    %4277 = vmatprep.subr.bf16.mxu0 0
    %4278 = vmatpush2.bf16.msra.mxu0 0
    %4279 = vmatprep.subr.bf16.mxu0 0
    %4280 = vmatpush2.bf16.msra.mxu0 0
    %4281 = vmatprep.subr.bf16.mxu0 0
    %4282 = vmatpush2.bf16.msra.mxu0 0
    %4283 = vmatprep.subr.bf16.mxu0 0
    %4284 = vmatpush2.bf16.msra.mxu0 0
    %4285 = vmatprep.subr.bf16.mxu0 0
    %4286 = vmatpush2.bf16.msra.mxu0 0
    %4287 = vmatprep.subr.bf16.mxu0 0
    %4288 = vmatpush2.bf16.msra.mxu0 0
    %4289 = vmatprep.subr.bf16.mxu0 0
    %4290 = vmatpush2.bf16.msra.mxu0 0
    %4291 = vmatprep.subr.bf16.mxu0 0
    %4292 = vmatpush2.bf16.msra.mxu0 0
    %4293 = vmatprep.mubr.bf16.mxu0 0
    %4294 = vmatmul.mubr.bf16.gmra.mxu0 %v4256
    %v4295 = vpop.f32.mrf.mxu0
    %v4296 = vadd.f32 0.0, %v4295
    %v4297 = vpop.f32.mrf.mxu0
    %v4298 = vpop.f32.mrf.mxu0
    %v4299 = vadd.f32 0.0, %v4298
    %v4300 = vpop.f32.mrf.mxu0
    %4301 = vmatprep.mubr.bf16.mxu0 0
    %4302 = vmatmul.mubr.bf16.gmra.mxu0 %v4259
    %v4303 = vpop.f32.mrf.mxu0
    %v4304 = vadd.f32 0.0, %v4303
    %v4305 = vpop.f32.mrf.mxu0
    %v4306 = vpop.f32.mrf.mxu0
    %v4307 = vadd.f32 0.0, %v4306
    %v4308 = vpop.f32.mrf.mxu0
    %4309 = vdwg.mxu0
    %4314 = vrot.lane.b32.xlu0 %v4296, 24
    %v4315 = vpop.permute.xlu0 %4314
    %4316 = vrot.lane.b32.xlu0 %v4299, 24
    %v4317 = vpop.permute.xlu0 %4316
    %4318 = vrot.lane.b32.xlu0 %v4304, 24
    %v4319 = vpop.permute.xlu0 %4318
    %4320 = vrot.lane.b32.xlu0 %v4307, 24
    %v4321 = vpop.permute.xlu0 %4320
    %vm4326 = vcmask 261312
    %4327 = vst.msk [vmem:[#allocation4] sm:$0xff] %vm4326, %v4315
    %4328 = vst.msk [vmem:[#allocation4 + $0x8] sm:$0xff] %vm4326, %v4317
    %4329 = vst.msk [vmem:[#allocation4 + $0x10] sm:$0xff] %vm4326, %v4319
    %4330 = vst.msk [vmem:[#allocation4 + $0x18] sm:$0xff] %vm4326, %v4321
    %v4332 = vsel %vm3567, %v3553, 0
    %v4335 = vsel %vm3567, %v3554, 0
    %v4338 = vsel %vm3567, %v3557, 0
    %v4341 = vsel %vm3567, %v3558, 0
    %4343 = vmatprep.subr.bf16.mxu0 0
    %4344 = vmatpush1.bf16.xpose.msra.mxu0 0
    %4345 = vmatprep.subr.bf16.mxu0 0
    %4346 = vmatpush1.bf16.xpose.msra.mxu0 0
    %4347 = vmatprep.subr.bf16.mxu0 0
    %4348 = vmatpush1.bf16.xpose.msra.mxu0 0
    %4349 = vmatprep.subr.bf16.mxu0 0
    %4350 = vmatpush1.bf16.xpose.msra.mxu0 0
    %4351 = vmatprep.subr.bf16.mxu0 0
    %4352 = vmatpush1.bf16.xpose.msra.mxu0 0
    %4353 = vmatprep.subr.bf16.mxu0 0
    %4354 = vmatpush1.bf16.xpose.msra.mxu0 0
    %4355 = vmatprep.subr.bf16.mxu0 0
    %4356 = vmatpush1.bf16.xpose.msra.mxu0 %v4341
    %4357 = vmatprep.subr.bf16.mxu0 0
    %4358 = vmatpush1.bf16.xpose.msra.mxu0 %v4338
    %4359 = vmatprep.subr.bf16.mxu0 0
    %4360 = vmatpush2.bf16.xpose.msra.mxu0 0
    %4361 = vmatprep.subr.bf16.mxu0 0
    %4362 = vmatpush2.bf16.xpose.msra.mxu0 0
    %4363 = vmatprep.subr.bf16.mxu0 0
    %4364 = vmatpush2.bf16.xpose.msra.mxu0 0
    %4365 = vmatprep.subr.bf16.mxu0 0
    %4366 = vmatpush2.bf16.xpose.msra.mxu0 0
    %4367 = vmatprep.subr.bf16.mxu0 0
    %4368 = vmatpush2.bf16.xpose.msra.mxu0 0
    %4369 = vmatprep.subr.bf16.mxu0 0
    %4370 = vmatpush2.bf16.xpose.msra.mxu0 0
    %4371 = vmatprep.subr.bf16.mxu0 0
    %4372 = vmatpush2.bf16.xpose.msra.mxu0 0
    %4373 = vmatprep.subr.bf16.mxu0 0
    %4374 = vmatpush2.bf16.xpose.msra.mxu0 0
    %4375 = vmatprep.mubr.bf16.mxu0 0
    %4376 = vmatmul.mubr.bf16.gmra.mxu0 %v4332
    %v4377 = vpop.f32.mrf.mxu0
    %v4378 = vadd.f32 %v3566, %v4377
    %v4379 = vpop.f32.mrf.mxu0
    %v4380 = vpop.f32.mrf.mxu0
    %v4381 = vadd.f32 %v3566, %v4380
    %v4382 = vpop.f32.mrf.mxu0
    %4383 = vmatprep.mubr.bf16.mxu0 0
    %4384 = vmatmul.mubr.bf16.gmra.mxu0 %v4335
    %v4385 = vpop.f32.mrf.mxu0
    %v4386 = vadd.f32 %v3566, %v4385
    %v4387 = vpop.f32.mrf.mxu0
    %v4388 = vpop.f32.mrf.mxu0
    %v4389 = vadd.f32 %v3566, %v4388
    %v4390 = vpop.f32.mrf.mxu0
    %4391 = vdwg.mxu0
    %v4392 = vsel %vm2914, %v4378, -inf
    %4393 = vmax.xlane.f32.xlu0 %v4392
    %v4394 = vpop.xlane.xlu0 %4393
    %v4395 = vsel %vm2914, %v4381, -inf
    %4396 = vmax.xlane.f32.xlu0 %v4395
    %v4397 = vpop.xlane.xlu0 %4396
    %v4398 = vsel %vm2914, %v4386, -inf
    %4399 = vmax.xlane.f32.xlu0 %v4398
    %v4400 = vpop.xlane.xlu0 %4399
    %v4401 = vsel %vm2914, %v4389, -inf
    %4402 = vmax.xlane.f32.xlu0 %v4401
    %v4403 = vpop.xlane.xlu0 %4402
    %v4404 = vsub.f32 %v4378, %v4394
    %v4405 = vsub.f32 %v4381, %v4397
    %v4406 = vsub.f32 %v4386, %v4400
    %v4407 = vsub.f32 %v4389, %v4403
    %v4408 = vmul.f32 %v4404, 1.442695
    %v4409 = vpow.pop %v4408
    %v4410 = vmul.f32 %v4405, 1.442695
    %v4411 = vpow.pop %v4410
    %v4412 = vmul.f32 %v4406, 1.442695
    %v4413 = vpow.pop %v4412
    %v4414 = vmul.f32 %v4407, 1.442695
    %v4415 = vpow.pop %v4414
    %v4416 = vsel %vm2914, %v4409, 0.0
    %4417 = vadd.xlane.f32.xlu0 %v4416
    %v4418 = vpop.xlane.xlu0 %4417
    %v4419 = vsel %vm2914, %v4411, 0.0
    %4420 = vadd.xlane.f32.xlu0 %v4419
    %v4421 = vpop.xlane.xlu0 %4420
    %v4422 = vsel %vm2914, %v4413, 0.0
    %4423 = vadd.xlane.f32.xlu0 %v4422
    %v4424 = vpop.xlane.xlu0 %4423
    %v4425 = vsel %vm2914, %v4415, 0.0
    %4426 = vadd.xlane.f32.xlu0 %v4425
    %v4427 = vpop.xlane.xlu0 %4426
    %v4428 = vrcp.pop %v4418
    %v4429 = vrcp.pop %v4421
    %v4430 = vrcp.pop %v4424
    %v4431 = vrcp.pop %v4427
    %v4432 = vmul.f32 %v4409, %v4428
    %v4433 = vmul.f32 %v4411, %v4429
    %v4434 = vmul.f32 %v4413, %v4430
    %v4435 = vmul.f32 %v4415, %v4431
    %v4436 = vpack.c.bf16 %v4433, %v4432
    %v4437 = vpack.c.bf16 %v4435, %v4434
    %v4439 = vsel %vm2914, %v4436, 0
    %v4442 = vsel %vm2914, %v4437, 0
    %4444 = vmatprep.subr.bf16.mxu0 0
    %4445 = vmatpush1.bf16.msra.mxu0 0
    %4446 = vmatprep.subr.bf16.mxu0 0
    %4447 = vmatpush1.bf16.msra.mxu0 0
    %4448 = vmatprep.subr.bf16.mxu0 0
    %4449 = vmatpush1.bf16.msra.mxu0 0
    %4450 = vmatprep.subr.bf16.mxu0 0
    %4451 = vmatpush1.bf16.msra.mxu0 0
    %4452 = vmatprep.subr.bf16.mxu0 0
    %4453 = vmatpush1.bf16.msra.mxu0 0
    %4454 = vmatprep.subr.bf16.mxu0 0
    %4455 = vmatpush1.bf16.msra.mxu0 0
    %4456 = vmatprep.subr.bf16.mxu0 0
    %4457 = vmatpush1.bf16.msra.mxu0 %v3562
    %4458 = vmatprep.subr.bf16.mxu0 0
    %4459 = vmatpush1.bf16.msra.mxu0 %v3561
    %4460 = vmatprep.subr.bf16.mxu0 0
    %4461 = vmatpush2.bf16.msra.mxu0 0
    %4462 = vmatprep.subr.bf16.mxu0 0
    %4463 = vmatpush2.bf16.msra.mxu0 0
    %4464 = vmatprep.subr.bf16.mxu0 0
    %4465 = vmatpush2.bf16.msra.mxu0 0
    %4466 = vmatprep.subr.bf16.mxu0 0
    %4467 = vmatpush2.bf16.msra.mxu0 0
    %4468 = vmatprep.subr.bf16.mxu0 0
    %4469 = vmatpush2.bf16.msra.mxu0 0
    %4470 = vmatprep.subr.bf16.mxu0 0
    %4471 = vmatpush2.bf16.msra.mxu0 0
    %4472 = vmatprep.subr.bf16.mxu0 0
    %4473 = vmatpush2.bf16.msra.mxu0 0
    %4474 = vmatprep.subr.bf16.mxu0 0
    %4475 = vmatpush2.bf16.msra.mxu0 0
    %4476 = vmatprep.mubr.bf16.mxu0 0
    %4477 = vmatmul.mubr.bf16.gmra.mxu0 %v4439
    %v4478 = vpop.f32.mrf.mxu0
    %v4479 = vadd.f32 0.0, %v4478
    %v4480 = vpop.f32.mrf.mxu0
    %v4481 = vpop.f32.mrf.mxu0
    %v4482 = vadd.f32 0.0, %v4481
    %v4483 = vpop.f32.mrf.mxu0
    %4484 = vmatprep.mubr.bf16.mxu0 0
    %4485 = vmatmul.mubr.bf16.gmra.mxu0 %v4442
    %v4486 = vpop.f32.mrf.mxu0
    %v4487 = vadd.f32 0.0, %v4486
    %v4488 = vpop.f32.mrf.mxu0
    %v4489 = vpop.f32.mrf.mxu0
    %v4490 = vadd.f32 0.0, %v4489
    %v4491 = vpop.f32.mrf.mxu0
    %4492 = vdwg.mxu0
    %4493 = vst.msk [vmem:[#allocation4 + $0x20] sm:$0xff] %vm3567, %v4479
    %4494 = vst.msk [vmem:[#allocation4 + $0x28] sm:$0xff] %vm3567, %v4482
    %4495 = vst.msk [vmem:[#allocation4 + $0x30] sm:$0xff] %vm3567, %v4487
    %4496 = vst.msk [vmem:[#allocation4 + $0x38] sm:$0xff] %vm3567, %v4490
    %4499 = vrot.lane.b32.xlu0 %v3553, 120
    %v4500 = vpop.permute.xlu0 %4499
    %4501 = vrot.lane.b32.xlu0 %v3554, 120
    %v4502 = vpop.permute.xlu0 %4501
    %4505 = vrot.lane.b32.xlu0 %v3557, 120
    %v4506 = vpop.permute.xlu0 %4505
    %4507 = vrot.lane.b32.xlu0 %v3558, 120
    %v4508 = vpop.permute.xlu0 %4507
    %v4510 = vsel %vm3567, %v4500, 0
    %v4513 = vsel %vm3567, %v4502, 0
    %v4516 = vsel %vm3567, %v4506, 0
    %v4519 = vsel %vm3567, %v4508, 0
    %4521 = vmatprep.subr.bf16.mxu0 0
    %4522 = vmatpush1.bf16.xpose.msra.mxu0 0
    %4523 = vmatprep.subr.bf16.mxu0 0
    %4524 = vmatpush1.bf16.xpose.msra.mxu0 0
    %4525 = vmatprep.subr.bf16.mxu0 0
    %4526 = vmatpush1.bf16.xpose.msra.mxu0 0
    %4527 = vmatprep.subr.bf16.mxu0 0
    %4528 = vmatpush1.bf16.xpose.msra.mxu0 0
    %4529 = vmatprep.subr.bf16.mxu0 0
    %4530 = vmatpush1.bf16.xpose.msra.mxu0 0
    %4531 = vmatprep.subr.bf16.mxu0 0
    %4532 = vmatpush1.bf16.xpose.msra.mxu0 0
    %4533 = vmatprep.subr.bf16.mxu0 0
    %4534 = vmatpush1.bf16.xpose.msra.mxu0 %v4519
    %4535 = vmatprep.subr.bf16.mxu0 0
    %4536 = vmatpush1.bf16.xpose.msra.mxu0 %v4516
    %4537 = vmatprep.subr.bf16.mxu0 0
    %4538 = vmatpush2.bf16.xpose.msra.mxu0 0
    %4539 = vmatprep.subr.bf16.mxu0 0
    %4540 = vmatpush2.bf16.xpose.msra.mxu0 0
    %4541 = vmatprep.subr.bf16.mxu0 0
    %4542 = vmatpush2.bf16.xpose.msra.mxu0 0
    %4543 = vmatprep.subr.bf16.mxu0 0
    %4544 = vmatpush2.bf16.xpose.msra.mxu0 0
    %4545 = vmatprep.subr.bf16.mxu0 0
    %4546 = vmatpush2.bf16.xpose.msra.mxu0 0
    %4547 = vmatprep.subr.bf16.mxu0 0
    %4548 = vmatpush2.bf16.xpose.msra.mxu0 0
    %4549 = vmatprep.subr.bf16.mxu0 0
    %4550 = vmatpush2.bf16.xpose.msra.mxu0 0
    %4551 = vmatprep.subr.bf16.mxu0 0
    %4552 = vmatpush2.bf16.xpose.msra.mxu0 0
    %4553 = vmatprep.mubr.bf16.mxu0 0
    %4554 = vmatmul.mubr.bf16.gmra.mxu0 %v4510
    %v4555 = vpop.f32.mrf.mxu0
    %v4556 = vadd.f32 %v3566, %v4555
    %v4557 = vpop.f32.mrf.mxu0
    %v4558 = vpop.f32.mrf.mxu0
    %v4559 = vadd.f32 %v3566, %v4558
    %v4560 = vpop.f32.mrf.mxu0
    %4561 = vmatprep.mubr.bf16.mxu0 0
    %4562 = vmatmul.mubr.bf16.gmra.mxu0 %v4513
    %v4563 = vpop.f32.mrf.mxu0
    %v4564 = vadd.f32 %v3566, %v4563
    %v4565 = vpop.f32.mrf.mxu0
    %v4566 = vpop.f32.mrf.mxu0
    %v4567 = vadd.f32 %v3566, %v4566
    %v4568 = vpop.f32.mrf.mxu0
    %4569 = vdwg.mxu0
    %v4570 = vsel %vm2914, %v4556, -inf
    %4571 = vmax.xlane.f32.xlu0 %v4570
    %v4572 = vpop.xlane.xlu0 %4571
    %v4573 = vsel %vm2914, %v4559, -inf
    %4574 = vmax.xlane.f32.xlu0 %v4573
    %v4575 = vpop.xlane.xlu0 %4574
    %v4576 = vsel %vm2914, %v4564, -inf
    %4577 = vmax.xlane.f32.xlu0 %v4576
    %v4578 = vpop.xlane.xlu0 %4577
    %v4579 = vsel %vm2914, %v4567, -inf
    %4580 = vmax.xlane.f32.xlu0 %v4579
    %v4581 = vpop.xlane.xlu0 %4580
    %v4582 = vsub.f32 %v4556, %v4572
    %v4583 = vsub.f32 %v4559, %v4575
    %v4584 = vsub.f32 %v4564, %v4578
    %v4585 = vsub.f32 %v4567, %v4581
    %v4586 = vmul.f32 %v4582, 1.442695
    %v4587 = vpow.pop %v4586
    %v4588 = vmul.f32 %v4583, 1.442695
    %v4589 = vpow.pop %v4588
    %v4590 = vmul.f32 %v4584, 1.442695
    %v4591 = vpow.pop %v4590
    %v4592 = vmul.f32 %v4585, 1.442695
    %v4593 = vpow.pop %v4592
    %v4594 = vsel %vm2914, %v4587, 0.0
    %4595 = vadd.xlane.f32.xlu0 %v4594
    %v4596 = vpop.xlane.xlu0 %4595
    %v4597 = vsel %vm2914, %v4589, 0.0
    %4598 = vadd.xlane.f32.xlu0 %v4597
    %v4599 = vpop.xlane.xlu0 %4598
    %v4600 = vsel %vm2914, %v4591, 0.0
    %4601 = vadd.xlane.f32.xlu0 %v4600
    %v4602 = vpop.xlane.xlu0 %4601
    %v4603 = vsel %vm2914, %v4593, 0.0
    %4604 = vadd.xlane.f32.xlu0 %v4603
    %v4605 = vpop.xlane.xlu0 %4604
    %v4606 = vrcp.pop %v4596
    %v4607 = vrcp.pop %v4599
    %v4608 = vrcp.pop %v4602
    %v4609 = vrcp.pop %v4605
    %v4610 = vmul.f32 %v4587, %v4606
    %v4611 = vmul.f32 %v4589, %v4607
    %v4612 = vmul.f32 %v4591, %v4608
    %v4613 = vmul.f32 %v4593, %v4609
    %v4614 = vpack.c.bf16 %v4611, %v4610
    %v4615 = vpack.c.bf16 %v4613, %v4612
    %4618 = vrot.lane.b32.xlu0 %v3561, 120
    %v4619 = vpop.permute.xlu0 %4618
    %4620 = vrot.lane.b32.xlu0 %v3562, 120
    %v4621 = vpop.permute.xlu0 %4620
    %v4625 = vsel %vm2914, %v4614, 0
    %v4628 = vsel %vm2914, %v4615, 0
    %4630 = vmatprep.subr.bf16.mxu0 0
    %4631 = vmatpush1.bf16.msra.mxu0 0
    %4632 = vmatprep.subr.bf16.mxu0 0
    %4633 = vmatpush1.bf16.msra.mxu0 0
    %4634 = vmatprep.subr.bf16.mxu0 0
    %4635 = vmatpush1.bf16.msra.mxu0 0
    %4636 = vmatprep.subr.bf16.mxu0 0
    %4637 = vmatpush1.bf16.msra.mxu0 0
    %4638 = vmatprep.subr.bf16.mxu0 0
    %4639 = vmatpush1.bf16.msra.mxu0 0
    %4640 = vmatprep.subr.bf16.mxu0 0
    %4641 = vmatpush1.bf16.msra.mxu0 0
    %4642 = vmatprep.subr.bf16.mxu0 0
    %4643 = vmatpush1.bf16.msra.mxu0 %v4621
    %4644 = vmatprep.subr.bf16.mxu0 0
    %4645 = vmatpush1.bf16.msra.mxu0 %v4619
    %4646 = vmatprep.subr.bf16.mxu0 0
    %4647 = vmatpush2.bf16.msra.mxu0 0
    %4648 = vmatprep.subr.bf16.mxu0 0
    %4649 = vmatpush2.bf16.msra.mxu0 0
    %4650 = vmatprep.subr.bf16.mxu0 0
    %4651 = vmatpush2.bf16.msra.mxu0 0
    %4652 = vmatprep.subr.bf16.mxu0 0
    %4653 = vmatpush2.bf16.msra.mxu0 0
    %4654 = vmatprep.subr.bf16.mxu0 0
    %4655 = vmatpush2.bf16.msra.mxu0 0
    %4656 = vmatprep.subr.bf16.mxu0 0
    %4657 = vmatpush2.bf16.msra.mxu0 0
    %4658 = vmatprep.subr.bf16.mxu0 0
    %4659 = vmatpush2.bf16.msra.mxu0 0
    %4660 = vmatprep.subr.bf16.mxu0 0
    %4661 = vmatpush2.bf16.msra.mxu0 0
    %4662 = vmatprep.mubr.bf16.mxu0 0
    %4663 = vmatmul.mubr.bf16.gmra.mxu0 %v4625
    %v4664 = vpop.f32.mrf.mxu0
    %v4665 = vadd.f32 0.0, %v4664
    %v4666 = vpop.f32.mrf.mxu0
    %v4667 = vpop.f32.mrf.mxu0
    %v4668 = vadd.f32 0.0, %v4667
    %v4669 = vpop.f32.mrf.mxu0
    %4670 = vmatprep.mubr.bf16.mxu0 0
    %4671 = vmatmul.mubr.bf16.gmra.mxu0 %v4628
    %v4672 = vpop.f32.mrf.mxu0
    %v4673 = vadd.f32 0.0, %v4672
    %v4674 = vpop.f32.mrf.mxu0
    %v4675 = vpop.f32.mrf.mxu0
    %v4676 = vadd.f32 0.0, %v4675
    %v4677 = vpop.f32.mrf.mxu0
    %4678 = vdwg.mxu0
    %4683 = vrot.lane.b32.xlu0 %v4665, 8
    %v4684 = vpop.permute.xlu0 %4683
    %4685 = vrot.lane.b32.xlu0 %v4668, 8
    %v4686 = vpop.permute.xlu0 %4685
    %4687 = vrot.lane.b32.xlu0 %v4673, 8
    %v4688 = vpop.permute.xlu0 %4687
    %4689 = vrot.lane.b32.xlu0 %v4676, 8
    %v4690 = vpop.permute.xlu0 %4689
    %4695 = vst.msk [vmem:[#allocation4 + $0x20] sm:$0xff] %vm3932, %v4684
    %4696 = vst.msk [vmem:[#allocation4 + $0x28] sm:$0xff] %vm3932, %v4686
    %4697 = vst.msk [vmem:[#allocation4 + $0x30] sm:$0xff] %vm3932, %v4688
    %4698 = vst.msk [vmem:[#allocation4 + $0x38] sm:$0xff] %vm3932, %v4690
    %4699 = vrot.lane.b32.xlu0 %v3553, 112
    %v4700 = vpop.permute.xlu0 %4699
    %4701 = vrot.lane.b32.xlu0 %v3554, 112
    %v4702 = vpop.permute.xlu0 %4701
    %4703 = vrot.lane.b32.xlu0 %v3557, 112
    %v4704 = vpop.permute.xlu0 %4703
    %4705 = vrot.lane.b32.xlu0 %v3558, 112
    %v4706 = vpop.permute.xlu0 %4705
    %v4708 = vsel %vm3567, %v4700, 0
    %v4711 = vsel %vm3567, %v4702, 0
    %v4714 = vsel %vm3567, %v4704, 0
    %v4717 = vsel %vm3567, %v4706, 0
    %4719 = vmatprep.subr.bf16.mxu0 0
    %4720 = vmatpush1.bf16.xpose.msra.mxu0 0
    %4721 = vmatprep.subr.bf16.mxu0 0
    %4722 = vmatpush1.bf16.xpose.msra.mxu0 0
    %4723 = vmatprep.subr.bf16.mxu0 0
    %4724 = vmatpush1.bf16.xpose.msra.mxu0 0
    %4725 = vmatprep.subr.bf16.mxu0 0
    %4726 = vmatpush1.bf16.xpose.msra.mxu0 0
    %4727 = vmatprep.subr.bf16.mxu0 0
    %4728 = vmatpush1.bf16.xpose.msra.mxu0 0
    %4729 = vmatprep.subr.bf16.mxu0 0
    %4730 = vmatpush1.bf16.xpose.msra.mxu0 0
    %4731 = vmatprep.subr.bf16.mxu0 0
    %4732 = vmatpush1.bf16.xpose.msra.mxu0 %v4717
    %4733 = vmatprep.subr.bf16.mxu0 0
    %4734 = vmatpush1.bf16.xpose.msra.mxu0 %v4714
    %4735 = vmatprep.subr.bf16.mxu0 0
    %4736 = vmatpush2.bf16.xpose.msra.mxu0 0
    %4737 = vmatprep.subr.bf16.mxu0 0
    %4738 = vmatpush2.bf16.xpose.msra.mxu0 0
    %4739 = vmatprep.subr.bf16.mxu0 0
    %4740 = vmatpush2.bf16.xpose.msra.mxu0 0
    %4741 = vmatprep.subr.bf16.mxu0 0
    %4742 = vmatpush2.bf16.xpose.msra.mxu0 0
    %4743 = vmatprep.subr.bf16.mxu0 0
    %4744 = vmatpush2.bf16.xpose.msra.mxu0 0
    %4745 = vmatprep.subr.bf16.mxu0 0
    %4746 = vmatpush2.bf16.xpose.msra.mxu0 0
    %4747 = vmatprep.subr.bf16.mxu0 0
    %4748 = vmatpush2.bf16.xpose.msra.mxu0 0
    %4749 = vmatprep.subr.bf16.mxu0 0
    %4750 = vmatpush2.bf16.xpose.msra.mxu0 0
    %4751 = vmatprep.mubr.bf16.mxu0 0
    %4752 = vmatmul.mubr.bf16.gmra.mxu0 %v4708
    %v4753 = vpop.f32.mrf.mxu0
    %v4754 = vadd.f32 %v3566, %v4753
    %v4755 = vpop.f32.mrf.mxu0
    %v4756 = vpop.f32.mrf.mxu0
    %v4757 = vadd.f32 %v3566, %v4756
    %v4758 = vpop.f32.mrf.mxu0
    %4759 = vmatprep.mubr.bf16.mxu0 0
    %4760 = vmatmul.mubr.bf16.gmra.mxu0 %v4711
    %v4761 = vpop.f32.mrf.mxu0
    %v4762 = vadd.f32 %v3566, %v4761
    %v4763 = vpop.f32.mrf.mxu0
    %v4764 = vpop.f32.mrf.mxu0
    %v4765 = vadd.f32 %v3566, %v4764
    %v4766 = vpop.f32.mrf.mxu0
    %4767 = vdwg.mxu0
    %v4768 = vsel %vm2914, %v4754, -inf
    %4769 = vmax.xlane.f32.xlu0 %v4768
    %v4770 = vpop.xlane.xlu0 %4769
    %v4771 = vsel %vm2914, %v4757, -inf
    %4772 = vmax.xlane.f32.xlu0 %v4771
    %v4773 = vpop.xlane.xlu0 %4772
    %v4774 = vsel %vm2914, %v4762, -inf
    %4775 = vmax.xlane.f32.xlu0 %v4774
    %v4776 = vpop.xlane.xlu0 %4775
    %v4777 = vsel %vm2914, %v4765, -inf
    %4778 = vmax.xlane.f32.xlu0 %v4777
    %v4779 = vpop.xlane.xlu0 %4778
    %v4780 = vsub.f32 %v4754, %v4770
    %v4781 = vsub.f32 %v4757, %v4773
    %v4782 = vsub.f32 %v4762, %v4776
    %v4783 = vsub.f32 %v4765, %v4779
    %v4784 = vmul.f32 %v4780, 1.442695
    %v4785 = vpow.pop %v4784
    %v4786 = vmul.f32 %v4781, 1.442695
    %v4787 = vpow.pop %v4786
    %v4788 = vmul.f32 %v4782, 1.442695
    %v4789 = vpow.pop %v4788
    %v4790 = vmul.f32 %v4783, 1.442695
    %v4791 = vpow.pop %v4790
    %v4792 = vsel %vm2914, %v4785, 0.0
    %4793 = vadd.xlane.f32.xlu0 %v4792
    %v4794 = vpop.xlane.xlu0 %4793
    %v4795 = vsel %vm2914, %v4787, 0.0
    %4796 = vadd.xlane.f32.xlu0 %v4795
    %v4797 = vpop.xlane.xlu0 %4796
    %v4798 = vsel %vm2914, %v4789, 0.0
    %4799 = vadd.xlane.f32.xlu0 %v4798
    %v4800 = vpop.xlane.xlu0 %4799
    %v4801 = vsel %vm2914, %v4791, 0.0
    %4802 = vadd.xlane.f32.xlu0 %v4801
    %v4803 = vpop.xlane.xlu0 %4802
    %v4804 = vrcp.pop %v4794
    %v4805 = vrcp.pop %v4797
    %v4806 = vrcp.pop %v4800
    %v4807 = vrcp.pop %v4803
    %v4808 = vmul.f32 %v4785, %v4804
    %v4809 = vmul.f32 %v4787, %v4805
    %v4810 = vmul.f32 %v4789, %v4806
    %v4811 = vmul.f32 %v4791, %v4807
    %v4812 = vpack.c.bf16 %v4809, %v4808
    %v4813 = vpack.c.bf16 %v4811, %v4810
    %4814 = vrot.lane.b32.xlu0 %v3561, 112
    %v4815 = vpop.permute.xlu0 %4814
    %4816 = vrot.lane.b32.xlu0 %v3562, 112
    %v4817 = vpop.permute.xlu0 %4816
    %v4821 = vsel %vm2914, %v4812, 0
    %v4824 = vsel %vm2914, %v4813, 0
    %4826 = vmatprep.subr.bf16.mxu0 0
    %4827 = vmatpush1.bf16.msra.mxu0 0
    %4828 = vmatprep.subr.bf16.mxu0 0
    %4829 = vmatpush1.bf16.msra.mxu0 0
    %4830 = vmatprep.subr.bf16.mxu0 0
    %4831 = vmatpush1.bf16.msra.mxu0 0
    %4832 = vmatprep.subr.bf16.mxu0 0
    %4833 = vmatpush1.bf16.msra.mxu0 0
    %4834 = vmatprep.subr.bf16.mxu0 0
    %4835 = vmatpush1.bf16.msra.mxu0 0
    %4836 = vmatprep.subr.bf16.mxu0 0
    %4837 = vmatpush1.bf16.msra.mxu0 0
    %4838 = vmatprep.subr.bf16.mxu0 0
    %4839 = vmatpush1.bf16.msra.mxu0 %v4817
    %4840 = vmatprep.subr.bf16.mxu0 0
    %4841 = vmatpush1.bf16.msra.mxu0 %v4815
    %4842 = vmatprep.subr.bf16.mxu0 0
    %4843 = vmatpush2.bf16.msra.mxu0 0
    %4844 = vmatprep.subr.bf16.mxu0 0
    %4845 = vmatpush2.bf16.msra.mxu0 0
    %4846 = vmatprep.subr.bf16.mxu0 0
    %4847 = vmatpush2.bf16.msra.mxu0 0
    %4848 = vmatprep.subr.bf16.mxu0 0
    %4849 = vmatpush2.bf16.msra.mxu0 0
    %4850 = vmatprep.subr.bf16.mxu0 0
    %4851 = vmatpush2.bf16.msra.mxu0 0
    %4852 = vmatprep.subr.bf16.mxu0 0
    %4853 = vmatpush2.bf16.msra.mxu0 0
    %4854 = vmatprep.subr.bf16.mxu0 0
    %4855 = vmatpush2.bf16.msra.mxu0 0
    %4856 = vmatprep.subr.bf16.mxu0 0
    %4857 = vmatpush2.bf16.msra.mxu0 0
    %4858 = vmatprep.mubr.bf16.mxu0 0
    %4859 = vmatmul.mubr.bf16.gmra.mxu0 %v4821
    %v4860 = vpop.f32.mrf.mxu0
    %v4861 = vadd.f32 0.0, %v4860
    %v4862 = vpop.f32.mrf.mxu0
    %v4863 = vpop.f32.mrf.mxu0
    %v4864 = vadd.f32 0.0, %v4863
    %v4865 = vpop.f32.mrf.mxu0
    %4866 = vmatprep.mubr.bf16.mxu0 0
    %4867 = vmatmul.mubr.bf16.gmra.mxu0 %v4824
    %v4868 = vpop.f32.mrf.mxu0
    %v4869 = vadd.f32 0.0, %v4868
    %v4870 = vpop.f32.mrf.mxu0
    %v4871 = vpop.f32.mrf.mxu0
    %v4872 = vadd.f32 0.0, %v4871
    %v4873 = vpop.f32.mrf.mxu0
    %4874 = vdwg.mxu0
    %4879 = vrot.lane.b32.xlu0 %v4861, 16
    %v4880 = vpop.permute.xlu0 %4879
    %4881 = vrot.lane.b32.xlu0 %v4864, 16
    %v4882 = vpop.permute.xlu0 %4881
    %4883 = vrot.lane.b32.xlu0 %v4869, 16
    %v4884 = vpop.permute.xlu0 %4883
    %4885 = vrot.lane.b32.xlu0 %v4872, 16
    %v4886 = vpop.permute.xlu0 %4885
    %4891 = vst.msk [vmem:[#allocation4 + $0x20] sm:$0xff] %vm4129, %v4880
    %4892 = vst.msk [vmem:[#allocation4 + $0x28] sm:$0xff] %vm4129, %v4882
    %4893 = vst.msk [vmem:[#allocation4 + $0x30] sm:$0xff] %vm4129, %v4884
    %4894 = vst.msk [vmem:[#allocation4 + $0x38] sm:$0xff] %vm4129, %v4886
    %4895 = vrot.lane.b32.xlu0 %v3553, 104
    %v4896 = vpop.permute.xlu0 %4895
    %4897 = vrot.lane.b32.xlu0 %v3554, 104
    %v4898 = vpop.permute.xlu0 %4897
    %4899 = vrot.lane.b32.xlu0 %v3557, 104
    %v4900 = vpop.permute.xlu0 %4899
    %4901 = vrot.lane.b32.xlu0 %v3558, 104
    %v4902 = vpop.permute.xlu0 %4901
    %v4904 = vsel %vm3567, %v4896, 0
    %v4907 = vsel %vm3567, %v4898, 0
    %v4910 = vsel %vm3567, %v4900, 0
    %v4913 = vsel %vm3567, %v4902, 0
    %4915 = vmatprep.subr.bf16.mxu0 0
    %4916 = vmatpush1.bf16.xpose.msra.mxu0 0
    %4917 = vmatprep.subr.bf16.mxu0 0
    %4918 = vmatpush1.bf16.xpose.msra.mxu0 0
    %4919 = vmatprep.subr.bf16.mxu0 0
    %4920 = vmatpush1.bf16.xpose.msra.mxu0 0
    %4921 = vmatprep.subr.bf16.mxu0 0
    %4922 = vmatpush1.bf16.xpose.msra.mxu0 0
    %4923 = vmatprep.subr.bf16.mxu0 0
    %4924 = vmatpush1.bf16.xpose.msra.mxu0 0
    %4925 = vmatprep.subr.bf16.mxu0 0
    %4926 = vmatpush1.bf16.xpose.msra.mxu0 0
    %4927 = vmatprep.subr.bf16.mxu0 0
    %4928 = vmatpush1.bf16.xpose.msra.mxu0 %v4913
    %4929 = vmatprep.subr.bf16.mxu0 0
    %4930 = vmatpush1.bf16.xpose.msra.mxu0 %v4910
    %4931 = vmatprep.subr.bf16.mxu0 0
    %4932 = vmatpush2.bf16.xpose.msra.mxu0 0
    %4933 = vmatprep.subr.bf16.mxu0 0
    %4934 = vmatpush2.bf16.xpose.msra.mxu0 0
    %4935 = vmatprep.subr.bf16.mxu0 0
    %4936 = vmatpush2.bf16.xpose.msra.mxu0 0
    %4937 = vmatprep.subr.bf16.mxu0 0
    %4938 = vmatpush2.bf16.xpose.msra.mxu0 0
    %4939 = vmatprep.subr.bf16.mxu0 0
    %4940 = vmatpush2.bf16.xpose.msra.mxu0 0
    %4941 = vmatprep.subr.bf16.mxu0 0
    %4942 = vmatpush2.bf16.xpose.msra.mxu0 0
    %4943 = vmatprep.subr.bf16.mxu0 0
    %4944 = vmatpush2.bf16.xpose.msra.mxu0 0
    %4945 = vmatprep.subr.bf16.mxu0 0
    %4946 = vmatpush2.bf16.xpose.msra.mxu0 0
    %4947 = vmatprep.mubr.bf16.mxu0 0
    %4948 = vmatmul.mubr.bf16.gmra.mxu0 %v4904
    %v4949 = vpop.f32.mrf.mxu0
    %v4950 = vadd.f32 %v3566, %v4949
    %v4951 = vpop.f32.mrf.mxu0
    %v4952 = vpop.f32.mrf.mxu0
    %v4953 = vadd.f32 %v3566, %v4952
    %v4954 = vpop.f32.mrf.mxu0
    %4955 = vmatprep.mubr.bf16.mxu0 0
    %4956 = vmatmul.mubr.bf16.gmra.mxu0 %v4907
    %v4957 = vpop.f32.mrf.mxu0
    %v4958 = vadd.f32 %v3566, %v4957
    %v4959 = vpop.f32.mrf.mxu0
    %v4960 = vpop.f32.mrf.mxu0
    %v4961 = vadd.f32 %v3566, %v4960
    %v4962 = vpop.f32.mrf.mxu0
    %4963 = vdwg.mxu0
    %v4964 = vsel %vm2914, %v4950, -inf
    %4965 = vmax.xlane.f32.xlu0 %v4964
    %v4966 = vpop.xlane.xlu0 %4965
    %v4967 = vsel %vm2914, %v4953, -inf
    %4968 = vmax.xlane.f32.xlu0 %v4967
    %v4969 = vpop.xlane.xlu0 %4968
    %v4970 = vsel %vm2914, %v4958, -inf
    %4971 = vmax.xlane.f32.xlu0 %v4970
    %v4972 = vpop.xlane.xlu0 %4971
    %v4973 = vsel %vm2914, %v4961, -inf
    %4974 = vmax.xlane.f32.xlu0 %v4973
    %v4975 = vpop.xlane.xlu0 %4974
    %v4976 = vsub.f32 %v4950, %v4966
    %v4977 = vsub.f32 %v4953, %v4969
    %v4978 = vsub.f32 %v4958, %v4972
    %v4979 = vsub.f32 %v4961, %v4975
    %v4980 = vmul.f32 %v4976, 1.442695
    %v4981 = vpow.pop %v4980
    %v4982 = vmul.f32 %v4977, 1.442695
    %v4983 = vpow.pop %v4982
    %v4984 = vmul.f32 %v4978, 1.442695
    %v4985 = vpow.pop %v4984
    %v4986 = vmul.f32 %v4979, 1.442695
    %v4987 = vpow.pop %v4986
    %v4988 = vsel %vm2914, %v4981, 0.0
    %4989 = vadd.xlane.f32.xlu0 %v4988
    %v4990 = vpop.xlane.xlu0 %4989
    %v4991 = vsel %vm2914, %v4983, 0.0
    %4992 = vadd.xlane.f32.xlu0 %v4991
    %v4993 = vpop.xlane.xlu0 %4992
    %v4994 = vsel %vm2914, %v4985, 0.0
    %4995 = vadd.xlane.f32.xlu0 %v4994
    %v4996 = vpop.xlane.xlu0 %4995
    %v4997 = vsel %vm2914, %v4987, 0.0
    %4998 = vadd.xlane.f32.xlu0 %v4997
    %v4999 = vpop.xlane.xlu0 %4998
    %v5000 = vrcp.pop %v4990
    %v5001 = vrcp.pop %v4993
    %v5002 = vrcp.pop %v4996
    %v5003 = vrcp.pop %v4999
    %v5004 = vmul.f32 %v4981, %v5000
    %v5005 = vmul.f32 %v4983, %v5001
    %v5006 = vmul.f32 %v4985, %v5002
    %v5007 = vmul.f32 %v4987, %v5003
    %v5008 = vpack.c.bf16 %v5005, %v5004
    %v5009 = vpack.c.bf16 %v5007, %v5006
    %5010 = vrot.lane.b32.xlu0 %v3561, 104
    %v5011 = vpop.permute.xlu0 %5010
    %5012 = vrot.lane.b32.xlu0 %v3562, 104
    %v5013 = vpop.permute.xlu0 %5012
    %v5017 = vsel %vm2914, %v5008, 0
    %v5020 = vsel %vm2914, %v5009, 0
    %5022 = vmatprep.subr.bf16.mxu0 0
    %5023 = vmatpush1.bf16.msra.mxu0 0
    %5024 = vmatprep.subr.bf16.mxu0 0
    %5025 = vmatpush1.bf16.msra.mxu0 0
    %5026 = vmatprep.subr.bf16.mxu0 0
    %5027 = vmatpush1.bf16.msra.mxu0 0
    %5028 = vmatprep.subr.bf16.mxu0 0
    %5029 = vmatpush1.bf16.msra.mxu0 0
    %5030 = vmatprep.subr.bf16.mxu0 0
    %5031 = vmatpush1.bf16.msra.mxu0 0
    %5032 = vmatprep.subr.bf16.mxu0 0
    %5033 = vmatpush1.bf16.msra.mxu0 0
    %5034 = vmatprep.subr.bf16.mxu0 0
    %5035 = vmatpush1.bf16.msra.mxu0 %v5013
    %5036 = vmatprep.subr.bf16.mxu0 0
    %5037 = vmatpush1.bf16.msra.mxu0 %v5011
    %5038 = vmatprep.subr.bf16.mxu0 0
    %5039 = vmatpush2.bf16.msra.mxu0 0
    %5040 = vmatprep.subr.bf16.mxu0 0
    %5041 = vmatpush2.bf16.msra.mxu0 0
    %5042 = vmatprep.subr.bf16.mxu0 0
    %5043 = vmatpush2.bf16.msra.mxu0 0
    %5044 = vmatprep.subr.bf16.mxu0 0
    %5045 = vmatpush2.bf16.msra.mxu0 0
    %5046 = vmatprep.subr.bf16.mxu0 0
    %5047 = vmatpush2.bf16.msra.mxu0 0
    %5048 = vmatprep.subr.bf16.mxu0 0
    %5049 = vmatpush2.bf16.msra.mxu0 0
    %5050 = vmatprep.subr.bf16.mxu0 0
    %5051 = vmatpush2.bf16.msra.mxu0 0
    %5052 = vmatprep.subr.bf16.mxu0 0
    %5053 = vmatpush2.bf16.msra.mxu0 0
    %5054 = vmatprep.mubr.bf16.mxu0 0
    %5055 = vmatmul.mubr.bf16.gmra.mxu0 %v5017
    %v5056 = vpop.f32.mrf.mxu0
    %v5057 = vadd.f32 0.0, %v5056
    %v5058 = vpop.f32.mrf.mxu0
    %v5059 = vpop.f32.mrf.mxu0
    %v5060 = vadd.f32 0.0, %v5059
    %v5061 = vpop.f32.mrf.mxu0
    %5062 = vmatprep.mubr.bf16.mxu0 0
    %5063 = vmatmul.mubr.bf16.gmra.mxu0 %v5020
    %v5064 = vpop.f32.mrf.mxu0
    %v5065 = vadd.f32 0.0, %v5064
    %v5066 = vpop.f32.mrf.mxu0
    %v5067 = vpop.f32.mrf.mxu0
    %v5068 = vadd.f32 0.0, %v5067
    %v5069 = vpop.f32.mrf.mxu0
    %5070 = vdwg.mxu0
    %5075 = vrot.lane.b32.xlu0 %v5057, 24
    %v5076 = vpop.permute.xlu0 %5075
    %5077 = vrot.lane.b32.xlu0 %v5060, 24
    %v5078 = vpop.permute.xlu0 %5077
    %5079 = vrot.lane.b32.xlu0 %v5065, 24
    %v5080 = vpop.permute.xlu0 %5079
    %5081 = vrot.lane.b32.xlu0 %v5068, 24
    %v5082 = vpop.permute.xlu0 %5081
    %5087 = vst.msk [vmem:[#allocation4 + $0x20] sm:$0xff] %vm4326, %v5076
    %5088 = vst.msk [vmem:[#allocation4 + $0x28] sm:$0xff] %vm4326, %v5078
    %5089 = vst.msk [vmem:[#allocation4 + $0x30] sm:$0xff] %vm4326, %v5080
    %5090 = vst.msk [vmem:[#allocation4 + $0x38] sm:$0xff] %vm4326, %v5082
    %v5091 = vld [vmem:[#allocation4] sm:$0xff]
    %v5092 = vld [vmem:[#allocation4 + $0x8] sm:$0xff]
    %v5093 = vld [vmem:[#allocation4 + $0x10] sm:$0xff]
    %v5094 = vld [vmem:[#allocation4 + $0x18] sm:$0xff]
    %v5095 = vld [vmem:[#allocation4 + $0x20] sm:$0xff]
    %v5096 = vld [vmem:[#allocation4 + $0x28] sm:$0xff]
    %v5097 = vld [vmem:[#allocation4 + $0x30] sm:$0xff]
    %v5098 = vld [vmem:[#allocation4 + $0x38] sm:$0xff]
    %v5099 = vpack.c.bf16 %v5092, %v5091
    %v5100 = vpack.c.bf16 %v5094, %v5093
    %v5101 = vpack.c.bf16 %v5096, %v5095
    %v5102 = vpack.c.bf16 %v5098, %v5097
    %v5103 = vld [vmem:[%s37] sm:$0xf]
    %v5104 = vld [vmem:[%s37 + $0x4] sm:$0xf]
    %v5105 = vld [vmem:[%s37 + $0x8] sm:$0xf]
    %v5106 = vld [vmem:[%s37 + $0xc] sm:$0xf]
    %v5111 = vunpack.c.l.b16 %v5103
    %v5112 = vunpack.c.l.b16 %v5104
    %v5113 = vunpack.c.l.b16 %v5105
    %v5114 = vunpack.c.l.b16 %v5106
    %v5115 = vpack.c.b16 %v5112, %v5111
    %v5116 = vpack.c.b16 %v5114, %v5113
    %v5120 = vsel %vm2914, %v5099, 0
    %v5123 = vsel %vm2914, %v5100, 0
    %v5126 = vsel %vm2914, %v5101, 0
    %v5129 = vsel %vm2914, %v5102, 0
    %5131 = vmatprep.subr.bf16.mxu0 0
    %5132 = vmatpush1.bf16.msra.mxu0 0
    %5133 = vmatprep.subr.bf16.mxu0 0
    %5134 = vmatpush1.bf16.msra.mxu0 0
    %5135 = vmatprep.subr.bf16.mxu0 0
    %5136 = vmatpush1.bf16.msra.mxu0 0
    %5137 = vmatprep.subr.bf16.mxu0 0
    %5138 = vmatpush1.bf16.msra.mxu0 0
    %5139 = vmatprep.subr.bf16.mxu0 0
    %5140 = vmatpush1.bf16.msra.mxu0 0
    %5141 = vmatprep.subr.bf16.mxu0 0
    %5142 = vmatpush1.bf16.msra.mxu0 0
    %5143 = vmatprep.subr.bf16.mxu0 0
    %5144 = vmatpush1.bf16.msra.mxu0 %v5116
    %5145 = vmatprep.subr.bf16.mxu0 0
    %5146 = vmatpush1.bf16.msra.mxu0 %v5115
    %5147 = vmatprep.subr.bf16.mxu0 0
    %5148 = vmatpush2.bf16.msra.mxu0 0
    %5149 = vmatprep.subr.bf16.mxu0 0
    %5150 = vmatpush2.bf16.msra.mxu0 0
    %5151 = vmatprep.subr.bf16.mxu0 0
    %5152 = vmatpush2.bf16.msra.mxu0 0
    %5153 = vmatprep.subr.bf16.mxu0 0
    %5154 = vmatpush2.bf16.msra.mxu0 0
    %5155 = vmatprep.subr.bf16.mxu0 0
    %5156 = vmatpush2.bf16.msra.mxu0 0
    %5157 = vmatprep.subr.bf16.mxu0 0
    %5158 = vmatpush2.bf16.msra.mxu0 0
    %5159 = vmatprep.subr.bf16.mxu0 0
    %5160 = vmatpush2.bf16.msra.mxu0 0
    %5161 = vmatprep.subr.bf16.mxu0 0
    %5162 = vmatpush2.bf16.msra.mxu0 0
    %5163 = vmatprep.mubr.bf16.mxu0 0
    %5164 = vmatmul.mubr.bf16.gmra.mxu0 %v5120
    %v5165 = vpop.f32.mrf.mxu0
    %v5166 = vadd.f32 0.0, %v5165
    %v5167 = vpop.f32.mrf.mxu0
    %v5168 = vpop.f32.mrf.mxu0
    %v5169 = vadd.f32 0.0, %v5168
    %v5170 = vpop.f32.mrf.mxu0
    %5171 = vmatprep.mubr.bf16.mxu0 0
    %5172 = vmatmul.mubr.bf16.gmra.mxu0 %v5123
    %v5173 = vpop.f32.mrf.mxu0
    %v5174 = vadd.f32 0.0, %v5173
    %v5175 = vpop.f32.mrf.mxu0
    %v5176 = vpop.f32.mrf.mxu0
    %v5177 = vadd.f32 0.0, %v5176
    %v5178 = vpop.f32.mrf.mxu0
    %5179 = vmatprep.mubr.bf16.mxu0 0
    %5180 = vmatmul.mubr.bf16.gmra.mxu0 %v5126
    %v5181 = vpop.f32.mrf.mxu0
    %v5182 = vadd.f32 0.0, %v5181
    %v5183 = vpop.f32.mrf.mxu0
    %v5184 = vpop.f32.mrf.mxu0
    %v5185 = vadd.f32 0.0, %v5184
    %v5186 = vpop.f32.mrf.mxu0
    %5187 = vmatprep.mubr.bf16.mxu0 0
    %5188 = vmatmul.mubr.bf16.gmra.mxu0 %v5129
    %v5189 = vpop.f32.mrf.mxu0
    %v5190 = vadd.f32 0.0, %v5189
    %v5191 = vpop.f32.mrf.mxu0
    %v5192 = vpop.f32.mrf.mxu0
    %v5193 = vadd.f32 0.0, %v5192
    %v5194 = vpop.f32.mrf.mxu0
    %5195 = vdwg.mxu0
    %v5196 = vadd.f32 %v3142, %v5166
    %v5197 = vadd.f32 %v3143, %v5169
    %v5198 = vadd.f32 %v3144, %v5174
    %v5199 = vadd.f32 %v3145, %v5177
    %v5200 = vadd.f32 %v3146, %v5182
    %v5201 = vadd.f32 %v3147, %v5185
    %v5202 = vadd.f32 %v3148, %v5190
    %v5203 = vadd.f32 %v3149, %v5193
    %v5204 = vld [vmem:[%s39] sm:$0x1]
    %v5206 = vlaneseq
    %v5207 = vshrl.u32 %v5206, 7
    %v5208 = vsub.s32 0, %v5207
    %v5209 = vrot.slane %v5204, %v5208
    %v5211 = vadd.f32 %v5196, %v5209
    %v5212 = vadd.f32 %v5197, %v5209
    %v5213 = vadd.f32 %v5198, %v5209
    %v5214 = vadd.f32 %v5199, %v5209
    %v5215 = vadd.f32 %v5200, %v5209
    %v5216 = vadd.f32 %v5201, %v5209
    %v5217 = vadd.f32 %v5202, %v5209
    %v5218 = vadd.f32 %v5203, %v5209
    %v5219 = vld [vmem:[%s41] sm:$0x1]
    %v5220 = vld [vmem:[%s43] sm:$0x1]
    %v5221 = vsel %vm2914, %v5211, 0.0
    %5222 = vadd.xlane.f32.xlu0 %v5221
    %v5223 = vpop.xlane.xlu0 %5222
    %v5224 = vsel %vm2914, %v5212, 0.0
    %5225 = vadd.xlane.f32.xlu0 %v5224
    %v5226 = vpop.xlane.xlu0 %5225
    %v5227 = vsel %vm2914, %v5213, 0.0
    %5228 = vadd.xlane.f32.xlu0 %v5227
    %v5229 = vpop.xlane.xlu0 %5228
    %v5230 = vsel %vm2914, %v5214, 0.0
    %5231 = vadd.xlane.f32.xlu0 %v5230
    %v5232 = vpop.xlane.xlu0 %5231
    %v5233 = vsel %vm2914, %v5215, 0.0
    %5234 = vadd.xlane.f32.xlu0 %v5233
    %v5235 = vpop.xlane.xlu0 %5234
    %v5236 = vsel %vm2914, %v5216, 0.0
    %5237 = vadd.xlane.f32.xlu0 %v5236
    %v5238 = vpop.xlane.xlu0 %5237
    %v5239 = vsel %vm2914, %v5217, 0.0
    %5240 = vadd.xlane.f32.xlu0 %v5239
    %v5241 = vpop.xlane.xlu0 %5240
    %v5242 = vsel %vm2914, %v5218, 0.0
    %5243 = vadd.xlane.f32.xlu0 %v5242
    %v5244 = vpop.xlane.xlu0 %5243
    %v5245 = vmul.f32 %v5223, %v2927
    %v5246 = vmul.f32 %v5226, %v2927
    %v5247 = vmul.f32 %v5229, %v2927
    %v5248 = vmul.f32 %v5232, %v2927
    %v5249 = vmul.f32 %v5235, %v2927
    %v5250 = vmul.f32 %v5238, %v2927
    %v5251 = vmul.f32 %v5241, %v2927
    %v5252 = vmul.f32 %v5244, %v2927
    %v5253 = vsub.f32 %v5211, %v5245
    %v5254 = vsub.f32 %v5212, %v5246
    %v5255 = vsub.f32 %v5213, %v5247
    %v5256 = vsub.f32 %v5214, %v5248
    %v5257 = vsub.f32 %v5215, %v5249
    %v5258 = vsub.f32 %v5216, %v5250
    %v5259 = vsub.f32 %v5217, %v5251
    %v5260 = vsub.f32 %v5218, %v5252
    %v5261 = vmul.f32 %v5253, %v5253
    %v5262 = vmul.f32 %v5254, %v5254
    %v5263 = vmul.f32 %v5255, %v5255
    %v5264 = vmul.f32 %v5256, %v5256
    %v5265 = vmul.f32 %v5257, %v5257
    %v5266 = vmul.f32 %v5258, %v5258
    %v5267 = vmul.f32 %v5259, %v5259
    %v5268 = vmul.f32 %v5260, %v5260
    %v5269 = vsel %vm2914, %v5261, 0.0
    %5270 = vadd.xlane.f32.xlu0 %v5269
    %v5271 = vpop.xlane.xlu0 %5270
    %v5272 = vsel %vm2914, %v5262, 0.0
    %5273 = vadd.xlane.f32.xlu0 %v5272
    %v5274 = vpop.xlane.xlu0 %5273
    %v5275 = vsel %vm2914, %v5263, 0.0
    %5276 = vadd.xlane.f32.xlu0 %v5275
    %v5277 = vpop.xlane.xlu0 %5276
    %v5278 = vsel %vm2914, %v5264, 0.0
    %5279 = vadd.xlane.f32.xlu0 %v5278
    %v5280 = vpop.xlane.xlu0 %5279
    %v5281 = vsel %vm2914, %v5265, 0.0
    %5282 = vadd.xlane.f32.xlu0 %v5281
    %v5283 = vpop.xlane.xlu0 %5282
    %v5284 = vsel %vm2914, %v5266, 0.0
    %5285 = vadd.xlane.f32.xlu0 %v5284
    %v5286 = vpop.xlane.xlu0 %5285
    %v5287 = vsel %vm2914, %v5267, 0.0
    %5288 = vadd.xlane.f32.xlu0 %v5287
    %v5289 = vpop.xlane.xlu0 %5288
    %v5290 = vsel %vm2914, %v5268, 0.0
    %5291 = vadd.xlane.f32.xlu0 %v5290
    %v5292 = vpop.xlane.xlu0 %5291
    %v5293 = vmul.f32 %v5271, %v2927
    %v5294 = vmul.f32 %v5274, %v2927
    %v5295 = vmul.f32 %v5277, %v2927
    %v5296 = vmul.f32 %v5280, %v2927
    %v5297 = vmul.f32 %v5283, %v2927
    %v5298 = vmul.f32 %v5286, %v2927
    %v5299 = vmul.f32 %v5289, %v2927
    %v5300 = vmul.f32 %v5292, %v2927
    %v5301 = vadd.f32 %v5293, 1e-06
    %v5302 = vadd.f32 %v5294, 1e-06
    %v5303 = vadd.f32 %v5295, 1e-06
    %v5304 = vadd.f32 %v5296, 1e-06
    %v5305 = vadd.f32 %v5297, 1e-06
    %v5306 = vadd.f32 %v5298, 1e-06
    %v5307 = vadd.f32 %v5299, 1e-06
    %v5308 = vadd.f32 %v5300, 1e-06
    %v5309 = vrsqrt.pop %v5301
    %v5310 = vrsqrt.pop %v5302
    %v5311 = vrsqrt.pop %v5303
    %v5312 = vrsqrt.pop %v5304
    %v5313 = vrsqrt.pop %v5305
    %v5314 = vrsqrt.pop %v5306
    %v5315 = vrsqrt.pop %v5307
    %v5316 = vrsqrt.pop %v5308
    %v5317 = vmul.f32 %v5253, %v5309
    %v5318 = vmul.f32 %v5254, %v5310
    %v5319 = vmul.f32 %v5255, %v5311
    %v5320 = vmul.f32 %v5256, %v5312
    %v5321 = vmul.f32 %v5257, %v5313
    %v5322 = vmul.f32 %v5258, %v5314
    %v5323 = vmul.f32 %v5259, %v5315
    %v5324 = vmul.f32 %v5260, %v5316
    %v5326 = vlaneseq
    %v5327 = vshrl.u32 %v5326, 7
    %v5328 = vsub.s32 0, %v5327
    %v5329 = vrot.slane %v5219, %v5328
    %v5331 = vmul.f32 %v5317, %v5329
    %v5332 = vmul.f32 %v5318, %v5329
    %v5333 = vmul.f32 %v5319, %v5329
    %v5334 = vmul.f32 %v5320, %v5329
    %v5335 = vmul.f32 %v5321, %v5329
    %v5336 = vmul.f32 %v5322, %v5329
    %v5337 = vmul.f32 %v5323, %v5329
    %v5338 = vmul.f32 %v5324, %v5329
    %v5340 = vlaneseq
    %v5341 = vshrl.u32 %v5340, 7
    %v5342 = vsub.s32 0, %v5341
    %v5343 = vrot.slane %v5220, %v5342
    %v5345 = vadd.f32 %v5331, %v5343
    %v5346 = vadd.f32 %v5332, %v5343
    %v5347 = vadd.f32 %v5333, %v5343
    %v5348 = vadd.f32 %v5334, %v5343
    %v5349 = vadd.f32 %v5335, %v5343
    %v5350 = vadd.f32 %v5336, %v5343
    %v5351 = vadd.f32 %v5337, %v5343
    %v5352 = vadd.f32 %v5338, %v5343
    %v5353 = vpack.c.bf16 %v5346, %v5345
    %v5354 = vpack.c.bf16 %v5348, %v5347
    %v5355 = vpack.c.bf16 %v5350, %v5349
    %v5356 = vpack.c.bf16 %v5352, %v5351
    %v5357 = vld [vmem:[%s45] sm:$0xf]
    %v5358 = vld [vmem:[%s45 + $0x4] sm:$0xf]
    %v5359 = vld [vmem:[%s45 + $0x8] sm:$0xf]
    %v5360 = vld [vmem:[%s45 + $0xc] sm:$0xf]
    %v5361 = vld [vmem:[%s47] sm:$0x1]
    %v5363 = vlaneseq
    %v5364 = vshrl.u32 %v5363, 7
    %v5365 = vsub.s32 0, %v5364
    %v5366 = vrot.slane %v5361, %v5365
    %v5372 = vunpack.c.l.b16 %v5357
    %v5373 = vunpack.c.l.b16 %v5358
    %v5374 = vunpack.c.l.b16 %v5359
    %v5375 = vunpack.c.l.b16 %v5360
    %v5376 = vpack.c.b16 %v5373, %v5372
    %v5377 = vpack.c.b16 %v5375, %v5374
    %v5381 = vsel %vm2914, %v5353, 0
    %v5384 = vsel %vm2914, %v5354, 0
    %v5387 = vsel %vm2914, %v5355, 0
    %v5390 = vsel %vm2914, %v5356, 0
    %5392 = vmatprep.subr.bf16.mxu0 0
    %5393 = vmatpush1.bf16.msra.mxu0 0
    %5394 = vmatprep.subr.bf16.mxu0 0
    %5395 = vmatpush1.bf16.msra.mxu0 0
    %5396 = vmatprep.subr.bf16.mxu0 0
    %5397 = vmatpush1.bf16.msra.mxu0 0
    %5398 = vmatprep.subr.bf16.mxu0 0
    %5399 = vmatpush1.bf16.msra.mxu0 0
    %5400 = vmatprep.subr.bf16.mxu0 0
    %5401 = vmatpush1.bf16.msra.mxu0 0
    %5402 = vmatprep.subr.bf16.mxu0 0
    %5403 = vmatpush1.bf16.msra.mxu0 0
    %5404 = vmatprep.subr.bf16.mxu0 0
    %5405 = vmatpush1.bf16.msra.mxu0 %v5377
    %5406 = vmatprep.subr.bf16.mxu0 0
    %5407 = vmatpush1.bf16.msra.mxu0 %v5376
    %5408 = vmatprep.subr.bf16.mxu0 0
    %5409 = vmatpush2.bf16.msra.mxu0 0
    %5410 = vmatprep.subr.bf16.mxu0 0
    %5411 = vmatpush2.bf16.msra.mxu0 0
    %5412 = vmatprep.subr.bf16.mxu0 0
    %5413 = vmatpush2.bf16.msra.mxu0 0
    %5414 = vmatprep.subr.bf16.mxu0 0
    %5415 = vmatpush2.bf16.msra.mxu0 0
    %5416 = vmatprep.subr.bf16.mxu0 0
    %5417 = vmatpush2.bf16.msra.mxu0 0
    %5418 = vmatprep.subr.bf16.mxu0 0
    %5419 = vmatpush2.bf16.msra.mxu0 0
    %5420 = vmatprep.subr.bf16.mxu0 0
    %5421 = vmatpush2.bf16.msra.mxu0 0
    %5422 = vmatprep.subr.bf16.mxu0 0
    %5423 = vmatpush2.bf16.msra.mxu0 0
    %5424 = vmatprep.mubr.bf16.mxu0 0
    %5425 = vmatmul.mubr.bf16.gmra.mxu0 %v5381
    %v5426 = vpop.f32.mrf.mxu0
    %v5427 = vadd.f32 %v5366, %v5426
    %v5428 = vpop.f32.mrf.mxu0
    %v5429 = vpop.f32.mrf.mxu0
    %v5430 = vadd.f32 %v5366, %v5429
    %v5431 = vpop.f32.mrf.mxu0
    %5432 = vmatprep.mubr.bf16.mxu0 0
    %5433 = vmatmul.mubr.bf16.gmra.mxu0 %v5384
    %v5434 = vpop.f32.mrf.mxu0
    %v5435 = vadd.f32 %v5366, %v5434
    %v5436 = vpop.f32.mrf.mxu0
    %v5437 = vpop.f32.mrf.mxu0
    %v5438 = vadd.f32 %v5366, %v5437
    %v5439 = vpop.f32.mrf.mxu0
    %5440 = vmatprep.mubr.bf16.mxu0 0
    %5441 = vmatmul.mubr.bf16.gmra.mxu0 %v5387
    %v5442 = vpop.f32.mrf.mxu0
    %v5443 = vadd.f32 %v5366, %v5442
    %v5444 = vpop.f32.mrf.mxu0
    %v5445 = vpop.f32.mrf.mxu0
    %v5446 = vadd.f32 %v5366, %v5445
    %v5447 = vpop.f32.mrf.mxu0
    %5448 = vmatprep.mubr.bf16.mxu0 0
    %5449 = vmatmul.mubr.bf16.gmra.mxu0 %v5390
    %v5450 = vpop.f32.mrf.mxu0
    %v5451 = vadd.f32 %v5366, %v5450
    %v5452 = vpop.f32.mrf.mxu0
    %v5453 = vpop.f32.mrf.mxu0
    %v5454 = vadd.f32 %v5366, %v5453
    %v5455 = vpop.f32.mrf.mxu0
    %5456 = vdwg.mxu0
    %v5457 = vmul.f32 %v5427, 0.5
    %v5458 = vmul.f32 %v5430, 0.5
    %v5459 = vmul.f32 %v5435, 0.5
    %v5460 = vmul.f32 %v5438, 0.5
    %v5461 = vmul.f32 %v5443, 0.5
    %v5462 = vmul.f32 %v5446, 0.5
    %v5463 = vmul.f32 %v5451, 0.5
    %v5464 = vmul.f32 %v5454, 0.5
    %v5465 = vmul.f32 %v5427, 0.70710677
    %v5466 = vmul.f32 %v5430, 0.70710677
    %v5467 = vmul.f32 %v5435, 0.70710677
    %v5468 = vmul.f32 %v5438, 0.70710677
    %v5469 = vmul.f32 %v5443, 0.70710677
    %v5470 = vmul.f32 %v5446, 0.70710677
    %v5471 = vmul.f32 %v5451, 0.70710677
    %v5472 = vmul.f32 %v5454, 0.70710677
    %v5473 = vand.u32 2147483647, %v5465
    %v5474 = vand.u32 2147483647, %v5466
    %v5475 = vand.u32 2147483647, %v5467
    %v5476 = vand.u32 2147483647, %v5468
    %v5477 = vand.u32 2147483647, %v5469
    %v5478 = vand.u32 2147483647, %v5470
    %v5479 = vand.u32 2147483647, %v5471
    %v5480 = vand.u32 2147483647, %v5472
    %v5481 = vmul.f32 %v5473, 0.3275911
    %v5482 = vmul.f32 %v5474, 0.3275911
    %v5483 = vmul.f32 %v5475, 0.3275911
    %v5484 = vmul.f32 %v5476, 0.3275911
    %v5485 = vmul.f32 %v5477, 0.3275911
    %v5486 = vmul.f32 %v5478, 0.3275911
    %v5487 = vmul.f32 %v5479, 0.3275911
    %v5488 = vmul.f32 %v5480, 0.3275911
    %v5489 = vadd.f32 %v5481, 1.0
    %v5490 = vadd.f32 %v5482, 1.0
    %v5491 = vadd.f32 %v5483, 1.0
    %v5492 = vadd.f32 %v5484, 1.0
    %v5493 = vadd.f32 %v5485, 1.0
    %v5494 = vadd.f32 %v5486, 1.0
    %v5495 = vadd.f32 %v5487, 1.0
    %v5496 = vadd.f32 %v5488, 1.0
    %v5497 = vrcp.pop %v5489
    %v5498 = vrcp.pop %v5490
    %v5499 = vrcp.pop %v5491
    %v5500 = vrcp.pop %v5492
    %v5501 = vrcp.pop %v5493
    %v5502 = vrcp.pop %v5494
    %v5503 = vrcp.pop %v5495
    %v5504 = vrcp.pop %v5496
    %v5505 = vmul.f32 %v5497, 1.0614054
    %v5506 = vmul.f32 %v5498, 1.0614054
    %v5507 = vmul.f32 %v5499, 1.0614054
    %v5508 = vmul.f32 %v5500, 1.0614054
    %v5509 = vmul.f32 %v5501, 1.0614054
    %v5510 = vmul.f32 %v5502, 1.0614054
    %v5511 = vmul.f32 %v5503, 1.0614054
    %v5512 = vmul.f32 %v5504, 1.0614054
    %v5513 = vsub.f32 %v5505, 1.4531521
    %v5514 = vsub.f32 %v5506, 1.4531521
    %v5515 = vsub.f32 %v5507, 1.4531521
    %v5516 = vsub.f32 %v5508, 1.4531521
    %v5517 = vsub.f32 %v5509, 1.4531521
    %v5518 = vsub.f32 %v5510, 1.4531521
    %v5519 = vsub.f32 %v5511, 1.4531521
    %v5520 = vsub.f32 %v5512, 1.4531521
    %v5521 = vmul.f32 %v5513, %v5497
    %v5522 = vmul.f32 %v5514, %v5498
    %v5523 = vmul.f32 %v5515, %v5499
    %v5524 = vmul.f32 %v5516, %v5500
    %v5525 = vmul.f32 %v5517, %v5501
    %v5526 = vmul.f32 %v5518, %v5502
    %v5527 = vmul.f32 %v5519, %v5503
    %v5528 = vmul.f32 %v5520, %v5504
    %v5529 = vadd.f32 %v5521, 1.4214138
    %v5530 = vadd.f32 %v5522, 1.4214138
    %v5531 = vadd.f32 %v5523, 1.4214138
    %v5532 = vadd.f32 %v5524, 1.4214138
    %v5533 = vadd.f32 %v5525, 1.4214138
    %v5534 = vadd.f32 %v5526, 1.4214138
    %v5535 = vadd.f32 %v5527, 1.4214138
    %v5536 = vadd.f32 %v5528, 1.4214138
    %v5537 = vmul.f32 %v5529, %v5497
    %v5538 = vmul.f32 %v5530, %v5498
    %v5539 = vmul.f32 %v5531, %v5499
    %v5540 = vmul.f32 %v5532, %v5500
    %v5541 = vmul.f32 %v5533, %v5501
    %v5542 = vmul.f32 %v5534, %v5502
    %v5543 = vmul.f32 %v5535, %v5503
    %v5544 = vmul.f32 %v5536, %v5504
    %v5545 = vsub.f32 %v5537, 0.28449672
    %v5546 = vsub.f32 %v5538, 0.28449672
    %v5547 = vsub.f32 %v5539, 0.28449672
    %v5548 = vsub.f32 %v5540, 0.28449672
    %v5549 = vsub.f32 %v5541, 0.28449672
    %v5550 = vsub.f32 %v5542, 0.28449672
    %v5551 = vsub.f32 %v5543, 0.28449672
    %v5552 = vsub.f32 %v5544, 0.28449672
    %v5553 = vmul.f32 %v5545, %v5497
    %v5554 = vmul.f32 %v5546, %v5498
    %v5555 = vmul.f32 %v5547, %v5499
    %v5556 = vmul.f32 %v5548, %v5500
    %v5557 = vmul.f32 %v5549, %v5501
    %v5558 = vmul.f32 %v5550, %v5502
    %v5559 = vmul.f32 %v5551, %v5503
    %v5560 = vmul.f32 %v5552, %v5504
    %v5561 = vadd.f32 %v5553, 0.2548296
    %v5562 = vadd.f32 %v5554, 0.2548296
    %v5563 = vadd.f32 %v5555, 0.2548296
    %v5564 = vadd.f32 %v5556, 0.2548296
    %v5565 = vadd.f32 %v5557, 0.2548296
    %v5566 = vadd.f32 %v5558, 0.2548296
    %v5567 = vadd.f32 %v5559, 0.2548296
    %v5568 = vadd.f32 %v5560, 0.2548296
    %v5569 = vmul.f32 %v5561, %v5497
    %v5570 = vmul.f32 %v5562, %v5498
    %v5571 = vmul.f32 %v5563, %v5499
    %v5572 = vmul.f32 %v5564, %v5500
    %v5573 = vmul.f32 %v5565, %v5501
    %v5574 = vmul.f32 %v5566, %v5502
    %v5575 = vmul.f32 %v5567, %v5503
    %v5576 = vmul.f32 %v5568, %v5504
    %v5577 = vsub.f32 0.0, %v5473
    %v5578 = vsub.f32 0.0, %v5474
    %v5579 = vsub.f32 0.0, %v5475
    %v5580 = vsub.f32 0.0, %v5476
    %v5581 = vsub.f32 0.0, %v5477
    %v5582 = vsub.f32 0.0, %v5478
    %v5583 = vsub.f32 0.0, %v5479
    %v5584 = vsub.f32 0.0, %v5480
    %v5585 = vmul.f32 %v5577, %v5473
    %v5586 = vmul.f32 %v5578, %v5474
    %v5587 = vmul.f32 %v5579, %v5475
    %v5588 = vmul.f32 %v5580, %v5476
    %v5589 = vmul.f32 %v5581, %v5477
    %v5590 = vmul.f32 %v5582, %v5478
    %v5591 = vmul.f32 %v5583, %v5479
    %v5592 = vmul.f32 %v5584, %v5480
    %v5593 = vmul.f32 %v5585, 1.442695
    %v5594 = vpow.pop %v5593
    %v5595 = vmul.f32 %v5586, 1.442695
    %v5596 = vpow.pop %v5595
    %v5597 = vmul.f32 %v5587, 1.442695
    %v5598 = vpow.pop %v5597
    %v5599 = vmul.f32 %v5588, 1.442695
    %v5600 = vpow.pop %v5599
    %v5601 = vmul.f32 %v5589, 1.442695
    %v5602 = vpow.pop %v5601
    %v5603 = vmul.f32 %v5590, 1.442695
    %v5604 = vpow.pop %v5603
    %v5605 = vmul.f32 %v5591, 1.442695
    %v5606 = vpow.pop %v5605
    %v5607 = vmul.f32 %v5592, 1.442695
    %v5608 = vpow.pop %v5607
    %v5609 = vmul.f32 %v5569, %v5594
    %v5610 = vmul.f32 %v5570, %v5596
    %v5611 = vmul.f32 %v5571, %v5598
    %v5612 = vmul.f32 %v5572, %v5600
    %v5613 = vmul.f32 %v5573, %v5602
    %v5614 = vmul.f32 %v5574, %v5604
    %v5615 = vmul.f32 %v5575, %v5606
    %v5616 = vmul.f32 %v5576, %v5608
    %v5617 = vsub.f32 1.0, %v5609
    %v5618 = vsub.f32 1.0, %v5610
    %v5619 = vsub.f32 1.0, %v5611
    %v5620 = vsub.f32 1.0, %v5612
    %v5621 = vsub.f32 1.0, %v5613
    %v5622 = vsub.f32 1.0, %v5614
    %v5623 = vsub.f32 1.0, %v5615
    %v5624 = vsub.f32 1.0, %v5616
    %vm5625 = vcmp.ge.f32.partialorder %v5465, 0.0
    %vm5626 = vcmp.ge.f32.partialorder %v5466, 0.0
    %vm5627 = vcmp.ge.f32.partialorder %v5467, 0.0
    %vm5628 = vcmp.ge.f32.partialorder %v5468, 0.0
    %vm5629 = vcmp.ge.f32.partialorder %v5469, 0.0
    %vm5630 = vcmp.ge.f32.partialorder %v5470, 0.0
    %vm5631 = vcmp.ge.f32.partialorder %v5471, 0.0
    %vm5632 = vcmp.ge.f32.partialorder %v5472, 0.0
    %v5633 = vsub.f32 0.0, %v5617
    %v5634 = vsub.f32 0.0, %v5618
    %v5635 = vsub.f32 0.0, %v5619
    %v5636 = vsub.f32 0.0, %v5620
    %v5637 = vsub.f32 0.0, %v5621
    %v5638 = vsub.f32 0.0, %v5622
    %v5639 = vsub.f32 0.0, %v5623
    %v5640 = vsub.f32 0.0, %v5624
    %v5641 = vsel %vm5625, %v5617, %v5633
    %v5642 = vsel %vm5626, %v5618, %v5634
    %v5643 = vsel %vm5627, %v5619, %v5635
    %v5644 = vsel %vm5628, %v5620, %v5636
    %v5645 = vsel %vm5629, %v5621, %v5637
    %v5646 = vsel %vm5630, %v5622, %v5638
    %v5647 = vsel %vm5631, %v5623, %v5639
    %v5648 = vsel %vm5632, %v5624, %v5640
    %v5649 = vadd.f32 %v5641, 1.0
    %v5650 = vadd.f32 %v5642, 1.0
    %v5651 = vadd.f32 %v5643, 1.0
    %v5652 = vadd.f32 %v5644, 1.0
    %v5653 = vadd.f32 %v5645, 1.0
    %v5654 = vadd.f32 %v5646, 1.0
    %v5655 = vadd.f32 %v5647, 1.0
    %v5656 = vadd.f32 %v5648, 1.0
    %v5657 = vmul.f32 %v5457, %v5649
    %v5658 = vmul.f32 %v5458, %v5650
    %v5659 = vmul.f32 %v5459, %v5651
    %v5660 = vmul.f32 %v5460, %v5652
    %v5661 = vmul.f32 %v5461, %v5653
    %v5662 = vmul.f32 %v5462, %v5654
    %v5663 = vmul.f32 %v5463, %v5655
    %v5664 = vmul.f32 %v5464, %v5656
    %v5665 = vpack.c.bf16 %v5658, %v5657
    %v5666 = vpack.c.bf16 %v5660, %v5659
    %v5667 = vpack.c.bf16 %v5662, %v5661
    %v5668 = vpack.c.bf16 %v5664, %v5663
    %v5669 = vld [vmem:[%s49] sm:$0xf]
    %v5670 = vld [vmem:[%s49 + $0x4] sm:$0xf]
    %v5671 = vld [vmem:[%s49 + $0x8] sm:$0xf]
    %v5672 = vld [vmem:[%s49 + $0xc] sm:$0xf]
    %v5673 = vld [vmem:[%s49 + $0x10] sm:$0xf]
    %v5674 = vld [vmem:[%s49 + $0x14] sm:$0xf]
    %v5675 = vld [vmem:[%s49 + $0x18] sm:$0xf]
    %v5676 = vld [vmem:[%s49 + $0x1c] sm:$0xf]
    %v5677 = vld [vmem:[%s49 + $0x20] sm:$0xf]
    %v5678 = vld [vmem:[%s49 + $0x24] sm:$0xf]
    %v5679 = vld [vmem:[%s49 + $0x28] sm:$0xf]
    %v5680 = vld [vmem:[%s49 + $0x2c] sm:$0xf]
    %v5681 = vld [vmem:[%s49 + $0x30] sm:$0xf]
    %v5682 = vld [vmem:[%s49 + $0x34] sm:$0xf]
    %v5683 = vld [vmem:[%s49 + $0x38] sm:$0xf]
    %v5684 = vld [vmem:[%s49 + $0x3c] sm:$0xf]
    %v5701 = vunpack.c.l.b16 %v5669
    %v5702 = vunpack.c.l.b16 %v5670
    %v5703 = vunpack.c.l.b16 %v5671
    %v5704 = vunpack.c.l.b16 %v5672
    %v5705 = vunpack.c.l.b16 %v5673
    %v5706 = vunpack.c.l.b16 %v5674
    %v5707 = vunpack.c.l.b16 %v5675
    %v5708 = vunpack.c.l.b16 %v5676
    %v5709 = vunpack.c.l.b16 %v5677
    %v5710 = vunpack.c.l.b16 %v5678
    %v5711 = vunpack.c.l.b16 %v5679
    %v5712 = vunpack.c.l.b16 %v5680
    %v5713 = vunpack.c.l.b16 %v5681
    %v5714 = vunpack.c.l.b16 %v5682
    %v5715 = vunpack.c.l.b16 %v5683
    %v5716 = vunpack.c.l.b16 %v5684
    %v5717 = vpack.c.b16 %v5702, %v5701
    %v5718 = vpack.c.b16 %v5704, %v5703
    %v5719 = vpack.c.b16 %v5706, %v5705
    %v5720 = vpack.c.b16 %v5708, %v5707
    %v5721 = vpack.c.b16 %v5710, %v5709
    %v5722 = vpack.c.b16 %v5712, %v5711
    %v5723 = vpack.c.b16 %v5714, %v5713
    %v5724 = vpack.c.b16 %v5716, %v5715
    %5733 = vmatprep.subr.bf16.mxu0 0
    %5734 = vmatpush1.bf16.msra.mxu0 %v5724
    %5735 = vmatprep.subr.bf16.mxu0 0
    %5736 = vmatpush1.bf16.msra.mxu0 %v5723
    %5737 = vmatprep.subr.bf16.mxu0 0
    %5738 = vmatpush1.bf16.msra.mxu0 %v5722
    %5739 = vmatprep.subr.bf16.mxu0 0
    %5740 = vmatpush1.bf16.msra.mxu0 %v5721
    %5741 = vmatprep.subr.bf16.mxu0 0
    %5742 = vmatpush1.bf16.msra.mxu0 %v5720
    %5743 = vmatprep.subr.bf16.mxu0 0
    %5744 = vmatpush1.bf16.msra.mxu0 %v5719
    %5745 = vmatprep.subr.bf16.mxu0 0
    %5746 = vmatpush1.bf16.msra.mxu0 %v5718
    %5747 = vmatprep.subr.bf16.mxu0 0
    %5748 = vmatpush1.bf16.msra.mxu0 %v5717
    %5749 = vmatprep.subr.bf16.mxu0 0
    %5750 = vmatpush2.bf16.msra.mxu0 0
    %5751 = vmatprep.subr.bf16.mxu0 0
    %5752 = vmatpush2.bf16.msra.mxu0 0
    %5753 = vmatprep.subr.bf16.mxu0 0
    %5754 = vmatpush2.bf16.msra.mxu0 0
    %5755 = vmatprep.subr.bf16.mxu0 0
    %5756 = vmatpush2.bf16.msra.mxu0 0
    %5757 = vmatprep.subr.bf16.mxu0 0
    %5758 = vmatpush2.bf16.msra.mxu0 0
    %5759 = vmatprep.subr.bf16.mxu0 0
    %5760 = vmatpush2.bf16.msra.mxu0 0
    %5761 = vmatprep.subr.bf16.mxu0 0
    %5762 = vmatpush2.bf16.msra.mxu0 0
    %5763 = vmatprep.subr.bf16.mxu0 0
    %5764 = vmatpush2.bf16.msra.mxu0 0
    %5765 = vmatprep.mubr.bf16.mxu0 0
    %5766 = vmatmul.mubr.bf16.gmra.mxu0 %v5665
    %v5767 = vpop.f32.mrf.mxu0
    %v5768 = vadd.f32 0.0, %v5767
    %v5769 = vpop.f32.mrf.mxu0
    %v5770 = vpop.f32.mrf.mxu0
    %v5771 = vadd.f32 0.0, %v5770
    %v5772 = vpop.f32.mrf.mxu0
    %5773 = vmatprep.mubr.bf16.mxu0 0
    %5774 = vmatmul.mubr.bf16.gmra.mxu0 %v5666
    %v5775 = vpop.f32.mrf.mxu0
    %v5776 = vadd.f32 0.0, %v5775
    %v5777 = vpop.f32.mrf.mxu0
    %v5778 = vpop.f32.mrf.mxu0
    %v5779 = vadd.f32 0.0, %v5778
    %v5780 = vpop.f32.mrf.mxu0
    %5781 = vmatprep.mubr.bf16.mxu0 0
    %5782 = vmatmul.mubr.bf16.gmra.mxu0 %v5667
    %v5783 = vpop.f32.mrf.mxu0
    %v5784 = vadd.f32 0.0, %v5783
    %v5785 = vpop.f32.mrf.mxu0
    %v5786 = vpop.f32.mrf.mxu0
    %v5787 = vadd.f32 0.0, %v5786
    %v5788 = vpop.f32.mrf.mxu0
    %5789 = vmatprep.mubr.bf16.mxu0 0
    %5790 = vmatmul.mubr.bf16.gmra.mxu0 %v5668
    %v5791 = vpop.f32.mrf.mxu0
    %v5792 = vadd.f32 0.0, %v5791
    %v5793 = vpop.f32.mrf.mxu0
    %v5794 = vpop.f32.mrf.mxu0
    %v5795 = vadd.f32 0.0, %v5794
    %v5796 = vpop.f32.mrf.mxu0
    %5797 = vdwg.mxu0
    %v5798 = vadd.f32 %v5211, %v5768
    %v5799 = vadd.f32 %v5212, %v5771
    %v5800 = vadd.f32 %v5213, %v5776
    %v5801 = vadd.f32 %v5214, %v5779
    %v5802 = vadd.f32 %v5215, %v5784
    %v5803 = vadd.f32 %v5216, %v5787
    %v5804 = vadd.f32 %v5217, %v5792
    %v5805 = vadd.f32 %v5218, %v5795
    %v5806 = vld [vmem:[%s51] sm:$0x1]
    %v5808 = vlaneseq
    %v5809 = vshrl.u32 %v5808, 7
    %v5810 = vsub.s32 0, %v5809
    %v5811 = vrot.slane %v5806, %v5810
    %v5813 = vadd.f32 %v5798, %v5811
    %v5814 = vadd.f32 %v5799, %v5811
    %v5815 = vadd.f32 %v5800, %v5811
    %v5816 = vadd.f32 %v5801, %v5811
    %v5817 = vadd.f32 %v5802, %v5811
    %v5818 = vadd.f32 %v5803, %v5811
    %v5819 = vadd.f32 %v5804, %v5811
    %v5820 = vadd.f32 %v5805, %v5811
    %5821 = vst.msk [vmem:[%s71] sm:$0xff] %vm2914, %v5813
    %5822 = vst.msk [vmem:[%s71 + $0x8] sm:$0xff] %vm2914, %v5814
    %5823 = vst.msk [vmem:[%s71 + $0x10] sm:$0x1] %vm3109, %v5815
    %s5824 = scalar_lea.vmem %s71, 24
    %5825 = vst.msk [vmem:[%s5824] sm:$0xff] %vm2914, %v5817
    %5826 = vst.msk [vmem:[%s5824 + $0x8] sm:$0xff] %vm2914, %v5818
    %5827 = vst.msk [vmem:[%s5824 + $0x10] sm:$0x1] %vm3109, %v5819
    %v5828 = vpack.c.bf16 %v5814, %v5813
    %v5829 = vpack.c.bf16 %v5816, %v5815
    %v5830 = vpack.c.bf16 %v5818, %v5817
    %v5831 = vpack.c.bf16 %v5820, %v5819
    %v5832 = vld [vmem:[%s53] sm:$0xf]
    %v5833 = vld [vmem:[%s53 + $0x4] sm:$0xf]
    %v5834 = vld [vmem:[%s53 + $0x8] sm:$0xf]
    %v5835 = vld [vmem:[%s53 + $0xc] sm:$0xf]
    %v5836 = vld [vmem:[%s55] sm:$0x1]
    %v5838 = vlaneseq
    %v5839 = vshrl.u32 %v5838, 7
    %v5840 = vsub.s32 0, %v5839
    %v5841 = vrot.slane %v5836, %v5840
    %v5847 = vunpack.c.l.b16 %v5832
    %v5848 = vunpack.c.l.b16 %v5833
    %v5849 = vunpack.c.l.b16 %v5834
    %v5850 = vunpack.c.l.b16 %v5835
    %v5851 = vpack.c.b16 %v5848, %v5847
    %v5852 = vpack.c.b16 %v5850, %v5849
    %v5856 = vsel %vm2914, %v5828, 0
    %v5859 = vsel %vm2914, %v5829, 0
    %v5862 = vsel %vm2914, %v5830, 0
    %v5865 = vsel %vm2914, %v5831, 0
    %5867 = vmatprep.subr.bf16.mxu0 0
    %5868 = vmatpush1.bf16.msra.mxu0 0
    %5869 = vmatprep.subr.bf16.mxu0 0
    %5870 = vmatpush1.bf16.msra.mxu0 0
    %5871 = vmatprep.subr.bf16.mxu0 0
    %5872 = vmatpush1.bf16.msra.mxu0 0
    %5873 = vmatprep.subr.bf16.mxu0 0
    %5874 = vmatpush1.bf16.msra.mxu0 0
    %5875 = vmatprep.subr.bf16.mxu0 0
    %5876 = vmatpush1.bf16.msra.mxu0 0
    %5877 = vmatprep.subr.bf16.mxu0 0
    %5878 = vmatpush1.bf16.msra.mxu0 0
    %5879 = vmatprep.subr.bf16.mxu0 0
    %5880 = vmatpush1.bf16.msra.mxu0 %v5852
    %5881 = vmatprep.subr.bf16.mxu0 0
    %5882 = vmatpush1.bf16.msra.mxu0 %v5851
    %5883 = vmatprep.subr.bf16.mxu0 0
    %5884 = vmatpush2.bf16.msra.mxu0 0
    %5885 = vmatprep.subr.bf16.mxu0 0
    %5886 = vmatpush2.bf16.msra.mxu0 0
    %5887 = vmatprep.subr.bf16.mxu0 0
    %5888 = vmatpush2.bf16.msra.mxu0 0
    %5889 = vmatprep.subr.bf16.mxu0 0
    %5890 = vmatpush2.bf16.msra.mxu0 0
    %5891 = vmatprep.subr.bf16.mxu0 0
    %5892 = vmatpush2.bf16.msra.mxu0 0
    %5893 = vmatprep.subr.bf16.mxu0 0
    %5894 = vmatpush2.bf16.msra.mxu0 0
    %5895 = vmatprep.subr.bf16.mxu0 0
    %5896 = vmatpush2.bf16.msra.mxu0 0
    %5897 = vmatprep.subr.bf16.mxu0 0
    %5898 = vmatpush2.bf16.msra.mxu0 0
    %5899 = vmatprep.mubr.bf16.mxu0 0
    %5900 = vmatmul.mubr.bf16.gmra.mxu0 %v5856
    %v5901 = vpop.f32.mrf.mxu0
    %v5902 = vadd.f32 %v5841, %v5901
    %v5903 = vpop.f32.mrf.mxu0
    %v5904 = vpop.f32.mrf.mxu0
    %v5905 = vadd.f32 %v5841, %v5904
    %v5906 = vpop.f32.mrf.mxu0
    %5907 = vmatprep.mubr.bf16.mxu0 0
    %5908 = vmatmul.mubr.bf16.gmra.mxu0 %v5859
    %v5909 = vpop.f32.mrf.mxu0
    %v5910 = vadd.f32 %v5841, %v5909
    %v5911 = vpop.f32.mrf.mxu0
    %v5912 = vpop.f32.mrf.mxu0
    %v5913 = vpop.f32.mrf.mxu0
    %5914 = vmatprep.mubr.bf16.mxu0 0
    %5915 = vmatmul.mubr.bf16.gmra.mxu0 %v5862
    %v5916 = vpop.f32.mrf.mxu0
    %v5917 = vadd.f32 %v5841, %v5916
    %v5918 = vpop.f32.mrf.mxu0
    %v5919 = vpop.f32.mrf.mxu0
    %v5920 = vadd.f32 %v5841, %v5919
    %v5921 = vpop.f32.mrf.mxu0
    %5922 = vmatprep.mubr.bf16.mxu0 0
    %5923 = vmatmul.mubr.bf16.gmra.mxu0 %v5865
    %v5924 = vpop.f32.mrf.mxu0
    %v5925 = vadd.f32 %v5841, %v5924
    %v5926 = vpop.f32.mrf.mxu0
    %v5927 = vpop.f32.mrf.mxu0
    %v5928 = vpop.f32.mrf.mxu0
    %5929 = vdwg.mxu0
    %v5930 = vmax.f32 %v5902, 0.0
    %v5931 = vmax.f32 %v5905, 0.0
    %v5932 = vmax.f32 %v5910, 0.0
    %v5933 = vmax.f32 %v5917, 0.0
    %v5934 = vmax.f32 %v5920, 0.0
    %v5935 = vmax.f32 %v5925, 0.0
    %v5936 = vlaneseq
    %v5937 = vshrl.u32 %v5936, 7
    %v5938 = vsub.s32 1, %v5937
    %v5939 = vrot.slane %v5930, %v5938
    %vm5940 = vcmask 25600
    %5941 = vst.msk [vmem:[#allocation5] sm:$0x3] %vm5940, %v5939
    %5942 = vst.msk [vmem:[#allocation5 + $0x8] sm:$0x3] %vm5940, %v5939
    %v5943 = vlaneseq
    %v5944 = vshrl.u32 %v5943, 7
    %v5945 = vsub.s32 2, %v5944
    %v5946 = vrot.slane %v5930, %v5945
    %5947 = vst.msk [vmem:[#allocation5 + $0x2] sm:$0x3] %vm5940, %v5946
    %5948 = vst.msk [vmem:[#allocation5 + $0xa] sm:$0x3] %vm5940, %v5946
    %v5949 = vlaneseq
    %v5950 = vshrl.u32 %v5949, 7
    %v5951 = vsub.s32 3, %v5950
    %v5952 = vrot.slane %v5930, %v5951
    %5953 = vst.msk [vmem:[#allocation5 + $0x4] sm:$0x3] %vm5940, %v5952
    %5954 = vst.msk [vmem:[#allocation5 + $0xc] sm:$0x3] %vm5940, %v5952
    %v5955 = vlaneseq
    %v5956 = vshrl.u32 %v5955, 7
    %v5957 = vsub.s32 4, %v5956
    %v5958 = vrot.slane %v5930, %v5957
    %5959 = vst.msk [vmem:[#allocation5 + $0x6] sm:$0x3] %vm5940, %v5958
    %5960 = vst.msk [vmem:[#allocation5 + $0xe] sm:$0x3] %vm5940, %v5958
    %v5961 = vlaneseq
    %v5962 = vshrl.u32 %v5961, 7
    %v5963 = vsub.s32 5, %v5962
    %v5964 = vrot.slane %v5930, %v5963
    %5965 = vst.msk [vmem:[#allocation5 + $0x10] sm:$0x3] %vm5940, %v5964
    %5966 = vst.msk [vmem:[#allocation5 + $0x18] sm:$0x3] %vm5940, %v5964
    %v5967 = vlaneseq
    %v5968 = vshrl.u32 %v5967, 7
    %v5969 = vsub.s32 6, %v5968
    %v5970 = vrot.slane %v5930, %v5969
    %5971 = vst.msk [vmem:[#allocation5 + $0x12] sm:$0x3] %vm5940, %v5970
    %5972 = vst.msk [vmem:[#allocation5 + $0x1a] sm:$0x3] %vm5940, %v5970
    %v5973 = vlaneseq
    %v5974 = vshrl.u32 %v5973, 7
    %v5975 = vsub.s32 7, %v5974
    %v5976 = vrot.slane %v5930, %v5975
    %5977 = vst.msk [vmem:[#allocation5 + $0x14] sm:$0x3] %vm5940, %v5976
    %5978 = vst.msk [vmem:[#allocation5 + $0x1c] sm:$0x3] %vm5940, %v5976
    %v5979 = vlaneseq
    %v5980 = vshrl.u32 %v5979, 7
    %v5981 = vsub.s32 0, %v5980
    %v5982 = vrot.slane %v5931, %v5981
    %5983 = vst.msk [vmem:[#allocation5 + $0x16] sm:$0x3] %vm5940, %v5982
    %5984 = vst.msk [vmem:[#allocation5 + $0x1e] sm:$0x3] %vm5940, %v5982
    %v5985 = vlaneseq
    %v5986 = vshrl.u32 %v5985, 7
    %v5987 = vsub.s32 1, %v5986
    %v5988 = vrot.slane %v5931, %v5987
    %5989 = vst.msk [vmem:[#allocation5 + $0x20] sm:$0x3] %vm5940, %v5988
    %5990 = vst.msk [vmem:[#allocation5 + $0x28] sm:$0x3] %vm5940, %v5988
    %v5991 = vlaneseq
    %v5992 = vshrl.u32 %v5991, 7
    %v5993 = vsub.s32 2, %v5992
    %v5994 = vrot.slane %v5931, %v5993
    %5995 = vst.msk [vmem:[#allocation5 + $0x22] sm:$0x3] %vm5940, %v5994
    %5996 = vst.msk [vmem:[#allocation5 + $0x2a] sm:$0x3] %vm5940, %v5994
    %v5997 = vlaneseq
    %v5998 = vshrl.u32 %v5997, 7
    %v5999 = vsub.s32 3, %v5998
    %v6000 = vrot.slane %v5931, %v5999
    %6001 = vst.msk [vmem:[#allocation5 + $0x24] sm:$0x3] %vm5940, %v6000
    %6002 = vst.msk [vmem:[#allocation5 + $0x2c] sm:$0x3] %vm5940, %v6000
    %v6003 = vlaneseq
    %v6004 = vshrl.u32 %v6003, 7
    %v6005 = vsub.s32 4, %v6004
    %v6006 = vrot.slane %v5931, %v6005
    %6007 = vst.msk [vmem:[#allocation5 + $0x26] sm:$0x3] %vm5940, %v6006
    %6008 = vst.msk [vmem:[#allocation5 + $0x2e] sm:$0x3] %vm5940, %v6006
    %v6009 = vlaneseq
    %v6010 = vshrl.u32 %v6009, 7
    %v6011 = vsub.s32 5, %v6010
    %v6012 = vrot.slane %v5931, %v6011
    %6013 = vst.msk [vmem:[#allocation5 + $0x30] sm:$0x3] %vm5940, %v6012
    %6014 = vst.msk [vmem:[#allocation5 + $0x38] sm:$0x3] %vm5940, %v6012
    %v6015 = vlaneseq
    %v6016 = vshrl.u32 %v6015, 7
    %v6017 = vsub.s32 6, %v6016
    %v6018 = vrot.slane %v5931, %v6017
    %6019 = vst.msk [vmem:[#allocation5 + $0x32] sm:$0x3] %vm5940, %v6018
    %6020 = vst.msk [vmem:[#allocation5 + $0x3a] sm:$0x3] %vm5940, %v6018
    %v6021 = vlaneseq
    %v6022 = vshrl.u32 %v6021, 7
    %v6023 = vsub.s32 7, %v6022
    %v6024 = vrot.slane %v5931, %v6023
    %6025 = vst.msk [vmem:[#allocation5 + $0x34] sm:$0x3] %vm5940, %v6024
    %6026 = vst.msk [vmem:[#allocation5 + $0x3c] sm:$0x3] %vm5940, %v6024
    %v6027 = vlaneseq
    %v6028 = vshrl.u32 %v6027, 7
    %v6029 = vsub.s32 0, %v6028
    %v6030 = vrot.slane %v5932, %v6029
    %6031 = vst.msk [vmem:[#allocation5 + $0x36] sm:$0x3] %vm5940, %v6030
    %6032 = vst.msk [vmem:[#allocation5 + $0x3e] sm:$0x3] %vm5940, %v6030
    %v6033 = vlaneseq
    %v6034 = vshrl.u32 %v6033, 7
    %v6035 = vsub.s32 1, %v6034
    %v6036 = vrot.slane %v5933, %v6035
    %6037 = vst.msk [vmem:[#allocation5 + $0x40] sm:$0x3] %vm5940, %v6036
    %6038 = vst.msk [vmem:[#allocation5 + $0x48] sm:$0x3] %vm5940, %v6036
    %v6039 = vlaneseq
    %v6040 = vshrl.u32 %v6039, 7
    %v6041 = vsub.s32 2, %v6040
    %v6042 = vrot.slane %v5933, %v6041
    %6043 = vst.msk [vmem:[#allocation5 + $0x42] sm:$0x3] %vm5940, %v6042
    %6044 = vst.msk [vmem:[#allocation5 + $0x4a] sm:$0x3] %vm5940, %v6042
    %v6045 = vlaneseq
    %v6046 = vshrl.u32 %v6045, 7
    %v6047 = vsub.s32 3, %v6046
    %v6048 = vrot.slane %v5933, %v6047
    %6049 = vst.msk [vmem:[#allocation5 + $0x44] sm:$0x3] %vm5940, %v6048
    %6050 = vst.msk [vmem:[#allocation5 + $0x4c] sm:$0x3] %vm5940, %v6048
    %v6051 = vlaneseq
    %v6052 = vshrl.u32 %v6051, 7
    %v6053 = vsub.s32 4, %v6052
    %v6054 = vrot.slane %v5933, %v6053
    %6055 = vst.msk [vmem:[#allocation5 + $0x46] sm:$0x3] %vm5940, %v6054
    %6056 = vst.msk [vmem:[#allocation5 + $0x4e] sm:$0x3] %vm5940, %v6054
    %v6057 = vlaneseq
    %v6058 = vshrl.u32 %v6057, 7
    %v6059 = vsub.s32 5, %v6058
    %v6060 = vrot.slane %v5933, %v6059
    %6061 = vst.msk [vmem:[#allocation5 + $0x50] sm:$0x3] %vm5940, %v6060
    %6062 = vst.msk [vmem:[#allocation5 + $0x58] sm:$0x3] %vm5940, %v6060
    %v6063 = vlaneseq
    %v6064 = vshrl.u32 %v6063, 7
    %v6065 = vsub.s32 6, %v6064
    %v6066 = vrot.slane %v5933, %v6065
    %6067 = vst.msk [vmem:[#allocation5 + $0x52] sm:$0x3] %vm5940, %v6066
    %6068 = vst.msk [vmem:[#allocation5 + $0x5a] sm:$0x3] %vm5940, %v6066
    %v6069 = vlaneseq
    %v6070 = vshrl.u32 %v6069, 7
    %v6071 = vsub.s32 7, %v6070
    %v6072 = vrot.slane %v5933, %v6071
    %6073 = vst.msk [vmem:[#allocation5 + $0x54] sm:$0x3] %vm5940, %v6072
    %6074 = vst.msk [vmem:[#allocation5 + $0x5c] sm:$0x3] %vm5940, %v6072
    %v6075 = vlaneseq
    %v6076 = vshrl.u32 %v6075, 7
    %v6077 = vsub.s32 0, %v6076
    %v6078 = vrot.slane %v5934, %v6077
    %6079 = vst.msk [vmem:[#allocation5 + $0x56] sm:$0x3] %vm5940, %v6078
    %6080 = vst.msk [vmem:[#allocation5 + $0x5e] sm:$0x3] %vm5940, %v6078
    %v6081 = vlaneseq
    %v6082 = vshrl.u32 %v6081, 7
    %v6083 = vsub.s32 1, %v6082
    %v6084 = vrot.slane %v5934, %v6083
    %6085 = vst.msk [vmem:[#allocation5 + $0x60] sm:$0x3] %vm5940, %v6084
    %6086 = vst.msk [vmem:[#allocation5 + $0x68] sm:$0x3] %vm5940, %v6084
    %v6087 = vlaneseq
    %v6088 = vshrl.u32 %v6087, 7
    %v6089 = vsub.s32 2, %v6088
    %v6090 = vrot.slane %v5934, %v6089
    %6091 = vst.msk [vmem:[#allocation5 + $0x62] sm:$0x3] %vm5940, %v6090
    %6092 = vst.msk [vmem:[#allocation5 + $0x6a] sm:$0x3] %vm5940, %v6090
    %v6093 = vlaneseq
    %v6094 = vshrl.u32 %v6093, 7
    %v6095 = vsub.s32 3, %v6094
    %v6096 = vrot.slane %v5934, %v6095
    %6097 = vst.msk [vmem:[#allocation5 + $0x64] sm:$0x3] %vm5940, %v6096
    %6098 = vst.msk [vmem:[#allocation5 + $0x6c] sm:$0x3] %vm5940, %v6096
    %v6099 = vlaneseq
    %v6100 = vshrl.u32 %v6099, 7
    %v6101 = vsub.s32 4, %v6100
    %v6102 = vrot.slane %v5934, %v6101
    %6103 = vst.msk [vmem:[#allocation5 + $0x66] sm:$0x3] %vm5940, %v6102
    %6104 = vst.msk [vmem:[#allocation5 + $0x6e] sm:$0x3] %vm5940, %v6102
    %v6105 = vlaneseq
    %v6106 = vshrl.u32 %v6105, 7
    %v6107 = vsub.s32 5, %v6106
    %v6108 = vrot.slane %v5934, %v6107
    %6109 = vst.msk [vmem:[#allocation5 + $0x70] sm:$0x3] %vm5940, %v6108
    %6110 = vst.msk [vmem:[#allocation5 + $0x78] sm:$0x3] %vm5940, %v6108
    %v6111 = vlaneseq
    %v6112 = vshrl.u32 %v6111, 7
    %v6113 = vsub.s32 6, %v6112
    %v6114 = vrot.slane %v5934, %v6113
    %6115 = vst.msk [vmem:[#allocation5 + $0x72] sm:$0x3] %vm5940, %v6114
    %6116 = vst.msk [vmem:[#allocation5 + $0x7a] sm:$0x3] %vm5940, %v6114
    %v6117 = vlaneseq
    %v6118 = vshrl.u32 %v6117, 7
    %v6119 = vsub.s32 7, %v6118
    %v6120 = vrot.slane %v5934, %v6119
    %6121 = vst.msk [vmem:[#allocation5 + $0x74] sm:$0x3] %vm5940, %v6120
    %6122 = vst.msk [vmem:[#allocation5 + $0x7c] sm:$0x3] %vm5940, %v6120
    %v6123 = vlaneseq
    %v6124 = vshrl.u32 %v6123, 7
    %v6125 = vsub.s32 0, %v6124
    %v6126 = vrot.slane %v5935, %v6125
    %6127 = vst.msk [vmem:[#allocation5 + $0x76] sm:$0x3] %vm5940, %v6126
    %6128 = vst.msk [vmem:[#allocation5 + $0x7e] sm:$0x3] %vm5940, %v6126
    %v6129 = vld [vmem:[#allocation5] sm:$0xff]
    %v6130 = vld [vmem:[#allocation5 + $0x8] sm:$0xff]
    %v6131 = vld [vmem:[#allocation5 + $0x10] sm:$0xff]
    %v6132 = vld [vmem:[#allocation5 + $0x18] sm:$0xff]
    %v6133 = vld [vmem:[#allocation5 + $0x20] sm:$0xff]
    %v6134 = vld [vmem:[#allocation5 + $0x28] sm:$0xff]
    %v6135 = vld [vmem:[#allocation5 + $0x30] sm:$0xff]
    %v6136 = vld [vmem:[#allocation5 + $0x38] sm:$0xff]
    %v6137 = vld [vmem:[#allocation5 + $0x40] sm:$0xff]
    %v6138 = vld [vmem:[#allocation5 + $0x48] sm:$0xff]
    %v6139 = vld [vmem:[#allocation5 + $0x50] sm:$0xff]
    %v6140 = vld [vmem:[#allocation5 + $0x58] sm:$0xff]
    %v6141 = vld [vmem:[#allocation5 + $0x60] sm:$0xff]
    %v6142 = vld [vmem:[#allocation5 + $0x68] sm:$0xff]
    %v6143 = vld [vmem:[#allocation5 + $0x70] sm:$0xff]
    %v6144 = vld [vmem:[#allocation5 + $0x78] sm:$0xff]
    %v6145 = vpack.c.bf16 %v2541, %v2540
    %v6146 = vpack.c.bf16 %v2543, %v2542
    %v6147 = vpack.c.bf16 %v2545, %v2544
    %v6148 = vpack.c.bf16 %v2547, %v2546
    %v6149 = vpack.c.bf16 %v2549, %v2548
    %v6150 = vpack.c.bf16 %v2551, %v2550
    %v6151 = vpack.c.bf16 %v2553, %v2552
    %v6152 = vpack.c.bf16 %v2555, %v2554
    %v6153 = vld [vmem:[%s57] sm:$0xf]
    %v6154 = vld [vmem:[%s57 + $0x4] sm:$0xf]
    %v6155 = vld [vmem:[%s59] sm:$0x1]
    %v6157 = vlaneseq
    %v6158 = vshrl.u32 %v6157, 7
    %v6159 = vsub.s32 0, %v6158
    %v6160 = vrot.slane %v6155, %v6159
    %v6164 = vunpack.c.l.b16 %v6153
    %v6165 = vunpack.c.l.b16 %v6154
    %v6166 = vpack.c.b16 %v6165, %v6164
    %v6169 = vsel %vm202, %v6145, 0
    %v6172 = vsel %vm202, %v6146, 0
    %v6175 = vsel %vm202, %v6147, 0
    %v6178 = vsel %vm202, %v6148, 0
    %v6181 = vsel %vm202, %v6149, 0
    %v6184 = vsel %vm202, %v6150, 0
    %v6187 = vsel %vm202, %v6151, 0
    %v6190 = vsel %vm202, %v6152, 0
    %6192 = vmatprep.subr.bf16.mxu0 0
    %6193 = vmatpush1.bf16.msra.mxu0 0
    %6194 = vmatprep.subr.bf16.mxu0 0
    %6195 = vmatpush1.bf16.msra.mxu0 0
    %6196 = vmatprep.subr.bf16.mxu0 0
    %6197 = vmatpush1.bf16.msra.mxu0 0
    %6198 = vmatprep.subr.bf16.mxu0 0
    %6199 = vmatpush1.bf16.msra.mxu0 0
    %6200 = vmatprep.subr.bf16.mxu0 0
    %6201 = vmatpush1.bf16.msra.mxu0 0
    %6202 = vmatprep.subr.bf16.mxu0 0
    %6203 = vmatpush1.bf16.msra.mxu0 0
    %6204 = vmatprep.subr.bf16.mxu0 0
    %6205 = vmatpush1.bf16.msra.mxu0 0
    %6206 = vmatprep.subr.bf16.mxu0 0
    %6207 = vmatpush1.bf16.msra.mxu0 %v6166
    %6208 = vmatprep.subr.bf16.mxu0 0
    %6209 = vmatpush2.bf16.msra.mxu0 0
    %6210 = vmatprep.subr.bf16.mxu0 0
    %6211 = vmatpush2.bf16.msra.mxu0 0
    %6212 = vmatprep.subr.bf16.mxu0 0
    %6213 = vmatpush2.bf16.msra.mxu0 0
    %6214 = vmatprep.subr.bf16.mxu0 0
    %6215 = vmatpush2.bf16.msra.mxu0 0
    %6216 = vmatprep.subr.bf16.mxu0 0
    %6217 = vmatpush2.bf16.msra.mxu0 0
    %6218 = vmatprep.subr.bf16.mxu0 0
    %6219 = vmatpush2.bf16.msra.mxu0 0
    %6220 = vmatprep.subr.bf16.mxu0 0
    %6221 = vmatpush2.bf16.msra.mxu0 0
    %6222 = vmatprep.subr.bf16.mxu0 0
    %6223 = vmatpush2.bf16.msra.mxu0 0
    %6224 = vmatprep.mubr.bf16.mxu0 0
    %6225 = vmatmul.mubr.bf16.gmra.mxu0 %v6169
    %v6226 = vpop.f32.mrf.mxu0
    %v6227 = vadd.f32 %v6160, %v6226
    %v6228 = vpop.f32.mrf.mxu0
    %v6229 = vpop.f32.mrf.mxu0
    %v6230 = vadd.f32 %v6160, %v6229
    %v6231 = vpop.f32.mrf.mxu0
    %6232 = vmatprep.mubr.bf16.mxu0 0
    %6233 = vmatmul.mubr.bf16.gmra.mxu0 %v6172
    %v6234 = vpop.f32.mrf.mxu0
    %v6235 = vadd.f32 %v6160, %v6234
    %v6236 = vpop.f32.mrf.mxu0
    %v6237 = vpop.f32.mrf.mxu0
    %v6238 = vadd.f32 %v6160, %v6237
    %v6239 = vpop.f32.mrf.mxu0
    %6240 = vmatprep.mubr.bf16.mxu0 0
    %6241 = vmatmul.mubr.bf16.gmra.mxu0 %v6175
    %v6242 = vpop.f32.mrf.mxu0
    %v6243 = vadd.f32 %v6160, %v6242
    %v6244 = vpop.f32.mrf.mxu0
    %v6245 = vpop.f32.mrf.mxu0
    %v6246 = vadd.f32 %v6160, %v6245
    %v6247 = vpop.f32.mrf.mxu0
    %6248 = vmatprep.mubr.bf16.mxu0 0
    %6249 = vmatmul.mubr.bf16.gmra.mxu0 %v6178
    %v6250 = vpop.f32.mrf.mxu0
    %v6251 = vadd.f32 %v6160, %v6250
    %v6252 = vpop.f32.mrf.mxu0
    %v6253 = vpop.f32.mrf.mxu0
    %v6254 = vadd.f32 %v6160, %v6253
    %v6255 = vpop.f32.mrf.mxu0
    %6256 = vmatprep.mubr.bf16.mxu0 0
    %6257 = vmatmul.mubr.bf16.gmra.mxu0 %v6181
    %v6258 = vpop.f32.mrf.mxu0
    %v6259 = vadd.f32 %v6160, %v6258
    %v6260 = vpop.f32.mrf.mxu0
    %v6261 = vpop.f32.mrf.mxu0
    %v6262 = vadd.f32 %v6160, %v6261
    %v6263 = vpop.f32.mrf.mxu0
    %6264 = vmatprep.mubr.bf16.mxu0 0
    %6265 = vmatmul.mubr.bf16.gmra.mxu0 %v6184
    %v6266 = vpop.f32.mrf.mxu0
    %v6267 = vadd.f32 %v6160, %v6266
    %v6268 = vpop.f32.mrf.mxu0
    %v6269 = vpop.f32.mrf.mxu0
    %v6270 = vadd.f32 %v6160, %v6269
    %v6271 = vpop.f32.mrf.mxu0
    %6272 = vmatprep.mubr.bf16.mxu0 0
    %6273 = vmatmul.mubr.bf16.gmra.mxu0 %v6187
    %v6274 = vpop.f32.mrf.mxu0
    %v6275 = vadd.f32 %v6160, %v6274
    %v6276 = vpop.f32.mrf.mxu0
    %v6277 = vpop.f32.mrf.mxu0
    %v6278 = vadd.f32 %v6160, %v6277
    %v6279 = vpop.f32.mrf.mxu0
    %6280 = vmatprep.mubr.bf16.mxu0 0
    %6281 = vmatmul.mubr.bf16.gmra.mxu0 %v6190
    %v6282 = vpop.f32.mrf.mxu0
    %v6283 = vadd.f32 %v6160, %v6282
    %v6284 = vpop.f32.mrf.mxu0
    %v6285 = vpop.f32.mrf.mxu0
    %v6286 = vadd.f32 %v6160, %v6285
    %v6287 = vpop.f32.mrf.mxu0
    %6288 = vdwg.mxu0
    %v6289 = vmax.f32 %v6227, 0.0
    %v6290 = vmax.f32 %v6230, 0.0
    %v6291 = vmax.f32 %v6235, 0.0
    %v6292 = vmax.f32 %v6238, 0.0
    %v6293 = vmax.f32 %v6243, 0.0
    %v6294 = vmax.f32 %v6246, 0.0
    %v6295 = vmax.f32 %v6251, 0.0
    %v6296 = vmax.f32 %v6254, 0.0
    %v6297 = vmax.f32 %v6259, 0.0
    %v6298 = vmax.f32 %v6262, 0.0
    %v6299 = vmax.f32 %v6267, 0.0
    %v6300 = vmax.f32 %v6270, 0.0
    %v6301 = vmax.f32 %v6275, 0.0
    %v6302 = vmax.f32 %v6278, 0.0
    %v6303 = vmax.f32 %v6283, 0.0
    %v6304 = vmax.f32 %v6286, 0.0
    %v6305 = vadd.f32 %v6289, %v6129
    %v6306 = vadd.f32 %v6290, %v6130
    %v6307 = vadd.f32 %v6291, %v6131
    %v6308 = vadd.f32 %v6292, %v6132
    %v6309 = vadd.f32 %v6293, %v6133
    %v6310 = vadd.f32 %v6294, %v6134
    %v6311 = vadd.f32 %v6295, %v6135
    %v6312 = vadd.f32 %v6296, %v6136
    %v6313 = vadd.f32 %v6297, %v6137
    %v6314 = vadd.f32 %v6298, %v6138
    %v6315 = vadd.f32 %v6299, %v6139
    %v6316 = vadd.f32 %v6300, %v6140
    %v6317 = vadd.f32 %v6301, %v6141
    %v6318 = vadd.f32 %v6302, %v6142
    %v6319 = vadd.f32 %v6303, %v6143
    %v6320 = vadd.f32 %v6304, %v6144
    %v6321 = vpack.c.bf16 %v6306, %v6305
    %v6322 = vpack.c.bf16 %v6308, %v6307
    %v6323 = vpack.c.bf16 %v6310, %v6309
    %v6324 = vpack.c.bf16 %v6312, %v6311
    %v6325 = vpack.c.bf16 %v6314, %v6313
    %v6326 = vpack.c.bf16 %v6316, %v6315
    %v6327 = vpack.c.bf16 %v6318, %v6317
    %v6328 = vpack.c.bf16 %v6320, %v6319
    %v6329 = vld [vmem:[%s61] sm:$0x3]
    %v6331 = vsel %vm349, %v6321, 0
    %v6334 = vsel %vm349, %v6322, 0
    %v6337 = vsel %vm349, %v6323, 0
    %v6340 = vsel %vm349, %v6324, 0
    %v6343 = vsel %vm349, %v6325, 0
    %v6346 = vsel %vm349, %v6326, 0
    %v6349 = vsel %vm349, %v6327, 0
    %v6352 = vsel %vm349, %v6328, 0
    %v6355 = vsel %vm374, %v6329, 0
    %6357 = vmatprep.subr.bf16.mxu0 0
    %6358 = vmatpush1.bf16.msra.mxu0 0
    %6359 = vmatprep.subr.bf16.mxu0 0
    %6360 = vmatpush1.bf16.msra.mxu0 0
    %6361 = vmatprep.subr.bf16.mxu0 0
    %6362 = vmatpush1.bf16.msra.mxu0 0
    %6363 = vmatprep.subr.bf16.mxu0 0
    %6364 = vmatpush1.bf16.msra.mxu0 0
    %6365 = vmatprep.subr.bf16.mxu0 0
    %6366 = vmatpush1.bf16.msra.mxu0 0
    %6367 = vmatprep.subr.bf16.mxu0 0
    %6368 = vmatpush1.bf16.msra.mxu0 0
    %6369 = vmatprep.subr.bf16.mxu0 0
    %6370 = vmatpush1.bf16.msra.mxu0 0
    %6371 = vmatprep.subr.bf16.mxu0 0
    %6372 = vmatpush1.bf16.msra.mxu0 %v6355
    %6373 = vmatprep.subr.bf16.mxu0 0
    %6374 = vmatpush2.bf16.msra.mxu0 0
    %6375 = vmatprep.subr.bf16.mxu0 0
    %6376 = vmatpush2.bf16.msra.mxu0 0
    %6377 = vmatprep.subr.bf16.mxu0 0
    %6378 = vmatpush2.bf16.msra.mxu0 0
    %6379 = vmatprep.subr.bf16.mxu0 0
    %6380 = vmatpush2.bf16.msra.mxu0 0
    %6381 = vmatprep.subr.bf16.mxu0 0
    %6382 = vmatpush2.bf16.msra.mxu0 0
    %6383 = vmatprep.subr.bf16.mxu0 0
    %6384 = vmatpush2.bf16.msra.mxu0 0
    %6385 = vmatprep.subr.bf16.mxu0 0
    %6386 = vmatpush2.bf16.msra.mxu0 0
    %6387 = vmatprep.subr.bf16.mxu0 0
    %6388 = vmatpush2.bf16.msra.mxu0 0
    %6389 = vmatprep.mubr.bf16.mxu0 0
    %6390 = vmatmul.mubr.bf16.gmra.mxu0 %v6331
    %v6391 = vpop.f32.mrf.mxu0
    %v6392 = vadd.f32 0.0, %v6391
    %v6393 = vpop.f32.mrf.mxu0
    %v6394 = vpop.f32.mrf.mxu0
    %v6395 = vadd.f32 0.0, %v6394
    %v6396 = vpop.f32.mrf.mxu0
    %6397 = vmatprep.mubr.bf16.mxu0 0
    %6398 = vmatmul.mubr.bf16.gmra.mxu0 %v6334
    %v6399 = vpop.f32.mrf.mxu0
    %v6400 = vadd.f32 0.0, %v6399
    %v6401 = vpop.f32.mrf.mxu0
    %v6402 = vpop.f32.mrf.mxu0
    %v6403 = vadd.f32 0.0, %v6402
    %v6404 = vpop.f32.mrf.mxu0
    %6405 = vmatprep.mubr.bf16.mxu0 0
    %6406 = vmatmul.mubr.bf16.gmra.mxu0 %v6337
    %v6407 = vpop.f32.mrf.mxu0
    %v6408 = vadd.f32 0.0, %v6407
    %v6409 = vpop.f32.mrf.mxu0
    %v6410 = vpop.f32.mrf.mxu0
    %v6411 = vadd.f32 0.0, %v6410
    %v6412 = vpop.f32.mrf.mxu0
    %6413 = vmatprep.mubr.bf16.mxu0 0
    %6414 = vmatmul.mubr.bf16.gmra.mxu0 %v6340
    %v6415 = vpop.f32.mrf.mxu0
    %v6416 = vadd.f32 0.0, %v6415
    %v6417 = vpop.f32.mrf.mxu0
    %v6418 = vpop.f32.mrf.mxu0
    %v6419 = vadd.f32 0.0, %v6418
    %v6420 = vpop.f32.mrf.mxu0
    %6421 = vmatprep.mubr.bf16.mxu0 0
    %6422 = vmatmul.mubr.bf16.gmra.mxu0 %v6343
    %v6423 = vpop.f32.mrf.mxu0
    %v6424 = vadd.f32 0.0, %v6423
    %v6425 = vpop.f32.mrf.mxu0
    %v6426 = vpop.f32.mrf.mxu0
    %v6427 = vadd.f32 0.0, %v6426
    %v6428 = vpop.f32.mrf.mxu0
    %6429 = vmatprep.mubr.bf16.mxu0 0
    %6430 = vmatmul.mubr.bf16.gmra.mxu0 %v6346
    %v6431 = vpop.f32.mrf.mxu0
    %v6432 = vadd.f32 0.0, %v6431
    %v6433 = vpop.f32.mrf.mxu0
    %v6434 = vpop.f32.mrf.mxu0
    %v6435 = vadd.f32 0.0, %v6434
    %v6436 = vpop.f32.mrf.mxu0
    %6437 = vmatprep.mubr.bf16.mxu0 0
    %6438 = vmatmul.mubr.bf16.gmra.mxu0 %v6349
    %v6439 = vpop.f32.mrf.mxu0
    %v6440 = vadd.f32 0.0, %v6439
    %v6441 = vpop.f32.mrf.mxu0
    %v6442 = vpop.f32.mrf.mxu0
    %v6443 = vadd.f32 0.0, %v6442
    %v6444 = vpop.f32.mrf.mxu0
    %6445 = vmatprep.mubr.bf16.mxu0 0
    %6446 = vmatmul.mubr.bf16.gmra.mxu0 %v6352
    %v6447 = vpop.f32.mrf.mxu0
    %v6448 = vadd.f32 0.0, %v6447
    %v6449 = vpop.f32.mrf.mxu0
    %v6450 = vpop.f32.mrf.mxu0
    %v6451 = vadd.f32 0.0, %v6450
    %v6452 = vpop.f32.mrf.mxu0
    %6453 = vdwg.mxu0
    %v6454 = vrot.slane %v6392, 7
    %v6455 = vrot.slane %v6395, 7
    %v6456 = vrot.slane %v6400, 7
    %v6457 = vrot.slane %v6403, 7
    %v6458 = vrot.slane %v6408, 7
    %v6459 = vrot.slane %v6411, 7
    %v6460 = vrot.slane %v6416, 7
    %v6461 = vrot.slane %v6419, 7
    %v6462 = vrot.slane %v6424, 7
    %v6463 = vrot.slane %v6427, 7
    %v6464 = vrot.slane %v6432, 7
    %v6465 = vrot.slane %v6435, 7
    %v6466 = vrot.slane %v6440, 7
    %v6467 = vrot.slane %v6443, 7
    %v6468 = vrot.slane %v6448, 7
    %v6469 = vrot.slane %v6451, 7
    %v6470 = vsel %vm493, %v6468, %v6469
    %v6471 = vsel %vm493, %v6467, %v6468
    %v6472 = vsel %vm493, %v6466, %v6467
    %v6473 = vsel %vm493, %v6465, %v6466
    %v6474 = vsel %vm493, %v6464, %v6465
    %v6475 = vsel %vm493, %v6463, %v6464
    %v6476 = vsel %vm493, %v6462, %v6463
    %v6477 = vsel %vm493, %v6461, %v6462
    %v6478 = vsel %vm493, %v6460, %v6461
    %v6479 = vsel %vm493, %v6459, %v6460
    %v6480 = vsel %vm493, %v6458, %v6459
    %v6481 = vsel %vm493, %v6457, %v6458
    %v6482 = vsel %vm493, %v6456, %v6457
    %v6483 = vsel %vm493, %v6455, %v6456
    %v6484 = vsel %vm493, %v6454, %v6455
    %v6485 = vsel %vm493, %v6469, %v6454
    %v6486 = vmul.f32 %v6470, %v513
    %v6487 = vmul.f32 %v6485, %v518
    %v6488 = vmul.f32 %v6484, %v523
    %v6489 = vmul.f32 %v6483, %v528
    %v6490 = vmul.f32 %v6482, %v533
    %v6491 = vmul.f32 %v6481, %v538
    %v6492 = vmul.f32 %v6480, %v543
    %v6493 = vmul.f32 %v6479, %v548
    %v6494 = vmul.f32 %v6478, %v553
    %v6495 = vmul.f32 %v6477, %v558
    %v6496 = vmul.f32 %v6476, %v563
    %v6497 = vmul.f32 %v6475, %v568
    %v6498 = vmul.f32 %v6474, %v573
    %v6499 = vmul.f32 %v6473, %v578
    %v6500 = vmul.f32 %v6472, %v583
    %v6501 = vmul.f32 %v6471, %v588
    %6518 = vrot.lane.b32.xlu0 %v6486, 16
    %v6519 = vpop.permute.xlu0 %6518
    %6520 = vrot.lane.b32.xlu0 %v6487, 16
    %v6521 = vpop.permute.xlu0 %6520
    %6522 = vrot.lane.b32.xlu0 %v6488, 16
    %v6523 = vpop.permute.xlu0 %6522
    %6524 = vrot.lane.b32.xlu0 %v6489, 16
    %v6525 = vpop.permute.xlu0 %6524
    %6526 = vrot.lane.b32.xlu0 %v6490, 16
    %v6527 = vpop.permute.xlu0 %6526
    %6528 = vrot.lane.b32.xlu0 %v6491, 16
    %v6529 = vpop.permute.xlu0 %6528
    %6530 = vrot.lane.b32.xlu0 %v6492, 16
    %v6531 = vpop.permute.xlu0 %6530
    %6532 = vrot.lane.b32.xlu0 %v6493, 16
    %v6533 = vpop.permute.xlu0 %6532
    %6534 = vrot.lane.b32.xlu0 %v6494, 16
    %v6535 = vpop.permute.xlu0 %6534
    %6536 = vrot.lane.b32.xlu0 %v6495, 16
    %v6537 = vpop.permute.xlu0 %6536
    %6538 = vrot.lane.b32.xlu0 %v6496, 16
    %v6539 = vpop.permute.xlu0 %6538
    %6540 = vrot.lane.b32.xlu0 %v6497, 16
    %v6541 = vpop.permute.xlu0 %6540
    %6542 = vrot.lane.b32.xlu0 %v6498, 16
    %v6543 = vpop.permute.xlu0 %6542
    %6544 = vrot.lane.b32.xlu0 %v6499, 16
    %v6545 = vpop.permute.xlu0 %6544
    %6546 = vrot.lane.b32.xlu0 %v6500, 16
    %v6547 = vpop.permute.xlu0 %6546
    %6548 = vrot.lane.b32.xlu0 %v6501, 16
    %v6549 = vpop.permute.xlu0 %6548
    %v6566 = vadd.f32 %v6392, %v6519
    %v6567 = vadd.f32 %v6395, %v6521
    %v6568 = vadd.f32 %v6400, %v6523
    %v6569 = vadd.f32 %v6403, %v6525
    %v6570 = vadd.f32 %v6408, %v6527
    %v6571 = vadd.f32 %v6411, %v6529
    %v6572 = vadd.f32 %v6416, %v6531
    %v6573 = vadd.f32 %v6419, %v6533
    %v6574 = vadd.f32 %v6424, %v6535
    %v6575 = vadd.f32 %v6427, %v6537
    %v6576 = vadd.f32 %v6432, %v6539
    %v6577 = vadd.f32 %v6435, %v6541
    %v6578 = vadd.f32 %v6440, %v6543
    %v6579 = vadd.f32 %v6443, %v6545
    %v6580 = vadd.f32 %v6448, %v6547
    %v6581 = vadd.f32 %v6451, %v6549
    %6598 = vrot.lane.b32.xlu0 %v6392, 124
    %v6599 = vpop.permute.xlu0 %6598
    %6600 = vrot.lane.b32.xlu0 %v6395, 124
    %v6601 = vpop.permute.xlu0 %6600
    %6602 = vrot.lane.b32.xlu0 %v6400, 124
    %v6603 = vpop.permute.xlu0 %6602
    %6604 = vrot.lane.b32.xlu0 %v6403, 124
    %v6605 = vpop.permute.xlu0 %6604
    %6606 = vrot.lane.b32.xlu0 %v6408, 124
    %v6607 = vpop.permute.xlu0 %6606
    %6608 = vrot.lane.b32.xlu0 %v6411, 124
    %v6609 = vpop.permute.xlu0 %6608
    %6610 = vrot.lane.b32.xlu0 %v6416, 124
    %v6611 = vpop.permute.xlu0 %6610
    %6612 = vrot.lane.b32.xlu0 %v6419, 124
    %v6613 = vpop.permute.xlu0 %6612
    %6614 = vrot.lane.b32.xlu0 %v6424, 124
    %v6615 = vpop.permute.xlu0 %6614
    %6616 = vrot.lane.b32.xlu0 %v6427, 124
    %v6617 = vpop.permute.xlu0 %6616
    %6618 = vrot.lane.b32.xlu0 %v6432, 124
    %v6619 = vpop.permute.xlu0 %6618
    %6620 = vrot.lane.b32.xlu0 %v6435, 124
    %v6621 = vpop.permute.xlu0 %6620
    %6622 = vrot.lane.b32.xlu0 %v6440, 124
    %v6623 = vpop.permute.xlu0 %6622
    %6624 = vrot.lane.b32.xlu0 %v6443, 124
    %v6625 = vpop.permute.xlu0 %6624
    %6626 = vrot.lane.b32.xlu0 %v6448, 124
    %v6627 = vpop.permute.xlu0 %6626
    %6628 = vrot.lane.b32.xlu0 %v6451, 124
    %v6629 = vpop.permute.xlu0 %6628
    %v6646 = vmul.f32 %v6629, %v752
    %v6647 = vmul.f32 %v6599, %v756
    %v6648 = vmul.f32 %v6601, %v760
    %v6649 = vmul.f32 %v6603, %v764
    %v6650 = vmul.f32 %v6605, %v768
    %v6651 = vmul.f32 %v6607, %v772
    %v6652 = vmul.f32 %v6609, %v776
    %v6653 = vmul.f32 %v6611, %v780
    %v6654 = vmul.f32 %v6613, %v784
    %v6655 = vmul.f32 %v6615, %v788
    %v6656 = vmul.f32 %v6617, %v792
    %v6657 = vmul.f32 %v6619, %v796
    %v6658 = vmul.f32 %v6621, %v800
    %v6659 = vmul.f32 %v6623, %v804
    %v6660 = vmul.f32 %v6625, %v808
    %v6661 = vmul.f32 %v6627, %v812
    %6678 = vrot.lane.b32.xlu0 %v6646, 16
    %v6679 = vpop.permute.xlu0 %6678
    %6680 = vrot.lane.b32.xlu0 %v6647, 16
    %v6681 = vpop.permute.xlu0 %6680
    %6682 = vrot.lane.b32.xlu0 %v6648, 16
    %v6683 = vpop.permute.xlu0 %6682
    %6684 = vrot.lane.b32.xlu0 %v6649, 16
    %v6685 = vpop.permute.xlu0 %6684
    %6686 = vrot.lane.b32.xlu0 %v6650, 16
    %v6687 = vpop.permute.xlu0 %6686
    %6688 = vrot.lane.b32.xlu0 %v6651, 16
    %v6689 = vpop.permute.xlu0 %6688
    %6690 = vrot.lane.b32.xlu0 %v6652, 16
    %v6691 = vpop.permute.xlu0 %6690
    %6692 = vrot.lane.b32.xlu0 %v6653, 16
    %v6693 = vpop.permute.xlu0 %6692
    %6694 = vrot.lane.b32.xlu0 %v6654, 16
    %v6695 = vpop.permute.xlu0 %6694
    %6696 = vrot.lane.b32.xlu0 %v6655, 16
    %v6697 = vpop.permute.xlu0 %6696
    %6698 = vrot.lane.b32.xlu0 %v6656, 16
    %v6699 = vpop.permute.xlu0 %6698
    %6700 = vrot.lane.b32.xlu0 %v6657, 16
    %v6701 = vpop.permute.xlu0 %6700
    %6702 = vrot.lane.b32.xlu0 %v6658, 16
    %v6703 = vpop.permute.xlu0 %6702
    %6704 = vrot.lane.b32.xlu0 %v6659, 16
    %v6705 = vpop.permute.xlu0 %6704
    %6706 = vrot.lane.b32.xlu0 %v6660, 16
    %v6707 = vpop.permute.xlu0 %6706
    %6708 = vrot.lane.b32.xlu0 %v6661, 16
    %v6709 = vpop.permute.xlu0 %6708
    %v6726 = vadd.f32 %v6566, %v6679
    %v6727 = vadd.f32 %v6567, %v6681
    %v6728 = vadd.f32 %v6568, %v6683
    %v6729 = vadd.f32 %v6569, %v6685
    %v6730 = vadd.f32 %v6570, %v6687
    %v6731 = vadd.f32 %v6571, %v6689
    %v6732 = vadd.f32 %v6572, %v6691
    %v6733 = vadd.f32 %v6573, %v6693
    %v6734 = vadd.f32 %v6574, %v6695
    %v6735 = vadd.f32 %v6575, %v6697
    %v6736 = vadd.f32 %v6576, %v6699
    %v6737 = vadd.f32 %v6577, %v6701
    %v6738 = vadd.f32 %v6578, %v6703
    %v6739 = vadd.f32 %v6579, %v6705
    %v6740 = vadd.f32 %v6580, %v6707
    %v6741 = vadd.f32 %v6581, %v6709
    %6742 = vrot.lane.b32.xlu0 %v6392, 120
    %v6743 = vpop.permute.xlu0 %6742
    %6744 = vrot.lane.b32.xlu0 %v6395, 120
    %v6745 = vpop.permute.xlu0 %6744
    %6746 = vrot.lane.b32.xlu0 %v6400, 120
    %v6747 = vpop.permute.xlu0 %6746
    %6748 = vrot.lane.b32.xlu0 %v6403, 120
    %v6749 = vpop.permute.xlu0 %6748
    %6750 = vrot.lane.b32.xlu0 %v6408, 120
    %v6751 = vpop.permute.xlu0 %6750
    %6752 = vrot.lane.b32.xlu0 %v6411, 120
    %v6753 = vpop.permute.xlu0 %6752
    %6754 = vrot.lane.b32.xlu0 %v6416, 120
    %v6755 = vpop.permute.xlu0 %6754
    %6756 = vrot.lane.b32.xlu0 %v6419, 120
    %v6757 = vpop.permute.xlu0 %6756
    %6758 = vrot.lane.b32.xlu0 %v6424, 120
    %v6759 = vpop.permute.xlu0 %6758
    %6760 = vrot.lane.b32.xlu0 %v6427, 120
    %v6761 = vpop.permute.xlu0 %6760
    %6762 = vrot.lane.b32.xlu0 %v6432, 120
    %v6763 = vpop.permute.xlu0 %6762
    %6764 = vrot.lane.b32.xlu0 %v6435, 120
    %v6765 = vpop.permute.xlu0 %6764
    %6766 = vrot.lane.b32.xlu0 %v6440, 120
    %v6767 = vpop.permute.xlu0 %6766
    %6768 = vrot.lane.b32.xlu0 %v6443, 120
    %v6769 = vpop.permute.xlu0 %6768
    %6770 = vrot.lane.b32.xlu0 %v6448, 120
    %v6771 = vpop.permute.xlu0 %6770
    %6772 = vrot.lane.b32.xlu0 %v6451, 120
    %v6773 = vpop.permute.xlu0 %6772
    %v6790 = vrot.slane %v6743, 1
    %v6791 = vrot.slane %v6745, 1
    %v6792 = vrot.slane %v6747, 1
    %v6793 = vrot.slane %v6749, 1
    %v6794 = vrot.slane %v6751, 1
    %v6795 = vrot.slane %v6753, 1
    %v6796 = vrot.slane %v6755, 1
    %v6797 = vrot.slane %v6757, 1
    %v6798 = vrot.slane %v6759, 1
    %v6799 = vrot.slane %v6761, 1
    %v6800 = vrot.slane %v6763, 1
    %v6801 = vrot.slane %v6765, 1
    %v6802 = vrot.slane %v6767, 1
    %v6803 = vrot.slane %v6769, 1
    %v6804 = vrot.slane %v6771, 1
    %v6805 = vrot.slane %v6773, 1
    %v6806 = vsel %vm974, %v6804, %v6805
    %v6807 = vsel %vm974, %v6803, %v6804
    %v6808 = vsel %vm974, %v6802, %v6803
    %v6809 = vsel %vm974, %v6801, %v6802
    %v6810 = vsel %vm974, %v6800, %v6801
    %v6811 = vsel %vm974, %v6799, %v6800
    %v6812 = vsel %vm974, %v6798, %v6799
    %v6813 = vsel %vm974, %v6797, %v6798
    %v6814 = vsel %vm974, %v6796, %v6797
    %v6815 = vsel %vm974, %v6795, %v6796
    %v6816 = vsel %vm974, %v6794, %v6795
    %v6817 = vsel %vm974, %v6793, %v6794
    %v6818 = vsel %vm974, %v6792, %v6793
    %v6819 = vsel %vm974, %v6791, %v6792
    %v6820 = vsel %vm974, %v6790, %v6791
    %v6821 = vsel %vm974, %v6805, %v6790
    %v6822 = vmul.f32 %v6821, %v993
    %v6823 = vmul.f32 %v6820, %v997
    %v6824 = vmul.f32 %v6819, %v1001
    %v6825 = vmul.f32 %v6818, %v1005
    %v6826 = vmul.f32 %v6817, %v1009
    %v6827 = vmul.f32 %v6816, %v1013
    %v6828 = vmul.f32 %v6815, %v1017
    %v6829 = vmul.f32 %v6814, %v1021
    %v6830 = vmul.f32 %v6813, %v1025
    %v6831 = vmul.f32 %v6812, %v1029
    %v6832 = vmul.f32 %v6811, %v1033
    %v6833 = vmul.f32 %v6810, %v1037
    %v6834 = vmul.f32 %v6809, %v1041
    %v6835 = vmul.f32 %v6808, %v1045
    %v6836 = vmul.f32 %v6807, %v1049
    %v6837 = vmul.f32 %v6806, %v1053
    %6854 = vrot.lane.b32.xlu0 %v6822, 16
    %v6855 = vpop.permute.xlu0 %6854
    %6856 = vrot.lane.b32.xlu0 %v6823, 16
    %v6857 = vpop.permute.xlu0 %6856
    %6858 = vrot.lane.b32.xlu0 %v6824, 16
    %v6859 = vpop.permute.xlu0 %6858
    %6860 = vrot.lane.b32.xlu0 %v6825, 16
    %v6861 = vpop.permute.xlu0 %6860
    %6862 = vrot.lane.b32.xlu0 %v6826, 16
    %v6863 = vpop.permute.xlu0 %6862
    %6864 = vrot.lane.b32.xlu0 %v6827, 16
    %v6865 = vpop.permute.xlu0 %6864
    %6866 = vrot.lane.b32.xlu0 %v6828, 16
    %v6867 = vpop.permute.xlu0 %6866
    %6868 = vrot.lane.b32.xlu0 %v6829, 16
    %v6869 = vpop.permute.xlu0 %6868
    %6870 = vrot.lane.b32.xlu0 %v6830, 16
    %v6871 = vpop.permute.xlu0 %6870
    %6872 = vrot.lane.b32.xlu0 %v6831, 16
    %v6873 = vpop.permute.xlu0 %6872
    %6874 = vrot.lane.b32.xlu0 %v6832, 16
    %v6875 = vpop.permute.xlu0 %6874
    %6876 = vrot.lane.b32.xlu0 %v6833, 16
    %v6877 = vpop.permute.xlu0 %6876
    %6878 = vrot.lane.b32.xlu0 %v6834, 16
    %v6879 = vpop.permute.xlu0 %6878
    %6880 = vrot.lane.b32.xlu0 %v6835, 16
    %v6881 = vpop.permute.xlu0 %6880
    %6882 = vrot.lane.b32.xlu0 %v6836, 16
    %v6883 = vpop.permute.xlu0 %6882
    %6884 = vrot.lane.b32.xlu0 %v6837, 16
    %v6885 = vpop.permute.xlu0 %6884
    %v6902 = vadd.f32 %v6726, %v6855
    %v6903 = vadd.f32 %v6727, %v6857
    %v6904 = vadd.f32 %v6728, %v6859
    %v6905 = vadd.f32 %v6729, %v6861
    %v6906 = vadd.f32 %v6730, %v6863
    %v6907 = vadd.f32 %v6731, %v6865
    %v6908 = vadd.f32 %v6732, %v6867
    %v6909 = vadd.f32 %v6733, %v6869
    %v6910 = vadd.f32 %v6734, %v6871
    %v6911 = vadd.f32 %v6735, %v6873
    %v6912 = vadd.f32 %v6736, %v6875
    %v6913 = vadd.f32 %v6737, %v6877
    %v6914 = vadd.f32 %v6738, %v6879
    %v6915 = vadd.f32 %v6739, %v6881
    %v6916 = vadd.f32 %v6740, %v6883
    %v6917 = vadd.f32 %v6741, %v6885
    %6918 = vrot.lane.b32.xlu0 %v6392, 116
    %v6919 = vpop.permute.xlu0 %6918
    %6920 = vrot.lane.b32.xlu0 %v6395, 116
    %v6921 = vpop.permute.xlu0 %6920
    %6922 = vrot.lane.b32.xlu0 %v6400, 116
    %v6923 = vpop.permute.xlu0 %6922
    %6924 = vrot.lane.b32.xlu0 %v6403, 116
    %v6925 = vpop.permute.xlu0 %6924
    %6926 = vrot.lane.b32.xlu0 %v6408, 116
    %v6927 = vpop.permute.xlu0 %6926
    %6928 = vrot.lane.b32.xlu0 %v6411, 116
    %v6929 = vpop.permute.xlu0 %6928
    %6930 = vrot.lane.b32.xlu0 %v6416, 116
    %v6931 = vpop.permute.xlu0 %6930
    %6932 = vrot.lane.b32.xlu0 %v6419, 116
    %v6933 = vpop.permute.xlu0 %6932
    %6934 = vrot.lane.b32.xlu0 %v6424, 116
    %v6935 = vpop.permute.xlu0 %6934
    %6936 = vrot.lane.b32.xlu0 %v6427, 116
    %v6937 = vpop.permute.xlu0 %6936
    %6938 = vrot.lane.b32.xlu0 %v6432, 116
    %v6939 = vpop.permute.xlu0 %6938
    %6940 = vrot.lane.b32.xlu0 %v6435, 116
    %v6941 = vpop.permute.xlu0 %6940
    %6942 = vrot.lane.b32.xlu0 %v6440, 116
    %v6943 = vpop.permute.xlu0 %6942
    %6944 = vrot.lane.b32.xlu0 %v6443, 116
    %v6945 = vpop.permute.xlu0 %6944
    %6946 = vrot.lane.b32.xlu0 %v6448, 116
    %v6947 = vpop.permute.xlu0 %6946
    %6948 = vrot.lane.b32.xlu0 %v6451, 116
    %v6949 = vpop.permute.xlu0 %6948
    %v6966 = vrot.slane %v6919, 7
    %v6967 = vrot.slane %v6921, 7
    %v6968 = vrot.slane %v6923, 7
    %v6969 = vrot.slane %v6925, 7
    %v6970 = vrot.slane %v6927, 7
    %v6971 = vrot.slane %v6929, 7
    %v6972 = vrot.slane %v6931, 7
    %v6973 = vrot.slane %v6933, 7
    %v6974 = vrot.slane %v6935, 7
    %v6975 = vrot.slane %v6937, 7
    %v6976 = vrot.slane %v6939, 7
    %v6977 = vrot.slane %v6941, 7
    %v6978 = vrot.slane %v6943, 7
    %v6979 = vrot.slane %v6945, 7
    %v6980 = vrot.slane %v6947, 7
    %v6981 = vrot.slane %v6949, 7
    %v6982 = vsel %vm493, %v6980, %v6981
    %v6983 = vsel %vm493, %v6979, %v6980
    %v6984 = vsel %vm493, %v6978, %v6979
    %v6985 = vsel %vm493, %v6977, %v6978
    %v6986 = vsel %vm493, %v6976, %v6977
    %v6987 = vsel %vm493, %v6975, %v6976
    %v6988 = vsel %vm493, %v6974, %v6975
    %v6989 = vsel %vm493, %v6973, %v6974
    %v6990 = vsel %vm493, %v6972, %v6973
    %v6991 = vsel %vm493, %v6971, %v6972
    %v6992 = vsel %vm493, %v6970, %v6971
    %v6993 = vsel %vm493, %v6969, %v6970
    %v6994 = vsel %vm493, %v6968, %v6969
    %v6995 = vsel %vm493, %v6967, %v6968
    %v6996 = vsel %vm493, %v6966, %v6967
    %v6997 = vsel %vm493, %v6981, %v6966
    %v6998 = vmul.f32 %v6997, %v1233
    %v6999 = vmul.f32 %v6996, %v1237
    %v7000 = vmul.f32 %v6995, %v1241
    %v7001 = vmul.f32 %v6994, %v1245
    %v7002 = vmul.f32 %v6993, %v1249
    %v7003 = vmul.f32 %v6992, %v1253
    %v7004 = vmul.f32 %v6991, %v1257
    %v7005 = vmul.f32 %v6990, %v1261
    %v7006 = vmul.f32 %v6989, %v1265
    %v7007 = vmul.f32 %v6988, %v1269
    %v7008 = vmul.f32 %v6987, %v1273
    %v7009 = vmul.f32 %v6986, %v1277
    %v7010 = vmul.f32 %v6985, %v1281
    %v7011 = vmul.f32 %v6984, %v1285
    %v7012 = vmul.f32 %v6983, %v1289
    %v7013 = vmul.f32 %v6982, %v1293
    %7030 = vrot.lane.b32.xlu0 %v6998, 16
    %v7031 = vpop.permute.xlu0 %7030
    %7032 = vrot.lane.b32.xlu0 %v6999, 16
    %v7033 = vpop.permute.xlu0 %7032
    %7034 = vrot.lane.b32.xlu0 %v7000, 16
    %v7035 = vpop.permute.xlu0 %7034
    %7036 = vrot.lane.b32.xlu0 %v7001, 16
    %v7037 = vpop.permute.xlu0 %7036
    %7038 = vrot.lane.b32.xlu0 %v7002, 16
    %v7039 = vpop.permute.xlu0 %7038
    %7040 = vrot.lane.b32.xlu0 %v7003, 16
    %v7041 = vpop.permute.xlu0 %7040
    %7042 = vrot.lane.b32.xlu0 %v7004, 16
    %v7043 = vpop.permute.xlu0 %7042
    %7044 = vrot.lane.b32.xlu0 %v7005, 16
    %v7045 = vpop.permute.xlu0 %7044
    %7046 = vrot.lane.b32.xlu0 %v7006, 16
    %v7047 = vpop.permute.xlu0 %7046
    %7048 = vrot.lane.b32.xlu0 %v7007, 16
    %v7049 = vpop.permute.xlu0 %7048
    %7050 = vrot.lane.b32.xlu0 %v7008, 16
    %v7051 = vpop.permute.xlu0 %7050
    %7052 = vrot.lane.b32.xlu0 %v7009, 16
    %v7053 = vpop.permute.xlu0 %7052
    %7054 = vrot.lane.b32.xlu0 %v7010, 16
    %v7055 = vpop.permute.xlu0 %7054
    %7056 = vrot.lane.b32.xlu0 %v7011, 16
    %v7057 = vpop.permute.xlu0 %7056
    %7058 = vrot.lane.b32.xlu0 %v7012, 16
    %v7059 = vpop.permute.xlu0 %7058
    %7060 = vrot.lane.b32.xlu0 %v7013, 16
    %v7061 = vpop.permute.xlu0 %7060
    %v7078 = vadd.f32 %v6902, %v7031
    %v7079 = vadd.f32 %v6903, %v7033
    %v7080 = vadd.f32 %v6904, %v7035
    %v7081 = vadd.f32 %v6905, %v7037
    %v7082 = vadd.f32 %v6906, %v7039
    %v7083 = vadd.f32 %v6907, %v7041
    %v7084 = vadd.f32 %v6908, %v7043
    %v7085 = vadd.f32 %v6909, %v7045
    %v7086 = vadd.f32 %v6910, %v7047
    %v7087 = vadd.f32 %v6911, %v7049
    %v7088 = vadd.f32 %v6912, %v7051
    %v7089 = vadd.f32 %v6913, %v7053
    %v7090 = vadd.f32 %v6914, %v7055
    %v7091 = vadd.f32 %v6915, %v7057
    %v7092 = vadd.f32 %v6916, %v7059
    %v7093 = vadd.f32 %v6917, %v7061
    %7094 = vrot.lane.b32.xlu0 %v6392, 108
    %v7095 = vpop.permute.xlu0 %7094
    %7096 = vrot.lane.b32.xlu0 %v6395, 108
    %v7097 = vpop.permute.xlu0 %7096
    %7098 = vrot.lane.b32.xlu0 %v6400, 108
    %v7099 = vpop.permute.xlu0 %7098
    %7100 = vrot.lane.b32.xlu0 %v6403, 108
    %v7101 = vpop.permute.xlu0 %7100
    %7102 = vrot.lane.b32.xlu0 %v6408, 108
    %v7103 = vpop.permute.xlu0 %7102
    %7104 = vrot.lane.b32.xlu0 %v6411, 108
    %v7105 = vpop.permute.xlu0 %7104
    %7106 = vrot.lane.b32.xlu0 %v6416, 108
    %v7107 = vpop.permute.xlu0 %7106
    %7108 = vrot.lane.b32.xlu0 %v6419, 108
    %v7109 = vpop.permute.xlu0 %7108
    %7110 = vrot.lane.b32.xlu0 %v6424, 108
    %v7111 = vpop.permute.xlu0 %7110
    %7112 = vrot.lane.b32.xlu0 %v6427, 108
    %v7113 = vpop.permute.xlu0 %7112
    %7114 = vrot.lane.b32.xlu0 %v6432, 108
    %v7115 = vpop.permute.xlu0 %7114
    %7116 = vrot.lane.b32.xlu0 %v6435, 108
    %v7117 = vpop.permute.xlu0 %7116
    %7118 = vrot.lane.b32.xlu0 %v6440, 108
    %v7119 = vpop.permute.xlu0 %7118
    %7120 = vrot.lane.b32.xlu0 %v6443, 108
    %v7121 = vpop.permute.xlu0 %7120
    %7122 = vrot.lane.b32.xlu0 %v6448, 108
    %v7123 = vpop.permute.xlu0 %7122
    %7124 = vrot.lane.b32.xlu0 %v6451, 108
    %v7125 = vpop.permute.xlu0 %7124
    %v7142 = vrot.slane %v7095, 1
    %v7143 = vrot.slane %v7097, 1
    %v7144 = vrot.slane %v7099, 1
    %v7145 = vrot.slane %v7101, 1
    %v7146 = vrot.slane %v7103, 1
    %v7147 = vrot.slane %v7105, 1
    %v7148 = vrot.slane %v7107, 1
    %v7149 = vrot.slane %v7109, 1
    %v7150 = vrot.slane %v7111, 1
    %v7151 = vrot.slane %v7113, 1
    %v7152 = vrot.slane %v7115, 1
    %v7153 = vrot.slane %v7117, 1
    %v7154 = vrot.slane %v7119, 1
    %v7155 = vrot.slane %v7121, 1
    %v7156 = vrot.slane %v7123, 1
    %v7157 = vrot.slane %v7125, 1
    %v7158 = vsel %vm974, %v7156, %v7157
    %v7159 = vsel %vm974, %v7155, %v7156
    %v7160 = vsel %vm974, %v7154, %v7155
    %v7161 = vsel %vm974, %v7153, %v7154
    %v7162 = vsel %vm974, %v7152, %v7153
    %v7163 = vsel %vm974, %v7151, %v7152
    %v7164 = vsel %vm974, %v7150, %v7151
    %v7165 = vsel %vm974, %v7149, %v7150
    %v7166 = vsel %vm974, %v7148, %v7149
    %v7167 = vsel %vm974, %v7147, %v7148
    %v7168 = vsel %vm974, %v7146, %v7147
    %v7169 = vsel %vm974, %v7145, %v7146
    %v7170 = vsel %vm974, %v7144, %v7145
    %v7171 = vsel %vm974, %v7143, %v7144
    %v7172 = vsel %vm974, %v7142, %v7143
    %v7173 = vsel %vm974, %v7157, %v7142
    %v7174 = vmul.f32 %v7172, %v1473
    %v7175 = vmul.f32 %v7171, %v1477
    %v7176 = vmul.f32 %v7170, %v1481
    %v7177 = vmul.f32 %v7169, %v1485
    %v7178 = vmul.f32 %v7168, %v1489
    %v7179 = vmul.f32 %v7167, %v1493
    %v7180 = vmul.f32 %v7166, %v1497
    %v7181 = vmul.f32 %v7165, %v1501
    %v7182 = vmul.f32 %v7164, %v1505
    %v7183 = vmul.f32 %v7163, %v1509
    %v7184 = vmul.f32 %v7162, %v1513
    %v7185 = vmul.f32 %v7161, %v1517
    %v7186 = vmul.f32 %v7160, %v1521
    %v7187 = vmul.f32 %v7159, %v1525
    %v7188 = vmul.f32 %v7158, %v1529
    %v7189 = vmul.f32 %v7173, %v1533
    %7206 = vrot.lane.b32.xlu0 %v7174, 16
    %v7207 = vpop.permute.xlu0 %7206
    %7208 = vrot.lane.b32.xlu0 %v7175, 16
    %v7209 = vpop.permute.xlu0 %7208
    %7210 = vrot.lane.b32.xlu0 %v7176, 16
    %v7211 = vpop.permute.xlu0 %7210
    %7212 = vrot.lane.b32.xlu0 %v7177, 16
    %v7213 = vpop.permute.xlu0 %7212
    %7214 = vrot.lane.b32.xlu0 %v7178, 16
    %v7215 = vpop.permute.xlu0 %7214
    %7216 = vrot.lane.b32.xlu0 %v7179, 16
    %v7217 = vpop.permute.xlu0 %7216
    %7218 = vrot.lane.b32.xlu0 %v7180, 16
    %v7219 = vpop.permute.xlu0 %7218
    %7220 = vrot.lane.b32.xlu0 %v7181, 16
    %v7221 = vpop.permute.xlu0 %7220
    %7222 = vrot.lane.b32.xlu0 %v7182, 16
    %v7223 = vpop.permute.xlu0 %7222
    %7224 = vrot.lane.b32.xlu0 %v7183, 16
    %v7225 = vpop.permute.xlu0 %7224
    %7226 = vrot.lane.b32.xlu0 %v7184, 16
    %v7227 = vpop.permute.xlu0 %7226
    %7228 = vrot.lane.b32.xlu0 %v7185, 16
    %v7229 = vpop.permute.xlu0 %7228
    %7230 = vrot.lane.b32.xlu0 %v7186, 16
    %v7231 = vpop.permute.xlu0 %7230
    %7232 = vrot.lane.b32.xlu0 %v7187, 16
    %v7233 = vpop.permute.xlu0 %7232
    %7234 = vrot.lane.b32.xlu0 %v7188, 16
    %v7235 = vpop.permute.xlu0 %7234
    %7236 = vrot.lane.b32.xlu0 %v7189, 16
    %v7237 = vpop.permute.xlu0 %7236
    %v7254 = vadd.f32 %v7078, %v7207
    %v7255 = vadd.f32 %v7079, %v7209
    %v7256 = vadd.f32 %v7080, %v7211
    %v7257 = vadd.f32 %v7081, %v7213
    %v7258 = vadd.f32 %v7082, %v7215
    %v7259 = vadd.f32 %v7083, %v7217
    %v7260 = vadd.f32 %v7084, %v7219
    %v7261 = vadd.f32 %v7085, %v7221
    %v7262 = vadd.f32 %v7086, %v7223
    %v7263 = vadd.f32 %v7087, %v7225
    %v7264 = vadd.f32 %v7088, %v7227
    %v7265 = vadd.f32 %v7089, %v7229
    %v7266 = vadd.f32 %v7090, %v7231
    %v7267 = vadd.f32 %v7091, %v7233
    %v7268 = vadd.f32 %v7092, %v7235
    %v7269 = vadd.f32 %v7093, %v7237
    %7270 = vrot.lane.b32.xlu0 %v6392, 104
    %v7271 = vpop.permute.xlu0 %7270
    %7272 = vrot.lane.b32.xlu0 %v6395, 104
    %v7273 = vpop.permute.xlu0 %7272
    %7274 = vrot.lane.b32.xlu0 %v6400, 104
    %v7275 = vpop.permute.xlu0 %7274
    %7276 = vrot.lane.b32.xlu0 %v6403, 104
    %v7277 = vpop.permute.xlu0 %7276
    %7278 = vrot.lane.b32.xlu0 %v6408, 104
    %v7279 = vpop.permute.xlu0 %7278
    %7280 = vrot.lane.b32.xlu0 %v6411, 104
    %v7281 = vpop.permute.xlu0 %7280
    %7282 = vrot.lane.b32.xlu0 %v6416, 104
    %v7283 = vpop.permute.xlu0 %7282
    %7284 = vrot.lane.b32.xlu0 %v6419, 104
    %v7285 = vpop.permute.xlu0 %7284
    %7286 = vrot.lane.b32.xlu0 %v6424, 104
    %v7287 = vpop.permute.xlu0 %7286
    %7288 = vrot.lane.b32.xlu0 %v6427, 104
    %v7289 = vpop.permute.xlu0 %7288
    %7290 = vrot.lane.b32.xlu0 %v6432, 104
    %v7291 = vpop.permute.xlu0 %7290
    %7292 = vrot.lane.b32.xlu0 %v6435, 104
    %v7293 = vpop.permute.xlu0 %7292
    %7294 = vrot.lane.b32.xlu0 %v6440, 104
    %v7295 = vpop.permute.xlu0 %7294
    %7296 = vrot.lane.b32.xlu0 %v6443, 104
    %v7297 = vpop.permute.xlu0 %7296
    %7298 = vrot.lane.b32.xlu0 %v6448, 104
    %v7299 = vpop.permute.xlu0 %7298
    %7300 = vrot.lane.b32.xlu0 %v6451, 104
    %v7301 = vpop.permute.xlu0 %7300
    %v7318 = vrot.slane %v7271, 7
    %v7319 = vrot.slane %v7273, 7
    %v7320 = vrot.slane %v7275, 7
    %v7321 = vrot.slane %v7277, 7
    %v7322 = vrot.slane %v7279, 7
    %v7323 = vrot.slane %v7281, 7
    %v7324 = vrot.slane %v7283, 7
    %v7325 = vrot.slane %v7285, 7
    %v7326 = vrot.slane %v7287, 7
    %v7327 = vrot.slane %v7289, 7
    %v7328 = vrot.slane %v7291, 7
    %v7329 = vrot.slane %v7293, 7
    %v7330 = vrot.slane %v7295, 7
    %v7331 = vrot.slane %v7297, 7
    %v7332 = vrot.slane %v7299, 7
    %v7333 = vrot.slane %v7301, 7
    %v7334 = vsel %vm493, %v7332, %v7333
    %v7335 = vsel %vm493, %v7331, %v7332
    %v7336 = vsel %vm493, %v7330, %v7331
    %v7337 = vsel %vm493, %v7329, %v7330
    %v7338 = vsel %vm493, %v7328, %v7329
    %v7339 = vsel %vm493, %v7327, %v7328
    %v7340 = vsel %vm493, %v7326, %v7327
    %v7341 = vsel %vm493, %v7325, %v7326
    %v7342 = vsel %vm493, %v7324, %v7325
    %v7343 = vsel %vm493, %v7323, %v7324
    %v7344 = vsel %vm493, %v7322, %v7323
    %v7345 = vsel %vm493, %v7321, %v7322
    %v7346 = vsel %vm493, %v7320, %v7321
    %v7347 = vsel %vm493, %v7319, %v7320
    %v7348 = vsel %vm493, %v7318, %v7319
    %v7349 = vsel %vm493, %v7333, %v7318
    %v7350 = vmul.f32 %v7348, %v1713
    %v7351 = vmul.f32 %v7347, %v1717
    %v7352 = vmul.f32 %v7346, %v1721
    %v7353 = vmul.f32 %v7345, %v1725
    %v7354 = vmul.f32 %v7344, %v1729
    %v7355 = vmul.f32 %v7343, %v1733
    %v7356 = vmul.f32 %v7342, %v1737
    %v7357 = vmul.f32 %v7341, %v1741
    %v7358 = vmul.f32 %v7340, %v1745
    %v7359 = vmul.f32 %v7339, %v1749
    %v7360 = vmul.f32 %v7338, %v1753
    %v7361 = vmul.f32 %v7337, %v1757
    %v7362 = vmul.f32 %v7336, %v1761
    %v7363 = vmul.f32 %v7335, %v1765
    %v7364 = vmul.f32 %v7334, %v1769
    %v7365 = vmul.f32 %v7349, %v1773
    %7382 = vrot.lane.b32.xlu0 %v7350, 16
    %v7383 = vpop.permute.xlu0 %7382
    %7384 = vrot.lane.b32.xlu0 %v7351, 16
    %v7385 = vpop.permute.xlu0 %7384
    %7386 = vrot.lane.b32.xlu0 %v7352, 16
    %v7387 = vpop.permute.xlu0 %7386
    %7388 = vrot.lane.b32.xlu0 %v7353, 16
    %v7389 = vpop.permute.xlu0 %7388
    %7390 = vrot.lane.b32.xlu0 %v7354, 16
    %v7391 = vpop.permute.xlu0 %7390
    %7392 = vrot.lane.b32.xlu0 %v7355, 16
    %v7393 = vpop.permute.xlu0 %7392
    %7394 = vrot.lane.b32.xlu0 %v7356, 16
    %v7395 = vpop.permute.xlu0 %7394
    %7396 = vrot.lane.b32.xlu0 %v7357, 16
    %v7397 = vpop.permute.xlu0 %7396
    %7398 = vrot.lane.b32.xlu0 %v7358, 16
    %v7399 = vpop.permute.xlu0 %7398
    %7400 = vrot.lane.b32.xlu0 %v7359, 16
    %v7401 = vpop.permute.xlu0 %7400
    %7402 = vrot.lane.b32.xlu0 %v7360, 16
    %v7403 = vpop.permute.xlu0 %7402
    %7404 = vrot.lane.b32.xlu0 %v7361, 16
    %v7405 = vpop.permute.xlu0 %7404
    %7406 = vrot.lane.b32.xlu0 %v7362, 16
    %v7407 = vpop.permute.xlu0 %7406
    %7408 = vrot.lane.b32.xlu0 %v7363, 16
    %v7409 = vpop.permute.xlu0 %7408
    %7410 = vrot.lane.b32.xlu0 %v7364, 16
    %v7411 = vpop.permute.xlu0 %7410
    %7412 = vrot.lane.b32.xlu0 %v7365, 16
    %v7413 = vpop.permute.xlu0 %7412
    %v7430 = vadd.f32 %v7254, %v7383
    %v7431 = vadd.f32 %v7255, %v7385
    %v7432 = vadd.f32 %v7256, %v7387
    %v7433 = vadd.f32 %v7257, %v7389
    %v7434 = vadd.f32 %v7258, %v7391
    %v7435 = vadd.f32 %v7259, %v7393
    %v7436 = vadd.f32 %v7260, %v7395
    %v7437 = vadd.f32 %v7261, %v7397
    %v7438 = vadd.f32 %v7262, %v7399
    %v7439 = vadd.f32 %v7263, %v7401
    %v7440 = vadd.f32 %v7264, %v7403
    %v7441 = vadd.f32 %v7265, %v7405
    %v7442 = vadd.f32 %v7266, %v7407
    %v7443 = vadd.f32 %v7267, %v7409
    %v7444 = vadd.f32 %v7268, %v7411
    %v7445 = vadd.f32 %v7269, %v7413
    %7446 = vrot.lane.b32.xlu0 %v6392, 100
    %v7447 = vpop.permute.xlu0 %7446
    %7448 = vrot.lane.b32.xlu0 %v6395, 100
    %v7449 = vpop.permute.xlu0 %7448
    %7450 = vrot.lane.b32.xlu0 %v6400, 100
    %v7451 = vpop.permute.xlu0 %7450
    %7452 = vrot.lane.b32.xlu0 %v6403, 100
    %v7453 = vpop.permute.xlu0 %7452
    %7454 = vrot.lane.b32.xlu0 %v6408, 100
    %v7455 = vpop.permute.xlu0 %7454
    %7456 = vrot.lane.b32.xlu0 %v6411, 100
    %v7457 = vpop.permute.xlu0 %7456
    %7458 = vrot.lane.b32.xlu0 %v6416, 100
    %v7459 = vpop.permute.xlu0 %7458
    %7460 = vrot.lane.b32.xlu0 %v6419, 100
    %v7461 = vpop.permute.xlu0 %7460
    %7462 = vrot.lane.b32.xlu0 %v6424, 100
    %v7463 = vpop.permute.xlu0 %7462
    %7464 = vrot.lane.b32.xlu0 %v6427, 100
    %v7465 = vpop.permute.xlu0 %7464
    %7466 = vrot.lane.b32.xlu0 %v6432, 100
    %v7467 = vpop.permute.xlu0 %7466
    %7468 = vrot.lane.b32.xlu0 %v6435, 100
    %v7469 = vpop.permute.xlu0 %7468
    %7470 = vrot.lane.b32.xlu0 %v6440, 100
    %v7471 = vpop.permute.xlu0 %7470
    %7472 = vrot.lane.b32.xlu0 %v6443, 100
    %v7473 = vpop.permute.xlu0 %7472
    %7474 = vrot.lane.b32.xlu0 %v6448, 100
    %v7475 = vpop.permute.xlu0 %7474
    %7476 = vrot.lane.b32.xlu0 %v6451, 100
    %v7477 = vpop.permute.xlu0 %7476
    %v7494 = vmul.f32 %v7449, %v1921
    %v7495 = vmul.f32 %v7451, %v1925
    %v7496 = vmul.f32 %v7453, %v1929
    %v7497 = vmul.f32 %v7455, %v1933
    %v7498 = vmul.f32 %v7457, %v1937
    %v7499 = vmul.f32 %v7459, %v1941
    %v7500 = vmul.f32 %v7461, %v1945
    %v7501 = vmul.f32 %v7463, %v1949
    %v7502 = vmul.f32 %v7465, %v1953
    %v7503 = vmul.f32 %v7467, %v1957
    %v7504 = vmul.f32 %v7469, %v1961
    %v7505 = vmul.f32 %v7471, %v1965
    %v7506 = vmul.f32 %v7473, %v1969
    %v7507 = vmul.f32 %v7475, %v1973
    %v7508 = vmul.f32 %v7477, %v1977
    %v7509 = vmul.f32 %v7447, %v1981
    %7526 = vrot.lane.b32.xlu0 %v7494, 16
    %v7527 = vpop.permute.xlu0 %7526
    %7528 = vrot.lane.b32.xlu0 %v7495, 16
    %v7529 = vpop.permute.xlu0 %7528
    %7530 = vrot.lane.b32.xlu0 %v7496, 16
    %v7531 = vpop.permute.xlu0 %7530
    %7532 = vrot.lane.b32.xlu0 %v7497, 16
    %v7533 = vpop.permute.xlu0 %7532
    %7534 = vrot.lane.b32.xlu0 %v7498, 16
    %v7535 = vpop.permute.xlu0 %7534
    %7536 = vrot.lane.b32.xlu0 %v7499, 16
    %v7537 = vpop.permute.xlu0 %7536
    %7538 = vrot.lane.b32.xlu0 %v7500, 16
    %v7539 = vpop.permute.xlu0 %7538
    %7540 = vrot.lane.b32.xlu0 %v7501, 16
    %v7541 = vpop.permute.xlu0 %7540
    %7542 = vrot.lane.b32.xlu0 %v7502, 16
    %v7543 = vpop.permute.xlu0 %7542
    %7544 = vrot.lane.b32.xlu0 %v7503, 16
    %v7545 = vpop.permute.xlu0 %7544
    %7546 = vrot.lane.b32.xlu0 %v7504, 16
    %v7547 = vpop.permute.xlu0 %7546
    %7548 = vrot.lane.b32.xlu0 %v7505, 16
    %v7549 = vpop.permute.xlu0 %7548
    %7550 = vrot.lane.b32.xlu0 %v7506, 16
    %v7551 = vpop.permute.xlu0 %7550
    %7552 = vrot.lane.b32.xlu0 %v7507, 16
    %v7553 = vpop.permute.xlu0 %7552
    %7554 = vrot.lane.b32.xlu0 %v7508, 16
    %v7555 = vpop.permute.xlu0 %7554
    %7556 = vrot.lane.b32.xlu0 %v7509, 16
    %v7557 = vpop.permute.xlu0 %7556
    %v7574 = vadd.f32 %v7430, %v7527
    %v7575 = vadd.f32 %v7431, %v7529
    %v7576 = vadd.f32 %v7432, %v7531
    %v7577 = vadd.f32 %v7433, %v7533
    %v7578 = vadd.f32 %v7434, %v7535
    %v7579 = vadd.f32 %v7435, %v7537
    %v7580 = vadd.f32 %v7436, %v7539
    %v7581 = vadd.f32 %v7437, %v7541
    %v7582 = vadd.f32 %v7438, %v7543
    %v7583 = vadd.f32 %v7439, %v7545
    %v7584 = vadd.f32 %v7440, %v7547
    %v7585 = vadd.f32 %v7441, %v7549
    %v7586 = vadd.f32 %v7442, %v7551
    %v7587 = vadd.f32 %v7443, %v7553
    %v7588 = vadd.f32 %v7444, %v7555
    %v7589 = vadd.f32 %v7445, %v7557
    %7590 = vrot.lane.b32.xlu0 %v6392, 96
    %v7591 = vpop.permute.xlu0 %7590
    %7592 = vrot.lane.b32.xlu0 %v6395, 96
    %v7593 = vpop.permute.xlu0 %7592
    %7594 = vrot.lane.b32.xlu0 %v6400, 96
    %v7595 = vpop.permute.xlu0 %7594
    %7596 = vrot.lane.b32.xlu0 %v6403, 96
    %v7597 = vpop.permute.xlu0 %7596
    %7598 = vrot.lane.b32.xlu0 %v6408, 96
    %v7599 = vpop.permute.xlu0 %7598
    %7600 = vrot.lane.b32.xlu0 %v6411, 96
    %v7601 = vpop.permute.xlu0 %7600
    %7602 = vrot.lane.b32.xlu0 %v6416, 96
    %v7603 = vpop.permute.xlu0 %7602
    %7604 = vrot.lane.b32.xlu0 %v6419, 96
    %v7605 = vpop.permute.xlu0 %7604
    %7606 = vrot.lane.b32.xlu0 %v6424, 96
    %v7607 = vpop.permute.xlu0 %7606
    %7608 = vrot.lane.b32.xlu0 %v6427, 96
    %v7609 = vpop.permute.xlu0 %7608
    %7610 = vrot.lane.b32.xlu0 %v6432, 96
    %v7611 = vpop.permute.xlu0 %7610
    %7612 = vrot.lane.b32.xlu0 %v6435, 96
    %v7613 = vpop.permute.xlu0 %7612
    %7614 = vrot.lane.b32.xlu0 %v6440, 96
    %v7615 = vpop.permute.xlu0 %7614
    %7616 = vrot.lane.b32.xlu0 %v6443, 96
    %v7617 = vpop.permute.xlu0 %7616
    %7618 = vrot.lane.b32.xlu0 %v6448, 96
    %v7619 = vpop.permute.xlu0 %7618
    %7620 = vrot.lane.b32.xlu0 %v6451, 96
    %v7621 = vpop.permute.xlu0 %7620
    %v7638 = vrot.slane %v7591, 1
    %v7639 = vrot.slane %v7593, 1
    %v7640 = vrot.slane %v7595, 1
    %v7641 = vrot.slane %v7597, 1
    %v7642 = vrot.slane %v7599, 1
    %v7643 = vrot.slane %v7601, 1
    %v7644 = vrot.slane %v7603, 1
    %v7645 = vrot.slane %v7605, 1
    %v7646 = vrot.slane %v7607, 1
    %v7647 = vrot.slane %v7609, 1
    %v7648 = vrot.slane %v7611, 1
    %v7649 = vrot.slane %v7613, 1
    %v7650 = vrot.slane %v7615, 1
    %v7651 = vrot.slane %v7617, 1
    %v7652 = vrot.slane %v7619, 1
    %v7653 = vrot.slane %v7621, 1
    %v7654 = vsel %vm974, %v7652, %v7653
    %v7655 = vsel %vm974, %v7651, %v7652
    %v7656 = vsel %vm974, %v7650, %v7651
    %v7657 = vsel %vm974, %v7649, %v7650
    %v7658 = vsel %vm974, %v7648, %v7649
    %v7659 = vsel %vm974, %v7647, %v7648
    %v7660 = vsel %vm974, %v7646, %v7647
    %v7661 = vsel %vm974, %v7645, %v7646
    %v7662 = vsel %vm974, %v7644, %v7645
    %v7663 = vsel %vm974, %v7643, %v7644
    %v7664 = vsel %vm974, %v7642, %v7643
    %v7665 = vsel %vm974, %v7641, %v7642
    %v7666 = vsel %vm974, %v7640, %v7641
    %v7667 = vsel %vm974, %v7639, %v7640
    %v7668 = vsel %vm974, %v7638, %v7639
    %v7669 = vsel %vm974, %v7653, %v7638
    %v7670 = vmul.f32 %v7667, %v2161
    %v7671 = vmul.f32 %v7666, %v2165
    %v7672 = vmul.f32 %v7665, %v2169
    %v7673 = vmul.f32 %v7664, %v2173
    %v7674 = vmul.f32 %v7663, %v2177
    %v7675 = vmul.f32 %v7662, %v2181
    %v7676 = vmul.f32 %v7661, %v2185
    %v7677 = vmul.f32 %v7660, %v2189
    %v7678 = vmul.f32 %v7659, %v2193
    %v7679 = vmul.f32 %v7658, %v2197
    %v7680 = vmul.f32 %v7657, %v2201
    %v7681 = vmul.f32 %v7656, %v2205
    %v7682 = vmul.f32 %v7655, %v2209
    %v7683 = vmul.f32 %v7654, %v2213
    %v7684 = vmul.f32 %v7669, %v2217
    %v7685 = vmul.f32 %v7668, %v2221
    %7702 = vrot.lane.b32.xlu0 %v7670, 16
    %v7703 = vpop.permute.xlu0 %7702
    %7704 = vrot.lane.b32.xlu0 %v7671, 16
    %v7705 = vpop.permute.xlu0 %7704
    %7706 = vrot.lane.b32.xlu0 %v7672, 16
    %v7707 = vpop.permute.xlu0 %7706
    %7708 = vrot.lane.b32.xlu0 %v7673, 16
    %v7709 = vpop.permute.xlu0 %7708
    %7710 = vrot.lane.b32.xlu0 %v7674, 16
    %v7711 = vpop.permute.xlu0 %7710
    %7712 = vrot.lane.b32.xlu0 %v7675, 16
    %v7713 = vpop.permute.xlu0 %7712
    %7714 = vrot.lane.b32.xlu0 %v7676, 16
    %v7715 = vpop.permute.xlu0 %7714
    %7716 = vrot.lane.b32.xlu0 %v7677, 16
    %v7717 = vpop.permute.xlu0 %7716
    %7718 = vrot.lane.b32.xlu0 %v7678, 16
    %v7719 = vpop.permute.xlu0 %7718
    %7720 = vrot.lane.b32.xlu0 %v7679, 16
    %v7721 = vpop.permute.xlu0 %7720
    %7722 = vrot.lane.b32.xlu0 %v7680, 16
    %v7723 = vpop.permute.xlu0 %7722
    %7724 = vrot.lane.b32.xlu0 %v7681, 16
    %v7725 = vpop.permute.xlu0 %7724
    %7726 = vrot.lane.b32.xlu0 %v7682, 16
    %v7727 = vpop.permute.xlu0 %7726
    %7728 = vrot.lane.b32.xlu0 %v7683, 16
    %v7729 = vpop.permute.xlu0 %7728
    %7730 = vrot.lane.b32.xlu0 %v7684, 16
    %v7731 = vpop.permute.xlu0 %7730
    %7732 = vrot.lane.b32.xlu0 %v7685, 16
    %v7733 = vpop.permute.xlu0 %7732
    %v7750 = vadd.f32 %v7574, %v7703
    %v7751 = vadd.f32 %v7575, %v7705
    %v7752 = vadd.f32 %v7576, %v7707
    %v7753 = vadd.f32 %v7577, %v7709
    %v7754 = vadd.f32 %v7578, %v7711
    %v7755 = vadd.f32 %v7579, %v7713
    %v7756 = vadd.f32 %v7580, %v7715
    %v7757 = vadd.f32 %v7581, %v7717
    %v7758 = vadd.f32 %v7582, %v7719
    %v7759 = vadd.f32 %v7583, %v7721
    %v7760 = vadd.f32 %v7584, %v7723
    %v7761 = vadd.f32 %v7585, %v7725
    %v7762 = vadd.f32 %v7586, %v7727
    %v7763 = vadd.f32 %v7587, %v7729
    %v7764 = vadd.f32 %v7588, %v7731
    %v7765 = vadd.f32 %v7589, %v7733
    %v7766 = vld [vmem:[%s63] sm:$0x1]
    %v7768 = vlaneseq
    %v7769 = vshrl.u32 %v7768, 7
    %v7770 = vsub.s32 0, %v7769
    %v7771 = vrot.slane %v7766, %v7770
    %7772 = vrot.lane.b32.xlu0 %v7771, 16
    %v7773 = vpop.permute.xlu0 %7772
    %v7775 = vadd.f32 %v7750, %v7773
    %v7776 = vadd.f32 %v7751, %v7773
    %v7777 = vadd.f32 %v7752, %v7773
    %v7778 = vadd.f32 %v7753, %v7773
    %v7779 = vadd.f32 %v7754, %v7773
    %v7780 = vadd.f32 %v7755, %v7773
    %v7781 = vadd.f32 %v7756, %v7773
    %v7782 = vadd.f32 %v7757, %v7773
    %v7783 = vadd.f32 %v7758, %v7773
    %v7784 = vadd.f32 %v7759, %v7773
    %v7785 = vadd.f32 %v7760, %v7773
    %v7786 = vadd.f32 %v7761, %v7773
    %v7787 = vadd.f32 %v7762, %v7773
    %v7788 = vadd.f32 %v7763, %v7773
    %v7789 = vadd.f32 %v7764, %v7773
    %v7790 = vadd.f32 %v7765, %v7773
    %v7791 = vmax.f32 %v7775, 0.0
    %v7792 = vmax.f32 %v7776, 0.0
    %v7793 = vmax.f32 %v7777, 0.0
    %v7794 = vmax.f32 %v7778, 0.0
    %v7795 = vmax.f32 %v7779, 0.0
    %v7796 = vmax.f32 %v7780, 0.0
    %v7797 = vmax.f32 %v7781, 0.0
    %v7798 = vmax.f32 %v7782, 0.0
    %v7799 = vmax.f32 %v7783, 0.0
    %v7800 = vmax.f32 %v7784, 0.0
    %v7801 = vmax.f32 %v7785, 0.0
    %v7802 = vmax.f32 %v7786, 0.0
    %v7803 = vmax.f32 %v7787, 0.0
    %v7804 = vmax.f32 %v7788, 0.0
    %v7805 = vmax.f32 %v7789, 0.0
    %v7806 = vmax.f32 %v7790, 0.0
    %v7807 = vpack.c.bf16 %v7792, %v7791
    %v7808 = vpack.c.bf16 %v7794, %v7793
    %v7809 = vpack.c.bf16 %v7796, %v7795
    %v7810 = vpack.c.bf16 %v7798, %v7797
    %v7811 = vpack.c.bf16 %v7800, %v7799
    %v7812 = vpack.c.bf16 %v7802, %v7801
    %v7813 = vpack.c.bf16 %v7804, %v7803
    %v7814 = vpack.c.bf16 %v7806, %v7805
    %v7815 = vld [vmem:[%s65] sm:$0x3]
    %v7816 = vld [vmem:[%s67] sm:$0x1]
    %v7818 = vlaneseq
    %v7819 = vshrl.u32 %v7818, 7
    %v7820 = vsub.s32 0, %v7819
    %v7821 = vrot.slane %v7816, %v7820
    %7831 = vrot.lane.b32.xlu0 %v7807, 112
    %v7832 = vpop.permute.xlu0 %7831
    %7833 = vrot.lane.b32.xlu0 %v7808, 112
    %v7834 = vpop.permute.xlu0 %7833
    %7835 = vrot.lane.b32.xlu0 %v7809, 112
    %v7836 = vpop.permute.xlu0 %7835
    %7837 = vrot.lane.b32.xlu0 %v7810, 112
    %v7838 = vpop.permute.xlu0 %7837
    %7839 = vrot.lane.b32.xlu0 %v7811, 112
    %v7840 = vpop.permute.xlu0 %7839
    %7841 = vrot.lane.b32.xlu0 %v7812, 112
    %v7842 = vpop.permute.xlu0 %7841
    %7843 = vrot.lane.b32.xlu0 %v7813, 112
    %v7844 = vpop.permute.xlu0 %7843
    %7845 = vrot.lane.b32.xlu0 %v7814, 112
    %v7846 = vpop.permute.xlu0 %7845
    %v7848 = vsel %vm349, %v7832, 0
    %v7851 = vsel %vm349, %v7834, 0
    %v7854 = vsel %vm349, %v7836, 0
    %v7857 = vsel %vm349, %v7838, 0
    %v7860 = vsel %vm349, %v7840, 0
    %v7863 = vsel %vm349, %v7842, 0
    %v7866 = vsel %vm349, %v7844, 0
    %v7869 = vsel %vm349, %v7846, 0
    %v7872 = vsel %vm374, %v7815, 0
    %7874 = vmatprep.subr.bf16.mxu0 0
    %7875 = vmatpush1.bf16.msra.mxu0 0
    %7876 = vmatprep.subr.bf16.mxu0 0
    %7877 = vmatpush1.bf16.msra.mxu0 0
    %7878 = vmatprep.subr.bf16.mxu0 0
    %7879 = vmatpush1.bf16.msra.mxu0 0
    %7880 = vmatprep.subr.bf16.mxu0 0
    %7881 = vmatpush1.bf16.msra.mxu0 0
    %7882 = vmatprep.subr.bf16.mxu0 0
    %7883 = vmatpush1.bf16.msra.mxu0 0
    %7884 = vmatprep.subr.bf16.mxu0 0
    %7885 = vmatpush1.bf16.msra.mxu0 0
    %7886 = vmatprep.subr.bf16.mxu0 0
    %7887 = vmatpush1.bf16.msra.mxu0 0
    %7888 = vmatprep.subr.bf16.mxu0 0
    %7889 = vmatpush1.bf16.msra.mxu0 %v7872
    %7890 = vmatprep.subr.bf16.mxu0 0
    %7891 = vmatpush2.bf16.msra.mxu0 0
    %7892 = vmatprep.subr.bf16.mxu0 0
    %7893 = vmatpush2.bf16.msra.mxu0 0
    %7894 = vmatprep.subr.bf16.mxu0 0
    %7895 = vmatpush2.bf16.msra.mxu0 0
    %7896 = vmatprep.subr.bf16.mxu0 0
    %7897 = vmatpush2.bf16.msra.mxu0 0
    %7898 = vmatprep.subr.bf16.mxu0 0
    %7899 = vmatpush2.bf16.msra.mxu0 0
    %7900 = vmatprep.subr.bf16.mxu0 0
    %7901 = vmatpush2.bf16.msra.mxu0 0
    %7902 = vmatprep.subr.bf16.mxu0 0
    %7903 = vmatpush2.bf16.msra.mxu0 0
    %7904 = vmatprep.subr.bf16.mxu0 0
    %7905 = vmatpush2.bf16.msra.mxu0 0
    %7906 = vmatprep.mubr.bf16.mxu0 0
    %7907 = vmatmul.mubr.bf16.gmra.mxu0 %v7848
    %v7908 = vpop.f32.mrf.mxu0
    %v7909 = vadd.f32 %v7821, %v7908
    %v7910 = vpop.f32.mrf.mxu0
    %v7911 = vpop.f32.mrf.mxu0
    %v7912 = vadd.f32 %v7821, %v7911
    %v7913 = vpop.f32.mrf.mxu0
    %7914 = vmatprep.mubr.bf16.mxu0 0
    %7915 = vmatmul.mubr.bf16.gmra.mxu0 %v7851
    %v7916 = vpop.f32.mrf.mxu0
    %v7917 = vadd.f32 %v7821, %v7916
    %v7918 = vpop.f32.mrf.mxu0
    %v7919 = vpop.f32.mrf.mxu0
    %v7920 = vadd.f32 %v7821, %v7919
    %v7921 = vpop.f32.mrf.mxu0
    %7922 = vmatprep.mubr.bf16.mxu0 0
    %7923 = vmatmul.mubr.bf16.gmra.mxu0 %v7854
    %v7924 = vpop.f32.mrf.mxu0
    %v7925 = vadd.f32 %v7821, %v7924
    %v7926 = vpop.f32.mrf.mxu0
    %v7927 = vpop.f32.mrf.mxu0
    %v7928 = vadd.f32 %v7821, %v7927
    %v7929 = vpop.f32.mrf.mxu0
    %7930 = vmatprep.mubr.bf16.mxu0 0
    %7931 = vmatmul.mubr.bf16.gmra.mxu0 %v7857
    %v7932 = vpop.f32.mrf.mxu0
    %v7933 = vadd.f32 %v7821, %v7932
    %v7934 = vpop.f32.mrf.mxu0
    %v7935 = vpop.f32.mrf.mxu0
    %v7936 = vadd.f32 %v7821, %v7935
    %v7937 = vpop.f32.mrf.mxu0
    %7938 = vmatprep.mubr.bf16.mxu0 0
    %7939 = vmatmul.mubr.bf16.gmra.mxu0 %v7860
    %v7940 = vpop.f32.mrf.mxu0
    %v7941 = vadd.f32 %v7821, %v7940
    %v7942 = vpop.f32.mrf.mxu0
    %v7943 = vpop.f32.mrf.mxu0
    %v7944 = vadd.f32 %v7821, %v7943
    %v7945 = vpop.f32.mrf.mxu0
    %7946 = vmatprep.mubr.bf16.mxu0 0
    %7947 = vmatmul.mubr.bf16.gmra.mxu0 %v7863
    %v7948 = vpop.f32.mrf.mxu0
    %v7949 = vadd.f32 %v7821, %v7948
    %v7950 = vpop.f32.mrf.mxu0
    %v7951 = vpop.f32.mrf.mxu0
    %v7952 = vadd.f32 %v7821, %v7951
    %v7953 = vpop.f32.mrf.mxu0
    %7954 = vmatprep.mubr.bf16.mxu0 0
    %7955 = vmatmul.mubr.bf16.gmra.mxu0 %v7866
    %v7956 = vpop.f32.mrf.mxu0
    %v7957 = vadd.f32 %v7821, %v7956
    %v7958 = vpop.f32.mrf.mxu0
    %v7959 = vpop.f32.mrf.mxu0
    %v7960 = vadd.f32 %v7821, %v7959
    %v7961 = vpop.f32.mrf.mxu0
    %7962 = vmatprep.mubr.bf16.mxu0 0
    %7963 = vmatmul.mubr.bf16.gmra.mxu0 %v7869
    %v7964 = vpop.f32.mrf.mxu0
    %v7965 = vadd.f32 %v7821, %v7964
    %v7966 = vpop.f32.mrf.mxu0
    %v7967 = vpop.f32.mrf.mxu0
    %v7968 = vadd.f32 %v7821, %v7967
    %v7969 = vpop.f32.mrf.mxu0
    %7970 = vdwg.mxu0
    %v7971 = vadd.f32 %v7909, %v2540
    %v7972 = vadd.f32 %v7912, %v2541
    %v7973 = vadd.f32 %v7917, %v2542
    %v7974 = vadd.f32 %v7920, %v2543
    %v7975 = vadd.f32 %v7925, %v2544
    %v7976 = vadd.f32 %v7928, %v2545
    %v7977 = vadd.f32 %v7933, %v2546
    %v7978 = vadd.f32 %v7936, %v2547
    %v7979 = vadd.f32 %v7941, %v2548
    %v7980 = vadd.f32 %v7944, %v2549
    %v7981 = vadd.f32 %v7949, %v2550
    %v7982 = vadd.f32 %v7952, %v2551
    %v7983 = vadd.f32 %v7957, %v2552
    %v7984 = vadd.f32 %v7960, %v2553
    %v7985 = vadd.f32 %v7965, %v2554
    %v7986 = vadd.f32 %v7968, %v2555
    %v7987 = vmax.f32 %v7971, 0.0
    %v7988 = vmax.f32 %v7972, 0.0
    %v7989 = vmax.f32 %v7973, 0.0
    %v7990 = vmax.f32 %v7974, 0.0
    %v7991 = vmax.f32 %v7975, 0.0
    %v7992 = vmax.f32 %v7976, 0.0
    %v7993 = vmax.f32 %v7977, 0.0
    %v7994 = vmax.f32 %v7978, 0.0
    %v7995 = vmax.f32 %v7979, 0.0
    %v7996 = vmax.f32 %v7980, 0.0
    %v7997 = vmax.f32 %v7981, 0.0
    %v7998 = vmax.f32 %v7982, 0.0
    %v7999 = vmax.f32 %v7983, 0.0
    %v8000 = vmax.f32 %v7984, 0.0
    %v8001 = vmax.f32 %v7985, 0.0
    %v8002 = vmax.f32 %v7986, 0.0
    %8003 = vst.msk [vmem:[#allocation6] sm:$0xff] %vm202, %v7987
    %8004 = vst.msk [vmem:[#allocation6 + $0x8] sm:$0xff] %vm202, %v7988
    %8005 = vst.msk [vmem:[#allocation6 + $0x10] sm:$0xff] %vm202, %v7989
    %8006 = vst.msk [vmem:[#allocation6 + $0x18] sm:$0xff] %vm202, %v7990
    %8007 = vst.msk [vmem:[#allocation6 + $0x20] sm:$0xff] %vm202, %v7991
    %8008 = vst.msk [vmem:[#allocation6 + $0x28] sm:$0xff] %vm202, %v7992
    %8009 = vst.msk [vmem:[#allocation6 + $0x30] sm:$0xff] %vm202, %v7993
    %8010 = vst.msk [vmem:[#allocation6 + $0x38] sm:$0xff] %vm202, %v7994
    %8011 = vst.msk [vmem:[#allocation6 + $0x40] sm:$0xff] %vm202, %v7995
    %8012 = vst.msk [vmem:[#allocation6 + $0x48] sm:$0xff] %vm202, %v7996
    %8013 = vst.msk [vmem:[#allocation6 + $0x50] sm:$0xff] %vm202, %v7997
    %8014 = vst.msk [vmem:[#allocation6 + $0x58] sm:$0xff] %vm202, %v7998
    %8015 = vst.msk [vmem:[#allocation6 + $0x60] sm:$0xff] %vm202, %v7999
    %8016 = vst.msk [vmem:[#allocation6 + $0x68] sm:$0xff] %vm202, %v8000
    %8017 = vst.msk [vmem:[#allocation6 + $0x70] sm:$0xff] %vm202, %v8001
    %8018 = vst.msk [vmem:[#allocation6 + $0x78] sm:$0xff] %vm202, %v8002
    // Predicated region
    $region138: #{conv_trans_block_forward.1} parent=1 // pred_check
      _
    $region139: #{conv_trans_block_forward.1} parent=1 // pred_check_branch
      %8020 = sbr.rel (0) target = $region141
    $region140: #{conv_trans_block_forward.1} parent=1 // pred_region
      %s8022 = ssub.s32 2048, 2048
      %8023 = vsyncadd [#allocation7], %s8022
      %s8024 = sshll.u32 [#allocation6], 4
      %s8025 = int_to_ptr.vmem [resolvable:$true] %s8024
      %8030 = dma.vmem_to_hbm [thread:$0]  %s8025, 2048, %s69, [#allocation7], 128, 128, 8
    $region141: #{conv_trans_block_forward.1} parent=1 // pred_fallthru
      _
    // Predicated region
    $region142: #{conv_trans_block_forward.1} parent=1 // pred_check
      _
    $region143: #{conv_trans_block_forward.1} parent=1 // pred_check_branch
      %8032 = sbr.rel (0) target = $region145
    $region144: #{conv_trans_block_forward.1} parent=1 // pred_region
      _
    $region145: #{conv_trans_block_forward.1} parent=1 // pred_fallthru
      _
    // Predicated region
    $region146: #{conv_trans_block_forward.1} parent=1 // pred_check
      _
    $region147: #{conv_trans_block_forward.1} parent=1 // pred_check_branch
      %8034 = sbr.rel (0) target = $region149
    $region148: #{conv_trans_block_forward.1} parent=1 // pred_region
      %8035 = dma.done [#allocation7], 2048
    $region149: #{conv_trans_block_forward.1} parent=1 // pred_fallthru
      _
    // Predicated region
    $region150: #{conv_trans_block_forward.1} parent=1 // pred_check
      _
    $region151: #{conv_trans_block_forward.1} parent=1 // pred_check_branch
      %8037 = sbr.rel (0) target = $region153
    $region152: #{conv_trans_block_forward.1} parent=1 // pred_region
      _
    $region153: #{conv_trans_block_forward.1} parent=1 // pred_fallthru
      _
    %8038 = vsyncpa [#allocation7], 1

</llo_original>
